<compile_context>
chip_gen: v6e
topology: v6e:2x2x1
jax: 0.10.0
libtpu: 0.0.40
codegen_flags: <defaults>
</compile_context>

<pallas_src>
import functools

import jax
import jax.numpy as jnp
from jax.experimental import pallas as pl
from jax.experimental.pallas import tpu as pltpu


# ----------------------------------------------------------------------------
# Fused kernel: one batch image per grid step
# ----------------------------------------------------------------------------
def _gelayer_s2_kernel(x_ref, w1_ref, b1_ref, wsc_ref, bsc_ref,
                       wdw1_ref, bdw1_ref, wdw2_ref, bdw2_ref,
                       w2_ref, b2_ref, out_ref,
                       xq_ref, f1q_ref, f2p_ref, tk_ref,
                       *, cin, mid, cout, ho, wo):
    """Fully fused GELayerS2 forward for one image.

    x_ref  : (Ho, 2, Wo, 2*Cin) bf16 -- x[2a+u, 2b+v, c] lives at [a, u, b, v*Cin+c]
    out_ref: (1, Ho, Wo, Cout)  f32
    xq_ref / f1q_ref : (Ho+1, Wo+1, 4*Cin) bf16 padded "quad-layout" scratches
                       (quad block q=2u+v at [a,b] holds pad[2a+u, 2b+v, :])
    f2p_ref: (Ho+2, Wo+2, mid) bf16 padded dwconv1 output
    tk_ref : (Ho, Wo, 9*Cin)   bf16 im2col staging scratch
    """
    m = ho * wo
    f32, bf16 = jnp.float32, jnp.bfloat16

    # ---- padded quad-layout copy of x in VMEM (static slices only) ----------
    xq_ref[...] = jnp.zeros(xq_ref.shape, xq_ref.dtype)
    f1q_ref[...] = jnp.zeros(f1q_ref.shape, f1q_ref.dtype)
    for u in range(2):
        for v in range(2):
            q = 2 * u + v
            xq_ref[1 - u:1 - u + ho, 1 - v:1 - v + wo,
                   q * cin:(q + 1) * cin] = (
                x_ref[:, 1 - u, :, (1 - v) * cin:(2 - v) * cin])

    def build_taps(src_ref, r, s):
        # im2col: tk[a, b, (kh*3+kw)*Cin + c] = src_pad[2a+r+kh, 2b+s+kw, c]
        for kh in range(3):
            for kw in range(3):
                da, u = (r + kh) // 2, (r + kh) % 2
                db, v = (s + kw) // 2, (s + kw) % 2
                q = 2 * u + v
                t = kh * 3 + kw
                tk_ref[:, :, t * cin:(t + 1) * cin] = (
                    src_ref[da:da + ho, db:db + wo, q * cin:(q + 1) * cin])
        return tk_ref[...].reshape(m, 9 * cin)

    # ---- conv1 (3x3 s1 + BN + ReLU): one K=9*Cin MXU dot per output parity --
    # ---- shortcut (dw3x3 s2 + BN -> 1x1 + BN) reuses the (0,0)-parity taps --
    sc = None
    for r in range(2):
        for s in range(2):
            taps = build_taps(xq_ref, r, s)
            q1 = jnp.dot(taps, w1_ref[...], preferred_element_type=f32)
            q1 = jnp.maximum(q1 + b1_ref[...], 0.0)
            if r == 0 and s == 0:
                sc = jnp.dot(taps, wsc_ref[...], preferred_element_type=f32)
                sc = sc + bsc_ref[...]
            qb = 3 - 2 * r - s
            f1q_ref[r:r + ho, s:s + wo, qb * cin:(qb + 1) * cin] = (
                q1.astype(bf16).reshape(ho, wo, cin))

    # ---- dwconv1 (grouped 3x3 s2, Cin -> mid, + BN) as one sparse MXU dot ---
    taps = build_taps(f1q_ref, 0, 0)
    f2 = jnp.dot(taps, wdw1_ref[...], preferred_element_type=f32)
    f2 = f2 + bdw1_ref[...]
    f2p_ref[...] = jnp.zeros(f2p_ref.shape, f2p_ref.dtype)
    f2p_ref[1:ho + 1, 1:wo + 1, :] = f2.astype(bf16).reshape(ho, wo, mid)

    # ---- dwconv2 (depthwise 3x3 s1 + BN + ReLU) on the VPU ------------------
    acc = jnp.zeros((m, mid), f32)
    for kh in range(3):
        for kw in range(3):
            t = kh * 3 + kw
            tap = f2p_ref[kh:kh + ho, kw:kw + wo, :].reshape(m, mid)
            acc = acc + tap.astype(f32) * wdw2_ref[t:t + 1, :]
    acc = jnp.maximum(acc + bdw2_ref[...], 0.0)

    # ---- conv2 (1x1 + BN) -> + shortcut -> ReLU -----------------------------
    res = jnp.dot(acc.astype(bf16), w2_ref[...], preferred_element_type=f32)
    res = res + b2_ref[...] + sc
    out_ref[0] = jnp.maximum(res, 0.0).reshape(ho, wo, cout).astype(out_ref.dtype)


# ----------------------------------------------------------------------------
# pallas_call wrapper
# ----------------------------------------------------------------------------
def gelayer_s2(x_nchw, params):
    n, cin, h, w = x_nchw.shape
    assert h % 2 == 0 and w % 16 == 0, "kernel assumes even H and W % 16 == 0"
    ho, wo = h // 2, w // 2
    mid = params["dw1_b"].shape[-1]
    cout = params["conv2_b"].shape[-1]

    # NHWC + bf16; the (N,H,W,C)->(N*Ho,2,Wo,2C) reshape is layout-free
    # (it just exposes row/column parity statically -- no extra HBM traffic).
    x = jnp.transpose(x_nchw, (0, 2, 3, 1)).astype(jnp.bfloat16)
    x_r = x.reshape(n * ho, 2, wo, 2 * cin)

    kernel = functools.partial(
        _gelayer_s2_kernel, cin=cin, mid=mid, cout=cout, ho=ho, wo=wo)

    def cmap(shape):
        return pl.BlockSpec(shape, lambda i, _nd=len(shape): (0,) * _nd)

    out = pl.pallas_call(
        kernel,
        out_shape=jax.ShapeDtypeStruct((n, ho, wo, cout), jnp.float32),
        grid=(n,),
        in_specs=[
            pl.BlockSpec((ho, 2, wo, 2 * cin), lambda i: (i, 0, 0, 0)),
            cmap((9 * cin, cin)), cmap((1, cin)),      # conv1
            cmap((9 * cin, cout)), cmap((1, cout)),    # shortcut (composed)
            cmap((9 * cin, mid)), cmap((1, mid)),      # dwconv1 (expansion mm)
            cmap((9, mid)), cmap((1, mid)),            # dwconv2 (depthwise)
            cmap((mid, cout)), cmap((1, cout)),        # conv2 1x1
        ],
        out_specs=pl.BlockSpec((1, ho, wo, cout), lambda i: (i, 0, 0, 0)),
        scratch_shapes=[
            pltpu.VMEM((ho + 1, wo + 1, 4 * cin), jnp.bfloat16),   # xq
            pltpu.VMEM((ho + 1, wo + 1, 4 * cin), jnp.bfloat16),   # f1q
            pltpu.VMEM((ho + 2, wo + 2, mid), jnp.bfloat16),       # f2 padded
            pltpu.VMEM((ho, wo, 9 * cin), jnp.bfloat16),           # im2col
        ],
        compiler_params=pltpu.CompilerParams(
            dimension_semantics=("parallel",),
            vmem_limit_bytes=32 * 1024 * 1024),
    )(x_r, params["conv1_w"], params["conv1_b"],
      params["sc_w"], params["sc_b"],
      params["dw1_w"], params["dw1_b"],
      params["dw2_w"], params["dw2_b"],
      params["conv2_w"], params["conv2_b"])

    # TODO(synk): the NCHW transpose could be folded into the kernel's output
    # layout for large feature maps; kept as a single XLA op for robustness.
    return jnp.transpose(out, (0, 3, 1, 2))


# ----------------------------------------------------------------------------
# Parameters: raw PyTorch-layout init + BN folding / layout prep
# ----------------------------------------------------------------------------
def bn_fold(gamma, beta, mean, var, eps=1e-5):
    scale = gamma / jnp.sqrt(var + eps)
    return scale, beta - mean * scale


def _bn_params(key, c):
    k1, k2, k3, k4 = jax.random.split(key, 4)
    gamma = 1.0 + 0.1 * jax.random.normal(k1, (c,), jnp.float32)
    beta = 0.1 * jax.random.normal(k2, (c,), jnp.float32)
    mean = 0.1 * jax.random.normal(k3, (c,), jnp.float32)
    var = jax.random.uniform(k4, (c,), jnp.float32, minval=0.5, maxval=1.5)
    return (gamma, beta, mean, var)


def init_raw_params(key, in_chan, out_chan, exp_ratio=6):
    mid = in_chan * exp_ratio
    keys = jax.random.split(key, 12)

    def conv_w(k, shape):
        fan_in = shape[1] * shape[2] * shape[3]
        return jax.random.normal(k, shape, jnp.float32) / jnp.sqrt(fan_in)

    # PyTorch-layout weights: (Cout, Cin/groups, kh, kw)
    return {
        "exp": exp_ratio,
        "w_conv1": conv_w(keys[0], (in_chan, in_chan, 3, 3)),
        "w_dw1": conv_w(keys[1], (mid, 1, 3, 3)),
        "w_dw2": conv_w(keys[2], (mid, 1, 3, 3)),
        "w_conv2": conv_w(keys[3], (out_chan, mid, 1, 1)),
        "w_sc_dw": conv_w(keys[4], (in_chan, 1, 3, 3)),
        "w_sc_pw": conv_w(keys[5], (out_chan, in_chan, 1, 1)),
        "bn1": _bn_params(keys[6], in_chan),
        "bn_dw1": _bn_params(keys[7], mid),
        "bn_dw2": _bn_params(keys[8], mid),
        "bn2": _bn_params(keys[9], out_chan),
        "bn_sc1": _bn_params(keys[10], in_chan),
        "bn_sc2": _bn_params(keys[11], out_chan),
    }


def prepare_params(raw):
    """Fold eval-mode BN into weights; build tap-stacked matmul layouts."""
    # TODO(synk): BatchNorm folded with running stats (inference mode only).
    exp = raw["exp"]
    cin = raw["w_conv1"].shape[0]
    mid = cin * exp
    cout = raw["w_conv2"].shape[0]
    f32, bf16 = jnp.float32, jnp.bfloat16

    s1, b1 = bn_fold(*raw["bn1"])
    sdw1, bdw1 = bn_fold(*raw["bn_dw1"])
    sdw2, bdw2 = bn_fold(*raw["bn_dw2"])
    s2, b2 = bn_fold(*raw["bn2"])
    ssc1, bsc1 = bn_fold(*raw["bn_sc1"])
    ssc2, bsc2 = bn_fold(*raw["bn_sc2"])

    # conv1: (Cout,Cin,3,3) -> tap-stacked (9*Cin, Cout), BN scale folded.
    w1 = jnp.transpose(raw["w_conv1"], (2, 3, 1, 0)).reshape(9 * cin, cin) * s1

    # dwconv1 (groups=Cin, Cin->mid): channel expansion folded into a sparse
    # (9*Cin, mid) matmul weight (output channel m reads input channel m//exp).
    dw1 = jnp.transpose(raw["w_dw1"][:, 0], (1, 2, 0)).reshape(9, mid) * sdw1
    mask = (jnp.arange(mid)[None, :] // exp
            == jnp.arange(cin)[:, None]).astype(f32)            # (Cin, mid)
    wdw1 = (dw1[:, None, :] * mask[None]).reshape(9 * cin, mid)

    # dwconv2: true depthwise (VPU), per-tap (9, mid) weights, scale folded.
    wdw2 = jnp.transpose(raw["w_dw2"][:, 0], (1, 2, 0)).reshape(9, mid) * sdw2

    # conv2 1x1 as (mid, Cout), scale folded.
    w2 = raw["w_conv2"][:, :, 0, 0].T * s2

    # shortcut: dw3x3(s2)+BN -> 1x1+BN composed into ONE dense 3x3/s2 conv:
    #   W[tap, c, o] = wdw[c,tap]*ssc1[c]*wpw[o,c]*ssc2[o]
    #   b[o]         = ssc2[o]*sum_c bsc1[c]*wpw[o,c] + bsc2[o]
    scdw = jnp.transpose(raw["w_sc_dw"][:, 0], (1, 2, 0)).reshape(9, cin)
    scpw = raw["w_sc_pw"][:, :, 0, 0]                            # (Cout, Cin)
    wsc = ((scdw * ssc1[None, :])[:, :, None]
           * (scpw.T * ssc2[None, :])[None, :, :]).reshape(9 * cin, cout)
    bsc = ssc2 * (scpw @ bsc1) + bsc2

    return {
        "conv1_w": w1.astype(bf16), "conv1_b": b1.reshape(1, cin).astype(f32),
        "sc_w": wsc.astype(bf16),   "sc_b": bsc.reshape(1, cout).astype(f32),
        "dw1_w": wdw1.astype(bf16), "dw1_b": bdw1.reshape(1, mid).astype(f32),
        "dw2_w": wdw2.astype(f32),  "dw2_b": bdw2.reshape(1, mid).astype(f32),
        "conv2_w": w2.astype(bf16), "conv2_b": b2.reshape(1, cout).astype(f32),
    }


# ----------------------------------------------------------------------------
# Pure-JAX (XLA) reference of the original PyTorch module, for validation
# ----------------------------------------------------------------------------
def _ref_forward(x, raw):
    def conv(inp, w, stride=1, groups=1):
        pad = ((1, 1), (1, 1)) if w.shape[2] == 3 else ((0, 0), (0, 0))
        return jax.lax.conv_general_dilated(
            inp, w, window_strides=(stride, stride), padding=pad,
            dimension_numbers=("NCHW", "OIHW", "NCHW"),
            feature_group_count=groups)

    def bn(inp, p):
        gamma, beta, mean, var = p
        s = gamma / jnp.sqrt(var + 1e-5)
        return inp * s[None, :, None, None] + (beta - mean * s)[None, :, None, None]

    cin = raw["w_conv1"].shape[0]
    mid = raw["w_dw1"].shape[0]
    feat = jax.nn.relu(bn(conv(x, raw["w_conv1"]), raw["bn1"]))
    feat = bn(conv(feat, raw["w_dw1"], stride=2, groups=cin), raw["bn_dw1"])
    feat = jax.nn.relu(bn(conv(feat, raw["w_dw2"], groups=mid), raw["bn_dw2"]))
    feat = bn(conv(feat, raw["w_conv2"]), raw["bn2"])
    sc = bn(conv(x, raw["w_sc_dw"], stride=2, groups=cin), raw["bn_sc1"])
    sc = bn(conv(sc, raw["w_sc_pw"]), raw["bn_sc2"])
    return jax.nn.relu(feat + sc)


if __name__ == "__main__":
    key = jax.random.PRNGKey(0)
    k_x, k_p = jax.random.split(key)

    batch, in_chan, out_chan, hw = 2, 4, 8, 16
    x = jax.random.normal(k_x, (batch, in_chan, hw, hw), jnp.float32)
    raw = init_raw_params(k_p, in_chan, out_chan, exp_ratio=6)
    params = prepare_params(raw)

    out = jax.jit(lambda xx: gelayer_s2(xx, params))(x)
    jax.block_until_ready(out)
    assert out.shape == (batch, out_chan, hw // 2, hw // 2), out.shape

    ref = _ref_forward(x, raw)
    rel = float(jnp.max(jnp.abs(out - ref)) / (jnp.max(jnp.abs(ref)) + 1e-6))
    assert rel < 0.1, f"mismatch vs reference: rel_err={rel:.4f}"
    print("KERNEL_OK")
</pallas_src>

<mosaic_0001>
module attributes {stable_mosaic.version = 11 : i64} {
  func.func @_gelayer_s2_kernel(%arg0: i32, %arg1: memref<8x2x8x8xbf16, #tpu.memory_space<vmem>>, %arg2: memref<36x4xbf16, #tpu.memory_space<vmem>>, %arg3: memref<1x4xf32, #tpu.memory_space<vmem>>, %arg4: memref<36x8xbf16, #tpu.memory_space<vmem>>, %arg5: memref<1x8xf32, #tpu.memory_space<vmem>>, %arg6: memref<36x24xbf16, #tpu.memory_space<vmem>>, %arg7: memref<1x24xf32, #tpu.memory_space<vmem>>, %arg8: memref<9x24xf32, #tpu.memory_space<vmem>>, %arg9: memref<1x24xf32, #tpu.memory_space<vmem>>, %arg10: memref<24x8xbf16, #tpu.memory_space<vmem>>, %arg11: memref<1x8xf32, #tpu.memory_space<vmem>>, %arg12: memref<1x8x8x8xf32, #tpu.memory_space<vmem>>, %arg13: memref<9x9x16xbf16, #tpu.memory_space<vmem>>, %arg14: memref<9x9x16xbf16, #tpu.memory_space<vmem>>, %arg15: memref<10x10x24xbf16, #tpu.memory_space<vmem>>, %arg16: memref<8x8x36xbf16, #tpu.memory_space<vmem>>) attributes {dimension_semantics = [#tpu.dimension_semantics<parallel>], iteration_bounds = array<i64: 2>, scalar_prefetch = 0 : i64, scratch_operands = 4 : i64, tpu.core_type = #tpu.core_type<tc>, window_params = [{transform_indices = @transform_0, window_bounds = array<i64: 8, 2, 8, 8>}, {pipeline_mode = #tpu.pipeline_mode<synchronous>, transform_indices = @transform_1, window_bounds = array<i64: 36, 4>}, {pipeline_mode = #tpu.pipeline_mode<synchronous>, transform_indices = @transform_2, window_bounds = array<i64: 1, 4>}, {pipeline_mode = #tpu.pipeline_mode<synchronous>, transform_indices = @transform_3, window_bounds = array<i64: 36, 8>}, {pipeline_mode = #tpu.pipeline_mode<synchronous>, transform_indices = @transform_4, window_bounds = array<i64: 1, 8>}, {pipeline_mode = #tpu.pipeline_mode<synchronous>, transform_indices = @transform_5, window_bounds = array<i64: 36, 24>}, {pipeline_mode = #tpu.pipeline_mode<synchronous>, transform_indices = @transform_6, window_bounds = array<i64: 1, 24>}, {pipeline_mode = #tpu.pipeline_mode<synchronous>, transform_indices = @transform_7, window_bounds = array<i64: 9, 24>}, {pipeline_mode = #tpu.pipeline_mode<synchronous>, transform_indices = @transform_8, window_bounds = array<i64: 1, 24>}, {pipeline_mode = #tpu.pipeline_mode<synchronous>, transform_indices = @transform_9, window_bounds = array<i64: 24, 8>}, {pipeline_mode = #tpu.pipeline_mode<synchronous>, transform_indices = @transform_10, window_bounds = array<i64: 1, 8>}, {transform_indices = @transform_11, window_bounds = array<i64: 1, 8, 8, 8>}]} {
    %cst = arith.constant 0.000000e+00 : bf16
    %0 = vector.broadcast %cst : bf16 to vector<9x9x16xbf16>
    %c0 = arith.constant 0 : index
    %c0_0 = arith.constant 0 : index
    %c0_1 = arith.constant 0 : index
    %1 = vector.load %arg13[%c0, %c0_0, %c0_1] : memref<9x9x16xbf16, #tpu.memory_space<vmem>>, vector<9x9x16xbf16>
    tpu.vector_store %arg13[%c0, %c0_0, %c0_1], %0 {strides = array<i32>} : memref<9x9x16xbf16, #tpu.memory_space<vmem>>, vector<9x9x16xbf16>,
    %cst_2 = arith.constant 0.000000e+00 : bf16
    %2 = vector.broadcast %cst_2 : bf16 to vector<9x9x16xbf16>
    %c0_3 = arith.constant 0 : index
    %c0_4 = arith.constant 0 : index
    %c0_5 = arith.constant 0 : index
    %3 = vector.load %arg14[%c0_3, %c0_4, %c0_5] : memref<9x9x16xbf16, #tpu.memory_space<vmem>>, vector<9x9x16xbf16>
    tpu.vector_store %arg14[%c0_3, %c0_4, %c0_5], %2 {strides = array<i32>} : memref<9x9x16xbf16, #tpu.memory_space<vmem>>, vector<9x9x16xbf16>,
    %c0_6 = arith.constant 0 : index
    %c1 = arith.constant 1 : index
    %c0_7 = arith.constant 0 : index
    %c4 = arith.constant 4 : index
    %4 = vector.load %arg1[%c0_6, %c1, %c0_7, %c4] : memref<8x2x8x8xbf16, #tpu.memory_space<vmem>>, vector<8x1x8x4xbf16>
    %5 = vector.shape_cast %4 : vector<8x1x8x4xbf16> to vector<8x8x4xbf16>
    %c1_8 = arith.constant 1 : index
    %c1_9 = arith.constant 1 : index
    %c0_10 = arith.constant 0 : index
    %6 = vector.load %arg13[%c1_8, %c1_9, %c0_10] : memref<9x9x16xbf16, #tpu.memory_space<vmem>>, vector<8x8x4xbf16>
    tpu.vector_store %arg13[%c1_8, %c1_9, %c0_10], %5 {strides = array<i32>} : memref<9x9x16xbf16, #tpu.memory_space<vmem>>, vector<8x8x4xbf16>,
    %c0_11 = arith.constant 0 : index
    %c1_12 = arith.constant 1 : index
    %c0_13 = arith.constant 0 : index
    %c0_14 = arith.constant 0 : index
    %7 = vector.load %arg1[%c0_11, %c1_12, %c0_13, %c0_14] : memref<8x2x8x8xbf16, #tpu.memory_space<vmem>>, vector<8x1x8x4xbf16>
    %8 = vector.shape_cast %7 : vector<8x1x8x4xbf16> to vector<8x8x4xbf16>
    %c1_15 = arith.constant 1 : index
    %c0_16 = arith.constant 0 : index
    %c4_17 = arith.constant 4 : index
    %9 = vector.load %arg13[%c1_15, %c0_16, %c4_17] : memref<9x9x16xbf16, #tpu.memory_space<vmem>>, vector<8x8x4xbf16>
    tpu.vector_store %arg13[%c1_15, %c0_16, %c4_17], %8 {strides = array<i32>} : memref<9x9x16xbf16, #tpu.memory_space<vmem>>, vector<8x8x4xbf16>,
    %c0_18 = arith.constant 0 : index
    %c0_19 = arith.constant 0 : index
    %c0_20 = arith.constant 0 : index
    %c4_21 = arith.constant 4 : index
    %10 = vector.load %arg1[%c0_18, %c0_19, %c0_20, %c4_21] : memref<8x2x8x8xbf16, #tpu.memory_space<vmem>>, vector<8x1x8x4xbf16>
    %11 = vector.shape_cast %10 : vector<8x1x8x4xbf16> to vector<8x8x4xbf16>
    %c0_22 = arith.constant 0 : index
    %c1_23 = arith.constant 1 : index
    %c8 = arith.constant 8 : index
    %12 = vector.load %arg13[%c0_22, %c1_23, %c8] : memref<9x9x16xbf16, #tpu.memory_space<vmem>>, vector<8x8x4xbf16>
    tpu.vector_store %arg13[%c0_22, %c1_23, %c8], %11 {strides = array<i32>} : memref<9x9x16xbf16, #tpu.memory_space<vmem>>, vector<8x8x4xbf16>,
    %c0_24 = arith.constant 0 : index
    %c0_25 = arith.constant 0 : index
    %c0_26 = arith.constant 0 : index
    %c0_27 = arith.constant 0 : index
    %13 = vector.load %arg1[%c0_24, %c0_25, %c0_26, %c0_27] : memref<8x2x8x8xbf16, #tpu.memory_space<vmem>>, vector<8x1x8x4xbf16>
    %14 = vector.shape_cast %13 : vector<8x1x8x4xbf16> to vector<8x8x4xbf16>
    %c0_28 = arith.constant 0 : index
    %c0_29 = arith.constant 0 : index
    %c12 = arith.constant 12 : index
    %15 = vector.load %arg13[%c0_28, %c0_29, %c12] : memref<9x9x16xbf16, #tpu.memory_space<vmem>>, vector<8x8x4xbf16>
    tpu.vector_store %arg13[%c0_28, %c0_29, %c12], %14 {strides = array<i32>} : memref<9x9x16xbf16, #tpu.memory_space<vmem>>, vector<8x8x4xbf16>,
    %c0_30 = arith.constant 0 : index
    %c0_31 = arith.constant 0 : index
    %c0_32 = arith.constant 0 : index
    %16 = vector.load %arg13[%c0_30, %c0_31, %c0_32] : memref<9x9x16xbf16, #tpu.memory_space<vmem>>, vector<8x8x4xbf16>
    %c0_33 = arith.constant 0 : index
    %c0_34 = arith.constant 0 : index
    %c0_35 = arith.constant 0 : index
    %17 = vector.load %arg16[%c0_33, %c0_34, %c0_35] : memref<8x8x36xbf16, #tpu.memory_space<vmem>>, vector<8x8x4xbf16>
    tpu.vector_store %arg16[%c0_33, %c0_34, %c0_35], %16 {strides = array<i32>} : memref<8x8x36xbf16, #tpu.memory_space<vmem>>, vector<8x8x4xbf16>,
    %c0_36 = arith.constant 0 : index
    %c0_37 = arith.constant 0 : index
    %c4_38 = arith.constant 4 : index
    %18 = vector.load %arg13[%c0_36, %c0_37, %c4_38] : memref<9x9x16xbf16, #tpu.memory_space<vmem>>, vector<8x8x4xbf16>
    %c0_39 = arith.constant 0 : index
    %c0_40 = arith.constant 0 : index
    %c4_41 = arith.constant 4 : index
    %19 = vector.load %arg16[%c0_39, %c0_40, %c4_41] : memref<8x8x36xbf16, #tpu.memory_space<vmem>>, vector<8x8x4xbf16>
    tpu.vector_store %arg16[%c0_39, %c0_40, %c4_41], %18 {strides = array<i32>} : memref<8x8x36xbf16, #tpu.memory_space<vmem>>, vector<8x8x4xbf16>,
    %c0_42 = arith.constant 0 : index
    %c1_43 = arith.constant 1 : index
    %c0_44 = arith.constant 0 : index
    %20 = vector.load %arg13[%c0_42, %c1_43, %c0_44] : memref<9x9x16xbf16, #tpu.memory_space<vmem>>, vector<8x8x4xbf16>
    %c0_45 = arith.constant 0 : index
    %c0_46 = arith.constant 0 : index
    %c8_47 = arith.constant 8 : index
    %21 = vector.load %arg16[%c0_45, %c0_46, %c8_47] : memref<8x8x36xbf16, #tpu.memory_space<vmem>>, vector<8x8x4xbf16>
    tpu.vector_store %arg16[%c0_45, %c0_46, %c8_47], %20 {strides = array<i32>} : memref<8x8x36xbf16, #tpu.memory_space<vmem>>, vector<8x8x4xbf16>,
    %c0_48 = arith.constant 0 : index
    %c0_49 = arith.constant 0 : index
    %c8_50 = arith.constant 8 : index
    %22 = vector.load %arg13[%c0_48, %c0_49, %c8_50] : memref<9x9x16xbf16, #tpu.memory_space<vmem>>, vector<8x8x4xbf16>
    %c0_51 = arith.constant 0 : index
    %c0_52 = arith.constant 0 : index
    %c12_53 = arith.constant 12 : index
    %23 = vector.load %arg16[%c0_51, %c0_52, %c12_53] : memref<8x8x36xbf16, #tpu.memory_space<vmem>>, vector<8x8x4xbf16>
    tpu.vector_store %arg16[%c0_51, %c0_52, %c12_53], %22 {strides = array<i32>} : memref<8x8x36xbf16, #tpu.memory_space<vmem>>, vector<8x8x4xbf16>,
    %c0_54 = arith.constant 0 : index
    %c0_55 = arith.constant 0 : index
    %c12_56 = arith.constant 12 : index
    %24 = vector.load %arg13[%c0_54, %c0_55, %c12_56] : memref<9x9x16xbf16, #tpu.memory_space<vmem>>, vector<8x8x4xbf16>
    %c0_57 = arith.constant 0 : index
    %c0_58 = arith.constant 0 : index
    %c16 = arith.constant 16 : index
    %25 = vector.load %arg16[%c0_57, %c0_58, %c16] : memref<8x8x36xbf16, #tpu.memory_space<vmem>>, vector<8x8x4xbf16>
    tpu.vector_store %arg16[%c0_57, %c0_58, %c16], %24 {strides = array<i32>} : memref<8x8x36xbf16, #tpu.memory_space<vmem>>, vector<8x8x4xbf16>,
    %c0_59 = arith.constant 0 : index
    %c1_60 = arith.constant 1 : index
    %c8_61 = arith.constant 8 : index
    %26 = vector.load %arg13[%c0_59, %c1_60, %c8_61] : memref<9x9x16xbf16, #tpu.memory_space<vmem>>, vector<8x8x4xbf16>
    %c0_62 = arith.constant 0 : index
    %c0_63 = arith.constant 0 : index
    %c20 = arith.constant 20 : index
    %27 = vector.load %arg16[%c0_62, %c0_63, %c20] : memref<8x8x36xbf16, #tpu.memory_space<vmem>>, vector<8x8x4xbf16>
    tpu.vector_store %arg16[%c0_62, %c0_63, %c20], %26 {strides = array<i32>} : memref<8x8x36xbf16, #tpu.memory_space<vmem>>, vector<8x8x4xbf16>,
    %c1_64 = arith.constant 1 : index
    %c0_65 = arith.constant 0 : index
    %c0_66 = arith.constant 0 : index
    %28 = vector.load %arg13[%c1_64, %c0_65, %c0_66] : memref<9x9x16xbf16, #tpu.memory_space<vmem>>, vector<8x8x4xbf16>
    %c0_67 = arith.constant 0 : index
    %c0_68 = arith.constant 0 : index
    %c24 = arith.constant 24 : index
    %29 = vector.load %arg16[%c0_67, %c0_68, %c24] : memref<8x8x36xbf16, #tpu.memory_space<vmem>>, vector<8x8x4xbf16>
    tpu.vector_store %arg16[%c0_67, %c0_68, %c24], %28 {strides = array<i32>} : memref<8x8x36xbf16, #tpu.memory_space<vmem>>, vector<8x8x4xbf16>,
    %c1_69 = arith.constant 1 : index
    %c0_70 = arith.constant 0 : index
    %c4_71 = arith.constant 4 : index
    %30 = vector.load %arg13[%c1_69, %c0_70, %c4_71] : memref<9x9x16xbf16, #tpu.memory_space<vmem>>, vector<8x8x4xbf16>
    %c0_72 = arith.constant 0 : index
    %c0_73 = arith.constant 0 : index
    %c28 = arith.constant 28 : index
    %31 = vector.load %arg16[%c0_72, %c0_73, %c28] : memref<8x8x36xbf16, #tpu.memory_space<vmem>>, vector<8x8x4xbf16>
    tpu.vector_store %arg16[%c0_72, %c0_73, %c28], %30 {strides = array<i32>} : memref<8x8x36xbf16, #tpu.memory_space<vmem>>, vector<8x8x4xbf16>,
    %c1_74 = arith.constant 1 : index
    %c1_75 = arith.constant 1 : index
    %c0_76 = arith.constant 0 : index
    %32 = vector.load %arg13[%c1_74, %c1_75, %c0_76] : memref<9x9x16xbf16, #tpu.memory_space<vmem>>, vector<8x8x4xbf16>
    %c0_77 = arith.constant 0 : index
    %c0_78 = arith.constant 0 : index
    %c32 = arith.constant 32 : index
    %33 = vector.load %arg16[%c0_77, %c0_78, %c32] : memref<8x8x36xbf16, #tpu.memory_space<vmem>>, vector<8x8x4xbf16>
    tpu.vector_store %arg16[%c0_77, %c0_78, %c32], %32 {strides = array<i32>} : memref<8x8x36xbf16, #tpu.memory_space<vmem>>, vector<8x8x4xbf16>,
    %c0_79 = arith.constant 0 : index
    %c0_80 = arith.constant 0 : index
    %c0_81 = arith.constant 0 : index
    %34 = vector.load %arg16[%c0_79, %c0_80, %c0_81] : memref<8x8x36xbf16, #tpu.memory_space<vmem>>, vector<8x8x36xbf16>
    %35 = vector.shape_cast %34 : vector<8x8x36xbf16> to vector<64x36xbf16>
    %c0_82 = arith.constant 0 : index
    %c0_83 = arith.constant 0 : index
    %36 = vector.load %arg2[%c0_82, %c0_83] : memref<36x4xbf16, #tpu.memory_space<vmem>>, vector<36x4xbf16>
    %cst_84 = arith.constant dense<0.000000e+00> : vector<64x4xf32>
    %37 = tpu.matmul %35, %36, %cst_84 {dimension_numbers = #tpu.dot_dimension_numbers<[1], [0], [0], [1], [0, 0, 1, 1], [], []>} : vector<64x36xbf16>, vector<36x4xbf16>, vector<64x4xf32> -> vector<64x4xf32>
    %c0_85 = arith.constant 0 : index
    %c0_86 = arith.constant 0 : index
    %38 = vector.load %arg3[%c0_85, %c0_86] : memref<1x4xf32, #tpu.memory_space<vmem>>, vector<1x4xf32>
    %39 = vector.broadcast %38 : vector<1x4xf32> to vector<64x4xf32>
    %40 = arith.addf %37, %39 : vector<64x4xf32>
    %cst_87 = arith.constant 0.000000e+00 : f32
    %41 = vector.broadcast %cst_87 : f32 to vector<64x4xf32>
    %42 = arith.maximumf %40, %41 : vector<64x4xf32>
    %c0_88 = arith.constant 0 : index
    %c0_89 = arith.constant 0 : index
    %43 = vector.load %arg4[%c0_88, %c0_89] : memref<36x8xbf16, #tpu.memory_space<vmem>>, vector<36x8xbf16>
    %cst_90 = arith.constant dense<0.000000e+00> : vector<64x8xf32>
    %44 = tpu.matmul %35, %43, %cst_90 {dimension_numbers = #tpu.dot_dimension_numbers<[1], [0], [0], [1], [0, 0, 1, 1], [], []>} : vector<64x36xbf16>, vector<36x8xbf16>, vector<64x8xf32> -> vector<64x8xf32>
    %c0_91 = arith.constant 0 : index
    %c0_92 = arith.constant 0 : index
    %45 = vector.load %arg5[%c0_91, %c0_92] : memref<1x8xf32, #tpu.memory_space<vmem>>, vector<1x8xf32>
    %46 = vector.broadcast %45 : vector<1x8xf32> to vector<64x8xf32>
    %47 = arith.addf %44, %46 : vector<64x8xf32>
    %48 = arith.truncf %42 : vector<64x4xf32> to vector<64x4xbf16>
    %49 = vector.shape_cast %48 : vector<64x4xbf16> to vector<8x8x4xbf16>
    %c0_93 = arith.constant 0 : index
    %c0_94 = arith.constant 0 : index
    %c12_95 = arith.constant 12 : index
    %50 = vector.load %arg14[%c0_93, %c0_94, %c12_95] : memref<9x9x16xbf16, #tpu.memory_space<vmem>>, vector<8x8x4xbf16>
    tpu.vector_store %arg14[%c0_93, %c0_94, %c12_95], %49 {strides = array<i32>} : memref<9x9x16xbf16, #tpu.memory_space<vmem>>, vector<8x8x4xbf16>,
    %c0_96 = arith.constant 0 : index
    %c0_97 = arith.constant 0 : index
    %c4_98 = arith.constant 4 : index
    %51 = vector.load %arg13[%c0_96, %c0_97, %c4_98] : memref<9x9x16xbf16, #tpu.memory_space<vmem>>, vector<8x8x4xbf16>
    %c0_99 = arith.constant 0 : index
    %c0_100 = arith.constant 0 : index
    %c0_101 = arith.constant 0 : index
    %52 = vector.load %arg16[%c0_99, %c0_100, %c0_101] : memref<8x8x36xbf16, #tpu.memory_space<vmem>>, vector<8x8x4xbf16>
    tpu.vector_store %arg16[%c0_99, %c0_100, %c0_101], %51 {strides = array<i32>} : memref<8x8x36xbf16, #tpu.memory_space<vmem>>, vector<8x8x4xbf16>,
    %c0_102 = arith.constant 0 : index
    %c1_103 = arith.constant 1 : index
    %c0_104 = arith.constant 0 : index
    %53 = vector.load %arg13[%c0_102, %c1_103, %c0_104] : memref<9x9x16xbf16, #tpu.memory_space<vmem>>, vector<8x8x4xbf16>
    %c0_105 = arith.constant 0 : index
    %c0_106 = arith.constant 0 : index
    %c4_107 = arith.constant 4 : index
    %54 = vector.load %arg16[%c0_105, %c0_106, %c4_107] : memref<8x8x36xbf16, #tpu.memory_space<vmem>>, vector<8x8x4xbf16>
    tpu.vector_store %arg16[%c0_105, %c0_106, %c4_107], %53 {strides = array<i32>} : memref<8x8x36xbf16, #tpu.memory_space<vmem>>, vector<8x8x4xbf16>,
    %c0_108 = arith.constant 0 : index
    %c1_109 = arith.constant 1 : index
    %c4_110 = arith.constant 4 : index
    %55 = vector.load %arg13[%c0_108, %c1_109, %c4_110] : memref<9x9x16xbf16, #tpu.memory_space<vmem>>, vector<8x8x4xbf16>
    %c0_111 = arith.constant 0 : index
    %c0_112 = arith.constant 0 : index
    %c8_113 = arith.constant 8 : index
    %56 = vector.load %arg16[%c0_111, %c0_112, %c8_113] : memref<8x8x36xbf16, #tpu.memory_space<vmem>>, vector<8x8x4xbf16>
    tpu.vector_store %arg16[%c0_111, %c0_112, %c8_113], %55 {strides = array<i32>} : memref<8x8x36xbf16, #tpu.memory_space<vmem>>, vector<8x8x4xbf16>,
    %c0_114 = arith.constant 0 : index
    %c0_115 = arith.constant 0 : index
    %c12_116 = arith.constant 12 : index
    %57 = vector.load %arg13[%c0_114, %c0_115, %c12_116] : memref<9x9x16xbf16, #tpu.memory_space<vmem>>, vector<8x8x4xbf16>
    %c0_117 = arith.constant 0 : index
    %c0_118 = arith.constant 0 : index
    %c12_119 = arith.constant 12 : index
    %58 = vector.load %arg16[%c0_117, %c0_118, %c12_119] : memref<8x8x36xbf16, #tpu.memory_space<vmem>>, vector<8x8x4xbf16>
    tpu.vector_store %arg16[%c0_117, %c0_118, %c12_119], %57 {strides = array<i32>} : memref<8x8x36xbf16, #tpu.memory_space<vmem>>, vector<8x8x4xbf16>,
    %c0_120 = arith.constant 0 : index
    %c1_121 = arith.constant 1 : index
    %c8_122 = arith.constant 8 : index
    %59 = vector.load %arg13[%c0_120, %c1_121, %c8_122] : memref<9x9x16xbf16, #tpu.memory_space<vmem>>, vector<8x8x4xbf16>
    %c0_123 = arith.constant 0 : index
    %c0_124 = arith.constant 0 : index
    %c16_125 = arith.constant 16 : index
    %60 = vector.load %arg16[%c0_123, %c0_124, %c16_125] : memref<8x8x36xbf16, #tpu.memory_space<vmem>>, vector<8x8x4xbf16>
    tpu.vector_store %arg16[%c0_123, %c0_124, %c16_125], %59 {strides = array<i32>} : memref<8x8x36xbf16, #tpu.memory_space<vmem>>, vector<8x8x4xbf16>,
    %c0_126 = arith.constant 0 : index
    %c1_127 = arith.constant 1 : index
    %c12_128 = arith.constant 12 : index
    %61 = vector.load %arg13[%c0_126, %c1_127, %c12_128] : memref<9x9x16xbf16, #tpu.memory_space<vmem>>, vector<8x8x4xbf16>
    %c0_129 = arith.constant 0 : index
    %c0_130 = arith.constant 0 : index
    %c20_131 = arith.constant 20 : index
    %62 = vector.load %arg16[%c0_129, %c0_130, %c20_131] : memref<8x8x36xbf16, #tpu.memory_space<vmem>>, vector<8x8x4xbf16>
    tpu.vector_store %arg16[%c0_129, %c0_130, %c20_131], %61 {strides = array<i32>} : memref<8x8x36xbf16, #tpu.memory_space<vmem>>, vector<8x8x4xbf16>,
    %c1_132 = arith.constant 1 : index
    %c0_133 = arith.constant 0 : index
    %c4_134 = arith.constant 4 : index
    %63 = vector.load %arg13[%c1_132, %c0_133, %c4_134] : memref<9x9x16xbf16, #tpu.memory_space<vmem>>, vector<8x8x4xbf16>
    %c0_135 = arith.constant 0 : index
    %c0_136 = arith.constant 0 : index
    %c24_137 = arith.constant 24 : index
    %64 = vector.load %arg16[%c0_135, %c0_136, %c24_137] : memref<8x8x36xbf16, #tpu.memory_space<vmem>>, vector<8x8x4xbf16>
    tpu.vector_store %arg16[%c0_135, %c0_136, %c24_137], %63 {strides = array<i32>} : memref<8x8x36xbf16, #tpu.memory_space<vmem>>, vector<8x8x4xbf16>,
    %c1_138 = arith.constant 1 : index
    %c1_139 = arith.constant 1 : index
    %c0_140 = arith.constant 0 : index
    %65 = vector.load %arg13[%c1_138, %c1_139, %c0_140] : memref<9x9x16xbf16, #tpu.memory_space<vmem>>, vector<8x8x4xbf16>
    %c0_141 = arith.constant 0 : index
    %c0_142 = arith.constant 0 : index
    %c28_143 = arith.constant 28 : index
    %66 = vector.load %arg16[%c0_141, %c0_142, %c28_143] : memref<8x8x36xbf16, #tpu.memory_space<vmem>>, vector<8x8x4xbf16>
    tpu.vector_store %arg16[%c0_141, %c0_142, %c28_143], %65 {strides = array<i32>} : memref<8x8x36xbf16, #tpu.memory_space<vmem>>, vector<8x8x4xbf16>,
    %c1_144 = arith.constant 1 : index
    %c1_145 = arith.constant 1 : index
    %c4_146 = arith.constant 4 : index
    %67 = vector.load %arg13[%c1_144, %c1_145, %c4_146] : memref<9x9x16xbf16, #tpu.memory_space<vmem>>, vector<8x8x4xbf16>
    %c0_147 = arith.constant 0 : index
    %c0_148 = arith.constant 0 : index
    %c32_149 = arith.constant 32 : index
    %68 = vector.load %arg16[%c0_147, %c0_148, %c32_149] : memref<8x8x36xbf16, #tpu.memory_space<vmem>>, vector<8x8x4xbf16>
    tpu.vector_store %arg16[%c0_147, %c0_148, %c32_149], %67 {strides = array<i32>} : memref<8x8x36xbf16, #tpu.memory_space<vmem>>, vector<8x8x4xbf16>,
    %c0_150 = arith.constant 0 : index
    %c0_151 = arith.constant 0 : index
    %c0_152 = arith.constant 0 : index
    %69 = vector.load %arg16[%c0_150, %c0_151, %c0_152] : memref<8x8x36xbf16, #tpu.memory_space<vmem>>, vector<8x8x36xbf16>
    %70 = vector.shape_cast %69 : vector<8x8x36xbf16> to vector<64x36xbf16>
    %c0_153 = arith.constant 0 : index
    %c0_154 = arith.constant 0 : index
    %71 = vector.load %arg2[%c0_153, %c0_154] : memref<36x4xbf16, #tpu.memory_space<vmem>>, vector<36x4xbf16>
    %cst_155 = arith.constant dense<0.000000e+00> : vector<64x4xf32>
    %72 = tpu.matmul %70, %71, %cst_155 {dimension_numbers = #tpu.dot_dimension_numbers<[1], [0], [0], [1], [0, 0, 1, 1], [], []>} : vector<64x36xbf16>, vector<36x4xbf16>, vector<64x4xf32> -> vector<64x4xf32>
    %c0_156 = arith.constant 0 : index
    %c0_157 = arith.constant 0 : index
    %73 = vector.load %arg3[%c0_156, %c0_157] : memref<1x4xf32, #tpu.memory_space<vmem>>, vector<1x4xf32>
    %74 = vector.broadcast %73 : vector<1x4xf32> to vector<64x4xf32>
    %75 = arith.addf %72, %74 : vector<64x4xf32>
    %cst_158 = arith.constant 0.000000e+00 : f32
    %76 = vector.broadcast %cst_158 : f32 to vector<64x4xf32>
    %77 = arith.maximumf %75, %76 : vector<64x4xf32>
    %78 = arith.truncf %77 : vector<64x4xf32> to vector<64x4xbf16>
    %79 = vector.shape_cast %78 : vector<64x4xbf16> to vector<8x8x4xbf16>
    %c0_159 = arith.constant 0 : index
    %c1_160 = arith.constant 1 : index
    %c8_161 = arith.constant 8 : index
    %80 = vector.load %arg14[%c0_159, %c1_160, %c8_161] : memref<9x9x16xbf16, #tpu.memory_space<vmem>>, vector<8x8x4xbf16>
    tpu.vector_store %arg14[%c0_159, %c1_160, %c8_161], %79 {strides = array<i32>} : memref<9x9x16xbf16, #tpu.memory_space<vmem>>, vector<8x8x4xbf16>,
    %c0_162 = arith.constant 0 : index
    %c0_163 = arith.constant 0 : index
    %c8_164 = arith.constant 8 : index
    %81 = vector.load %arg13[%c0_162, %c0_163, %c8_164] : memref<9x9x16xbf16, #tpu.memory_space<vmem>>, vector<8x8x4xbf16>
    %c0_165 = arith.constant 0 : index
    %c0_166 = arith.constant 0 : index
    %c0_167 = arith.constant 0 : index
    %82 = vector.load %arg16[%c0_165, %c0_166, %c0_167] : memref<8x8x36xbf16, #tpu.memory_space<vmem>>, vector<8x8x4xbf16>
    tpu.vector_store %arg16[%c0_165, %c0_166, %c0_167], %81 {strides = array<i32>} : memref<8x8x36xbf16, #tpu.memory_space<vmem>>, vector<8x8x4xbf16>,
    %c0_168 = arith.constant 0 : index
    %c0_169 = arith.constant 0 : index
    %c12_170 = arith.constant 12 : index
    %83 = vector.load %arg13[%c0_168, %c0_169, %c12_170] : memref<9x9x16xbf16, #tpu.memory_space<vmem>>, vector<8x8x4xbf16>
    %c0_171 = arith.constant 0 : index
    %c0_172 = arith.constant 0 : index
    %c4_173 = arith.constant 4 : index
    %84 = vector.load %arg16[%c0_171, %c0_172, %c4_173] : memref<8x8x36xbf16, #tpu.memory_space<vmem>>, vector<8x8x4xbf16>
    tpu.vector_store %arg16[%c0_171, %c0_172, %c4_173], %83 {strides = array<i32>} : memref<8x8x36xbf16, #tpu.memory_space<vmem>>, vector<8x8x4xbf16>,
    %c0_174 = arith.constant 0 : index
    %c1_175 = arith.constant 1 : index
    %c8_176 = arith.constant 8 : index
    %85 = vector.load %arg13[%c0_174, %c1_175, %c8_176] : memref<9x9x16xbf16, #tpu.memory_space<vmem>>, vector<8x8x4xbf16>
    %c0_177 = arith.constant 0 : index
    %c0_178 = arith.constant 0 : index
    %c8_179 = arith.constant 8 : index
    %86 = vector.load %arg16[%c0_177, %c0_178, %c8_179] : memref<8x8x36xbf16, #tpu.memory_space<vmem>>, vector<8x8x4xbf16>
    tpu.vector_store %arg16[%c0_177, %c0_178, %c8_179], %85 {strides = array<i32>} : memref<8x8x36xbf16, #tpu.memory_space<vmem>>, vector<8x8x4xbf16>,
    %c1_180 = arith.constant 1 : index
    %c0_181 = arith.constant 0 : index
    %c0_182 = arith.constant 0 : index
    %87 = vector.load %arg13[%c1_180, %c0_181, %c0_182] : memref<9x9x16xbf16, #tpu.memory_space<vmem>>, vector<8x8x4xbf16>
    %c0_183 = arith.constant 0 : index
    %c0_184 = arith.constant 0 : index
    %c12_185 = arith.constant 12 : index
    %88 = vector.load %arg16[%c0_183, %c0_184, %c12_185] : memref<8x8x36xbf16, #tpu.memory_space<vmem>>, vector<8x8x4xbf16>
    tpu.vector_store %arg16[%c0_183, %c0_184, %c12_185], %87 {strides = array<i32>} : memref<8x8x36xbf16, #tpu.memory_space<vmem>>, vector<8x8x4xbf16>,
    %c1_186 = arith.constant 1 : index
    %c0_187 = arith.constant 0 : index
    %c4_188 = arith.constant 4 : index
    %89 = vector.load %arg13[%c1_186, %c0_187, %c4_188] : memref<9x9x16xbf16, #tpu.memory_space<vmem>>, vector<8x8x4xbf16>
    %c0_189 = arith.constant 0 : index
    %c0_190 = arith.constant 0 : index
    %c16_191 = arith.constant 16 : index
    %90 = vector.load %arg16[%c0_189, %c0_190, %c16_191] : memref<8x8x36xbf16, #tpu.memory_space<vmem>>, vector<8x8x4xbf16>
    tpu.vector_store %arg16[%c0_189, %c0_190, %c16_191], %89 {strides = array<i32>} : memref<8x8x36xbf16, #tpu.memory_space<vmem>>, vector<8x8x4xbf16>,
    %c1_192 = arith.constant 1 : index
    %c1_193 = arith.constant 1 : index
    %c0_194 = arith.constant 0 : index
    %91 = vector.load %arg13[%c1_192, %c1_193, %c0_194] : memref<9x9x16xbf16, #tpu.memory_space<vmem>>, vector<8x8x4xbf16>
    %c0_195 = arith.constant 0 : index
    %c0_196 = arith.constant 0 : index
    %c20_197 = arith.constant 20 : index
    %92 = vector.load %arg16[%c0_195, %c0_196, %c20_197] : memref<8x8x36xbf16, #tpu.memory_space<vmem>>, vector<8x8x4xbf16>
    tpu.vector_store %arg16[%c0_195, %c0_196, %c20_197], %91 {strides = array<i32>} : memref<8x8x36xbf16, #tpu.memory_space<vmem>>, vector<8x8x4xbf16>,
    %c1_198 = arith.constant 1 : index
    %c0_199 = arith.constant 0 : index
    %c8_200 = arith.constant 8 : index
    %93 = vector.load %arg13[%c1_198, %c0_199, %c8_200] : memref<9x9x16xbf16, #tpu.memory_space<vmem>>, vector<8x8x4xbf16>
    %c0_201 = arith.constant 0 : index
    %c0_202 = arith.constant 0 : index
    %c24_203 = arith.constant 24 : index
    %94 = vector.load %arg16[%c0_201, %c0_202, %c24_203] : memref<8x8x36xbf16, #tpu.memory_space<vmem>>, vector<8x8x4xbf16>
    tpu.vector_store %arg16[%c0_201, %c0_202, %c24_203], %93 {strides = array<i32>} : memref<8x8x36xbf16, #tpu.memory_space<vmem>>, vector<8x8x4xbf16>,
    %c1_204 = arith.constant 1 : index
    %c0_205 = arith.constant 0 : index
    %c12_206 = arith.constant 12 : index
    %95 = vector.load %arg13[%c1_204, %c0_205, %c12_206] : memref<9x9x16xbf16, #tpu.memory_space<vmem>>, vector<8x8x4xbf16>
    %c0_207 = arith.constant 0 : index
    %c0_208 = arith.constant 0 : index
    %c28_209 = arith.constant 28 : index
    %96 = vector.load %arg16[%c0_207, %c0_208, %c28_209] : memref<8x8x36xbf16, #tpu.memory_space<vmem>>, vector<8x8x4xbf16>
    tpu.vector_store %arg16[%c0_207, %c0_208, %c28_209], %95 {strides = array<i32>} : memref<8x8x36xbf16, #tpu.memory_space<vmem>>, vector<8x8x4xbf16>,
    %c1_210 = arith.constant 1 : index
    %c1_211 = arith.constant 1 : index
    %c8_212 = arith.constant 8 : index
    %97 = vector.load %arg13[%c1_210, %c1_211, %c8_212] : memref<9x9x16xbf16, #tpu.memory_space<vmem>>, vector<8x8x4xbf16>
    %c0_213 = arith.constant 0 : index
    %c0_214 = arith.constant 0 : index
    %c32_215 = arith.constant 32 : index
    %98 = vector.load %arg16[%c0_213, %c0_214, %c32_215] : memref<8x8x36xbf16, #tpu.memory_space<vmem>>, vector<8x8x4xbf16>
    tpu.vector_store %arg16[%c0_213, %c0_214, %c32_215], %97 {strides = array<i32>} : memref<8x8x36xbf16, #tpu.memory_space<vmem>>, vector<8x8x4xbf16>,
    %c0_216 = arith.constant 0 : index
    %c0_217 = arith.constant 0 : index
    %c0_218 = arith.constant 0 : index
    %99 = vector.load %arg16[%c0_216, %c0_217, %c0_218] : memref<8x8x36xbf16, #tpu.memory_space<vmem>>, vector<8x8x36xbf16>
    %100 = vector.shape_cast %99 : vector<8x8x36xbf16> to vector<64x36xbf16>
    %c0_219 = arith.constant 0 : index
    %c0_220 = arith.constant 0 : index
    %101 = vector.load %arg2[%c0_219, %c0_220] : memref<36x4xbf16, #tpu.memory_space<vmem>>, vector<36x4xbf16>
    %cst_221 = arith.constant dense<0.000000e+00> : vector<64x4xf32>
    %102 = tpu.matmul %100, %101, %cst_221 {dimension_numbers = #tpu.dot_dimension_numbers<[1], [0], [0], [1], [0, 0, 1, 1], [], []>} : vector<64x36xbf16>, vector<36x4xbf16>, vector<64x4xf32> -> vector<64x4xf32>
    %c0_222 = arith.constant 0 : index
    %c0_223 = arith.constant 0 : index
    %103 = vector.load %arg3[%c0_222, %c0_223] : memref<1x4xf32, #tpu.memory_space<vmem>>, vector<1x4xf32>
    %104 = vector.broadcast %103 : vector<1x4xf32> to vector<64x4xf32>
    %105 = arith.addf %102, %104 : vector<64x4xf32>
    %cst_224 = arith.constant 0.000000e+00 : f32
    %106 = vector.broadcast %cst_224 : f32 to vector<64x4xf32>
    %107 = arith.maximumf %105, %106 : vector<64x4xf32>
    %108 = arith.truncf %107 : vector<64x4xf32> to vector<64x4xbf16>
    %109 = vector.shape_cast %108 : vector<64x4xbf16> to vector<8x8x4xbf16>
    %c1_225 = arith.constant 1 : index
    %c0_226 = arith.constant 0 : index
    %c4_227 = arith.constant 4 : index
    %110 = vector.load %arg14[%c1_225, %c0_226, %c4_227] : memref<9x9x16xbf16, #tpu.memory_space<vmem>>, vector<8x8x4xbf16>
    tpu.vector_store %arg14[%c1_225, %c0_226, %c4_227], %109 {strides = array<i32>} : memref<9x9x16xbf16, #tpu.memory_space<vmem>>, vector<8x8x4xbf16>,
    %c0_228 = arith.constant 0 : index
    %c0_229 = arith.constant 0 : index
    %c12_230 = arith.constant 12 : index
    %111 = vector.load %arg13[%c0_228, %c0_229, %c12_230] : memref<9x9x16xbf16, #tpu.memory_space<vmem>>, vector<8x8x4xbf16>
    %c0_231 = arith.constant 0 : index
    %c0_232 = arith.constant 0 : index
    %c0_233 = arith.constant 0 : index
    %112 = vector.load %arg16[%c0_231, %c0_232, %c0_233] : memref<8x8x36xbf16, #tpu.memory_space<vmem>>, vector<8x8x4xbf16>
    tpu.vector_store %arg16[%c0_231, %c0_232, %c0_233], %111 {strides = array<i32>} : memref<8x8x36xbf16, #tpu.memory_space<vmem>>, vector<8x8x4xbf16>,
    %c0_234 = arith.constant 0 : index
    %c1_235 = arith.constant 1 : index
    %c8_236 = arith.constant 8 : index
    %113 = vector.load %arg13[%c0_234, %c1_235, %c8_236] : memref<9x9x16xbf16, #tpu.memory_space<vmem>>, vector<8x8x4xbf16>
    %c0_237 = arith.constant 0 : index
    %c0_238 = arith.constant 0 : index
    %c4_239 = arith.constant 4 : index
    %114 = vector.load %arg16[%c0_237, %c0_238, %c4_239] : memref<8x8x36xbf16, #tpu.memory_space<vmem>>, vector<8x8x4xbf16>
    tpu.vector_store %arg16[%c0_237, %c0_238, %c4_239], %113 {strides = array<i32>} : memref<8x8x36xbf16, #tpu.memory_space<vmem>>, vector<8x8x4xbf16>,
    %c0_240 = arith.constant 0 : index
    %c1_241 = arith.constant 1 : index
    %c12_242 = arith.constant 12 : index
    %115 = vector.load %arg13[%c0_240, %c1_241, %c12_242] : memref<9x9x16xbf16, #tpu.memory_space<vmem>>, vector<8x8x4xbf16>
    %c0_243 = arith.constant 0 : index
    %c0_244 = arith.constant 0 : index
    %c8_245 = arith.constant 8 : index
    %116 = vector.load %arg16[%c0_243, %c0_244, %c8_245] : memref<8x8x36xbf16, #tpu.memory_space<vmem>>, vector<8x8x4xbf16>
    tpu.vector_store %arg16[%c0_243, %c0_244, %c8_245], %115 {strides = array<i32>} : memref<8x8x36xbf16, #tpu.memory_space<vmem>>, vector<8x8x4xbf16>,
    %c1_246 = arith.constant 1 : index
    %c0_247 = arith.constant 0 : index
    %c4_248 = arith.constant 4 : index
    %117 = vector.load %arg13[%c1_246, %c0_247, %c4_248] : memref<9x9x16xbf16, #tpu.memory_space<vmem>>, vector<8x8x4xbf16>
    %c0_249 = arith.constant 0 : index
    %c0_250 = arith.constant 0 : index
    %c12_251 = arith.constant 12 : index
    %118 = vector.load %arg16[%c0_249, %c0_250, %c12_251] : memref<8x8x36xbf16, #tpu.memory_space<vmem>>, vector<8x8x4xbf16>
    tpu.vector_store %arg16[%c0_249, %c0_250, %c12_251], %117 {strides = array<i32>} : memref<8x8x36xbf16, #tpu.memory_space<vmem>>, vector<8x8x4xbf16>,
    %c1_252 = arith.constant 1 : index
    %c1_253 = arith.constant 1 : index
    %c0_254 = arith.constant 0 : index
    %119 = vector.load %arg13[%c1_252, %c1_253, %c0_254] : memref<9x9x16xbf16, #tpu.memory_space<vmem>>, vector<8x8x4xbf16>
    %c0_255 = arith.constant 0 : index
    %c0_256 = arith.constant 0 : index
    %c16_257 = arith.constant 16 : index
    %120 = vector.load %arg16[%c0_255, %c0_256, %c16_257] : memref<8x8x36xbf16, #tpu.memory_space<vmem>>, vector<8x8x4xbf16>
    tpu.vector_store %arg16[%c0_255, %c0_256, %c16_257], %119 {strides = array<i32>} : memref<8x8x36xbf16, #tpu.memory_space<vmem>>, vector<8x8x4xbf16>,
    %c1_258 = arith.constant 1 : index
    %c1_259 = arith.constant 1 : index
    %c4_260 = arith.constant 4 : index
    %121 = vector.load %arg13[%c1_258, %c1_259, %c4_260] : memref<9x9x16xbf16, #tpu.memory_space<vmem>>, vector<8x8x4xbf16>
    %c0_261 = arith.constant 0 : index
    %c0_262 = arith.constant 0 : index
    %c20_263 = arith.constant 20 : index
    %122 = vector.load %arg16[%c0_261, %c0_262, %c20_263] : memref<8x8x36xbf16, #tpu.memory_space<vmem>>, vector<8x8x4xbf16>
    tpu.vector_store %arg16[%c0_261, %c0_262, %c20_263], %121 {strides = array<i32>} : memref<8x8x36xbf16, #tpu.memory_space<vmem>>, vector<8x8x4xbf16>,
    %c1_264 = arith.constant 1 : index
    %c0_265 = arith.constant 0 : index
    %c12_266 = arith.constant 12 : index
    %123 = vector.load %arg13[%c1_264, %c0_265, %c12_266] : memref<9x9x16xbf16, #tpu.memory_space<vmem>>, vector<8x8x4xbf16>
    %c0_267 = arith.constant 0 : index
    %c0_268 = arith.constant 0 : index
    %c24_269 = arith.constant 24 : index
    %124 = vector.load %arg16[%c0_267, %c0_268, %c24_269] : memref<8x8x36xbf16, #tpu.memory_space<vmem>>, vector<8x8x4xbf16>
    tpu.vector_store %arg16[%c0_267, %c0_268, %c24_269], %123 {strides = array<i32>} : memref<8x8x36xbf16, #tpu.memory_space<vmem>>, vector<8x8x4xbf16>,
    %c1_270 = arith.constant 1 : index
    %c1_271 = arith.constant 1 : index
    %c8_272 = arith.constant 8 : index
    %125 = vector.load %arg13[%c1_270, %c1_271, %c8_272] : memref<9x9x16xbf16, #tpu.memory_space<vmem>>, vector<8x8x4xbf16>
    %c0_273 = arith.constant 0 : index
    %c0_274 = arith.constant 0 : index
    %c28_275 = arith.constant 28 : index
    %126 = vector.load %arg16[%c0_273, %c0_274, %c28_275] : memref<8x8x36xbf16, #tpu.memory_space<vmem>>, vector<8x8x4xbf16>
    tpu.vector_store %arg16[%c0_273, %c0_274, %c28_275], %125 {strides = array<i32>} : memref<8x8x36xbf16, #tpu.memory_space<vmem>>, vector<8x8x4xbf16>,
    %c1_276 = arith.constant 1 : index
    %c1_277 = arith.constant 1 : index
    %c12_278 = arith.constant 12 : index
    %127 = vector.load %arg13[%c1_276, %c1_277, %c12_278] : memref<9x9x16xbf16, #tpu.memory_space<vmem>>, vector<8x8x4xbf16>
    %c0_279 = arith.constant 0 : index
    %c0_280 = arith.constant 0 : index
    %c32_281 = arith.constant 32 : index
    %128 = vector.load %arg16[%c0_279, %c0_280, %c32_281] : memref<8x8x36xbf16, #tpu.memory_space<vmem>>, vector<8x8x4xbf16>
    tpu.vector_store %arg16[%c0_279, %c0_280, %c32_281], %127 {strides = array<i32>} : memref<8x8x36xbf16, #tpu.memory_space<vmem>>, vector<8x8x4xbf16>,
    %c0_282 = arith.constant 0 : index
    %c0_283 = arith.constant 0 : index
    %c0_284 = arith.constant 0 : index
    %129 = vector.load %arg16[%c0_282, %c0_283, %c0_284] : memref<8x8x36xbf16, #tpu.memory_space<vmem>>, vector<8x8x36xbf16>
    %130 = vector.shape_cast %129 : vector<8x8x36xbf16> to vector<64x36xbf16>
    %c0_285 = arith.constant 0 : index
    %c0_286 = arith.constant 0 : index
    %131 = vector.load %arg2[%c0_285, %c0_286] : memref<36x4xbf16, #tpu.memory_space<vmem>>, vector<36x4xbf16>
    %cst_287 = arith.constant dense<0.000000e+00> : vector<64x4xf32>
    %132 = tpu.matmul %130, %131, %cst_287 {dimension_numbers = #tpu.dot_dimension_numbers<[1], [0], [0], [1], [0, 0, 1, 1], [], []>} : vector<64x36xbf16>, vector<36x4xbf16>, vector<64x4xf32> -> vector<64x4xf32>
    %c0_288 = arith.constant 0 : index
    %c0_289 = arith.constant 0 : index
    %133 = vector.load %arg3[%c0_288, %c0_289] : memref<1x4xf32, #tpu.memory_space<vmem>>, vector<1x4xf32>
    %134 = vector.broadcast %133 : vector<1x4xf32> to vector<64x4xf32>
    %135 = arith.addf %132, %134 : vector<64x4xf32>
    %cst_290 = arith.constant 0.000000e+00 : f32
    %136 = vector.broadcast %cst_290 : f32 to vector<64x4xf32>
    %137 = arith.maximumf %135, %136 : vector<64x4xf32>
    %138 = arith.truncf %137 : vector<64x4xf32> to vector<64x4xbf16>
    %139 = vector.shape_cast %138 : vector<64x4xbf16> to vector<8x8x4xbf16>
    %c1_291 = arith.constant 1 : index
    %c1_292 = arith.constant 1 : index
    %c0_293 = arith.constant 0 : index
    %140 = vector.load %arg14[%c1_291, %c1_292, %c0_293] : memref<9x9x16xbf16, #tpu.memory_space<vmem>>, vector<8x8x4xbf16>
    tpu.vector_store %arg14[%c1_291, %c1_292, %c0_293], %139 {strides = array<i32>} : memref<9x9x16xbf16, #tpu.memory_space<vmem>>, vector<8x8x4xbf16>,
    %c0_294 = arith.constant 0 : index
    %c0_295 = arith.constant 0 : index
    %c0_296 = arith.constant 0 : index
    %141 = vector.load %arg14[%c0_294, %c0_295, %c0_296] : memref<9x9x16xbf16, #tpu.memory_space<vmem>>, vector<8x8x4xbf16>
    %c0_297 = arith.constant 0 : index
    %c0_298 = arith.constant 0 : index
    %c0_299 = arith.constant 0 : index
    %142 = vector.load %arg16[%c0_297, %c0_298, %c0_299] : memref<8x8x36xbf16, #tpu.memory_space<vmem>>, vector<8x8x4xbf16>
    tpu.vector_store %arg16[%c0_297, %c0_298, %c0_299], %141 {strides = array<i32>} : memref<8x8x36xbf16, #tpu.memory_space<vmem>>, vector<8x8x4xbf16>,
    %c0_300 = arith.constant 0 : index
    %c0_301 = arith.constant 0 : index
    %c4_302 = arith.constant 4 : index
    %143 = vector.load %arg14[%c0_300, %c0_301, %c4_302] : memref<9x9x16xbf16, #tpu.memory_space<vmem>>, vector<8x8x4xbf16>
    %c0_303 = arith.constant 0 : index
    %c0_304 = arith.constant 0 : index
    %c4_305 = arith.constant 4 : index
    %144 = vector.load %arg16[%c0_303, %c0_304, %c4_305] : memref<8x8x36xbf16, #tpu.memory_space<vmem>>, vector<8x8x4xbf16>
    tpu.vector_store %arg16[%c0_303, %c0_304, %c4_305], %143 {strides = array<i32>} : memref<8x8x36xbf16, #tpu.memory_space<vmem>>, vector<8x8x4xbf16>,
    %c0_306 = arith.constant 0 : index
    %c1_307 = arith.constant 1 : index
    %c0_308 = arith.constant 0 : index
    %145 = vector.load %arg14[%c0_306, %c1_307, %c0_308] : memref<9x9x16xbf16, #tpu.memory_space<vmem>>, vector<8x8x4xbf16>
    %c0_309 = arith.constant 0 : index
    %c0_310 = arith.constant 0 : index
    %c8_311 = arith.constant 8 : index
    %146 = vector.load %arg16[%c0_309, %c0_310, %c8_311] : memref<8x8x36xbf16, #tpu.memory_space<vmem>>, vector<8x8x4xbf16>
    tpu.vector_store %arg16[%c0_309, %c0_310, %c8_311], %145 {strides = array<i32>} : memref<8x8x36xbf16, #tpu.memory_space<vmem>>, vector<8x8x4xbf16>,
    %c0_312 = arith.constant 0 : index
    %c0_313 = arith.constant 0 : index
    %c8_314 = arith.constant 8 : index
    %147 = vector.load %arg14[%c0_312, %c0_313, %c8_314] : memref<9x9x16xbf16, #tpu.memory_space<vmem>>, vector<8x8x4xbf16>
    %c0_315 = arith.constant 0 : index
    %c0_316 = arith.constant 0 : index
    %c12_317 = arith.constant 12 : index
    %148 = vector.load %arg16[%c0_315, %c0_316, %c12_317] : memref<8x8x36xbf16, #tpu.memory_space<vmem>>, vector<8x8x4xbf16>
    tpu.vector_store %arg16[%c0_315, %c0_316, %c12_317], %147 {strides = array<i32>} : memref<8x8x36xbf16, #tpu.memory_space<vmem>>, vector<8x8x4xbf16>,
    %c0_318 = arith.constant 0 : index
    %c0_319 = arith.constant 0 : index
    %c12_320 = arith.constant 12 : index
    %149 = vector.load %arg14[%c0_318, %c0_319, %c12_320] : memref<9x9x16xbf16, #tpu.memory_space<vmem>>, vector<8x8x4xbf16>
    %c0_321 = arith.constant 0 : index
    %c0_322 = arith.constant 0 : index
    %c16_323 = arith.constant 16 : index
    %150 = vector.load %arg16[%c0_321, %c0_322, %c16_323] : memref<8x8x36xbf16, #tpu.memory_space<vmem>>, vector<8x8x4xbf16>
    tpu.vector_store %arg16[%c0_321, %c0_322, %c16_323], %149 {strides = array<i32>} : memref<8x8x36xbf16, #tpu.memory_space<vmem>>, vector<8x8x4xbf16>,
    %c0_324 = arith.constant 0 : index
    %c1_325 = arith.constant 1 : index
    %c8_326 = arith.constant 8 : index
    %151 = vector.load %arg14[%c0_324, %c1_325, %c8_326] : memref<9x9x16xbf16, #tpu.memory_space<vmem>>, vector<8x8x4xbf16>
    %c0_327 = arith.constant 0 : index
    %c0_328 = arith.constant 0 : index
    %c20_329 = arith.constant 20 : index
    %152 = vector.load %arg16[%c0_327, %c0_328, %c20_329] : memref<8x8x36xbf16, #tpu.memory_space<vmem>>, vector<8x8x4xbf16>
    tpu.vector_store %arg16[%c0_327, %c0_328, %c20_329], %151 {strides = array<i32>} : memref<8x8x36xbf16, #tpu.memory_space<vmem>>, vector<8x8x4xbf16>,
    %c1_330 = arith.constant 1 : index
    %c0_331 = arith.constant 0 : index
    %c0_332 = arith.constant 0 : index
    %153 = vector.load %arg14[%c1_330, %c0_331, %c0_332] : memref<9x9x16xbf16, #tpu.memory_space<vmem>>, vector<8x8x4xbf16>
    %c0_333 = arith.constant 0 : index
    %c0_334 = arith.constant 0 : index
    %c24_335 = arith.constant 24 : index
    %154 = vector.load %arg16[%c0_333, %c0_334, %c24_335] : memref<8x8x36xbf16, #tpu.memory_space<vmem>>, vector<8x8x4xbf16>
    tpu.vector_store %arg16[%c0_333, %c0_334, %c24_335], %153 {strides = array<i32>} : memref<8x8x36xbf16, #tpu.memory_space<vmem>>, vector<8x8x4xbf16>,
    %c1_336 = arith.constant 1 : index
    %c0_337 = arith.constant 0 : index
    %c4_338 = arith.constant 4 : index
    %155 = vector.load %arg14[%c1_336, %c0_337, %c4_338] : memref<9x9x16xbf16, #tpu.memory_space<vmem>>, vector<8x8x4xbf16>
    %c0_339 = arith.constant 0 : index
    %c0_340 = arith.constant 0 : index
    %c28_341 = arith.constant 28 : index
    %156 = vector.load %arg16[%c0_339, %c0_340, %c28_341] : memref<8x8x36xbf16, #tpu.memory_space<vmem>>, vector<8x8x4xbf16>
    tpu.vector_store %arg16[%c0_339, %c0_340, %c28_341], %155 {strides = array<i32>} : memref<8x8x36xbf16, #tpu.memory_space<vmem>>, vector<8x8x4xbf16>,
    %c1_342 = arith.constant 1 : index
    %c1_343 = arith.constant 1 : index
    %c0_344 = arith.constant 0 : index
    %157 = vector.load %arg14[%c1_342, %c1_343, %c0_344] : memref<9x9x16xbf16, #tpu.memory_space<vmem>>, vector<8x8x4xbf16>
    %c0_345 = arith.constant 0 : index
    %c0_346 = arith.constant 0 : index
    %c32_347 = arith.constant 32 : index
    %158 = vector.load %arg16[%c0_345, %c0_346, %c32_347] : memref<8x8x36xbf16, #tpu.memory_space<vmem>>, vector<8x8x4xbf16>
    tpu.vector_store %arg16[%c0_345, %c0_346, %c32_347], %157 {strides = array<i32>} : memref<8x8x36xbf16, #tpu.memory_space<vmem>>, vector<8x8x4xbf16>,
    %c0_348 = arith.constant 0 : index
    %c0_349 = arith.constant 0 : index
    %c0_350 = arith.constant 0 : index
    %159 = vector.load %arg16[%c0_348, %c0_349, %c0_350] : memref<8x8x36xbf16, #tpu.memory_space<vmem>>, vector<8x8x36xbf16>
    %160 = vector.shape_cast %159 : vector<8x8x36xbf16> to vector<64x36xbf16>
    %c0_351 = arith.constant 0 : index
    %c0_352 = arith.constant 0 : index
    %161 = vector.load %arg6[%c0_351, %c0_352] : memref<36x24xbf16, #tpu.memory_space<vmem>>, vector<36x24xbf16>
    %cst_353 = arith.constant dense<0.000000e+00> : vector<64x24xf32>
    %162 = tpu.matmul %160, %161, %cst_353 {dimension_numbers = #tpu.dot_dimension_numbers<[1], [0], [0], [1], [0, 0, 1, 1], [], []>} : vector<64x36xbf16>, vector<36x24xbf16>, vector<64x24xf32> -> vector<64x24xf32>
    %c0_354 = arith.constant 0 : index
    %c0_355 = arith.constant 0 : index
    %163 = vector.load %arg7[%c0_354, %c0_355] : memref<1x24xf32, #tpu.memory_space<vmem>>, vector<1x24xf32>
    %164 = vector.broadcast %163 : vector<1x24xf32> to vector<64x24xf32>
    %165 = arith.addf %162, %164 : vector<64x24xf32>
    %cst_356 = arith.constant 0.000000e+00 : bf16
    %166 = vector.broadcast %cst_356 : bf16 to vector<10x10x24xbf16>
    %c0_357 = arith.constant 0 : index
    %c0_358 = arith.constant 0 : index
    %c0_359 = arith.constant 0 : index
    %167 = vector.load %arg15[%c0_357, %c0_358, %c0_359] : memref<10x10x24xbf16, #tpu.memory_space<vmem>>, vector<10x10x24xbf16>
    tpu.vector_store %arg15[%c0_357, %c0_358, %c0_359], %166 {strides = array<i32>} : memref<10x10x24xbf16, #tpu.memory_space<vmem>>, vector<10x10x24xbf16>,
    %168 = arith.truncf %165 : vector<64x24xf32> to vector<64x24xbf16>
    %169 = vector.shape_cast %168 : vector<64x24xbf16> to vector<8x8x24xbf16>
    %c1_360 = arith.constant 1 : index
    %c1_361 = arith.constant 1 : index
    %c0_362 = arith.constant 0 : index
    %170 = vector.load %arg15[%c1_360, %c1_361, %c0_362] : memref<10x10x24xbf16, #tpu.memory_space<vmem>>, vector<8x8x24xbf16>
    tpu.vector_store %arg15[%c1_360, %c1_361, %c0_362], %169 {strides = array<i32>} : memref<10x10x24xbf16, #tpu.memory_space<vmem>>, vector<8x8x24xbf16>,
    %cst_363 = arith.constant 0.000000e+00 : f32
    %171 = vector.broadcast %cst_363 : f32 to vector<64x24xf32>
    %c0_364 = arith.constant 0 : index
    %c0_365 = arith.constant 0 : index
    %c0_366 = arith.constant 0 : index
    %172 = vector.load %arg15[%c0_364, %c0_365, %c0_366] : memref<10x10x24xbf16, #tpu.memory_space<vmem>>, vector<8x8x24xbf16>
    %173 = vector.shape_cast %172 : vector<8x8x24xbf16> to vector<64x24xbf16>
    %174 = arith.extf %173 : vector<64x24xbf16> to vector<64x24xf32>
    %c0_367 = arith.constant 0 : index
    %c0_368 = arith.constant 0 : index
    %175 = vector.load %arg8[%c0_367, %c0_368] : memref<9x24xf32, #tpu.memory_space<vmem>>, vector<1x24xf32>
    %176 = vector.broadcast %175 : vector<1x24xf32> to vector<64x24xf32>
    %177 = arith.mulf %174, %176 : vector<64x24xf32>
    %178 = arith.addf %171, %177 : vector<64x24xf32>
    %c0_369 = arith.constant 0 : index
    %c1_370 = arith.constant 1 : index
    %c0_371 = arith.constant 0 : index
    %179 = vector.load %arg15[%c0_369, %c1_370, %c0_371] : memref<10x10x24xbf16, #tpu.memory_space<vmem>>, vector<8x8x24xbf16>
    %180 = vector.shape_cast %179 : vector<8x8x24xbf16> to vector<64x24xbf16>
    %181 = arith.extf %180 : vector<64x24xbf16> to vector<64x24xf32>
    %c1_372 = arith.constant 1 : index
    %c0_373 = arith.constant 0 : index
    %182 = vector.load %arg8[%c1_372, %c0_373] : memref<9x24xf32, #tpu.memory_space<vmem>>, vector<1x24xf32>
    %183 = vector.broadcast %182 : vector<1x24xf32> to vector<64x24xf32>
    %184 = arith.mulf %181, %183 : vector<64x24xf32>
    %185 = arith.addf %178, %184 : vector<64x24xf32>
    %c0_374 = arith.constant 0 : index
    %c2 = arith.constant 2 : index
    %c0_375 = arith.constant 0 : index
    %186 = vector.load %arg15[%c0_374, %c2, %c0_375] : memref<10x10x24xbf16, #tpu.memory_space<vmem>>, vector<8x8x24xbf16>
    %187 = vector.shape_cast %186 : vector<8x8x24xbf16> to vector<64x24xbf16>
    %188 = arith.extf %187 : vector<64x24xbf16> to vector<64x24xf32>
    %c2_376 = arith.constant 2 : index
    %c0_377 = arith.constant 0 : index
    %189 = vector.load %arg8[%c2_376, %c0_377] : memref<9x24xf32, #tpu.memory_space<vmem>>, vector<1x24xf32>
    %190 = vector.broadcast %189 : vector<1x24xf32> to vector<64x24xf32>
    %191 = arith.mulf %188, %190 : vector<64x24xf32>
    %192 = arith.addf %185, %191 : vector<64x24xf32>
    %c1_378 = arith.constant 1 : index
    %c0_379 = arith.constant 0 : index
    %c0_380 = arith.constant 0 : index
    %193 = vector.load %arg15[%c1_378, %c0_379, %c0_380] : memref<10x10x24xbf16, #tpu.memory_space<vmem>>, vector<8x8x24xbf16>
    %194 = vector.shape_cast %193 : vector<8x8x24xbf16> to vector<64x24xbf16>
    %195 = arith.extf %194 : vector<64x24xbf16> to vector<64x24xf32>
    %c3 = arith.constant 3 : index
    %c0_381 = arith.constant 0 : index
    %196 = vector.load %arg8[%c3, %c0_381] : memref<9x24xf32, #tpu.memory_space<vmem>>, vector<1x24xf32>
    %197 = vector.broadcast %196 : vector<1x24xf32> to vector<64x24xf32>
    %198 = arith.mulf %195, %197 : vector<64x24xf32>
    %199 = arith.addf %192, %198 : vector<64x24xf32>
    %c1_382 = arith.constant 1 : index
    %c1_383 = arith.constant 1 : index
    %c0_384 = arith.constant 0 : index
    %200 = vector.load %arg15[%c1_382, %c1_383, %c0_384] : memref<10x10x24xbf16, #tpu.memory_space<vmem>>, vector<8x8x24xbf16>
    %201 = vector.shape_cast %200 : vector<8x8x24xbf16> to vector<64x24xbf16>
    %202 = arith.extf %201 : vector<64x24xbf16> to vector<64x24xf32>
    %c4_385 = arith.constant 4 : index
    %c0_386 = arith.constant 0 : index
    %203 = vector.load %arg8[%c4_385, %c0_386] : memref<9x24xf32, #tpu.memory_space<vmem>>, vector<1x24xf32>
    %204 = vector.broadcast %203 : vector<1x24xf32> to vector<64x24xf32>
    %205 = arith.mulf %202, %204 : vector<64x24xf32>
    %206 = arith.addf %199, %205 : vector<64x24xf32>
    %c1_387 = arith.constant 1 : index
    %c2_388 = arith.constant 2 : index
    %c0_389 = arith.constant 0 : index
    %207 = vector.load %arg15[%c1_387, %c2_388, %c0_389] : memref<10x10x24xbf16, #tpu.memory_space<vmem>>, vector<8x8x24xbf16>
    %208 = vector.shape_cast %207 : vector<8x8x24xbf16> to vector<64x24xbf16>
    %209 = arith.extf %208 : vector<64x24xbf16> to vector<64x24xf32>
    %c5 = arith.constant 5 : index
    %c0_390 = arith.constant 0 : index
    %210 = vector.load %arg8[%c5, %c0_390] : memref<9x24xf32, #tpu.memory_space<vmem>>, vector<1x24xf32>
    %211 = vector.broadcast %210 : vector<1x24xf32> to vector<64x24xf32>
    %212 = arith.mulf %209, %211 : vector<64x24xf32>
    %213 = arith.addf %206, %212 : vector<64x24xf32>
    %c2_391 = arith.constant 2 : index
    %c0_392 = arith.constant 0 : index
    %c0_393 = arith.constant 0 : index
    %214 = vector.load %arg15[%c2_391, %c0_392, %c0_393] : memref<10x10x24xbf16, #tpu.memory_space<vmem>>, vector<8x8x24xbf16>
    %215 = vector.shape_cast %214 : vector<8x8x24xbf16> to vector<64x24xbf16>
    %216 = arith.extf %215 : vector<64x24xbf16> to vector<64x24xf32>
    %c6 = arith.constant 6 : index
    %c0_394 = arith.constant 0 : index
    %217 = vector.load %arg8[%c6, %c0_394] : memref<9x24xf32, #tpu.memory_space<vmem>>, vector<1x24xf32>
    %218 = vector.broadcast %217 : vector<1x24xf32> to vector<64x24xf32>
    %219 = arith.mulf %216, %218 : vector<64x24xf32>
    %220 = arith.addf %213, %219 : vector<64x24xf32>
    %c2_395 = arith.constant 2 : index
    %c1_396 = arith.constant 1 : index
    %c0_397 = arith.constant 0 : index
    %221 = vector.load %arg15[%c2_395, %c1_396, %c0_397] : memref<10x10x24xbf16, #tpu.memory_space<vmem>>, vector<8x8x24xbf16>
    %222 = vector.shape_cast %221 : vector<8x8x24xbf16> to vector<64x24xbf16>
    %223 = arith.extf %222 : vector<64x24xbf16> to vector<64x24xf32>
    %c7 = arith.constant 7 : index
    %c0_398 = arith.constant 0 : index
    %224 = vector.load %arg8[%c7, %c0_398] : memref<9x24xf32, #tpu.memory_space<vmem>>, vector<1x24xf32>
    %225 = vector.broadcast %224 : vector<1x24xf32> to vector<64x24xf32>
    %226 = arith.mulf %223, %225 : vector<64x24xf32>
    %227 = arith.addf %220, %226 : vector<64x24xf32>
    %c2_399 = arith.constant 2 : index
    %c2_400 = arith.constant 2 : index
    %c0_401 = arith.constant 0 : index
    %228 = vector.load %arg15[%c2_399, %c2_400, %c0_401] : memref<10x10x24xbf16, #tpu.memory_space<vmem>>, vector<8x8x24xbf16>
    %229 = vector.shape_cast %228 : vector<8x8x24xbf16> to vector<64x24xbf16>
    %230 = arith.extf %229 : vector<64x24xbf16> to vector<64x24xf32>
    %c8_402 = arith.constant 8 : index
    %c0_403 = arith.constant 0 : index
    %231 = vector.load %arg8[%c8_402, %c0_403] : memref<9x24xf32, #tpu.memory_space<vmem>>, vector<1x24xf32>
    %232 = vector.broadcast %231 : vector<1x24xf32> to vector<64x24xf32>
    %233 = arith.mulf %230, %232 : vector<64x24xf32>
    %234 = arith.addf %227, %233 : vector<64x24xf32>
    %c0_404 = arith.constant 0 : index
    %c0_405 = arith.constant 0 : index
    %235 = vector.load %arg9[%c0_404, %c0_405] : memref<1x24xf32, #tpu.memory_space<vmem>>, vector<1x24xf32>
    %236 = vector.broadcast %235 : vector<1x24xf32> to vector<64x24xf32>
    %237 = arith.addf %234, %236 : vector<64x24xf32>
    %cst_406 = arith.constant 0.000000e+00 : f32
    %238 = vector.broadcast %cst_406 : f32 to vector<64x24xf32>
    %239 = arith.maximumf %237, %238 : vector<64x24xf32>
    %240 = arith.truncf %239 : vector<64x24xf32> to vector<64x24xbf16>
    %c0_407 = arith.constant 0 : index
    %c0_408 = arith.constant 0 : index
    %241 = vector.load %arg10[%c0_407, %c0_408] : memref<24x8xbf16, #tpu.memory_space<vmem>>, vector<24x8xbf16>
    %cst_409 = arith.constant dense<0.000000e+00> : vector<64x8xf32>
    %242 = tpu.matmul %240, %241, %cst_409 {dimension_numbers = #tpu.dot_dimension_numbers<[1], [0], [0], [1], [0, 0, 1, 1], [], []>} : vector<64x24xbf16>, vector<24x8xbf16>, vector<64x8xf32> -> vector<64x8xf32>
    %c0_410 = arith.constant 0 : index
    %c0_411 = arith.constant 0 : index
    %243 = vector.load %arg11[%c0_410, %c0_411] : memref<1x8xf32, #tpu.memory_space<vmem>>, vector<1x8xf32>
    %244 = vector.broadcast %243 : vector<1x8xf32> to vector<64x8xf32>
    %245 = arith.addf %242, %244 : vector<64x8xf32>
    %246 = arith.addf %245, %47 : vector<64x8xf32>
    %cst_412 = arith.constant 0.000000e+00 : f32
    %247 = vector.broadcast %cst_412 : f32 to vector<64x8xf32>
    %248 = arith.maximumf %246, %247 : vector<64x8xf32>
    %249 = vector.shape_cast %248 : vector<64x8xf32> to vector<8x8x8xf32>
    %c0_413 = arith.constant 0 : index
    %c0_414 = arith.constant 0 : index
    %c0_415 = arith.constant 0 : index
    %c0_416 = arith.constant 0 : index
    %250 = vector.load %arg12[%c0_413, %c0_414, %c0_415, %c0_416] : memref<1x8x8x8xf32, #tpu.memory_space<vmem>>, vector<1x8x8x8xf32>
    %251 = vector.shape_cast %250 : vector<1x8x8x8xf32> to vector<8x8x8xf32>
    %252 = vector.shape_cast %249 : vector<8x8x8xf32> to vector<1x8x8x8xf32>
    tpu.vector_store %arg12[%c0_413, %c0_414, %c0_415, %c0_416], %252 {strides = array<i32>} : memref<1x8x8x8xf32, #tpu.memory_space<vmem>>, vector<1x8x8x8xf32>,
    return
  }
  func.func @transform_0(%arg0: i32) -> (i32, i32, i32, i32) {
    %c0_i32 = arith.constant 0 : i32
    %c0_i32_0 = arith.constant 0 : i32
    %c0_i32_1 = arith.constant 0 : i32
    %c0_i32_2 = arith.constant 0 : i32
    return %arg0, %c0_i32, %c0_i32_0, %c0_i32_1 : i32, i32, i32, i32
  }
  func.func @transform_1(%arg0: i32) -> (i32, i32) {
    %c0_i32 = arith.constant 0 : i32
    %c0_i32_0 = arith.constant 0 : i32
    %c0_i32_1 = arith.constant 0 : i32
    return %c0_i32, %c0_i32_0 : i32, i32
  }
  func.func @transform_2(%arg0: i32) -> (i32, i32) {
    %c0_i32 = arith.constant 0 : i32
    %c0_i32_0 = arith.constant 0 : i32
    %c0_i32_1 = arith.constant 0 : i32
    return %c0_i32, %c0_i32_0 : i32, i32
  }
  func.func @transform_3(%arg0: i32) -> (i32, i32) {
    %c0_i32 = arith.constant 0 : i32
    %c0_i32_0 = arith.constant 0 : i32
    %c0_i32_1 = arith.constant 0 : i32
    return %c0_i32, %c0_i32_0 : i32, i32
  }
  func.func @transform_4(%arg0: i32) -> (i32, i32) {
    %c0_i32 = arith.constant 0 : i32
    %c0_i32_0 = arith.constant 0 : i32
    %c0_i32_1 = arith.constant 0 : i32
    return %c0_i32, %c0_i32_0 : i32, i32
  }
  func.func @transform_5(%arg0: i32) -> (i32, i32) {
    %c0_i32 = arith.constant 0 : i32
    %c0_i32_0 = arith.constant 0 : i32
    %c0_i32_1 = arith.constant 0 : i32
    return %c0_i32, %c0_i32_0 : i32, i32
  }
  func.func @transform_6(%arg0: i32) -> (i32, i32) {
    %c0_i32 = arith.constant 0 : i32
    %c0_i32_0 = arith.constant 0 : i32
    %c0_i32_1 = arith.constant 0 : i32
    return %c0_i32, %c0_i32_0 : i32, i32
  }
  func.func @transform_7(%arg0: i32) -> (i32, i32) {
    %c0_i32 = arith.constant 0 : i32
    %c0_i32_0 = arith.constant 0 : i32
    %c0_i32_1 = arith.constant 0 : i32
    return %c0_i32, %c0_i32_0 : i32, i32
  }
  func.func @transform_8(%arg0: i32) -> (i32, i32) {
    %c0_i32 = arith.constant 0 : i32
    %c0_i32_0 = arith.constant 0 : i32
    %c0_i32_1 = arith.constant 0 : i32
    return %c0_i32, %c0_i32_0 : i32, i32
  }
  func.func @transform_9(%arg0: i32) -> (i32, i32) {
    %c0_i32 = arith.constant 0 : i32
    %c0_i32_0 = arith.constant 0 : i32
    %c0_i32_1 = arith.constant 0 : i32
    return %c0_i32, %c0_i32_0 : i32, i32
  }
  func.func @transform_10(%arg0: i32) -> (i32, i32) {
    %c0_i32 = arith.constant 0 : i32
    %c0_i32_0 = arith.constant 0 : i32
    %c0_i32_1 = arith.constant 0 : i32
    return %c0_i32, %c0_i32_0 : i32, i32
  }
  func.func @transform_11(%arg0: i32) -> (i32, i32, i32, i32) {
    %c0_i32 = arith.constant 0 : i32
    %c0_i32_0 = arith.constant 0 : i32
    %c0_i32_1 = arith.constant 0 : i32
    %c0_i32_2 = arith.constant 0 : i32
    return %arg0, %c0_i32, %c0_i32_0, %c0_i32_1 : i32, i32, i32, i32
  }
}

</mosaic_0001>

<llo_original>
// kernel: _lambda_.1
$region0: #{_lambda_.1}
  #allocation0 [shape = 'u32[]', space=smem, size = 0x4, offset = 0x4, fixed_abs, tag = 'smem constant byte address 0x4 - core index']
  #allocation1 [shape = 'u32[144,128]{1,0:T(1,128)}', space=vmem, size = 0x12000, scoped, tag = 'internal scratch']
  #allocation2 [shape = 'bf16[9,9,16]{2,1,0:T(8,128)(2,1)}', space=vmem, size = 0x9000, scoped, tag = 'scratch operand']
  #allocation3 [shape = 'bf16[9,9,16]{2,1,0:T(8,128)(2,1)}', space=vmem, size = 0x9000, scoped, tag = 'scratch operand']
  #allocation4 [shape = 'bf16[10,10,24]{2,1,0:T(8,128)(2,1)}', space=vmem, size = 0xa000, scoped, tag = 'scratch operand']
  #allocation5 [shape = 'bf16[8,8,36]{2,1,0:T(8,128)(2,1)}', space=vmem, size = 0x4000, scoped, tag = 'scratch operand']
  %s0 = inlined_call_operand.vmem [shape: bf16[16,2,8,8], index: 0, kind: input, shape index: {}]
  %s1 = inlined_call_operand.vmem [shape: bf16[36,4], index: 1, kind: input, shape index: {}]
  %s2 = inlined_call_operand.vmem [shape: f32[1,4], index: 2, kind: input, shape index: {}]
  %s3 = inlined_call_operand.vmem [shape: bf16[36,8], index: 3, kind: input, shape index: {}]
  %s4 = inlined_call_operand.vmem [shape: f32[1,8], index: 4, kind: input, shape index: {}]
  %s5 = inlined_call_operand.vmem [shape: bf16[36,24], index: 5, kind: input, shape index: {}]
  %s6 = inlined_call_operand.vmem [shape: f32[1,24], index: 6, kind: input, shape index: {}]
  %s7 = inlined_call_operand.vmem [shape: f32[9,24], index: 7, kind: input, shape index: {}]
  %s8 = inlined_call_operand.vmem [shape: f32[1,24], index: 8, kind: input, shape index: {}]
  %s9 = inlined_call_operand.vmem [shape: bf16[24,8], index: 9, kind: input, shape index: {}]
  %s10 = inlined_call_operand.vmem [shape: f32[1,8], index: 10, kind: input, shape index: {}]
  %s11 = inlined_call_operand.vmem [shape: f32[2,8,8,8], index: 11, kind: output, shape index: {}]
  %s12 = sld [smem:[#allocation0]]
  $region77: #{_lambda_.1} parent=0
    _
  %s14 = ssub.s32 1, %s12
  %s15 = scalar_select 0, %s14, %s12
  loop: start=0, step=1, limit=4
  $region2: #{_lambda_.1} parent=0 // loop_pre_header
    _
  $region3: #{_lambda_.1} parent=0 // loop_header
    %s17 = sphi 0, %s21
    %p18 = scmp.ge.s32.totalorder %s17, 4
    %s27 = sphi 0, %s29
    %s30 = sphi 0, %s27
    %s31 = sphi 0, %s30
    %s47 = sphi 0, %s31
    %s51 = sphi 0, %s51
    %s53 = sphi 0, %s51
    %s54 = sphi 0, %s53
    %s68 = sphi 0, %s54
    %s72 = sphi 0, %s72
    %s74 = sphi 0, %s72
    %s75 = sphi 0, %s74
    %s89 = sphi 0, %s75
    %s93 = sphi 0, %s93
    %s95 = sphi 0, %s93
    %s96 = sphi 0, %s95
    %s110 = sphi 0, %s96
    %s114 = sphi 0, %s114
    %s116 = sphi 0, %s114
    %s117 = sphi 0, %s116
    %s131 = sphi 0, %s117
    %s135 = sphi 0, %s135
    %s137 = sphi 0, %s135
    %s138 = sphi 0, %s137
    %s152 = sphi 0, %s138
    %s156 = sphi 0, %s156
    %s158 = sphi 0, %s156
    %s159 = sphi 0, %s158
    %s173 = sphi 0, %s159
    %s177 = sphi 0, %s177
    %s179 = sphi 0, %s177
    %s180 = sphi 0, %s179
    %s194 = sphi 0, %s180
    %s198 = sphi 0, %s198
    %s200 = sphi 0, %s198
    %s201 = sphi 0, %s200
    %s215 = sphi 0, %s201
    %s219 = sphi 0, %s219
    %s221 = sphi 0, %s219
    %s222 = sphi 0, %s221
    %s236 = sphi 0, %s222
    %s240 = sphi 0, %s240
    %s242 = sphi 0, %s240
    %s243 = sphi 0, %s242
    %s257 = sphi 0, %s243
    %s263 = sphi 0, %s265
    %s266 = sphi 0, %s263
    %s267 = sphi 0, %s266
    %s283 = sphi 0, %s267
  $region4: #{_lambda_.1} parent=0 // loop_header_branch
    %20 = sbr.rel (%p18) target = $region8
  $region5: #{_lambda_.1} parent=0 // loop_body
    %s22 = ssub.s32 %s17, 1
    %s23 = ssub.s32 %s17, 2
    %s24 = sadd.s32 %s17, 1
    %s25 = ssub.s32 %s17, %s24
    %p26 = scmp.eq.s32.totalorder %s25, 0
    %s28 = sadd.s32 %s27, 1
    %s29 = scalar_select %p26, %s27, %s28
    %p32 = pneg %p26
    %p33 = scmp.eq.s32.totalorder %s17, 1
    %p34 = por %p32, %p33
    %p35 = scmp.ne.s32.totalorder %s27, %s30
    %p36 = scmp.eq.s32.totalorder %s17, 0
    %p37 = por %p35, %p36
    %p38 = scmp.ne.s32.totalorder %s27, %s30
    %p39 = scmp.eq.s32.totalorder %s22, 1
    %p40 = por %p38, %p39
    %p41 = scmp.ne.s32.totalorder %s30, %s31
    %p42 = scmp.eq.s32.totalorder %s22, 0
    %p43 = por %p41, %p42
    %p44 = scmp.ne.s32.totalorder %s30, %s31
    %p45 = scmp.eq.s32.totalorder %s23, 1
    %p46 = por %p44, %p45
    %p48 = scmp.ne.s32.totalorder %s31, %s47
    %p49 = scmp.eq.s32.totalorder %s23, 0
    %p50 = por %p48, %p49
    %s52 = sadd.s32 %s51, 1
    %p55 = scmp.eq.s32.totalorder %s17, 1
    %p56 = scmp.ne.s32.totalorder %s51, %s53
    %p57 = scmp.eq.s32.totalorder %s17, 0
    %p58 = por %p56, %p57
    %p59 = scmp.ne.s32.totalorder %s51, %s53
    %p60 = scmp.eq.s32.totalorder %s22, 1
    %p61 = por %p59, %p60
    %p62 = scmp.ne.s32.totalorder %s53, %s54
    %p63 = scmp.eq.s32.totalorder %s22, 0
    %p64 = por %p62, %p63
    %p65 = scmp.ne.s32.totalorder %s53, %s54
    %p66 = scmp.eq.s32.totalorder %s23, 1
    %p67 = por %p65, %p66
    %p69 = scmp.ne.s32.totalorder %s54, %s68
    %p70 = scmp.eq.s32.totalorder %s23, 0
    %p71 = por %p69, %p70
    %s73 = sadd.s32 %s72, 1
    %p76 = scmp.eq.s32.totalorder %s17, 1
    %p77 = scmp.ne.s32.totalorder %s72, %s74
    %p78 = scmp.eq.s32.totalorder %s17, 0
    %p79 = por %p77, %p78
    %p80 = scmp.ne.s32.totalorder %s72, %s74
    %p81 = scmp.eq.s32.totalorder %s22, 1
    %p82 = por %p80, %p81
    %p83 = scmp.ne.s32.totalorder %s74, %s75
    %p84 = scmp.eq.s32.totalorder %s22, 0
    %p85 = por %p83, %p84
    %p86 = scmp.ne.s32.totalorder %s74, %s75
    %p87 = scmp.eq.s32.totalorder %s23, 1
    %p88 = por %p86, %p87
    %p90 = scmp.ne.s32.totalorder %s75, %s89
    %p91 = scmp.eq.s32.totalorder %s23, 0
    %p92 = por %p90, %p91
    %s94 = sadd.s32 %s93, 1
    %p97 = scmp.eq.s32.totalorder %s17, 1
    %p98 = scmp.ne.s32.totalorder %s93, %s95
    %p99 = scmp.eq.s32.totalorder %s17, 0
    %p100 = por %p98, %p99
    %p101 = scmp.ne.s32.totalorder %s93, %s95
    %p102 = scmp.eq.s32.totalorder %s22, 1
    %p103 = por %p101, %p102
    %p104 = scmp.ne.s32.totalorder %s95, %s96
    %p105 = scmp.eq.s32.totalorder %s22, 0
    %p106 = por %p104, %p105
    %p107 = scmp.ne.s32.totalorder %s95, %s96
    %p108 = scmp.eq.s32.totalorder %s23, 1
    %p109 = por %p107, %p108
    %p111 = scmp.ne.s32.totalorder %s96, %s110
    %p112 = scmp.eq.s32.totalorder %s23, 0
    %p113 = por %p111, %p112
    %s115 = sadd.s32 %s114, 1
    %p118 = scmp.eq.s32.totalorder %s17, 1
    %p119 = scmp.ne.s32.totalorder %s114, %s116
    %p120 = scmp.eq.s32.totalorder %s17, 0
    %p121 = por %p119, %p120
    %p122 = scmp.ne.s32.totalorder %s114, %s116
    %p123 = scmp.eq.s32.totalorder %s22, 1
    %p124 = por %p122, %p123
    %p125 = scmp.ne.s32.totalorder %s116, %s117
    %p126 = scmp.eq.s32.totalorder %s22, 0
    %p127 = por %p125, %p126
    %p128 = scmp.ne.s32.totalorder %s116, %s117
    %p129 = scmp.eq.s32.totalorder %s23, 1
    %p130 = por %p128, %p129
    %p132 = scmp.ne.s32.totalorder %s117, %s131
    %p133 = scmp.eq.s32.totalorder %s23, 0
    %p134 = por %p132, %p133
    %s136 = sadd.s32 %s135, 1
    %p139 = scmp.eq.s32.totalorder %s17, 1
    %p140 = scmp.ne.s32.totalorder %s135, %s137
    %p141 = scmp.eq.s32.totalorder %s17, 0
    %p142 = por %p140, %p141
    %p143 = scmp.ne.s32.totalorder %s135, %s137
    %p144 = scmp.eq.s32.totalorder %s22, 1
    %p145 = por %p143, %p144
    %p146 = scmp.ne.s32.totalorder %s137, %s138
    %p147 = scmp.eq.s32.totalorder %s22, 0
    %p148 = por %p146, %p147
    %p149 = scmp.ne.s32.totalorder %s137, %s138
    %p150 = scmp.eq.s32.totalorder %s23, 1
    %p151 = por %p149, %p150
    %p153 = scmp.ne.s32.totalorder %s138, %s152
    %p154 = scmp.eq.s32.totalorder %s23, 0
    %p155 = por %p153, %p154
    %s157 = sadd.s32 %s156, 1
    %p160 = scmp.eq.s32.totalorder %s17, 1
    %p161 = scmp.ne.s32.totalorder %s156, %s158
    %p162 = scmp.eq.s32.totalorder %s17, 0
    %p163 = por %p161, %p162
    %p164 = scmp.ne.s32.totalorder %s156, %s158
    %p165 = scmp.eq.s32.totalorder %s22, 1
    %p166 = por %p164, %p165
    %p167 = scmp.ne.s32.totalorder %s158, %s159
    %p168 = scmp.eq.s32.totalorder %s22, 0
    %p169 = por %p167, %p168
    %p170 = scmp.ne.s32.totalorder %s158, %s159
    %p171 = scmp.eq.s32.totalorder %s23, 1
    %p172 = por %p170, %p171
    %p174 = scmp.ne.s32.totalorder %s159, %s173
    %p175 = scmp.eq.s32.totalorder %s23, 0
    %p176 = por %p174, %p175
    %s178 = sadd.s32 %s177, 1
    %p181 = scmp.eq.s32.totalorder %s17, 1
    %p182 = scmp.ne.s32.totalorder %s177, %s179
    %p183 = scmp.eq.s32.totalorder %s17, 0
    %p184 = por %p182, %p183
    %p185 = scmp.ne.s32.totalorder %s177, %s179
    %p186 = scmp.eq.s32.totalorder %s22, 1
    %p187 = por %p185, %p186
    %p188 = scmp.ne.s32.totalorder %s179, %s180
    %p189 = scmp.eq.s32.totalorder %s22, 0
    %p190 = por %p188, %p189
    %p191 = scmp.ne.s32.totalorder %s179, %s180
    %p192 = scmp.eq.s32.totalorder %s23, 1
    %p193 = por %p191, %p192
    %p195 = scmp.ne.s32.totalorder %s180, %s194
    %p196 = scmp.eq.s32.totalorder %s23, 0
    %p197 = por %p195, %p196
    %s199 = sadd.s32 %s198, 1
    %p202 = scmp.eq.s32.totalorder %s17, 1
    %p203 = scmp.ne.s32.totalorder %s198, %s200
    %p204 = scmp.eq.s32.totalorder %s17, 0
    %p205 = por %p203, %p204
    %p206 = scmp.ne.s32.totalorder %s198, %s200
    %p207 = scmp.eq.s32.totalorder %s22, 1
    %p208 = por %p206, %p207
    %p209 = scmp.ne.s32.totalorder %s200, %s201
    %p210 = scmp.eq.s32.totalorder %s22, 0
    %p211 = por %p209, %p210
    %p212 = scmp.ne.s32.totalorder %s200, %s201
    %p213 = scmp.eq.s32.totalorder %s23, 1
    %p214 = por %p212, %p213
    %p216 = scmp.ne.s32.totalorder %s201, %s215
    %p217 = scmp.eq.s32.totalorder %s23, 0
    %p218 = por %p216, %p217
    %s220 = sadd.s32 %s219, 1
    %p223 = scmp.eq.s32.totalorder %s17, 1
    %p224 = scmp.ne.s32.totalorder %s219, %s221
    %p225 = scmp.eq.s32.totalorder %s17, 0
    %p226 = por %p224, %p225
    %p227 = scmp.ne.s32.totalorder %s219, %s221
    %p228 = scmp.eq.s32.totalorder %s22, 1
    %p229 = por %p227, %p228
    %p230 = scmp.ne.s32.totalorder %s221, %s222
    %p231 = scmp.eq.s32.totalorder %s22, 0
    %p232 = por %p230, %p231
    %p233 = scmp.ne.s32.totalorder %s221, %s222
    %p234 = scmp.eq.s32.totalorder %s23, 1
    %p235 = por %p233, %p234
    %p237 = scmp.ne.s32.totalorder %s222, %s236
    %p238 = scmp.eq.s32.totalorder %s23, 0
    %p239 = por %p237, %p238
    %s241 = sadd.s32 %s240, 1
    %p244 = scmp.eq.s32.totalorder %s17, 1
    %p245 = scmp.ne.s32.totalorder %s240, %s242
    %p246 = scmp.eq.s32.totalorder %s17, 0
    %p247 = por %p245, %p246
    %p248 = scmp.ne.s32.totalorder %s240, %s242
    %p249 = scmp.eq.s32.totalorder %s22, 1
    %p250 = por %p248, %p249
    %p251 = scmp.ne.s32.totalorder %s242, %s243
    %p252 = scmp.eq.s32.totalorder %s22, 0
    %p253 = por %p251, %p252
    %p254 = scmp.ne.s32.totalorder %s242, %s243
    %p255 = scmp.eq.s32.totalorder %s23, 1
    %p256 = por %p254, %p255
    %p258 = scmp.ne.s32.totalorder %s243, %s257
    %p259 = scmp.eq.s32.totalorder %s23, 0
    %p260 = por %p258, %p259
    %s261 = ssub.s32 %s17, %s24
    %p262 = scmp.eq.s32.totalorder %s261, 0
    %s264 = sadd.s32 %s263, 1
    %s265 = scalar_select %p262, %s263, %s264
    %p268 = pneg %p262
    %p269 = scmp.eq.s32.totalorder %s17, 1
    %p270 = por %p268, %p269
    %p271 = scmp.ne.s32.totalorder %s263, %s266
    %p272 = scmp.eq.s32.totalorder %s17, 0
    %p273 = por %p271, %p272
    %p274 = scmp.ne.s32.totalorder %s263, %s266
    %p275 = scmp.eq.s32.totalorder %s22, 1
    %p276 = por %p274, %p275
    %p277 = scmp.ne.s32.totalorder %s266, %s267
    %p278 = scmp.eq.s32.totalorder %s22, 0
    %p279 = por %p277, %p278
    %p280 = scmp.ne.s32.totalorder %s266, %s267
    %p281 = scmp.eq.s32.totalorder %s23, 1
    %p282 = por %p280, %p281
    %p284 = scmp.ne.s32.totalorder %s267, %s283
    %p285 = scmp.eq.s32.totalorder %s23, 0
    %p286 = por %p284, %p285
    %p287 = scmp.le.s32.totalorder 1, %s17
    %p288 = scmp.lt.s32.totalorder %s17, 3
    %p289 = pnand %p287, %p288
    %p290 = pneg %p289
    // Predicated region
    $region9: #{_lambda_.1} parent=5 // pred_check
      _
    $region10: #{_lambda_.1} parent=5 // pred_check_branch
      %292 = sbr.rel (%p289) target = $region12
    $region11: #{_lambda_.1} parent=5 // pred_region
      %s293 = ssub.s32 %s17, 1
      // Predicated region
      $region13: #{_lambda_.1} parent=11 // pred_check
        %p294 = pneg %p64
      $region14: #{_lambda_.1} parent=11 // pred_check_branch
        %296 = sbr.rel (%p294) target = $region16
      $region15: #{_lambda_.1} parent=11 // pred_region
        _
      $region16: #{_lambda_.1} parent=11 // pred_fallthru
        _
      // Predicated region
      $region17: #{_lambda_.1} parent=11 // pred_check
        %p297 = pneg %p85
      $region18: #{_lambda_.1} parent=11 // pred_check_branch
        %299 = sbr.rel (%p297) target = $region20
      $region19: #{_lambda_.1} parent=11 // pred_region
        _
      $region20: #{_lambda_.1} parent=11 // pred_fallthru
        _
      // Predicated region
      $region21: #{_lambda_.1} parent=11 // pred_check
        %p300 = pneg %p106
      $region22: #{_lambda_.1} parent=11 // pred_check_branch
        %302 = sbr.rel (%p300) target = $region24
      $region23: #{_lambda_.1} parent=11 // pred_region
        _
      $region24: #{_lambda_.1} parent=11 // pred_fallthru
        _
      // Predicated region
      $region25: #{_lambda_.1} parent=11 // pred_check
        %p303 = pneg %p127
      $region26: #{_lambda_.1} parent=11 // pred_check_branch
        %305 = sbr.rel (%p303) target = $region28
      $region27: #{_lambda_.1} parent=11 // pred_region
        _
      $region28: #{_lambda_.1} parent=11 // pred_fallthru
        _
      // Predicated region
      $region29: #{_lambda_.1} parent=11 // pred_check
        %p306 = pneg %p148
      $region30: #{_lambda_.1} parent=11 // pred_check_branch
        %308 = sbr.rel (%p306) target = $region32
      $region31: #{_lambda_.1} parent=11 // pred_region
        _
      $region32: #{_lambda_.1} parent=11 // pred_fallthru
        _
      // Predicated region
      $region33: #{_lambda_.1} parent=11 // pred_check
        %p309 = pneg %p169
      $region34: #{_lambda_.1} parent=11 // pred_check_branch
        %311 = sbr.rel (%p309) target = $region36
      $region35: #{_lambda_.1} parent=11 // pred_region
        _
      $region36: #{_lambda_.1} parent=11 // pred_fallthru
        _
      // Predicated region
      $region37: #{_lambda_.1} parent=11 // pred_check
        %p312 = pneg %p190
      $region38: #{_lambda_.1} parent=11 // pred_check_branch
        %314 = sbr.rel (%p312) target = $region40
      $region39: #{_lambda_.1} parent=11 // pred_region
        _
      $region40: #{_lambda_.1} parent=11 // pred_fallthru
        _
      // Predicated region
      $region41: #{_lambda_.1} parent=11 // pred_check
        %p315 = pneg %p211
      $region42: #{_lambda_.1} parent=11 // pred_check_branch
        %317 = sbr.rel (%p315) target = $region44
      $region43: #{_lambda_.1} parent=11 // pred_region
        _
      $region44: #{_lambda_.1} parent=11 // pred_fallthru
        _
      // Predicated region
      $region45: #{_lambda_.1} parent=11 // pred_check
        %p318 = pneg %p232
      $region46: #{_lambda_.1} parent=11 // pred_check_branch
        %320 = sbr.rel (%p318) target = $region48
      $region47: #{_lambda_.1} parent=11 // pred_region
        _
      $region48: #{_lambda_.1} parent=11 // pred_fallthru
        _
      // Predicated region
      $region49: #{_lambda_.1} parent=11 // pred_check
        %p321 = pneg %p253
      $region50: #{_lambda_.1} parent=11 // pred_check_branch
        %323 = sbr.rel (%p321) target = $region52
      $region51: #{_lambda_.1} parent=11 // pred_region
        _
      $region52: #{_lambda_.1} parent=11 // pred_fallthru
        _
    $region12: #{_lambda_.1} parent=5 // pred_fallthru
      _
    %p324 = scmp.lt.s32.totalorder %s17, 2
    // Predicated region
    $region53: #{_lambda_.1} parent=5 // pred_check
      %p325 = pneg %p324
    $region54: #{_lambda_.1} parent=5 // pred_check_branch
      %327 = sbr.rel (%p325) target = $region56
    $region55: #{_lambda_.1} parent=5 // pred_region
      // Predicated region
      $region57: #{_lambda_.1} parent=55 // pred_check
        %p328 = pneg %p37
      $region58: #{_lambda_.1} parent=55 // pred_check_branch
        %330 = sbr.rel (%p328) target = $region60
      $region59: #{_lambda_.1} parent=55 // pred_region
        %s331 = smul.u32 8, %s17
        %p332 = scmp.lt.s32.totalorder %s331, 15
        %s333 = scalar_select %p332, %s331, 15
        %s334 = smul.addr %s333, 2
        %s335 = smul.addr %s334, 4
        %s336 = scalar_lea.vmem %s0, %s335
        %s337 = smul.u32 8, %s17
      $region60: #{_lambda_.1} parent=55 // pred_fallthru
        _
    $region56: #{_lambda_.1} parent=5 // pred_fallthru
      _
    %p338 = scmp.le.s32.totalorder 1, %s17
    %p339 = scmp.lt.s32.totalorder %s17, 3
    %p340 = pnand %p338, %p339
    %p341 = pneg %p340
    // Predicated region
    $region61: #{_lambda_.1} parent=5 // pred_check
      _
    $region62: #{_lambda_.1} parent=5 // pred_check_branch
      %343 = sbr.rel (%p340) target = $region64
    $region63: #{_lambda_.1} parent=5 // pred_region
      %s344 = ssub.s32 %s17, 1
      %s345 = smul.u32 8, %s22
      %p346 = scmp.lt.s32.totalorder %s345, 15
      %s347 = scalar_select %p346, %s345, 15
      %s348 = smul.addr %s347, 2
      %s349 = smul.addr %s348, 4
      %s350 = scalar_lea.vmem %s0, %s349
      %p351 = pneg %p43
      %p352 = pneg %p40
      %p353 = pneg %p64
      %p354 = pneg %p61
      %p355 = pneg %p85
      %p356 = pneg %p82
      %p357 = pneg %p106
      %p358 = pneg %p103
      %p359 = pneg %p127
      %p360 = pneg %p124
      %p361 = pneg %p148
      %p362 = pneg %p145
      %p363 = pneg %p169
      %p364 = pneg %p166
      %p365 = pneg %p190
      %p366 = pneg %p187
      %p367 = pneg %p211
      %p368 = pneg %p208
      %p369 = pneg %p232
      %p370 = pneg %p229
      %p371 = pneg %p253
      %p372 = pneg %p250
      %p373 = pneg %p279
      %p374 = pneg %p276
      %p375 = scmp.lt.s32.totalorder %s22, 1
      %s376 = scalar_select %p375, %s22, 1
      %s377 = smul.addr %s376, 8
      %s378 = smul.addr %s377, 8
      %s379 = scalar_lea.vmem %s11, %s378
      %s380 = smul.u32 8, %s22
      %p381 = scmp.lt.s32.totalorder %s380, 15
      %s382 = scalar_select %p381, %s380, 15
      %s383 = smul.addr %s382, 2
      %s384 = smul.addr %s383, 4
      %s385 = scalar_lea.vmem %s0, %s384
      %s386 = smul.u32 8, %s22
      %p387 = scmp.lt.s32.totalorder %s22, 1
      %s388 = scalar_select %p387, %s22, 1
      %s389 = smul.addr %s388, 8
      %s390 = smul.addr %s389, 8
      %s391 = scalar_lea.vmem %s11, %s390
      %vm393 = vcmask 125952
      %394 = vst.msk [vmem:[#allocation2] sm:$0xf] %vm393, 0
      %vm395 = vcmask 122880
      %vm396 = vsmask.f32 256
      %vm397 = vmand %vm395, %vm396
      %v398 = vld [vmem:[#allocation2 + $0x4] sm:$0x1]
      %v399 = vsel %vm397, 0, %v398
      %400 = vst [vmem:[#allocation2 + $0x4] sm:$0x1] %v399
      %401 = vst.msk [vmem:[#allocation2 + $0x8] sm:$0xf] %vm393, 0
      %v402 = vld [vmem:[#allocation2 + $0xc] sm:$0x1]
      %v403 = vsel %vm397, 0, %v402
      %404 = vst [vmem:[#allocation2 + $0xc] sm:$0x1] %v403
      %405 = vst.msk [vmem:[#allocation2 + $0x10] sm:$0xf] %vm393, 0
      %v406 = vld [vmem:[#allocation2 + $0x14] sm:$0x1]
      %v407 = vsel %vm397, 0, %v406
      %408 = vst [vmem:[#allocation2 + $0x14] sm:$0x1] %v407
      %409 = vst.msk [vmem:[#allocation2 + $0x18] sm:$0xf] %vm393, 0
      %v410 = vld [vmem:[#allocation2 + $0x1c] sm:$0x1]
      %v411 = vsel %vm397, 0, %v410
      %412 = vst [vmem:[#allocation2 + $0x1c] sm:$0x1] %v411
      %413 = vst.msk [vmem:[#allocation2 + $0x20] sm:$0xf] %vm393, 0
      %v414 = vld [vmem:[#allocation2 + $0x24] sm:$0x1]
      %v415 = vsel %vm397, 0, %v414
      %416 = vst [vmem:[#allocation2 + $0x24] sm:$0x1] %v415
      %417 = vst.msk [vmem:[#allocation2 + $0x28] sm:$0xf] %vm393, 0
      %v418 = vld [vmem:[#allocation2 + $0x2c] sm:$0x1]
      %v419 = vsel %vm397, 0, %v418
      %420 = vst [vmem:[#allocation2 + $0x2c] sm:$0x1] %v419
      %421 = vst.msk [vmem:[#allocation2 + $0x30] sm:$0xf] %vm393, 0
      %v422 = vld [vmem:[#allocation2 + $0x34] sm:$0x1]
      %v423 = vsel %vm397, 0, %v422
      %424 = vst [vmem:[#allocation2 + $0x34] sm:$0x1] %v423
      %425 = vst.msk [vmem:[#allocation2 + $0x38] sm:$0xf] %vm393, 0
      %v426 = vld [vmem:[#allocation2 + $0x3c] sm:$0x1]
      %v427 = vsel %vm397, 0, %v426
      %428 = vst [vmem:[#allocation2 + $0x3c] sm:$0x1] %v427
      %429 = vst.msk [vmem:[#allocation2 + $0x40] sm:$0xf] %vm393, 0
      %v430 = vld [vmem:[#allocation2 + $0x44] sm:$0x1]
      %v431 = vsel %vm397, 0, %v430
      %432 = vst [vmem:[#allocation2 + $0x44] sm:$0x1] %v431
      %433 = vst.msk [vmem:[#allocation3] sm:$0xf] %vm393, 0
      %v434 = vld [vmem:[#allocation3 + $0x4] sm:$0x1]
      %v435 = vsel %vm397, 0, %v434
      %436 = vst [vmem:[#allocation3 + $0x4] sm:$0x1] %v435
      %437 = vst.msk [vmem:[#allocation3 + $0x8] sm:$0xf] %vm393, 0
      %v438 = vld [vmem:[#allocation3 + $0xc] sm:$0x1]
      %v439 = vsel %vm397, 0, %v438
      %440 = vst [vmem:[#allocation3 + $0xc] sm:$0x1] %v439
      %441 = vst.msk [vmem:[#allocation3 + $0x10] sm:$0xf] %vm393, 0
      %v442 = vld [vmem:[#allocation3 + $0x14] sm:$0x1]
      %v443 = vsel %vm397, 0, %v442
      %444 = vst [vmem:[#allocation3 + $0x14] sm:$0x1] %v443
      %445 = vst.msk [vmem:[#allocation3 + $0x18] sm:$0xf] %vm393, 0
      %v446 = vld [vmem:[#allocation3 + $0x1c] sm:$0x1]
      %v447 = vsel %vm397, 0, %v446
      %448 = vst [vmem:[#allocation3 + $0x1c] sm:$0x1] %v447
      %449 = vst.msk [vmem:[#allocation3 + $0x20] sm:$0xf] %vm393, 0
      %v450 = vld [vmem:[#allocation3 + $0x24] sm:$0x1]
      %v451 = vsel %vm397, 0, %v450
      %452 = vst [vmem:[#allocation3 + $0x24] sm:$0x1] %v451
      %453 = vst.msk [vmem:[#allocation3 + $0x28] sm:$0xf] %vm393, 0
      %v454 = vld [vmem:[#allocation3 + $0x2c] sm:$0x1]
      %v455 = vsel %vm397, 0, %v454
      %456 = vst [vmem:[#allocation3 + $0x2c] sm:$0x1] %v455
      %457 = vst.msk [vmem:[#allocation3 + $0x30] sm:$0xf] %vm393, 0
      %v458 = vld [vmem:[#allocation3 + $0x34] sm:$0x1]
      %v459 = vsel %vm397, 0, %v458
      %460 = vst [vmem:[#allocation3 + $0x34] sm:$0x1] %v459
      %461 = vst.msk [vmem:[#allocation3 + $0x38] sm:$0xf] %vm393, 0
      %v462 = vld [vmem:[#allocation3 + $0x3c] sm:$0x1]
      %v463 = vsel %vm397, 0, %v462
      %464 = vst [vmem:[#allocation3 + $0x3c] sm:$0x1] %v463
      %465 = vst.msk [vmem:[#allocation3 + $0x40] sm:$0xf] %vm393, 0
      %v466 = vld [vmem:[#allocation3 + $0x44] sm:$0x1]
      %v467 = vsel %vm397, 0, %v466
      %468 = vst [vmem:[#allocation3 + $0x44] sm:$0x1] %v467
      %s469 = scalar_lea.vmem %s385, 4
      %v470 = vld [vmem:[%s469] sm:$0xf]
      %v471 = vld [vmem:[%s469 + $0x8] sm:$0xf]
      %v472 = vld [vmem:[%s469 + $0x10] sm:$0xf]
      %v473 = vld [vmem:[%s469 + $0x18] sm:$0xf]
      %v474 = vld [vmem:[%s469 + $0x20] sm:$0xf]
      %v475 = vld [vmem:[%s469 + $0x28] sm:$0xf]
      %v476 = vld [vmem:[%s469 + $0x30] sm:$0xf]
      %v477 = vld [vmem:[%s469 + $0x38] sm:$0xf]
      %v479 = vshrl.u32 %v470, 16
      %v481 = vrot.slane %v479, 7
      %v482 = vshll.u32 %v470, 16
      %v484 = vor.u32 %v481, %v482
      %v485 = vrot.slane %v481, 4
      %v487 = vshrl.u32 %v471, 16
      %v489 = vrot.slane %v487, 7
      %v490 = vshll.u32 %v471, 16
      %v492 = vor.u32 %v489, %v490
      %v493 = vrot.slane %v489, 4
      %v495 = vshrl.u32 %v472, 16
      %v497 = vrot.slane %v495, 7
      %v498 = vshll.u32 %v472, 16
      %v500 = vor.u32 %v497, %v498
      %v501 = vrot.slane %v497, 4
      %v503 = vshrl.u32 %v473, 16
      %v505 = vrot.slane %v503, 7
      %v506 = vshll.u32 %v473, 16
      %v508 = vor.u32 %v505, %v506
      %v509 = vrot.slane %v505, 4
      %v511 = vshrl.u32 %v474, 16
      %v513 = vrot.slane %v511, 7
      %v514 = vshll.u32 %v474, 16
      %v516 = vor.u32 %v513, %v514
      %v517 = vrot.slane %v513, 4
      %v519 = vshrl.u32 %v475, 16
      %v521 = vrot.slane %v519, 7
      %v522 = vshll.u32 %v475, 16
      %v524 = vor.u32 %v521, %v522
      %v525 = vrot.slane %v521, 4
      %v527 = vshrl.u32 %v476, 16
      %v529 = vrot.slane %v527, 7
      %v530 = vshll.u32 %v476, 16
      %v532 = vor.u32 %v529, %v530
      %v533 = vrot.slane %v529, 4
      %v535 = vshrl.u32 %v477, 16
      %v537 = vrot.slane %v535, 7
      %v538 = vshll.u32 %v477, 16
      %v540 = vor.u32 %v537, %v538
      %v541 = vrot.slane %v537, 4
      %542 = vrot.lane.b32.xlu0 %v484, 124
      %v543 = vpop.permute.xlu0 %542
      %544 = vrot.lane.b32.xlu0 %v485, 124
      %v545 = vpop.permute.xlu0 %544
      %546 = vrot.lane.b32.xlu0 %v492, 124
      %v547 = vpop.permute.xlu0 %546
      %548 = vrot.lane.b32.xlu0 %v493, 124
      %v549 = vpop.permute.xlu0 %548
      %550 = vrot.lane.b32.xlu0 %v500, 124
      %v551 = vpop.permute.xlu0 %550
      %552 = vrot.lane.b32.xlu0 %v501, 124
      %v553 = vpop.permute.xlu0 %552
      %554 = vrot.lane.b32.xlu0 %v508, 124
      %v555 = vpop.permute.xlu0 %554
      %556 = vrot.lane.b32.xlu0 %v509, 124
      %v557 = vpop.permute.xlu0 %556
      %558 = vrot.lane.b32.xlu0 %v516, 124
      %v559 = vpop.permute.xlu0 %558
      %560 = vrot.lane.b32.xlu0 %v517, 124
      %v561 = vpop.permute.xlu0 %560
      %562 = vrot.lane.b32.xlu0 %v524, 124
      %v563 = vpop.permute.xlu0 %562
      %564 = vrot.lane.b32.xlu0 %v525, 124
      %v565 = vpop.permute.xlu0 %564
      %566 = vrot.lane.b32.xlu0 %v532, 124
      %v567 = vpop.permute.xlu0 %566
      %568 = vrot.lane.b32.xlu0 %v533, 124
      %v569 = vpop.permute.xlu0 %568
      %570 = vrot.lane.b32.xlu0 %v540, 124
      %v571 = vpop.permute.xlu0 %570
      %572 = vrot.lane.b32.xlu0 %v541, 124
      %v573 = vpop.permute.xlu0 %572
      %s590 = scalar_lea.vmem [#allocation2], 8
      %vm591 = vcmask 27648
      %vm592 = vsmask.f32 7938
      %vm593 = vmand %vm591, %vm592
      %v594 = vld [vmem:[%s590] sm:$0xf]
      %v595 = vsel %vm593, %v543, %v594
      %596 = vst [vmem:[%s590] sm:$0xf] %v595
      %vm597 = vcmask 24576
      %vm598 = vmand %vm597, %vm396
      %v599 = vld [vmem:[%s590 + $0x4] sm:$0x1]
      %v600 = vsel %vm598, %v545, %v599
      %601 = vst [vmem:[%s590 + $0x4] sm:$0x1] %v600
      %v602 = vld [vmem:[%s590 + $0x8] sm:$0xf]
      %v603 = vsel %vm593, %v547, %v602
      %604 = vst [vmem:[%s590 + $0x8] sm:$0xf] %v603
      %v605 = vld [vmem:[%s590 + $0xc] sm:$0x1]
      %v606 = vsel %vm598, %v549, %v605
      %607 = vst [vmem:[%s590 + $0xc] sm:$0x1] %v606
      %v608 = vld [vmem:[%s590 + $0x10] sm:$0xf]
      %v609 = vsel %vm593, %v551, %v608
      %610 = vst [vmem:[%s590 + $0x10] sm:$0xf] %v609
      %v611 = vld [vmem:[%s590 + $0x14] sm:$0x1]
      %v612 = vsel %vm598, %v553, %v611
      %613 = vst [vmem:[%s590 + $0x14] sm:$0x1] %v612
      %v614 = vld [vmem:[%s590 + $0x18] sm:$0xf]
      %v615 = vsel %vm593, %v555, %v614
      %616 = vst [vmem:[%s590 + $0x18] sm:$0xf] %v615
      %v617 = vld [vmem:[%s590 + $0x1c] sm:$0x1]
      %v618 = vsel %vm598, %v557, %v617
      %619 = vst [vmem:[%s590 + $0x1c] sm:$0x1] %v618
      %v620 = vld [vmem:[%s590 + $0x20] sm:$0xf]
      %v621 = vsel %vm593, %v559, %v620
      %622 = vst [vmem:[%s590 + $0x20] sm:$0xf] %v621
      %v623 = vld [vmem:[%s590 + $0x24] sm:$0x1]
      %v624 = vsel %vm598, %v561, %v623
      %625 = vst [vmem:[%s590 + $0x24] sm:$0x1] %v624
      %v626 = vld [vmem:[%s590 + $0x28] sm:$0xf]
      %v627 = vsel %vm593, %v563, %v626
      %628 = vst [vmem:[%s590 + $0x28] sm:$0xf] %v627
      %v629 = vld [vmem:[%s590 + $0x2c] sm:$0x1]
      %v630 = vsel %vm598, %v565, %v629
      %631 = vst [vmem:[%s590 + $0x2c] sm:$0x1] %v630
      %v632 = vld [vmem:[%s590 + $0x30] sm:$0xf]
      %v633 = vsel %vm593, %v567, %v632
      %634 = vst [vmem:[%s590 + $0x30] sm:$0xf] %v633
      %v635 = vld [vmem:[%s590 + $0x34] sm:$0x1]
      %v636 = vsel %vm598, %v569, %v635
      %637 = vst [vmem:[%s590 + $0x34] sm:$0x1] %v636
      %v638 = vld [vmem:[%s590 + $0x38] sm:$0xf]
      %v639 = vsel %vm593, %v571, %v638
      %640 = vst [vmem:[%s590 + $0x38] sm:$0xf] %v639
      %v641 = vld [vmem:[%s590 + $0x3c] sm:$0x1]
      %v642 = vsel %vm598, %v573, %v641
      %643 = vst [vmem:[%s590 + $0x3c] sm:$0x1] %v642
      %v644 = vld [vmem:[%s469] sm:$0xf]
      %v645 = vld [vmem:[%s469 + $0x8] sm:$0xf]
      %v646 = vld [vmem:[%s469 + $0x10] sm:$0xf]
      %v647 = vld [vmem:[%s469 + $0x18] sm:$0xf]
      %v648 = vld [vmem:[%s469 + $0x20] sm:$0xf]
      %v649 = vld [vmem:[%s469 + $0x28] sm:$0xf]
      %v650 = vld [vmem:[%s469 + $0x30] sm:$0xf]
      %v651 = vld [vmem:[%s469 + $0x38] sm:$0xf]
      %660 = vrot.lane.b32.xlu0 %v644, 4
      %v661 = vpop.permute.xlu0 %660
      %662 = vrot.lane.b32.xlu0 %v645, 4
      %v663 = vpop.permute.xlu0 %662
      %664 = vrot.lane.b32.xlu0 %v646, 4
      %v665 = vpop.permute.xlu0 %664
      %666 = vrot.lane.b32.xlu0 %v647, 4
      %v667 = vpop.permute.xlu0 %666
      %668 = vrot.lane.b32.xlu0 %v648, 4
      %v669 = vpop.permute.xlu0 %668
      %670 = vrot.lane.b32.xlu0 %v649, 4
      %v671 = vpop.permute.xlu0 %670
      %672 = vrot.lane.b32.xlu0 %v650, 4
      %v673 = vpop.permute.xlu0 %672
      %674 = vrot.lane.b32.xlu0 %v651, 4
      %v675 = vpop.permute.xlu0 %674
      %vm684 = vcmask 60448
      %685 = vst.msk [vmem:[%s590] sm:$0xf] %vm684, %v661
      %686 = vst.msk [vmem:[%s590 + $0x8] sm:$0xf] %vm684, %v663
      %687 = vst.msk [vmem:[%s590 + $0x10] sm:$0xf] %vm684, %v665
      %688 = vst.msk [vmem:[%s590 + $0x18] sm:$0xf] %vm684, %v667
      %689 = vst.msk [vmem:[%s590 + $0x20] sm:$0xf] %vm684, %v669
      %690 = vst.msk [vmem:[%s590 + $0x28] sm:$0xf] %vm684, %v671
      %691 = vst.msk [vmem:[%s590 + $0x30] sm:$0xf] %vm684, %v673
      %692 = vst.msk [vmem:[%s590 + $0x38] sm:$0xf] %vm684, %v675
      %v693 = vld [vmem:[%s385] sm:$0xf]
      %v694 = vld [vmem:[%s385 + $0x8] sm:$0xf]
      %v695 = vld [vmem:[%s385 + $0x10] sm:$0xf]
      %v696 = vld [vmem:[%s385 + $0x18] sm:$0xf]
      %v697 = vld [vmem:[%s385 + $0x20] sm:$0xf]
      %v698 = vld [vmem:[%s385 + $0x28] sm:$0xf]
      %v699 = vld [vmem:[%s385 + $0x30] sm:$0xf]
      %v700 = vld [vmem:[%s385 + $0x38] sm:$0xf]
      %v702 = vshrl.u32 %v693, 16
      %v704 = vrot.slane %v702, 7
      %v705 = vshll.u32 %v693, 16
      %v707 = vor.u32 %v704, %v705
      %v708 = vrot.slane %v704, 4
      %v710 = vshrl.u32 %v694, 16
      %v712 = vrot.slane %v710, 7
      %v713 = vshll.u32 %v694, 16
      %v715 = vor.u32 %v712, %v713
      %v716 = vrot.slane %v712, 4
      %v718 = vshrl.u32 %v695, 16
      %v720 = vrot.slane %v718, 7
      %v721 = vshll.u32 %v695, 16
      %v723 = vor.u32 %v720, %v721
      %v724 = vrot.slane %v720, 4
      %v726 = vshrl.u32 %v696, 16
      %v728 = vrot.slane %v726, 7
      %v729 = vshll.u32 %v696, 16
      %v731 = vor.u32 %v728, %v729
      %v732 = vrot.slane %v728, 4
      %v734 = vshrl.u32 %v697, 16
      %v736 = vrot.slane %v734, 7
      %v737 = vshll.u32 %v697, 16
      %v739 = vor.u32 %v736, %v737
      %v740 = vrot.slane %v736, 4
      %v742 = vshrl.u32 %v698, 16
      %v744 = vrot.slane %v742, 7
      %v745 = vshll.u32 %v698, 16
      %v747 = vor.u32 %v744, %v745
      %v748 = vrot.slane %v744, 4
      %v750 = vshrl.u32 %v699, 16
      %v752 = vrot.slane %v750, 7
      %v753 = vshll.u32 %v699, 16
      %v755 = vor.u32 %v752, %v753
      %v756 = vrot.slane %v752, 4
      %v758 = vshrl.u32 %v700, 16
      %v760 = vrot.slane %v758, 7
      %v761 = vshll.u32 %v700, 16
      %v763 = vor.u32 %v760, %v761
      %v764 = vrot.slane %v760, 4
      %765 = vrot.lane.b32.xlu0 %v707, 4
      %v766 = vpop.permute.xlu0 %765
      %767 = vrot.lane.b32.xlu0 %v708, 4
      %v768 = vpop.permute.xlu0 %767
      %769 = vrot.lane.b32.xlu0 %v715, 4
      %v770 = vpop.permute.xlu0 %769
      %771 = vrot.lane.b32.xlu0 %v716, 4
      %v772 = vpop.permute.xlu0 %771
      %773 = vrot.lane.b32.xlu0 %v723, 4
      %v774 = vpop.permute.xlu0 %773
      %775 = vrot.lane.b32.xlu0 %v724, 4
      %v776 = vpop.permute.xlu0 %775
      %777 = vrot.lane.b32.xlu0 %v731, 4
      %v778 = vpop.permute.xlu0 %777
      %779 = vrot.lane.b32.xlu0 %v732, 4
      %v780 = vpop.permute.xlu0 %779
      %781 = vrot.lane.b32.xlu0 %v739, 4
      %v782 = vpop.permute.xlu0 %781
      %783 = vrot.lane.b32.xlu0 %v740, 4
      %v784 = vpop.permute.xlu0 %783
      %785 = vrot.lane.b32.xlu0 %v747, 4
      %v786 = vpop.permute.xlu0 %785
      %787 = vrot.lane.b32.xlu0 %v748, 4
      %v788 = vpop.permute.xlu0 %787
      %789 = vrot.lane.b32.xlu0 %v755, 4
      %v790 = vpop.permute.xlu0 %789
      %791 = vrot.lane.b32.xlu0 %v756, 4
      %v792 = vpop.permute.xlu0 %791
      %793 = vrot.lane.b32.xlu0 %v763, 4
      %v794 = vpop.permute.xlu0 %793
      %795 = vrot.lane.b32.xlu0 %v764, 4
      %v796 = vpop.permute.xlu0 %795
      %vm813 = vcmask 93248
      %vm814 = vmand %vm813, %vm592
      %v815 = vld [vmem:[#allocation2] sm:$0xf]
      %v816 = vsel %vm814, %v766, %v815
      %817 = vst [vmem:[#allocation2] sm:$0xf] %v816
      %vm818 = vcmask 90176
      %vm819 = vmand %vm818, %vm396
      %v820 = vld [vmem:[#allocation2 + $0x4] sm:$0x1]
      %v821 = vsel %vm819, %v768, %v820
      %822 = vst [vmem:[#allocation2 + $0x4] sm:$0x1] %v821
      %v823 = vld [vmem:[#allocation2 + $0x8] sm:$0xf]
      %v824 = vsel %vm814, %v770, %v823
      %825 = vst [vmem:[#allocation2 + $0x8] sm:$0xf] %v824
      %v826 = vld [vmem:[#allocation2 + $0xc] sm:$0x1]
      %v827 = vsel %vm819, %v772, %v826
      %828 = vst [vmem:[#allocation2 + $0xc] sm:$0x1] %v827
      %v829 = vld [vmem:[#allocation2 + $0x10] sm:$0xf]
      %v830 = vsel %vm814, %v774, %v829
      %831 = vst [vmem:[#allocation2 + $0x10] sm:$0xf] %v830
      %v832 = vld [vmem:[#allocation2 + $0x14] sm:$0x1]
      %v833 = vsel %vm819, %v776, %v832
      %834 = vst [vmem:[#allocation2 + $0x14] sm:$0x1] %v833
      %v835 = vld [vmem:[#allocation2 + $0x18] sm:$0xf]
      %v836 = vsel %vm814, %v778, %v835
      %837 = vst [vmem:[#allocation2 + $0x18] sm:$0xf] %v836
      %v838 = vld [vmem:[#allocation2 + $0x1c] sm:$0x1]
      %v839 = vsel %vm819, %v780, %v838
      %840 = vst [vmem:[#allocation2 + $0x1c] sm:$0x1] %v839
      %v841 = vld [vmem:[#allocation2 + $0x20] sm:$0xf]
      %v842 = vsel %vm814, %v782, %v841
      %843 = vst [vmem:[#allocation2 + $0x20] sm:$0xf] %v842
      %v844 = vld [vmem:[#allocation2 + $0x24] sm:$0x1]
      %v845 = vsel %vm819, %v784, %v844
      %846 = vst [vmem:[#allocation2 + $0x24] sm:$0x1] %v845
      %v847 = vld [vmem:[#allocation2 + $0x28] sm:$0xf]
      %v848 = vsel %vm814, %v786, %v847
      %849 = vst [vmem:[#allocation2 + $0x28] sm:$0xf] %v848
      %v850 = vld [vmem:[#allocation2 + $0x2c] sm:$0x1]
      %v851 = vsel %vm819, %v788, %v850
      %852 = vst [vmem:[#allocation2 + $0x2c] sm:$0x1] %v851
      %v853 = vld [vmem:[#allocation2 + $0x30] sm:$0xf]
      %v854 = vsel %vm814, %v790, %v853
      %855 = vst [vmem:[#allocation2 + $0x30] sm:$0xf] %v854
      %v856 = vld [vmem:[#allocation2 + $0x34] sm:$0x1]
      %v857 = vsel %vm819, %v792, %v856
      %858 = vst [vmem:[#allocation2 + $0x34] sm:$0x1] %v857
      %v859 = vld [vmem:[#allocation2 + $0x38] sm:$0xf]
      %v860 = vsel %vm814, %v794, %v859
      %861 = vst [vmem:[#allocation2 + $0x38] sm:$0xf] %v860
      %v862 = vld [vmem:[#allocation2 + $0x3c] sm:$0x1]
      %v863 = vsel %vm819, %v796, %v862
      %864 = vst [vmem:[#allocation2 + $0x3c] sm:$0x1] %v863
      %v865 = vld [vmem:[%s385] sm:$0xf]
      %v866 = vld [vmem:[%s385 + $0x8] sm:$0xf]
      %v867 = vld [vmem:[%s385 + $0x10] sm:$0xf]
      %v868 = vld [vmem:[%s385 + $0x18] sm:$0xf]
      %v869 = vld [vmem:[%s385 + $0x20] sm:$0xf]
      %v870 = vld [vmem:[%s385 + $0x28] sm:$0xf]
      %v871 = vld [vmem:[%s385 + $0x30] sm:$0xf]
      %v872 = vld [vmem:[%s385 + $0x38] sm:$0xf]
      %881 = vrot.lane.b32.xlu0 %v865, 12
      %v882 = vpop.permute.xlu0 %881
      %883 = vrot.lane.b32.xlu0 %v866, 12
      %v884 = vpop.permute.xlu0 %883
      %885 = vrot.lane.b32.xlu0 %v867, 12
      %v886 = vpop.permute.xlu0 %885
      %887 = vrot.lane.b32.xlu0 %v868, 12
      %v888 = vpop.permute.xlu0 %887
      %889 = vrot.lane.b32.xlu0 %v869, 12
      %v890 = vpop.permute.xlu0 %889
      %891 = vrot.lane.b32.xlu0 %v870, 12
      %v892 = vpop.permute.xlu0 %891
      %893 = vrot.lane.b32.xlu0 %v871, 12
      %v894 = vpop.permute.xlu0 %893
      %895 = vrot.lane.b32.xlu0 %v872, 12
      %v896 = vpop.permute.xlu0 %895
      %vm905 = vcmask 126048
      %906 = vst.msk [vmem:[#allocation2] sm:$0xf] %vm905, %v882
      %907 = vst.msk [vmem:[#allocation2 + $0x8] sm:$0xf] %vm905, %v884
      %908 = vst.msk [vmem:[#allocation2 + $0x10] sm:$0xf] %vm905, %v886
      %909 = vst.msk [vmem:[#allocation2 + $0x18] sm:$0xf] %vm905, %v888
      %910 = vst.msk [vmem:[#allocation2 + $0x20] sm:$0xf] %vm905, %v890
      %911 = vst.msk [vmem:[#allocation2 + $0x28] sm:$0xf] %vm905, %v892
      %912 = vst.msk [vmem:[#allocation2 + $0x30] sm:$0xf] %vm905, %v894
      %913 = vst.msk [vmem:[#allocation2 + $0x38] sm:$0xf] %vm905, %v896
      %v914 = vld [vmem:[#allocation2] sm:$0xf]
      %v915 = vld [vmem:[#allocation2 + $0x8] sm:$0xf]
      %v916 = vld [vmem:[#allocation2 + $0x10] sm:$0xf]
      %v917 = vld [vmem:[#allocation2 + $0x18] sm:$0xf]
      %v918 = vld [vmem:[#allocation2 + $0x20] sm:$0xf]
      %v919 = vld [vmem:[#allocation2 + $0x28] sm:$0xf]
      %v920 = vld [vmem:[#allocation2 + $0x30] sm:$0xf]
      %v921 = vld [vmem:[#allocation2 + $0x38] sm:$0xf]
      %vm922 = vcmask 27648
      %923 = vst.msk [vmem:[#allocation5] sm:$0xf] %vm922, %v914
      %924 = vst.msk [vmem:[#allocation5 + $0x4] sm:$0xf] %vm922, %v915
      %925 = vst.msk [vmem:[#allocation5 + $0x8] sm:$0xf] %vm922, %v916
      %926 = vst.msk [vmem:[#allocation5 + $0xc] sm:$0xf] %vm922, %v917
      %927 = vst.msk [vmem:[#allocation5 + $0x10] sm:$0xf] %vm922, %v918
      %928 = vst.msk [vmem:[#allocation5 + $0x14] sm:$0xf] %vm922, %v919
      %929 = vst.msk [vmem:[#allocation5 + $0x18] sm:$0xf] %vm922, %v920
      %930 = vst.msk [vmem:[#allocation5 + $0x1c] sm:$0xf] %vm922, %v921
      %v931 = vld [vmem:[#allocation2] sm:$0xf]
      %v932 = vld [vmem:[#allocation2 + $0x8] sm:$0xf]
      %v933 = vld [vmem:[#allocation2 + $0x10] sm:$0xf]
      %v934 = vld [vmem:[#allocation2 + $0x18] sm:$0xf]
      %v935 = vld [vmem:[#allocation2 + $0x20] sm:$0xf]
      %v936 = vld [vmem:[#allocation2 + $0x28] sm:$0xf]
      %v937 = vld [vmem:[#allocation2 + $0x30] sm:$0xf]
      %v938 = vld [vmem:[#allocation2 + $0x38] sm:$0xf]
      %939 = vst.msk [vmem:[#allocation5] sm:$0xf] %vm684, %v931
      %940 = vst.msk [vmem:[#allocation5 + $0x4] sm:$0xf] %vm684, %v932
      %941 = vst.msk [vmem:[#allocation5 + $0x8] sm:$0xf] %vm684, %v933
      %942 = vst.msk [vmem:[#allocation5 + $0xc] sm:$0xf] %vm684, %v934
      %943 = vst.msk [vmem:[#allocation5 + $0x10] sm:$0xf] %vm684, %v935
      %944 = vst.msk [vmem:[#allocation5 + $0x14] sm:$0xf] %vm684, %v936
      %945 = vst.msk [vmem:[#allocation5 + $0x18] sm:$0xf] %vm684, %v937
      %946 = vst.msk [vmem:[#allocation5 + $0x1c] sm:$0xf] %vm684, %v938
      %v947 = vld [vmem:[#allocation2] sm:$0xf]
      %v948 = vld [vmem:[#allocation2 + $0x4] sm:$0x1]
      %v949 = vld [vmem:[#allocation2 + $0x8] sm:$0xf]
      %v950 = vld [vmem:[#allocation2 + $0xc] sm:$0x1]
      %v951 = vld [vmem:[#allocation2 + $0x10] sm:$0xf]
      %v952 = vld [vmem:[#allocation2 + $0x14] sm:$0x1]
      %v953 = vld [vmem:[#allocation2 + $0x18] sm:$0xf]
      %v954 = vld [vmem:[#allocation2 + $0x1c] sm:$0x1]
      %v955 = vld [vmem:[#allocation2 + $0x20] sm:$0xf]
      %v956 = vld [vmem:[#allocation2 + $0x24] sm:$0x1]
      %v957 = vld [vmem:[#allocation2 + $0x28] sm:$0xf]
      %v958 = vld [vmem:[#allocation2 + $0x2c] sm:$0x1]
      %v959 = vld [vmem:[#allocation2 + $0x30] sm:$0xf]
      %v960 = vld [vmem:[#allocation2 + $0x34] sm:$0x1]
      %v961 = vld [vmem:[#allocation2 + $0x38] sm:$0xf]
      %v962 = vld [vmem:[#allocation2 + $0x3c] sm:$0x1]
      %vm963 = vsmask.f32 3328
      %vm964 = vsmask.f32 7440
      %vm965 = vmor %vm963, %vm964
      %v967 = vshrl.u32 %v947, 16
      %v969 = vrot.slane %v967, 4
      %v970 = vshll.u32 %v947, 16
      %v972 = vrot.slane %v970, 5
      %v973 = vor.u32 %v969, %v972
      %v974 = vrot.slane %v973, 4
      %v976 = vshll.u32 %v948, 16
      %v978 = vrot.slane %v976, 5
      %v979 = vsel %vm965, %v974, %v978
      %v981 = vshrl.u32 %v949, 16
      %v983 = vrot.slane %v981, 4
      %v984 = vshll.u32 %v949, 16
      %v986 = vrot.slane %v984, 5
      %v987 = vor.u32 %v983, %v986
      %v988 = vrot.slane %v987, 4
      %v990 = vshll.u32 %v950, 16
      %v992 = vrot.slane %v990, 5
      %v993 = vsel %vm965, %v988, %v992
      %v995 = vshrl.u32 %v951, 16
      %v997 = vrot.slane %v995, 4
      %v998 = vshll.u32 %v951, 16
      %v1000 = vrot.slane %v998, 5
      %v1001 = vor.u32 %v997, %v1000
      %v1002 = vrot.slane %v1001, 4
      %v1004 = vshll.u32 %v952, 16
      %v1006 = vrot.slane %v1004, 5
      %v1007 = vsel %vm965, %v1002, %v1006
      %v1009 = vshrl.u32 %v953, 16
      %v1011 = vrot.slane %v1009, 4
      %v1012 = vshll.u32 %v953, 16
      %v1014 = vrot.slane %v1012, 5
      %v1015 = vor.u32 %v1011, %v1014
      %v1016 = vrot.slane %v1015, 4
      %v1018 = vshll.u32 %v954, 16
      %v1020 = vrot.slane %v1018, 5
      %v1021 = vsel %vm965, %v1016, %v1020
      %v1023 = vshrl.u32 %v955, 16
      %v1025 = vrot.slane %v1023, 4
      %v1026 = vshll.u32 %v955, 16
      %v1028 = vrot.slane %v1026, 5
      %v1029 = vor.u32 %v1025, %v1028
      %v1030 = vrot.slane %v1029, 4
      %v1032 = vshll.u32 %v956, 16
      %v1034 = vrot.slane %v1032, 5
      %v1035 = vsel %vm965, %v1030, %v1034
      %v1037 = vshrl.u32 %v957, 16
      %v1039 = vrot.slane %v1037, 4
      %v1040 = vshll.u32 %v957, 16
      %v1042 = vrot.slane %v1040, 5
      %v1043 = vor.u32 %v1039, %v1042
      %v1044 = vrot.slane %v1043, 4
      %v1046 = vshll.u32 %v958, 16
      %v1048 = vrot.slane %v1046, 5
      %v1049 = vsel %vm965, %v1044, %v1048
      %v1051 = vshrl.u32 %v959, 16
      %v1053 = vrot.slane %v1051, 4
      %v1054 = vshll.u32 %v959, 16
      %v1056 = vrot.slane %v1054, 5
      %v1057 = vor.u32 %v1053, %v1056
      %v1058 = vrot.slane %v1057, 4
      %v1060 = vshll.u32 %v960, 16
      %v1062 = vrot.slane %v1060, 5
      %v1063 = vsel %vm965, %v1058, %v1062
      %v1065 = vshrl.u32 %v961, 16
      %v1067 = vrot.slane %v1065, 4
      %v1068 = vshll.u32 %v961, 16
      %v1070 = vrot.slane %v1068, 5
      %v1071 = vor.u32 %v1067, %v1070
      %v1072 = vrot.slane %v1071, 4
      %v1074 = vshll.u32 %v962, 16
      %v1076 = vrot.slane %v1074, 5
      %v1077 = vsel %vm965, %v1072, %v1076
      %1078 = vrot.lane.b32.xlu0 %v979, 8
      %v1079 = vpop.permute.xlu0 %1078
      %1080 = vrot.lane.b32.xlu0 %v993, 8
      %v1081 = vpop.permute.xlu0 %1080
      %1082 = vrot.lane.b32.xlu0 %v1007, 8
      %v1083 = vpop.permute.xlu0 %1082
      %1084 = vrot.lane.b32.xlu0 %v1021, 8
      %v1085 = vpop.permute.xlu0 %1084
      %1086 = vrot.lane.b32.xlu0 %v1035, 8
      %v1087 = vpop.permute.xlu0 %1086
      %1088 = vrot.lane.b32.xlu0 %v1049, 8
      %v1089 = vpop.permute.xlu0 %1088
      %1090 = vrot.lane.b32.xlu0 %v1063, 8
      %v1091 = vpop.permute.xlu0 %1090
      %1092 = vrot.lane.b32.xlu0 %v1077, 8
      %v1093 = vpop.permute.xlu0 %1092
      %vm1102 = vcmask 93248
      %1103 = vst.msk [vmem:[#allocation5] sm:$0xf] %vm1102, %v1079
      %1104 = vst.msk [vmem:[#allocation5 + $0x4] sm:$0xf] %vm1102, %v1081
      %1105 = vst.msk [vmem:[#allocation5 + $0x8] sm:$0xf] %vm1102, %v1083
      %1106 = vst.msk [vmem:[#allocation5 + $0xc] sm:$0xf] %vm1102, %v1085
      %1107 = vst.msk [vmem:[#allocation5 + $0x10] sm:$0xf] %vm1102, %v1087
      %1108 = vst.msk [vmem:[#allocation5 + $0x14] sm:$0xf] %vm1102, %v1089
      %1109 = vst.msk [vmem:[#allocation5 + $0x18] sm:$0xf] %vm1102, %v1091
      %1110 = vst.msk [vmem:[#allocation5 + $0x1c] sm:$0xf] %vm1102, %v1093
      %v1111 = vld [vmem:[#allocation2] sm:$0xf]
      %v1112 = vld [vmem:[#allocation2 + $0x8] sm:$0xf]
      %v1113 = vld [vmem:[#allocation2 + $0x10] sm:$0xf]
      %v1114 = vld [vmem:[#allocation2 + $0x18] sm:$0xf]
      %v1115 = vld [vmem:[#allocation2 + $0x20] sm:$0xf]
      %v1116 = vld [vmem:[#allocation2 + $0x28] sm:$0xf]
      %v1117 = vld [vmem:[#allocation2 + $0x30] sm:$0xf]
      %v1118 = vld [vmem:[#allocation2 + $0x38] sm:$0xf]
      %1127 = vrot.lane.b32.xlu0 %v1111, 4
      %v1128 = vpop.permute.xlu0 %1127
      %1129 = vrot.lane.b32.xlu0 %v1112, 4
      %v1130 = vpop.permute.xlu0 %1129
      %1131 = vrot.lane.b32.xlu0 %v1113, 4
      %v1132 = vpop.permute.xlu0 %1131
      %1133 = vrot.lane.b32.xlu0 %v1114, 4
      %v1134 = vpop.permute.xlu0 %1133
      %1135 = vrot.lane.b32.xlu0 %v1115, 4
      %v1136 = vpop.permute.xlu0 %1135
      %1137 = vrot.lane.b32.xlu0 %v1116, 4
      %v1138 = vpop.permute.xlu0 %1137
      %1139 = vrot.lane.b32.xlu0 %v1117, 4
      %v1140 = vpop.permute.xlu0 %1139
      %1141 = vrot.lane.b32.xlu0 %v1118, 4
      %v1142 = vpop.permute.xlu0 %1141
      %1151 = vst.msk [vmem:[#allocation5] sm:$0xf] %vm905, %v1128
      %1152 = vst.msk [vmem:[#allocation5 + $0x4] sm:$0xf] %vm905, %v1130
      %1153 = vst.msk [vmem:[#allocation5 + $0x8] sm:$0xf] %vm905, %v1132
      %1154 = vst.msk [vmem:[#allocation5 + $0xc] sm:$0xf] %vm905, %v1134
      %1155 = vst.msk [vmem:[#allocation5 + $0x10] sm:$0xf] %vm905, %v1136
      %1156 = vst.msk [vmem:[#allocation5 + $0x14] sm:$0xf] %vm905, %v1138
      %1157 = vst.msk [vmem:[#allocation5 + $0x18] sm:$0xf] %vm905, %v1140
      %1158 = vst.msk [vmem:[#allocation5 + $0x1c] sm:$0xf] %vm905, %v1142
      %v1159 = vld [vmem:[#allocation2] sm:$0xf]
      %v1160 = vld [vmem:[#allocation2 + $0x8] sm:$0xf]
      %v1161 = vld [vmem:[#allocation2 + $0x10] sm:$0xf]
      %v1162 = vld [vmem:[#allocation2 + $0x18] sm:$0xf]
      %v1163 = vld [vmem:[#allocation2 + $0x20] sm:$0xf]
      %v1164 = vld [vmem:[#allocation2 + $0x28] sm:$0xf]
      %v1165 = vld [vmem:[#allocation2 + $0x30] sm:$0xf]
      %v1166 = vld [vmem:[#allocation2 + $0x38] sm:$0xf]
      %1175 = vrot.lane.b32.xlu0 %v1159, 4
      %v1176 = vpop.permute.xlu0 %1175
      %1177 = vrot.lane.b32.xlu0 %v1160, 4
      %v1178 = vpop.permute.xlu0 %1177
      %1179 = vrot.lane.b32.xlu0 %v1161, 4
      %v1180 = vpop.permute.xlu0 %1179
      %1181 = vrot.lane.b32.xlu0 %v1162, 4
      %v1182 = vpop.permute.xlu0 %1181
      %1183 = vrot.lane.b32.xlu0 %v1163, 4
      %v1184 = vpop.permute.xlu0 %1183
      %1185 = vrot.lane.b32.xlu0 %v1164, 4
      %v1186 = vpop.permute.xlu0 %1185
      %1187 = vrot.lane.b32.xlu0 %v1165, 4
      %v1188 = vpop.permute.xlu0 %1187
      %1189 = vrot.lane.b32.xlu0 %v1166, 4
      %v1190 = vpop.permute.xlu0 %1189
      %vm1199 = vcmask 158848
      %1200 = vst.msk [vmem:[#allocation5] sm:$0xf] %vm1199, %v1176
      %1201 = vst.msk [vmem:[#allocation5 + $0x4] sm:$0xf] %vm1199, %v1178
      %1202 = vst.msk [vmem:[#allocation5 + $0x8] sm:$0xf] %vm1199, %v1180
      %1203 = vst.msk [vmem:[#allocation5 + $0xc] sm:$0xf] %vm1199, %v1182
      %1204 = vst.msk [vmem:[#allocation5 + $0x10] sm:$0xf] %vm1199, %v1184
      %1205 = vst.msk [vmem:[#allocation5 + $0x14] sm:$0xf] %vm1199, %v1186
      %1206 = vst.msk [vmem:[#allocation5 + $0x18] sm:$0xf] %vm1199, %v1188
      %1207 = vst.msk [vmem:[#allocation5 + $0x1c] sm:$0xf] %vm1199, %v1190
      %v1208 = vld [vmem:[#allocation2] sm:$0xf]
      %v1209 = vld [vmem:[#allocation2 + $0x4] sm:$0x1]
      %v1210 = vld [vmem:[#allocation2 + $0x8] sm:$0xf]
      %v1211 = vld [vmem:[#allocation2 + $0xc] sm:$0x1]
      %v1212 = vld [vmem:[#allocation2 + $0x10] sm:$0xf]
      %v1213 = vld [vmem:[#allocation2 + $0x14] sm:$0x1]
      %v1214 = vld [vmem:[#allocation2 + $0x18] sm:$0xf]
      %v1215 = vld [vmem:[#allocation2 + $0x1c] sm:$0x1]
      %v1216 = vld [vmem:[#allocation2 + $0x20] sm:$0xf]
      %v1217 = vld [vmem:[#allocation2 + $0x24] sm:$0x1]
      %v1218 = vld [vmem:[#allocation2 + $0x28] sm:$0xf]
      %v1219 = vld [vmem:[#allocation2 + $0x2c] sm:$0x1]
      %v1220 = vld [vmem:[#allocation2 + $0x30] sm:$0xf]
      %v1221 = vld [vmem:[#allocation2 + $0x34] sm:$0x1]
      %v1222 = vld [vmem:[#allocation2 + $0x38] sm:$0xf]
      %v1223 = vld [vmem:[#allocation2 + $0x3c] sm:$0x1]
      %v1225 = vshrl.u32 %v1208, 16
      %v1227 = vrot.slane %v1225, 4
      %v1228 = vshll.u32 %v1208, 16
      %v1230 = vrot.slane %v1228, 5
      %v1231 = vor.u32 %v1227, %v1230
      %v1232 = vrot.slane %v1231, 4
      %v1234 = vshll.u32 %v1209, 16
      %v1236 = vrot.slane %v1234, 5
      %v1237 = vsel %vm965, %v1232, %v1236
      %v1239 = vshrl.u32 %v1210, 16
      %v1241 = vrot.slane %v1239, 4
      %v1242 = vshll.u32 %v1210, 16
      %v1244 = vrot.slane %v1242, 5
      %v1245 = vor.u32 %v1241, %v1244
      %v1246 = vrot.slane %v1245, 4
      %v1248 = vshll.u32 %v1211, 16
      %v1250 = vrot.slane %v1248, 5
      %v1251 = vsel %vm965, %v1246, %v1250
      %v1253 = vshrl.u32 %v1212, 16
      %v1255 = vrot.slane %v1253, 4
      %v1256 = vshll.u32 %v1212, 16
      %v1258 = vrot.slane %v1256, 5
      %v1259 = vor.u32 %v1255, %v1258
      %v1260 = vrot.slane %v1259, 4
      %v1262 = vshll.u32 %v1213, 16
      %v1264 = vrot.slane %v1262, 5
      %v1265 = vsel %vm965, %v1260, %v1264
      %v1267 = vshrl.u32 %v1214, 16
      %v1269 = vrot.slane %v1267, 4
      %v1270 = vshll.u32 %v1214, 16
      %v1272 = vrot.slane %v1270, 5
      %v1273 = vor.u32 %v1269, %v1272
      %v1274 = vrot.slane %v1273, 4
      %v1276 = vshll.u32 %v1215, 16
      %v1278 = vrot.slane %v1276, 5
      %v1279 = vsel %vm965, %v1274, %v1278
      %v1281 = vshrl.u32 %v1216, 16
      %v1283 = vrot.slane %v1281, 4
      %v1284 = vshll.u32 %v1216, 16
      %v1286 = vrot.slane %v1284, 5
      %v1287 = vor.u32 %v1283, %v1286
      %v1288 = vrot.slane %v1287, 4
      %v1290 = vshll.u32 %v1217, 16
      %v1292 = vrot.slane %v1290, 5
      %v1293 = vsel %vm965, %v1288, %v1292
      %v1295 = vshrl.u32 %v1218, 16
      %v1297 = vrot.slane %v1295, 4
      %v1298 = vshll.u32 %v1218, 16
      %v1300 = vrot.slane %v1298, 5
      %v1301 = vor.u32 %v1297, %v1300
      %v1302 = vrot.slane %v1301, 4
      %v1304 = vshll.u32 %v1219, 16
      %v1306 = vrot.slane %v1304, 5
      %v1307 = vsel %vm965, %v1302, %v1306
      %v1309 = vshrl.u32 %v1220, 16
      %v1311 = vrot.slane %v1309, 4
      %v1312 = vshll.u32 %v1220, 16
      %v1314 = vrot.slane %v1312, 5
      %v1315 = vor.u32 %v1311, %v1314
      %v1316 = vrot.slane %v1315, 4
      %v1318 = vshll.u32 %v1221, 16
      %v1320 = vrot.slane %v1318, 5
      %v1321 = vsel %vm965, %v1316, %v1320
      %v1323 = vshrl.u32 %v1222, 16
      %v1325 = vrot.slane %v1323, 4
      %v1326 = vshll.u32 %v1222, 16
      %v1328 = vrot.slane %v1326, 5
      %v1329 = vor.u32 %v1325, %v1328
      %v1330 = vrot.slane %v1329, 4
      %v1332 = vshll.u32 %v1223, 16
      %v1334 = vrot.slane %v1332, 5
      %v1335 = vsel %vm965, %v1330, %v1334
      %1336 = vrot.lane.b32.xlu0 %v1237, 12
      %v1337 = vpop.permute.xlu0 %1336
      %1338 = vrot.lane.b32.xlu0 %v1251, 12
      %v1339 = vpop.permute.xlu0 %1338
      %1340 = vrot.lane.b32.xlu0 %v1265, 12
      %v1341 = vpop.permute.xlu0 %1340
      %1342 = vrot.lane.b32.xlu0 %v1279, 12
      %v1343 = vpop.permute.xlu0 %1342
      %1344 = vrot.lane.b32.xlu0 %v1293, 12
      %v1345 = vpop.permute.xlu0 %1344
      %1346 = vrot.lane.b32.xlu0 %v1307, 12
      %v1347 = vpop.permute.xlu0 %1346
      %1348 = vrot.lane.b32.xlu0 %v1321, 12
      %v1349 = vpop.permute.xlu0 %1348
      %1350 = vrot.lane.b32.xlu0 %v1335, 12
      %v1351 = vpop.permute.xlu0 %1350
      %vm1360 = vcmask 191648
      %1361 = vst.msk [vmem:[#allocation5] sm:$0xf] %vm1360, %v1337
      %1362 = vst.msk [vmem:[#allocation5 + $0x4] sm:$0xf] %vm1360, %v1339
      %1363 = vst.msk [vmem:[#allocation5 + $0x8] sm:$0xf] %vm1360, %v1341
      %1364 = vst.msk [vmem:[#allocation5 + $0xc] sm:$0xf] %vm1360, %v1343
      %1365 = vst.msk [vmem:[#allocation5 + $0x10] sm:$0xf] %vm1360, %v1345
      %1366 = vst.msk [vmem:[#allocation5 + $0x14] sm:$0xf] %vm1360, %v1347
      %1367 = vst.msk [vmem:[#allocation5 + $0x18] sm:$0xf] %vm1360, %v1349
      %1368 = vst.msk [vmem:[#allocation5 + $0x1c] sm:$0xf] %vm1360, %v1351
      %v1369 = vld [vmem:[%s590] sm:$0xf]
      %v1370 = vld [vmem:[%s590 + $0x8] sm:$0xf]
      %v1371 = vld [vmem:[%s590 + $0x10] sm:$0xf]
      %v1372 = vld [vmem:[%s590 + $0x18] sm:$0xf]
      %v1373 = vld [vmem:[%s590 + $0x20] sm:$0xf]
      %v1374 = vld [vmem:[%s590 + $0x28] sm:$0xf]
      %v1375 = vld [vmem:[%s590 + $0x30] sm:$0xf]
      %v1376 = vld [vmem:[%s590 + $0x38] sm:$0xf]
      %1385 = vrot.lane.b32.xlu0 %v1369, 24
      %v1386 = vpop.permute.xlu0 %1385
      %1387 = vrot.lane.b32.xlu0 %v1370, 24
      %v1388 = vpop.permute.xlu0 %1387
      %1389 = vrot.lane.b32.xlu0 %v1371, 24
      %v1390 = vpop.permute.xlu0 %1389
      %1391 = vrot.lane.b32.xlu0 %v1372, 24
      %v1392 = vpop.permute.xlu0 %1391
      %1393 = vrot.lane.b32.xlu0 %v1373, 24
      %v1394 = vpop.permute.xlu0 %1393
      %1395 = vrot.lane.b32.xlu0 %v1374, 24
      %v1396 = vpop.permute.xlu0 %1395
      %1397 = vrot.lane.b32.xlu0 %v1375, 24
      %v1398 = vpop.permute.xlu0 %1397
      %1399 = vrot.lane.b32.xlu0 %v1376, 24
      %v1400 = vpop.permute.xlu0 %1399
      %vm1409 = vcmask 224448
      %1410 = vst.msk [vmem:[#allocation5] sm:$0xf] %vm1409, %v1386
      %1411 = vst.msk [vmem:[#allocation5 + $0x4] sm:$0xf] %vm1409, %v1388
      %1412 = vst.msk [vmem:[#allocation5 + $0x8] sm:$0xf] %vm1409, %v1390
      %1413 = vst.msk [vmem:[#allocation5 + $0xc] sm:$0xf] %vm1409, %v1392
      %1414 = vst.msk [vmem:[#allocation5 + $0x10] sm:$0xf] %vm1409, %v1394
      %1415 = vst.msk [vmem:[#allocation5 + $0x14] sm:$0xf] %vm1409, %v1396
      %1416 = vst.msk [vmem:[#allocation5 + $0x18] sm:$0xf] %vm1409, %v1398
      %1417 = vst.msk [vmem:[#allocation5 + $0x1c] sm:$0xf] %vm1409, %v1400
      %v1418 = vld [vmem:[%s590] sm:$0xf]
      %v1419 = vld [vmem:[%s590 + $0x8] sm:$0xf]
      %v1420 = vld [vmem:[%s590 + $0x10] sm:$0xf]
      %v1421 = vld [vmem:[%s590 + $0x18] sm:$0xf]
      %v1422 = vld [vmem:[%s590 + $0x20] sm:$0xf]
      %v1423 = vld [vmem:[%s590 + $0x28] sm:$0xf]
      %v1424 = vld [vmem:[%s590 + $0x30] sm:$0xf]
      %v1425 = vld [vmem:[%s590 + $0x38] sm:$0xf]
      %1434 = vrot.lane.b32.xlu0 %v1418, 24
      %v1435 = vpop.permute.xlu0 %1434
      %1436 = vrot.lane.b32.xlu0 %v1419, 24
      %v1437 = vpop.permute.xlu0 %1436
      %1438 = vrot.lane.b32.xlu0 %v1420, 24
      %v1439 = vpop.permute.xlu0 %1438
      %1440 = vrot.lane.b32.xlu0 %v1421, 24
      %v1441 = vpop.permute.xlu0 %1440
      %1442 = vrot.lane.b32.xlu0 %v1422, 24
      %v1443 = vpop.permute.xlu0 %1442
      %1444 = vrot.lane.b32.xlu0 %v1423, 24
      %v1445 = vpop.permute.xlu0 %1444
      %1446 = vrot.lane.b32.xlu0 %v1424, 24
      %v1447 = vpop.permute.xlu0 %1446
      %1448 = vrot.lane.b32.xlu0 %v1425, 24
      %v1449 = vpop.permute.xlu0 %1448
      %vm1458 = vcmask 257248
      %1459 = vst.msk [vmem:[#allocation5] sm:$0xf] %vm1458, %v1435
      %1460 = vst.msk [vmem:[#allocation5 + $0x4] sm:$0xf] %vm1458, %v1437
      %1461 = vst.msk [vmem:[#allocation5 + $0x8] sm:$0xf] %vm1458, %v1439
      %1462 = vst.msk [vmem:[#allocation5 + $0xc] sm:$0xf] %vm1458, %v1441
      %1463 = vst.msk [vmem:[#allocation5 + $0x10] sm:$0xf] %vm1458, %v1443
      %1464 = vst.msk [vmem:[#allocation5 + $0x14] sm:$0xf] %vm1458, %v1445
      %1465 = vst.msk [vmem:[#allocation5 + $0x18] sm:$0xf] %vm1458, %v1447
      %1466 = vst.msk [vmem:[#allocation5 + $0x1c] sm:$0xf] %vm1458, %v1449
      %v1467 = vld [vmem:[%s590] sm:$0xf]
      %v1468 = vld [vmem:[%s590 + $0x4] sm:$0x1]
      %v1469 = vld [vmem:[%s590 + $0x8] sm:$0xf]
      %v1470 = vld [vmem:[%s590 + $0xc] sm:$0x1]
      %v1471 = vld [vmem:[%s590 + $0x10] sm:$0xf]
      %v1472 = vld [vmem:[%s590 + $0x14] sm:$0x1]
      %v1473 = vld [vmem:[%s590 + $0x18] sm:$0xf]
      %v1474 = vld [vmem:[%s590 + $0x1c] sm:$0x1]
      %v1475 = vld [vmem:[%s590 + $0x20] sm:$0xf]
      %v1476 = vld [vmem:[%s590 + $0x24] sm:$0x1]
      %v1477 = vld [vmem:[%s590 + $0x28] sm:$0xf]
      %v1478 = vld [vmem:[%s590 + $0x2c] sm:$0x1]
      %v1479 = vld [vmem:[%s590 + $0x30] sm:$0xf]
      %v1480 = vld [vmem:[%s590 + $0x34] sm:$0x1]
      %v1481 = vld [vmem:[%s590 + $0x38] sm:$0xf]
      %v1482 = vld [vmem:[%s590 + $0x3c] sm:$0x1]
      %v1484 = vshrl.u32 %v1467, 16
      %v1486 = vrot.slane %v1484, 4
      %v1487 = vshll.u32 %v1467, 16
      %v1489 = vrot.slane %v1487, 5
      %v1490 = vor.u32 %v1486, %v1489
      %v1491 = vrot.slane %v1490, 4
      %v1493 = vshll.u32 %v1468, 16
      %v1495 = vrot.slane %v1493, 5
      %v1496 = vsel %vm965, %v1491, %v1495
      %v1498 = vshrl.u32 %v1469, 16
      %v1500 = vrot.slane %v1498, 4
      %v1501 = vshll.u32 %v1469, 16
      %v1503 = vrot.slane %v1501, 5
      %v1504 = vor.u32 %v1500, %v1503
      %v1505 = vrot.slane %v1504, 4
      %v1507 = vshll.u32 %v1470, 16
      %v1509 = vrot.slane %v1507, 5
      %v1510 = vsel %vm965, %v1505, %v1509
      %v1512 = vshrl.u32 %v1471, 16
      %v1514 = vrot.slane %v1512, 4
      %v1515 = vshll.u32 %v1471, 16
      %v1517 = vrot.slane %v1515, 5
      %v1518 = vor.u32 %v1514, %v1517
      %v1519 = vrot.slane %v1518, 4
      %v1521 = vshll.u32 %v1472, 16
      %v1523 = vrot.slane %v1521, 5
      %v1524 = vsel %vm965, %v1519, %v1523
      %v1526 = vshrl.u32 %v1473, 16
      %v1528 = vrot.slane %v1526, 4
      %v1529 = vshll.u32 %v1473, 16
      %v1531 = vrot.slane %v1529, 5
      %v1532 = vor.u32 %v1528, %v1531
      %v1533 = vrot.slane %v1532, 4
      %v1535 = vshll.u32 %v1474, 16
      %v1537 = vrot.slane %v1535, 5
      %v1538 = vsel %vm965, %v1533, %v1537
      %v1540 = vshrl.u32 %v1475, 16
      %v1542 = vrot.slane %v1540, 4
      %v1543 = vshll.u32 %v1475, 16
      %v1545 = vrot.slane %v1543, 5
      %v1546 = vor.u32 %v1542, %v1545
      %v1547 = vrot.slane %v1546, 4
      %v1549 = vshll.u32 %v1476, 16
      %v1551 = vrot.slane %v1549, 5
      %v1552 = vsel %vm965, %v1547, %v1551
      %v1554 = vshrl.u32 %v1477, 16
      %v1556 = vrot.slane %v1554, 4
      %v1557 = vshll.u32 %v1477, 16
      %v1559 = vrot.slane %v1557, 5
      %v1560 = vor.u32 %v1556, %v1559
      %v1561 = vrot.slane %v1560, 4
      %v1563 = vshll.u32 %v1478, 16
      %v1565 = vrot.slane %v1563, 5
      %v1566 = vsel %vm965, %v1561, %v1565
      %v1568 = vshrl.u32 %v1479, 16
      %v1570 = vrot.slane %v1568, 4
      %v1571 = vshll.u32 %v1479, 16
      %v1573 = vrot.slane %v1571, 5
      %v1574 = vor.u32 %v1570, %v1573
      %v1575 = vrot.slane %v1574, 4
      %v1577 = vshll.u32 %v1480, 16
      %v1579 = vrot.slane %v1577, 5
      %v1580 = vsel %vm965, %v1575, %v1579
      %v1582 = vshrl.u32 %v1481, 16
      %v1584 = vrot.slane %v1582, 4
      %v1585 = vshll.u32 %v1481, 16
      %v1587 = vrot.slane %v1585, 5
      %v1588 = vor.u32 %v1584, %v1587
      %v1589 = vrot.slane %v1588, 4
      %v1591 = vshll.u32 %v1482, 16
      %v1593 = vrot.slane %v1591, 5
      %v1594 = vsel %vm965, %v1589, %v1593
      %1595 = vrot.lane.b32.xlu0 %v1496, 32
      %v1596 = vpop.permute.xlu0 %1595
      %1597 = vrot.lane.b32.xlu0 %v1510, 32
      %v1598 = vpop.permute.xlu0 %1597
      %1599 = vrot.lane.b32.xlu0 %v1524, 32
      %v1600 = vpop.permute.xlu0 %1599
      %1601 = vrot.lane.b32.xlu0 %v1538, 32
      %v1602 = vpop.permute.xlu0 %1601
      %1603 = vrot.lane.b32.xlu0 %v1552, 32
      %v1604 = vpop.permute.xlu0 %1603
      %1605 = vrot.lane.b32.xlu0 %v1566, 32
      %v1606 = vpop.permute.xlu0 %1605
      %1607 = vrot.lane.b32.xlu0 %v1580, 32
      %v1608 = vpop.permute.xlu0 %1607
      %1609 = vrot.lane.b32.xlu0 %v1594, 32
      %v1610 = vpop.permute.xlu0 %1609
      %vm1619 = vcmask 290048
      %1620 = vst.msk [vmem:[#allocation5] sm:$0xf] %vm1619, %v1596
      %1621 = vst.msk [vmem:[#allocation5 + $0x4] sm:$0xf] %vm1619, %v1598
      %1622 = vst.msk [vmem:[#allocation5 + $0x8] sm:$0xf] %vm1619, %v1600
      %1623 = vst.msk [vmem:[#allocation5 + $0xc] sm:$0xf] %vm1619, %v1602
      %1624 = vst.msk [vmem:[#allocation5 + $0x10] sm:$0xf] %vm1619, %v1604
      %1625 = vst.msk [vmem:[#allocation5 + $0x14] sm:$0xf] %vm1619, %v1606
      %1626 = vst.msk [vmem:[#allocation5 + $0x18] sm:$0xf] %vm1619, %v1608
      %1627 = vst.msk [vmem:[#allocation5 + $0x1c] sm:$0xf] %vm1619, %v1610
      %v1628 = vld [vmem:[#allocation5] sm:$0xf]
      %v1629 = vld [vmem:[#allocation5 + $0x4] sm:$0xf]
      %v1630 = vld [vmem:[#allocation5 + $0x8] sm:$0xf]
      %v1631 = vld [vmem:[#allocation5 + $0xc] sm:$0xf]
      %v1632 = vld [vmem:[#allocation5 + $0x10] sm:$0xf]
      %v1633 = vld [vmem:[#allocation5 + $0x14] sm:$0xf]
      %v1634 = vld [vmem:[#allocation5 + $0x18] sm:$0xf]
      %v1635 = vld [vmem:[#allocation5 + $0x1c] sm:$0xf]
      %v1636 = vld [vmem:[%s1] sm:$0xf]
      %v1637 = vld [vmem:[%s1 + $0x4] sm:$0xf]
      %v1638 = vld [vmem:[%s1 + $0x8] sm:$0xf]
      %v1639 = vld [vmem:[%s1 + $0xc] sm:$0xf]
      %v1640 = vld [vmem:[%s1 + $0x10] sm:$0x3]
      %v1641 = vld [vmem:[%s2] sm:$0x1]
      %v1643 = vlaneseq
      %v1644 = vshrl.u32 %v1643, 7
      %v1645 = vsub.s32 0, %v1644
      %v1646 = vrot.slane %v1641, %v1645
      %v1656 = vunpack.c.l.b16 %v1628
      %v1657 = vunpack.c.l.b16 %v1629
      %v1658 = vunpack.c.l.b16 %v1630
      %v1659 = vunpack.c.l.b16 %v1631
      %v1660 = vunpack.c.l.b16 %v1632
      %v1661 = vunpack.c.l.b16 %v1633
      %v1662 = vunpack.c.l.b16 %v1634
      %v1663 = vunpack.c.l.b16 %v1635
      %v1664 = vpack.c.b16 %v1657, %v1656
      %v1665 = vpack.c.b16 %v1659, %v1658
      %v1666 = vpack.c.b16 %v1661, %v1660
      %v1667 = vpack.c.b16 %v1663, %v1662
      %v1673 = vunpack.c.l.b16 %v1636
      %v1674 = vunpack.c.l.b16 %v1637
      %v1675 = vunpack.c.l.b16 %v1638
      %v1676 = vunpack.c.l.b16 %v1639
      %v1677 = vunpack.c.l.b16 %v1640
      %v1678 = vpack.c.b16 %v1674, %v1673
      %v1679 = vpack.c.b16 %v1676, %v1675
      %v1680 = vpack.c.b16 %v1677, %v1677
      %vm1683 = vcmask 293888
      %v1685 = vsel %vm1683, %v1664, 0
      %v1688 = vsel %vm1683, %v1665, 0
      %v1691 = vsel %vm1683, %v1666, 0
      %v1694 = vsel %vm1683, %v1667, 0
      %vm1696 = vcmask 1041408
      %v1698 = vsel %vm1696, %v1680, 0
      %1700 = vmatprep.subr.bf16.mxu0 0
      %1701 = vmatpush1.bf16.msra.mxu0 0
      %1702 = vmatprep.subr.bf16.mxu0 0
      %1703 = vmatpush1.bf16.msra.mxu0 0
      %1704 = vmatprep.subr.bf16.mxu0 0
      %1705 = vmatpush1.bf16.msra.mxu0 0
      %1706 = vmatprep.subr.bf16.mxu0 0
      %1707 = vmatpush1.bf16.msra.mxu0 0
      %1708 = vmatprep.subr.bf16.mxu0 0
      %1709 = vmatpush1.bf16.msra.mxu0 0
      %1710 = vmatprep.subr.bf16.mxu0 0
      %1711 = vmatpush1.bf16.msra.mxu0 %v1698
      %1712 = vmatprep.subr.bf16.mxu0 0
      %1713 = vmatpush1.bf16.msra.mxu0 %v1679
      %1714 = vmatprep.subr.bf16.mxu0 0
      %1715 = vmatpush1.bf16.msra.mxu0 %v1678
      %1716 = vmatprep.subr.bf16.mxu0 0
      %1717 = vmatpush2.bf16.msra.mxu0 0
      %1718 = vmatprep.subr.bf16.mxu0 0
      %1719 = vmatpush2.bf16.msra.mxu0 0
      %1720 = vmatprep.subr.bf16.mxu0 0
      %1721 = vmatpush2.bf16.msra.mxu0 0
      %1722 = vmatprep.subr.bf16.mxu0 0
      %1723 = vmatpush2.bf16.msra.mxu0 0
      %1724 = vmatprep.subr.bf16.mxu0 0
      %1725 = vmatpush2.bf16.msra.mxu0 0
      %1726 = vmatprep.subr.bf16.mxu0 0
      %1727 = vmatpush2.bf16.msra.mxu0 0
      %1728 = vmatprep.subr.bf16.mxu0 0
      %1729 = vmatpush2.bf16.msra.mxu0 0
      %1730 = vmatprep.subr.bf16.mxu0 0
      %1731 = vmatpush2.bf16.msra.mxu0 0
      %1732 = vmatprep.mubr.bf16.mxu0 0
      %1733 = vmatmul.mubr.bf16.gmra.mxu0 %v1685
      %v1734 = vpop.f32.mrf.mxu0
      %v1735 = vadd.f32 %v1646, %v1734
      %v1736 = vpop.f32.mrf.mxu0
      %v1737 = vpop.f32.mrf.mxu0
      %v1738 = vadd.f32 %v1646, %v1737
      %v1739 = vpop.f32.mrf.mxu0
      %1740 = vmatprep.mubr.bf16.mxu0 0
      %1741 = vmatmul.mubr.bf16.gmra.mxu0 %v1688
      %v1742 = vpop.f32.mrf.mxu0
      %v1743 = vadd.f32 %v1646, %v1742
      %v1744 = vpop.f32.mrf.mxu0
      %v1745 = vpop.f32.mrf.mxu0
      %v1746 = vadd.f32 %v1646, %v1745
      %v1747 = vpop.f32.mrf.mxu0
      %1748 = vmatprep.mubr.bf16.mxu0 0
      %1749 = vmatmul.mubr.bf16.gmra.mxu0 %v1691
      %v1750 = vpop.f32.mrf.mxu0
      %v1751 = vadd.f32 %v1646, %v1750
      %v1752 = vpop.f32.mrf.mxu0
      %v1753 = vpop.f32.mrf.mxu0
      %v1754 = vadd.f32 %v1646, %v1753
      %v1755 = vpop.f32.mrf.mxu0
      %1756 = vmatprep.mubr.bf16.mxu0 0
      %1757 = vmatmul.mubr.bf16.gmra.mxu0 %v1694
      %v1758 = vpop.f32.mrf.mxu0
      %v1759 = vadd.f32 %v1646, %v1758
      %v1760 = vpop.f32.mrf.mxu0
      %v1761 = vpop.f32.mrf.mxu0
      %v1762 = vadd.f32 %v1646, %v1761
      %v1763 = vpop.f32.mrf.mxu0
      %1764 = vdwg.mxu0
      %v1765 = vmax.f32 %v1735, 0.0
      %v1766 = vmax.f32 %v1738, 0.0
      %v1767 = vmax.f32 %v1743, 0.0
      %v1768 = vmax.f32 %v1746, 0.0
      %v1769 = vmax.f32 %v1751, 0.0
      %v1770 = vmax.f32 %v1754, 0.0
      %v1771 = vmax.f32 %v1759, 0.0
      %v1772 = vmax.f32 %v1762, 0.0
      %v1773 = vld [vmem:[%s3] sm:$0xf]
      %v1774 = vld [vmem:[%s3 + $0x4] sm:$0xf]
      %v1775 = vld [vmem:[%s3 + $0x8] sm:$0xf]
      %v1776 = vld [vmem:[%s3 + $0xc] sm:$0xf]
      %v1777 = vld [vmem:[%s3 + $0x10] sm:$0x3]
      %v1778 = vld [vmem:[%s4] sm:$0x1]
      %v1780 = vlaneseq
      %v1781 = vshrl.u32 %v1780, 7
      %v1782 = vsub.s32 0, %v1781
      %v1783 = vrot.slane %v1778, %v1782
      %v1790 = vunpack.c.l.b16 %v1773
      %v1791 = vunpack.c.l.b16 %v1774
      %v1792 = vunpack.c.l.b16 %v1775
      %v1793 = vunpack.c.l.b16 %v1776
      %v1794 = vunpack.c.l.b16 %v1777
      %v1795 = vpack.c.b16 %v1791, %v1790
      %v1796 = vpack.c.b16 %v1793, %v1792
      %v1797 = vpack.c.b16 %v1794, %v1794
      %v1801 = vsel %vm1696, %v1797, 0
      %1803 = vmatprep.subr.bf16.mxu0 0
      %1804 = vmatpush1.bf16.msra.mxu0 0
      %1805 = vmatprep.subr.bf16.mxu0 0
      %1806 = vmatpush1.bf16.msra.mxu0 0
      %1807 = vmatprep.subr.bf16.mxu0 0
      %1808 = vmatpush1.bf16.msra.mxu0 0
      %1809 = vmatprep.subr.bf16.mxu0 0
      %1810 = vmatpush1.bf16.msra.mxu0 0
      %1811 = vmatprep.subr.bf16.mxu0 0
      %1812 = vmatpush1.bf16.msra.mxu0 0
      %1813 = vmatprep.subr.bf16.mxu0 0
      %1814 = vmatpush1.bf16.msra.mxu0 %v1801
      %1815 = vmatprep.subr.bf16.mxu0 0
      %1816 = vmatpush1.bf16.msra.mxu0 %v1796
      %1817 = vmatprep.subr.bf16.mxu0 0
      %1818 = vmatpush1.bf16.msra.mxu0 %v1795
      %1819 = vmatprep.subr.bf16.mxu0 0
      %1820 = vmatpush2.bf16.msra.mxu0 0
      %1821 = vmatprep.subr.bf16.mxu0 0
      %1822 = vmatpush2.bf16.msra.mxu0 0
      %1823 = vmatprep.subr.bf16.mxu0 0
      %1824 = vmatpush2.bf16.msra.mxu0 0
      %1825 = vmatprep.subr.bf16.mxu0 0
      %1826 = vmatpush2.bf16.msra.mxu0 0
      %1827 = vmatprep.subr.bf16.mxu0 0
      %1828 = vmatpush2.bf16.msra.mxu0 0
      %1829 = vmatprep.subr.bf16.mxu0 0
      %1830 = vmatpush2.bf16.msra.mxu0 0
      %1831 = vmatprep.subr.bf16.mxu0 0
      %1832 = vmatpush2.bf16.msra.mxu0 0
      %1833 = vmatprep.subr.bf16.mxu0 0
      %1834 = vmatpush2.bf16.msra.mxu0 0
      %1835 = vmatprep.mubr.bf16.mxu0 0
      %1836 = vmatmul.mubr.bf16.gmra.mxu0 %v1685
      %v1837 = vpop.f32.mrf.mxu0
      %v1838 = vadd.f32 %v1783, %v1837
      %v1839 = vpop.f32.mrf.mxu0
      %v1840 = vpop.f32.mrf.mxu0
      %v1841 = vadd.f32 %v1783, %v1840
      %v1842 = vpop.f32.mrf.mxu0
      %1843 = vmatprep.mubr.bf16.mxu0 0
      %1844 = vmatmul.mubr.bf16.gmra.mxu0 %v1688
      %v1845 = vpop.f32.mrf.mxu0
      %v1846 = vadd.f32 %v1783, %v1845
      %v1847 = vpop.f32.mrf.mxu0
      %v1848 = vpop.f32.mrf.mxu0
      %v1849 = vadd.f32 %v1783, %v1848
      %v1850 = vpop.f32.mrf.mxu0
      %1851 = vmatprep.mubr.bf16.mxu0 0
      %1852 = vmatmul.mubr.bf16.gmra.mxu0 %v1691
      %v1853 = vpop.f32.mrf.mxu0
      %v1854 = vadd.f32 %v1783, %v1853
      %v1855 = vpop.f32.mrf.mxu0
      %v1856 = vpop.f32.mrf.mxu0
      %v1857 = vadd.f32 %v1783, %v1856
      %v1858 = vpop.f32.mrf.mxu0
      %1859 = vmatprep.mubr.bf16.mxu0 0
      %1860 = vmatmul.mubr.bf16.gmra.mxu0 %v1694
      %v1861 = vpop.f32.mrf.mxu0
      %v1862 = vadd.f32 %v1783, %v1861
      %v1863 = vpop.f32.mrf.mxu0
      %v1864 = vpop.f32.mrf.mxu0
      %v1865 = vadd.f32 %v1783, %v1864
      %v1866 = vpop.f32.mrf.mxu0
      %1867 = vdwg.mxu0
      %v1868 = vpack.c.bf16 %v1766, %v1765
      %v1869 = vpack.c.bf16 %v1768, %v1767
      %v1870 = vpack.c.bf16 %v1770, %v1769
      %v1871 = vpack.c.bf16 %v1772, %v1771
      %v1876 = vunpack.c.l.b16 %v1868
      %v1877 = vunpack.c.h.b16 %v1868
      %v1878 = vunpack.c.l.b16 %v1869
      %v1879 = vunpack.c.h.b16 %v1869
      %v1880 = vunpack.c.l.b16 %v1870
      %v1881 = vunpack.c.h.b16 %v1870
      %v1882 = vunpack.c.l.b16 %v1871
      %v1883 = vunpack.c.h.b16 %v1871
      %v1884 = vpack.c.b16 %v1876, %v1876
      %v1885 = vpack.c.b16 %v1877, %v1877
      %v1886 = vpack.c.b16 %v1878, %v1878
      %v1887 = vpack.c.b16 %v1879, %v1879
      %v1888 = vpack.c.b16 %v1880, %v1880
      %v1889 = vpack.c.b16 %v1881, %v1881
      %v1890 = vpack.c.b16 %v1882, %v1882
      %v1891 = vpack.c.b16 %v1883, %v1883
      %1892 = vrot.lane.b32.xlu0 %v1884, 12
      %v1893 = vpop.permute.xlu0 %1892
      %1894 = vrot.lane.b32.xlu0 %v1885, 12
      %v1895 = vpop.permute.xlu0 %1894
      %1896 = vrot.lane.b32.xlu0 %v1886, 12
      %v1897 = vpop.permute.xlu0 %1896
      %1898 = vrot.lane.b32.xlu0 %v1887, 12
      %v1899 = vpop.permute.xlu0 %1898
      %1900 = vrot.lane.b32.xlu0 %v1888, 12
      %v1901 = vpop.permute.xlu0 %1900
      %1902 = vrot.lane.b32.xlu0 %v1889, 12
      %v1903 = vpop.permute.xlu0 %1902
      %1904 = vrot.lane.b32.xlu0 %v1890, 12
      %v1905 = vpop.permute.xlu0 %1904
      %1906 = vrot.lane.b32.xlu0 %v1891, 12
      %v1907 = vpop.permute.xlu0 %1906
      %1916 = vst.msk [vmem:[#allocation3] sm:$0xf] %vm905, %v1893
      %1917 = vst.msk [vmem:[#allocation3 + $0x8] sm:$0xf] %vm905, %v1895
      %1918 = vst.msk [vmem:[#allocation3 + $0x10] sm:$0xf] %vm905, %v1897
      %1919 = vst.msk [vmem:[#allocation3 + $0x18] sm:$0xf] %vm905, %v1899
      %1920 = vst.msk [vmem:[#allocation3 + $0x20] sm:$0xf] %vm905, %v1901
      %1921 = vst.msk [vmem:[#allocation3 + $0x28] sm:$0xf] %vm905, %v1903
      %1922 = vst.msk [vmem:[#allocation3 + $0x30] sm:$0xf] %vm905, %v1905
      %1923 = vst.msk [vmem:[#allocation3 + $0x38] sm:$0xf] %vm905, %v1907
      %v1924 = vld [vmem:[#allocation2] sm:$0xf]
      %v1925 = vld [vmem:[#allocation2 + $0x8] sm:$0xf]
      %v1926 = vld [vmem:[#allocation2 + $0x10] sm:$0xf]
      %v1927 = vld [vmem:[#allocation2 + $0x18] sm:$0xf]
      %v1928 = vld [vmem:[#allocation2 + $0x20] sm:$0xf]
      %v1929 = vld [vmem:[#allocation2 + $0x28] sm:$0xf]
      %v1930 = vld [vmem:[#allocation2 + $0x30] sm:$0xf]
      %v1931 = vld [vmem:[#allocation2 + $0x38] sm:$0xf]
      %1940 = vrot.lane.b32.xlu0 %v1924, 124
      %v1941 = vpop.permute.xlu0 %1940
      %1942 = vrot.lane.b32.xlu0 %v1925, 124
      %v1943 = vpop.permute.xlu0 %1942
      %1944 = vrot.lane.b32.xlu0 %v1926, 124
      %v1945 = vpop.permute.xlu0 %1944
      %1946 = vrot.lane.b32.xlu0 %v1927, 124
      %v1947 = vpop.permute.xlu0 %1946
      %1948 = vrot.lane.b32.xlu0 %v1928, 124
      %v1949 = vpop.permute.xlu0 %1948
      %1950 = vrot.lane.b32.xlu0 %v1929, 124
      %v1951 = vpop.permute.xlu0 %1950
      %1952 = vrot.lane.b32.xlu0 %v1930, 124
      %v1953 = vpop.permute.xlu0 %1952
      %1954 = vrot.lane.b32.xlu0 %v1931, 124
      %v1955 = vpop.permute.xlu0 %1954
      %1964 = vst.msk [vmem:[#allocation5] sm:$0xf] %vm922, %v1941
      %1965 = vst.msk [vmem:[#allocation5 + $0x4] sm:$0xf] %vm922, %v1943
      %1966 = vst.msk [vmem:[#allocation5 + $0x8] sm:$0xf] %vm922, %v1945
      %1967 = vst.msk [vmem:[#allocation5 + $0xc] sm:$0xf] %vm922, %v1947
      %1968 = vst.msk [vmem:[#allocation5 + $0x10] sm:$0xf] %vm922, %v1949
      %1969 = vst.msk [vmem:[#allocation5 + $0x14] sm:$0xf] %vm922, %v1951
      %1970 = vst.msk [vmem:[#allocation5 + $0x18] sm:$0xf] %vm922, %v1953
      %1971 = vst.msk [vmem:[#allocation5 + $0x1c] sm:$0xf] %vm922, %v1955
      %v1972 = vld [vmem:[#allocation2] sm:$0xf]
      %v1973 = vld [vmem:[#allocation2 + $0x4] sm:$0x1]
      %v1974 = vld [vmem:[#allocation2 + $0x8] sm:$0xf]
      %v1975 = vld [vmem:[#allocation2 + $0xc] sm:$0x1]
      %v1976 = vld [vmem:[#allocation2 + $0x10] sm:$0xf]
      %v1977 = vld [vmem:[#allocation2 + $0x14] sm:$0x1]
      %v1978 = vld [vmem:[#allocation2 + $0x18] sm:$0xf]
      %v1979 = vld [vmem:[#allocation2 + $0x1c] sm:$0x1]
      %v1980 = vld [vmem:[#allocation2 + $0x20] sm:$0xf]
      %v1981 = vld [vmem:[#allocation2 + $0x24] sm:$0x1]
      %v1982 = vld [vmem:[#allocation2 + $0x28] sm:$0xf]
      %v1983 = vld [vmem:[#allocation2 + $0x2c] sm:$0x1]
      %v1984 = vld [vmem:[#allocation2 + $0x30] sm:$0xf]
      %v1985 = vld [vmem:[#allocation2 + $0x34] sm:$0x1]
      %v1986 = vld [vmem:[#allocation2 + $0x38] sm:$0xf]
      %v1987 = vld [vmem:[#allocation2 + $0x3c] sm:$0x1]
      %v1989 = vshrl.u32 %v1972, 16
      %v1991 = vrot.slane %v1989, 4
      %v1992 = vshll.u32 %v1972, 16
      %v1994 = vrot.slane %v1992, 5
      %v1995 = vor.u32 %v1991, %v1994
      %v1996 = vrot.slane %v1995, 4
      %v1998 = vshll.u32 %v1973, 16
      %v2000 = vrot.slane %v1998, 5
      %v2001 = vsel %vm965, %v1996, %v2000
      %v2003 = vshrl.u32 %v1974, 16
      %v2005 = vrot.slane %v2003, 4
      %v2006 = vshll.u32 %v1974, 16
      %v2008 = vrot.slane %v2006, 5
      %v2009 = vor.u32 %v2005, %v2008
      %v2010 = vrot.slane %v2009, 4
      %v2012 = vshll.u32 %v1975, 16
      %v2014 = vrot.slane %v2012, 5
      %v2015 = vsel %vm965, %v2010, %v2014
      %v2017 = vshrl.u32 %v1976, 16
      %v2019 = vrot.slane %v2017, 4
      %v2020 = vshll.u32 %v1976, 16
      %v2022 = vrot.slane %v2020, 5
      %v2023 = vor.u32 %v2019, %v2022
      %v2024 = vrot.slane %v2023, 4
      %v2026 = vshll.u32 %v1977, 16
      %v2028 = vrot.slane %v2026, 5
      %v2029 = vsel %vm965, %v2024, %v2028
      %v2031 = vshrl.u32 %v1978, 16
      %v2033 = vrot.slane %v2031, 4
      %v2034 = vshll.u32 %v1978, 16
      %v2036 = vrot.slane %v2034, 5
      %v2037 = vor.u32 %v2033, %v2036
      %v2038 = vrot.slane %v2037, 4
      %v2040 = vshll.u32 %v1979, 16
      %v2042 = vrot.slane %v2040, 5
      %v2043 = vsel %vm965, %v2038, %v2042
      %v2045 = vshrl.u32 %v1980, 16
      %v2047 = vrot.slane %v2045, 4
      %v2048 = vshll.u32 %v1980, 16
      %v2050 = vrot.slane %v2048, 5
      %v2051 = vor.u32 %v2047, %v2050
      %v2052 = vrot.slane %v2051, 4
      %v2054 = vshll.u32 %v1981, 16
      %v2056 = vrot.slane %v2054, 5
      %v2057 = vsel %vm965, %v2052, %v2056
      %v2059 = vshrl.u32 %v1982, 16
      %v2061 = vrot.slane %v2059, 4
      %v2062 = vshll.u32 %v1982, 16
      %v2064 = vrot.slane %v2062, 5
      %v2065 = vor.u32 %v2061, %v2064
      %v2066 = vrot.slane %v2065, 4
      %v2068 = vshll.u32 %v1983, 16
      %v2070 = vrot.slane %v2068, 5
      %v2071 = vsel %vm965, %v2066, %v2070
      %v2073 = vshrl.u32 %v1984, 16
      %v2075 = vrot.slane %v2073, 4
      %v2076 = vshll.u32 %v1984, 16
      %v2078 = vrot.slane %v2076, 5
      %v2079 = vor.u32 %v2075, %v2078
      %v2080 = vrot.slane %v2079, 4
      %v2082 = vshll.u32 %v1985, 16
      %v2084 = vrot.slane %v2082, 5
      %v2085 = vsel %vm965, %v2080, %v2084
      %v2087 = vshrl.u32 %v1986, 16
      %v2089 = vrot.slane %v2087, 4
      %v2090 = vshll.u32 %v1986, 16
      %v2092 = vrot.slane %v2090, 5
      %v2093 = vor.u32 %v2089, %v2092
      %v2094 = vrot.slane %v2093, 4
      %v2096 = vshll.u32 %v1987, 16
      %v2098 = vrot.slane %v2096, 5
      %v2099 = vsel %vm965, %v2094, %v2098
      %2100 = vrot.lane.b32.xlu0 %v2001, 4
      %v2101 = vpop.permute.xlu0 %2100
      %2102 = vrot.lane.b32.xlu0 %v2015, 4
      %v2103 = vpop.permute.xlu0 %2102
      %2104 = vrot.lane.b32.xlu0 %v2029, 4
      %v2105 = vpop.permute.xlu0 %2104
      %2106 = vrot.lane.b32.xlu0 %v2043, 4
      %v2107 = vpop.permute.xlu0 %2106
      %2108 = vrot.lane.b32.xlu0 %v2057, 4
      %v2109 = vpop.permute.xlu0 %2108
      %2110 = vrot.lane.b32.xlu0 %v2071, 4
      %v2111 = vpop.permute.xlu0 %2110
      %2112 = vrot.lane.b32.xlu0 %v2085, 4
      %v2113 = vpop.permute.xlu0 %2112
      %2114 = vrot.lane.b32.xlu0 %v2099, 4
      %v2115 = vpop.permute.xlu0 %2114
      %2124 = vst.msk [vmem:[#allocation5] sm:$0xf] %vm684, %v2101
      %2125 = vst.msk [vmem:[#allocation5 + $0x4] sm:$0xf] %vm684, %v2103
      %2126 = vst.msk [vmem:[#allocation5 + $0x8] sm:$0xf] %vm684, %v2105
      %2127 = vst.msk [vmem:[#allocation5 + $0xc] sm:$0xf] %vm684, %v2107
      %2128 = vst.msk [vmem:[#allocation5 + $0x10] sm:$0xf] %vm684, %v2109
      %2129 = vst.msk [vmem:[#allocation5 + $0x14] sm:$0xf] %vm684, %v2111
      %2130 = vst.msk [vmem:[#allocation5 + $0x18] sm:$0xf] %vm684, %v2113
      %2131 = vst.msk [vmem:[#allocation5 + $0x1c] sm:$0xf] %vm684, %v2115
      %v2132 = vld [vmem:[#allocation2] sm:$0xf]
      %v2133 = vld [vmem:[#allocation2 + $0x4] sm:$0x1]
      %v2134 = vld [vmem:[#allocation2 + $0x8] sm:$0xf]
      %v2135 = vld [vmem:[#allocation2 + $0xc] sm:$0x1]
      %v2136 = vld [vmem:[#allocation2 + $0x10] sm:$0xf]
      %v2137 = vld [vmem:[#allocation2 + $0x14] sm:$0x1]
      %v2138 = vld [vmem:[#allocation2 + $0x18] sm:$0xf]
      %v2139 = vld [vmem:[#allocation2 + $0x1c] sm:$0x1]
      %v2140 = vld [vmem:[#allocation2 + $0x20] sm:$0xf]
      %v2141 = vld [vmem:[#allocation2 + $0x24] sm:$0x1]
      %v2142 = vld [vmem:[#allocation2 + $0x28] sm:$0xf]
      %v2143 = vld [vmem:[#allocation2 + $0x2c] sm:$0x1]
      %v2144 = vld [vmem:[#allocation2 + $0x30] sm:$0xf]
      %v2145 = vld [vmem:[#allocation2 + $0x34] sm:$0x1]
      %v2146 = vld [vmem:[#allocation2 + $0x38] sm:$0xf]
      %v2147 = vld [vmem:[#allocation2 + $0x3c] sm:$0x1]
      %v2149 = vshrl.u32 %v2132, 16
      %v2151 = vrot.slane %v2149, 4
      %v2152 = vshll.u32 %v2132, 16
      %v2154 = vrot.slane %v2152, 5
      %v2155 = vor.u32 %v2151, %v2154
      %v2156 = vrot.slane %v2155, 4
      %v2158 = vshll.u32 %v2133, 16
      %v2160 = vrot.slane %v2158, 5
      %v2161 = vsel %vm965, %v2156, %v2160
      %v2163 = vshrl.u32 %v2134, 16
      %v2165 = vrot.slane %v2163, 4
      %v2166 = vshll.u32 %v2134, 16
      %v2168 = vrot.slane %v2166, 5
      %v2169 = vor.u32 %v2165, %v2168
      %v2170 = vrot.slane %v2169, 4
      %v2172 = vshll.u32 %v2135, 16
      %v2174 = vrot.slane %v2172, 5
      %v2175 = vsel %vm965, %v2170, %v2174
      %v2177 = vshrl.u32 %v2136, 16
      %v2179 = vrot.slane %v2177, 4
      %v2180 = vshll.u32 %v2136, 16
      %v2182 = vrot.slane %v2180, 5
      %v2183 = vor.u32 %v2179, %v2182
      %v2184 = vrot.slane %v2183, 4
      %v2186 = vshll.u32 %v2137, 16
      %v2188 = vrot.slane %v2186, 5
      %v2189 = vsel %vm965, %v2184, %v2188
      %v2191 = vshrl.u32 %v2138, 16
      %v2193 = vrot.slane %v2191, 4
      %v2194 = vshll.u32 %v2138, 16
      %v2196 = vrot.slane %v2194, 5
      %v2197 = vor.u32 %v2193, %v2196
      %v2198 = vrot.slane %v2197, 4
      %v2200 = vshll.u32 %v2139, 16
      %v2202 = vrot.slane %v2200, 5
      %v2203 = vsel %vm965, %v2198, %v2202
      %v2205 = vshrl.u32 %v2140, 16
      %v2207 = vrot.slane %v2205, 4
      %v2208 = vshll.u32 %v2140, 16
      %v2210 = vrot.slane %v2208, 5
      %v2211 = vor.u32 %v2207, %v2210
      %v2212 = vrot.slane %v2211, 4
      %v2214 = vshll.u32 %v2141, 16
      %v2216 = vrot.slane %v2214, 5
      %v2217 = vsel %vm965, %v2212, %v2216
      %v2219 = vshrl.u32 %v2142, 16
      %v2221 = vrot.slane %v2219, 4
      %v2222 = vshll.u32 %v2142, 16
      %v2224 = vrot.slane %v2222, 5
      %v2225 = vor.u32 %v2221, %v2224
      %v2226 = vrot.slane %v2225, 4
      %v2228 = vshll.u32 %v2143, 16
      %v2230 = vrot.slane %v2228, 5
      %v2231 = vsel %vm965, %v2226, %v2230
      %v2233 = vshrl.u32 %v2144, 16
      %v2235 = vrot.slane %v2233, 4
      %v2236 = vshll.u32 %v2144, 16
      %v2238 = vrot.slane %v2236, 5
      %v2239 = vor.u32 %v2235, %v2238
      %v2240 = vrot.slane %v2239, 4
      %v2242 = vshll.u32 %v2145, 16
      %v2244 = vrot.slane %v2242, 5
      %v2245 = vsel %vm965, %v2240, %v2244
      %v2247 = vshrl.u32 %v2146, 16
      %v2249 = vrot.slane %v2247, 4
      %v2250 = vshll.u32 %v2146, 16
      %v2252 = vrot.slane %v2250, 5
      %v2253 = vor.u32 %v2249, %v2252
      %v2254 = vrot.slane %v2253, 4
      %v2256 = vshll.u32 %v2147, 16
      %v2258 = vrot.slane %v2256, 5
      %v2259 = vsel %vm965, %v2254, %v2258
      %2260 = vrot.lane.b32.xlu0 %v2161, 4
      %v2261 = vpop.permute.xlu0 %2260
      %2262 = vrot.lane.b32.xlu0 %v2175, 4
      %v2263 = vpop.permute.xlu0 %2262
      %2264 = vrot.lane.b32.xlu0 %v2189, 4
      %v2265 = vpop.permute.xlu0 %2264
      %2266 = vrot.lane.b32.xlu0 %v2203, 4
      %v2267 = vpop.permute.xlu0 %2266
      %2268 = vrot.lane.b32.xlu0 %v2217, 4
      %v2269 = vpop.permute.xlu0 %2268
      %2270 = vrot.lane.b32.xlu0 %v2231, 4
      %v2271 = vpop.permute.xlu0 %2270
      %2272 = vrot.lane.b32.xlu0 %v2245, 4
      %v2273 = vpop.permute.xlu0 %2272
      %2274 = vrot.lane.b32.xlu0 %v2259, 4
      %v2275 = vpop.permute.xlu0 %2274
      %2284 = vst.msk [vmem:[#allocation5] sm:$0xf] %vm1102, %v2261
      %2285 = vst.msk [vmem:[#allocation5 + $0x4] sm:$0xf] %vm1102, %v2263
      %2286 = vst.msk [vmem:[#allocation5 + $0x8] sm:$0xf] %vm1102, %v2265
      %2287 = vst.msk [vmem:[#allocation5 + $0xc] sm:$0xf] %vm1102, %v2267
      %2288 = vst.msk [vmem:[#allocation5 + $0x10] sm:$0xf] %vm1102, %v2269
      %2289 = vst.msk [vmem:[#allocation5 + $0x14] sm:$0xf] %vm1102, %v2271
      %2290 = vst.msk [vmem:[#allocation5 + $0x18] sm:$0xf] %vm1102, %v2273
      %2291 = vst.msk [vmem:[#allocation5 + $0x1c] sm:$0xf] %vm1102, %v2275
      %v2292 = vld [vmem:[#allocation2] sm:$0xf]
      %v2293 = vld [vmem:[#allocation2 + $0x8] sm:$0xf]
      %v2294 = vld [vmem:[#allocation2 + $0x10] sm:$0xf]
      %v2295 = vld [vmem:[#allocation2 + $0x18] sm:$0xf]
      %v2296 = vld [vmem:[#allocation2 + $0x20] sm:$0xf]
      %v2297 = vld [vmem:[#allocation2 + $0x28] sm:$0xf]
      %v2298 = vld [vmem:[#allocation2 + $0x30] sm:$0xf]
      %v2299 = vld [vmem:[#allocation2 + $0x38] sm:$0xf]
      %2300 = vst.msk [vmem:[#allocation5] sm:$0xf] %vm905, %v2292
      %2301 = vst.msk [vmem:[#allocation5 + $0x4] sm:$0xf] %vm905, %v2293
      %2302 = vst.msk [vmem:[#allocation5 + $0x8] sm:$0xf] %vm905, %v2294
      %2303 = vst.msk [vmem:[#allocation5 + $0xc] sm:$0xf] %vm905, %v2295
      %2304 = vst.msk [vmem:[#allocation5 + $0x10] sm:$0xf] %vm905, %v2296
      %2305 = vst.msk [vmem:[#allocation5 + $0x14] sm:$0xf] %vm905, %v2297
      %2306 = vst.msk [vmem:[#allocation5 + $0x18] sm:$0xf] %vm905, %v2298
      %2307 = vst.msk [vmem:[#allocation5 + $0x1c] sm:$0xf] %vm905, %v2299
      %v2308 = vld [vmem:[#allocation2] sm:$0xf]
      %v2309 = vld [vmem:[#allocation2 + $0x4] sm:$0x1]
      %v2310 = vld [vmem:[#allocation2 + $0x8] sm:$0xf]
      %v2311 = vld [vmem:[#allocation2 + $0xc] sm:$0x1]
      %v2312 = vld [vmem:[#allocation2 + $0x10] sm:$0xf]
      %v2313 = vld [vmem:[#allocation2 + $0x14] sm:$0x1]
      %v2314 = vld [vmem:[#allocation2 + $0x18] sm:$0xf]
      %v2315 = vld [vmem:[#allocation2 + $0x1c] sm:$0x1]
      %v2316 = vld [vmem:[#allocation2 + $0x20] sm:$0xf]
      %v2317 = vld [vmem:[#allocation2 + $0x24] sm:$0x1]
      %v2318 = vld [vmem:[#allocation2 + $0x28] sm:$0xf]
      %v2319 = vld [vmem:[#allocation2 + $0x2c] sm:$0x1]
      %v2320 = vld [vmem:[#allocation2 + $0x30] sm:$0xf]
      %v2321 = vld [vmem:[#allocation2 + $0x34] sm:$0x1]
      %v2322 = vld [vmem:[#allocation2 + $0x38] sm:$0xf]
      %v2323 = vld [vmem:[#allocation2 + $0x3c] sm:$0x1]
      %v2325 = vshrl.u32 %v2308, 16
      %v2327 = vrot.slane %v2325, 4
      %v2328 = vshll.u32 %v2308, 16
      %v2330 = vrot.slane %v2328, 5
      %v2331 = vor.u32 %v2327, %v2330
      %v2332 = vrot.slane %v2331, 4
      %v2334 = vshll.u32 %v2309, 16
      %v2336 = vrot.slane %v2334, 5
      %v2337 = vsel %vm965, %v2332, %v2336
      %v2339 = vshrl.u32 %v2310, 16
      %v2341 = vrot.slane %v2339, 4
      %v2342 = vshll.u32 %v2310, 16
      %v2344 = vrot.slane %v2342, 5
      %v2345 = vor.u32 %v2341, %v2344
      %v2346 = vrot.slane %v2345, 4
      %v2348 = vshll.u32 %v2311, 16
      %v2350 = vrot.slane %v2348, 5
      %v2351 = vsel %vm965, %v2346, %v2350
      %v2353 = vshrl.u32 %v2312, 16
      %v2355 = vrot.slane %v2353, 4
      %v2356 = vshll.u32 %v2312, 16
      %v2358 = vrot.slane %v2356, 5
      %v2359 = vor.u32 %v2355, %v2358
      %v2360 = vrot.slane %v2359, 4
      %v2362 = vshll.u32 %v2313, 16
      %v2364 = vrot.slane %v2362, 5
      %v2365 = vsel %vm965, %v2360, %v2364
      %v2367 = vshrl.u32 %v2314, 16
      %v2369 = vrot.slane %v2367, 4
      %v2370 = vshll.u32 %v2314, 16
      %v2372 = vrot.slane %v2370, 5
      %v2373 = vor.u32 %v2369, %v2372
      %v2374 = vrot.slane %v2373, 4
      %v2376 = vshll.u32 %v2315, 16
      %v2378 = vrot.slane %v2376, 5
      %v2379 = vsel %vm965, %v2374, %v2378
      %v2381 = vshrl.u32 %v2316, 16
      %v2383 = vrot.slane %v2381, 4
      %v2384 = vshll.u32 %v2316, 16
      %v2386 = vrot.slane %v2384, 5
      %v2387 = vor.u32 %v2383, %v2386
      %v2388 = vrot.slane %v2387, 4
      %v2390 = vshll.u32 %v2317, 16
      %v2392 = vrot.slane %v2390, 5
      %v2393 = vsel %vm965, %v2388, %v2392
      %v2395 = vshrl.u32 %v2318, 16
      %v2397 = vrot.slane %v2395, 4
      %v2398 = vshll.u32 %v2318, 16
      %v2400 = vrot.slane %v2398, 5
      %v2401 = vor.u32 %v2397, %v2400
      %v2402 = vrot.slane %v2401, 4
      %v2404 = vshll.u32 %v2319, 16
      %v2406 = vrot.slane %v2404, 5
      %v2407 = vsel %vm965, %v2402, %v2406
      %v2409 = vshrl.u32 %v2320, 16
      %v2411 = vrot.slane %v2409, 4
      %v2412 = vshll.u32 %v2320, 16
      %v2414 = vrot.slane %v2412, 5
      %v2415 = vor.u32 %v2411, %v2414
      %v2416 = vrot.slane %v2415, 4
      %v2418 = vshll.u32 %v2321, 16
      %v2420 = vrot.slane %v2418, 5
      %v2421 = vsel %vm965, %v2416, %v2420
      %v2423 = vshrl.u32 %v2322, 16
      %v2425 = vrot.slane %v2423, 4
      %v2426 = vshll.u32 %v2322, 16
      %v2428 = vrot.slane %v2426, 5
      %v2429 = vor.u32 %v2425, %v2428
      %v2430 = vrot.slane %v2429, 4
      %v2432 = vshll.u32 %v2323, 16
      %v2434 = vrot.slane %v2432, 5
      %v2435 = vsel %vm965, %v2430, %v2434
      %2436 = vrot.lane.b32.xlu0 %v2337, 8
      %v2437 = vpop.permute.xlu0 %2436
      %2438 = vrot.lane.b32.xlu0 %v2351, 8
      %v2439 = vpop.permute.xlu0 %2438
      %2440 = vrot.lane.b32.xlu0 %v2365, 8
      %v2441 = vpop.permute.xlu0 %2440
      %2442 = vrot.lane.b32.xlu0 %v2379, 8
      %v2443 = vpop.permute.xlu0 %2442
      %2444 = vrot.lane.b32.xlu0 %v2393, 8
      %v2445 = vpop.permute.xlu0 %2444
      %2446 = vrot.lane.b32.xlu0 %v2407, 8
      %v2447 = vpop.permute.xlu0 %2446
      %2448 = vrot.lane.b32.xlu0 %v2421, 8
      %v2449 = vpop.permute.xlu0 %2448
      %2450 = vrot.lane.b32.xlu0 %v2435, 8
      %v2451 = vpop.permute.xlu0 %2450
      %2460 = vst.msk [vmem:[#allocation5] sm:$0xf] %vm1199, %v2437
      %2461 = vst.msk [vmem:[#allocation5 + $0x4] sm:$0xf] %vm1199, %v2439
      %2462 = vst.msk [vmem:[#allocation5 + $0x8] sm:$0xf] %vm1199, %v2441
      %2463 = vst.msk [vmem:[#allocation5 + $0xc] sm:$0xf] %vm1199, %v2443
      %2464 = vst.msk [vmem:[#allocation5 + $0x10] sm:$0xf] %vm1199, %v2445
      %2465 = vst.msk [vmem:[#allocation5 + $0x14] sm:$0xf] %vm1199, %v2447
      %2466 = vst.msk [vmem:[#allocation5 + $0x18] sm:$0xf] %vm1199, %v2449
      %2467 = vst.msk [vmem:[#allocation5 + $0x1c] sm:$0xf] %vm1199, %v2451
      %v2468 = vld [vmem:[#allocation2] sm:$0xf]
      %v2469 = vld [vmem:[#allocation2 + $0x4] sm:$0x1]
      %v2470 = vld [vmem:[#allocation2 + $0x8] sm:$0xf]
      %v2471 = vld [vmem:[#allocation2 + $0xc] sm:$0x1]
      %v2472 = vld [vmem:[#allocation2 + $0x10] sm:$0xf]
      %v2473 = vld [vmem:[#allocation2 + $0x14] sm:$0x1]
      %v2474 = vld [vmem:[#allocation2 + $0x18] sm:$0xf]
      %v2475 = vld [vmem:[#allocation2 + $0x1c] sm:$0x1]
      %v2476 = vld [vmem:[#allocation2 + $0x20] sm:$0xf]
      %v2477 = vld [vmem:[#allocation2 + $0x24] sm:$0x1]
      %v2478 = vld [vmem:[#allocation2 + $0x28] sm:$0xf]
      %v2479 = vld [vmem:[#allocation2 + $0x2c] sm:$0x1]
      %v2480 = vld [vmem:[#allocation2 + $0x30] sm:$0xf]
      %v2481 = vld [vmem:[#allocation2 + $0x34] sm:$0x1]
      %v2482 = vld [vmem:[#allocation2 + $0x38] sm:$0xf]
      %v2483 = vld [vmem:[#allocation2 + $0x3c] sm:$0x1]
      %v2485 = vshrl.u32 %v2468, 16
      %v2487 = vrot.slane %v2485, 4
      %v2488 = vshll.u32 %v2468, 16
      %v2490 = vrot.slane %v2488, 5
      %v2491 = vor.u32 %v2487, %v2490
      %v2492 = vrot.slane %v2491, 4
      %v2494 = vshll.u32 %v2469, 16
      %v2496 = vrot.slane %v2494, 5
      %v2497 = vsel %vm965, %v2492, %v2496
      %v2499 = vshrl.u32 %v2470, 16
      %v2501 = vrot.slane %v2499, 4
      %v2502 = vshll.u32 %v2470, 16
      %v2504 = vrot.slane %v2502, 5
      %v2505 = vor.u32 %v2501, %v2504
      %v2506 = vrot.slane %v2505, 4
      %v2508 = vshll.u32 %v2471, 16
      %v2510 = vrot.slane %v2508, 5
      %v2511 = vsel %vm965, %v2506, %v2510
      %v2513 = vshrl.u32 %v2472, 16
      %v2515 = vrot.slane %v2513, 4
      %v2516 = vshll.u32 %v2472, 16
      %v2518 = vrot.slane %v2516, 5
      %v2519 = vor.u32 %v2515, %v2518
      %v2520 = vrot.slane %v2519, 4
      %v2522 = vshll.u32 %v2473, 16
      %v2524 = vrot.slane %v2522, 5
      %v2525 = vsel %vm965, %v2520, %v2524
      %v2527 = vshrl.u32 %v2474, 16
      %v2529 = vrot.slane %v2527, 4
      %v2530 = vshll.u32 %v2474, 16
      %v2532 = vrot.slane %v2530, 5
      %v2533 = vor.u32 %v2529, %v2532
      %v2534 = vrot.slane %v2533, 4
      %v2536 = vshll.u32 %v2475, 16
      %v2538 = vrot.slane %v2536, 5
      %v2539 = vsel %vm965, %v2534, %v2538
      %v2541 = vshrl.u32 %v2476, 16
      %v2543 = vrot.slane %v2541, 4
      %v2544 = vshll.u32 %v2476, 16
      %v2546 = vrot.slane %v2544, 5
      %v2547 = vor.u32 %v2543, %v2546
      %v2548 = vrot.slane %v2547, 4
      %v2550 = vshll.u32 %v2477, 16
      %v2552 = vrot.slane %v2550, 5
      %v2553 = vsel %vm965, %v2548, %v2552
      %v2555 = vshrl.u32 %v2478, 16
      %v2557 = vrot.slane %v2555, 4
      %v2558 = vshll.u32 %v2478, 16
      %v2560 = vrot.slane %v2558, 5
      %v2561 = vor.u32 %v2557, %v2560
      %v2562 = vrot.slane %v2561, 4
      %v2564 = vshll.u32 %v2479, 16
      %v2566 = vrot.slane %v2564, 5
      %v2567 = vsel %vm965, %v2562, %v2566
      %v2569 = vshrl.u32 %v2480, 16
      %v2571 = vrot.slane %v2569, 4
      %v2572 = vshll.u32 %v2480, 16
      %v2574 = vrot.slane %v2572, 5
      %v2575 = vor.u32 %v2571, %v2574
      %v2576 = vrot.slane %v2575, 4
      %v2578 = vshll.u32 %v2481, 16
      %v2580 = vrot.slane %v2578, 5
      %v2581 = vsel %vm965, %v2576, %v2580
      %v2583 = vshrl.u32 %v2482, 16
      %v2585 = vrot.slane %v2583, 4
      %v2586 = vshll.u32 %v2482, 16
      %v2588 = vrot.slane %v2586, 5
      %v2589 = vor.u32 %v2585, %v2588
      %v2590 = vrot.slane %v2589, 4
      %v2592 = vshll.u32 %v2483, 16
      %v2594 = vrot.slane %v2592, 5
      %v2595 = vsel %vm965, %v2590, %v2594
      %2596 = vrot.lane.b32.xlu0 %v2497, 8
      %v2597 = vpop.permute.xlu0 %2596
      %2598 = vrot.lane.b32.xlu0 %v2511, 8
      %v2599 = vpop.permute.xlu0 %2598
      %2600 = vrot.lane.b32.xlu0 %v2525, 8
      %v2601 = vpop.permute.xlu0 %2600
      %2602 = vrot.lane.b32.xlu0 %v2539, 8
      %v2603 = vpop.permute.xlu0 %2602
      %2604 = vrot.lane.b32.xlu0 %v2553, 8
      %v2605 = vpop.permute.xlu0 %2604
      %2606 = vrot.lane.b32.xlu0 %v2567, 8
      %v2607 = vpop.permute.xlu0 %2606
      %2608 = vrot.lane.b32.xlu0 %v2581, 8
      %v2609 = vpop.permute.xlu0 %2608
      %2610 = vrot.lane.b32.xlu0 %v2595, 8
      %v2611 = vpop.permute.xlu0 %2610
      %2620 = vst.msk [vmem:[#allocation5] sm:$0xf] %vm1360, %v2597
      %2621 = vst.msk [vmem:[#allocation5 + $0x4] sm:$0xf] %vm1360, %v2599
      %2622 = vst.msk [vmem:[#allocation5 + $0x8] sm:$0xf] %vm1360, %v2601
      %2623 = vst.msk [vmem:[#allocation5 + $0xc] sm:$0xf] %vm1360, %v2603
      %2624 = vst.msk [vmem:[#allocation5 + $0x10] sm:$0xf] %vm1360, %v2605
      %2625 = vst.msk [vmem:[#allocation5 + $0x14] sm:$0xf] %vm1360, %v2607
      %2626 = vst.msk [vmem:[#allocation5 + $0x18] sm:$0xf] %vm1360, %v2609
      %2627 = vst.msk [vmem:[#allocation5 + $0x1c] sm:$0xf] %vm1360, %v2611
      %v2628 = vld [vmem:[%s590] sm:$0xf]
      %v2629 = vld [vmem:[%s590 + $0x8] sm:$0xf]
      %v2630 = vld [vmem:[%s590 + $0x10] sm:$0xf]
      %v2631 = vld [vmem:[%s590 + $0x18] sm:$0xf]
      %v2632 = vld [vmem:[%s590 + $0x20] sm:$0xf]
      %v2633 = vld [vmem:[%s590 + $0x28] sm:$0xf]
      %v2634 = vld [vmem:[%s590 + $0x30] sm:$0xf]
      %v2635 = vld [vmem:[%s590 + $0x38] sm:$0xf]
      %2644 = vrot.lane.b32.xlu0 %v2628, 20
      %v2645 = vpop.permute.xlu0 %2644
      %2646 = vrot.lane.b32.xlu0 %v2629, 20
      %v2647 = vpop.permute.xlu0 %2646
      %2648 = vrot.lane.b32.xlu0 %v2630, 20
      %v2649 = vpop.permute.xlu0 %2648
      %2650 = vrot.lane.b32.xlu0 %v2631, 20
      %v2651 = vpop.permute.xlu0 %2650
      %2652 = vrot.lane.b32.xlu0 %v2632, 20
      %v2653 = vpop.permute.xlu0 %2652
      %2654 = vrot.lane.b32.xlu0 %v2633, 20
      %v2655 = vpop.permute.xlu0 %2654
      %2656 = vrot.lane.b32.xlu0 %v2634, 20
      %v2657 = vpop.permute.xlu0 %2656
      %2658 = vrot.lane.b32.xlu0 %v2635, 20
      %v2659 = vpop.permute.xlu0 %2658
      %2668 = vst.msk [vmem:[#allocation5] sm:$0xf] %vm1409, %v2645
      %2669 = vst.msk [vmem:[#allocation5 + $0x4] sm:$0xf] %vm1409, %v2647
      %2670 = vst.msk [vmem:[#allocation5 + $0x8] sm:$0xf] %vm1409, %v2649
      %2671 = vst.msk [vmem:[#allocation5 + $0xc] sm:$0xf] %vm1409, %v2651
      %2672 = vst.msk [vmem:[#allocation5 + $0x10] sm:$0xf] %vm1409, %v2653
      %2673 = vst.msk [vmem:[#allocation5 + $0x14] sm:$0xf] %vm1409, %v2655
      %2674 = vst.msk [vmem:[#allocation5 + $0x18] sm:$0xf] %vm1409, %v2657
      %2675 = vst.msk [vmem:[#allocation5 + $0x1c] sm:$0xf] %vm1409, %v2659
      %v2676 = vld [vmem:[%s590] sm:$0xf]
      %v2677 = vld [vmem:[%s590 + $0x4] sm:$0x1]
      %v2678 = vld [vmem:[%s590 + $0x8] sm:$0xf]
      %v2679 = vld [vmem:[%s590 + $0xc] sm:$0x1]
      %v2680 = vld [vmem:[%s590 + $0x10] sm:$0xf]
      %v2681 = vld [vmem:[%s590 + $0x14] sm:$0x1]
      %v2682 = vld [vmem:[%s590 + $0x18] sm:$0xf]
      %v2683 = vld [vmem:[%s590 + $0x1c] sm:$0x1]
      %v2684 = vld [vmem:[%s590 + $0x20] sm:$0xf]
      %v2685 = vld [vmem:[%s590 + $0x24] sm:$0x1]
      %v2686 = vld [vmem:[%s590 + $0x28] sm:$0xf]
      %v2687 = vld [vmem:[%s590 + $0x2c] sm:$0x1]
      %v2688 = vld [vmem:[%s590 + $0x30] sm:$0xf]
      %v2689 = vld [vmem:[%s590 + $0x34] sm:$0x1]
      %v2690 = vld [vmem:[%s590 + $0x38] sm:$0xf]
      %v2691 = vld [vmem:[%s590 + $0x3c] sm:$0x1]
      %v2693 = vshrl.u32 %v2676, 16
      %v2695 = vrot.slane %v2693, 4
      %v2696 = vshll.u32 %v2676, 16
      %v2698 = vrot.slane %v2696, 5
      %v2699 = vor.u32 %v2695, %v2698
      %v2700 = vrot.slane %v2699, 4
      %v2702 = vshll.u32 %v2677, 16
      %v2704 = vrot.slane %v2702, 5
      %v2705 = vsel %vm965, %v2700, %v2704
      %v2707 = vshrl.u32 %v2678, 16
      %v2709 = vrot.slane %v2707, 4
      %v2710 = vshll.u32 %v2678, 16
      %v2712 = vrot.slane %v2710, 5
      %v2713 = vor.u32 %v2709, %v2712
      %v2714 = vrot.slane %v2713, 4
      %v2716 = vshll.u32 %v2679, 16
      %v2718 = vrot.slane %v2716, 5
      %v2719 = vsel %vm965, %v2714, %v2718
      %v2721 = vshrl.u32 %v2680, 16
      %v2723 = vrot.slane %v2721, 4
      %v2724 = vshll.u32 %v2680, 16
      %v2726 = vrot.slane %v2724, 5
      %v2727 = vor.u32 %v2723, %v2726
      %v2728 = vrot.slane %v2727, 4
      %v2730 = vshll.u32 %v2681, 16
      %v2732 = vrot.slane %v2730, 5
      %v2733 = vsel %vm965, %v2728, %v2732
      %v2735 = vshrl.u32 %v2682, 16
      %v2737 = vrot.slane %v2735, 4
      %v2738 = vshll.u32 %v2682, 16
      %v2740 = vrot.slane %v2738, 5
      %v2741 = vor.u32 %v2737, %v2740
      %v2742 = vrot.slane %v2741, 4
      %v2744 = vshll.u32 %v2683, 16
      %v2746 = vrot.slane %v2744, 5
      %v2747 = vsel %vm965, %v2742, %v2746
      %v2749 = vshrl.u32 %v2684, 16
      %v2751 = vrot.slane %v2749, 4
      %v2752 = vshll.u32 %v2684, 16
      %v2754 = vrot.slane %v2752, 5
      %v2755 = vor.u32 %v2751, %v2754
      %v2756 = vrot.slane %v2755, 4
      %v2758 = vshll.u32 %v2685, 16
      %v2760 = vrot.slane %v2758, 5
      %v2761 = vsel %vm965, %v2756, %v2760
      %v2763 = vshrl.u32 %v2686, 16
      %v2765 = vrot.slane %v2763, 4
      %v2766 = vshll.u32 %v2686, 16
      %v2768 = vrot.slane %v2766, 5
      %v2769 = vor.u32 %v2765, %v2768
      %v2770 = vrot.slane %v2769, 4
      %v2772 = vshll.u32 %v2687, 16
      %v2774 = vrot.slane %v2772, 5
      %v2775 = vsel %vm965, %v2770, %v2774
      %v2777 = vshrl.u32 %v2688, 16
      %v2779 = vrot.slane %v2777, 4
      %v2780 = vshll.u32 %v2688, 16
      %v2782 = vrot.slane %v2780, 5
      %v2783 = vor.u32 %v2779, %v2782
      %v2784 = vrot.slane %v2783, 4
      %v2786 = vshll.u32 %v2689, 16
      %v2788 = vrot.slane %v2786, 5
      %v2789 = vsel %vm965, %v2784, %v2788
      %v2791 = vshrl.u32 %v2690, 16
      %v2793 = vrot.slane %v2791, 4
      %v2794 = vshll.u32 %v2690, 16
      %v2796 = vrot.slane %v2794, 5
      %v2797 = vor.u32 %v2793, %v2796
      %v2798 = vrot.slane %v2797, 4
      %v2800 = vshll.u32 %v2691, 16
      %v2802 = vrot.slane %v2800, 5
      %v2803 = vsel %vm965, %v2798, %v2802
      %2804 = vrot.lane.b32.xlu0 %v2705, 28
      %v2805 = vpop.permute.xlu0 %2804
      %2806 = vrot.lane.b32.xlu0 %v2719, 28
      %v2807 = vpop.permute.xlu0 %2806
      %2808 = vrot.lane.b32.xlu0 %v2733, 28
      %v2809 = vpop.permute.xlu0 %2808
      %2810 = vrot.lane.b32.xlu0 %v2747, 28
      %v2811 = vpop.permute.xlu0 %2810
      %2812 = vrot.lane.b32.xlu0 %v2761, 28
      %v2813 = vpop.permute.xlu0 %2812
      %2814 = vrot.lane.b32.xlu0 %v2775, 28
      %v2815 = vpop.permute.xlu0 %2814
      %2816 = vrot.lane.b32.xlu0 %v2789, 28
      %v2817 = vpop.permute.xlu0 %2816
      %2818 = vrot.lane.b32.xlu0 %v2803, 28
      %v2819 = vpop.permute.xlu0 %2818
      %2828 = vst.msk [vmem:[#allocation5] sm:$0xf] %vm1458, %v2805
      %2829 = vst.msk [vmem:[#allocation5 + $0x4] sm:$0xf] %vm1458, %v2807
      %2830 = vst.msk [vmem:[#allocation5 + $0x8] sm:$0xf] %vm1458, %v2809
      %2831 = vst.msk [vmem:[#allocation5 + $0xc] sm:$0xf] %vm1458, %v2811
      %2832 = vst.msk [vmem:[#allocation5 + $0x10] sm:$0xf] %vm1458, %v2813
      %2833 = vst.msk [vmem:[#allocation5 + $0x14] sm:$0xf] %vm1458, %v2815
      %2834 = vst.msk [vmem:[#allocation5 + $0x18] sm:$0xf] %vm1458, %v2817
      %2835 = vst.msk [vmem:[#allocation5 + $0x1c] sm:$0xf] %vm1458, %v2819
      %v2836 = vld [vmem:[%s590] sm:$0xf]
      %v2837 = vld [vmem:[%s590 + $0x4] sm:$0x1]
      %v2838 = vld [vmem:[%s590 + $0x8] sm:$0xf]
      %v2839 = vld [vmem:[%s590 + $0xc] sm:$0x1]
      %v2840 = vld [vmem:[%s590 + $0x10] sm:$0xf]
      %v2841 = vld [vmem:[%s590 + $0x14] sm:$0x1]
      %v2842 = vld [vmem:[%s590 + $0x18] sm:$0xf]
      %v2843 = vld [vmem:[%s590 + $0x1c] sm:$0x1]
      %v2844 = vld [vmem:[%s590 + $0x20] sm:$0xf]
      %v2845 = vld [vmem:[%s590 + $0x24] sm:$0x1]
      %v2846 = vld [vmem:[%s590 + $0x28] sm:$0xf]
      %v2847 = vld [vmem:[%s590 + $0x2c] sm:$0x1]
      %v2848 = vld [vmem:[%s590 + $0x30] sm:$0xf]
      %v2849 = vld [vmem:[%s590 + $0x34] sm:$0x1]
      %v2850 = vld [vmem:[%s590 + $0x38] sm:$0xf]
      %v2851 = vld [vmem:[%s590 + $0x3c] sm:$0x1]
      %v2853 = vshrl.u32 %v2836, 16
      %v2855 = vrot.slane %v2853, 4
      %v2856 = vshll.u32 %v2836, 16
      %v2858 = vrot.slane %v2856, 5
      %v2859 = vor.u32 %v2855, %v2858
      %v2860 = vrot.slane %v2859, 4
      %v2862 = vshll.u32 %v2837, 16
      %v2864 = vrot.slane %v2862, 5
      %v2865 = vsel %vm965, %v2860, %v2864
      %v2867 = vshrl.u32 %v2838, 16
      %v2869 = vrot.slane %v2867, 4
      %v2870 = vshll.u32 %v2838, 16
      %v2872 = vrot.slane %v2870, 5
      %v2873 = vor.u32 %v2869, %v2872
      %v2874 = vrot.slane %v2873, 4
      %v2876 = vshll.u32 %v2839, 16
      %v2878 = vrot.slane %v2876, 5
      %v2879 = vsel %vm965, %v2874, %v2878
      %v2881 = vshrl.u32 %v2840, 16
      %v2883 = vrot.slane %v2881, 4
      %v2884 = vshll.u32 %v2840, 16
      %v2886 = vrot.slane %v2884, 5
      %v2887 = vor.u32 %v2883, %v2886
      %v2888 = vrot.slane %v2887, 4
      %v2890 = vshll.u32 %v2841, 16
      %v2892 = vrot.slane %v2890, 5
      %v2893 = vsel %vm965, %v2888, %v2892
      %v2895 = vshrl.u32 %v2842, 16
      %v2897 = vrot.slane %v2895, 4
      %v2898 = vshll.u32 %v2842, 16
      %v2900 = vrot.slane %v2898, 5
      %v2901 = vor.u32 %v2897, %v2900
      %v2902 = vrot.slane %v2901, 4
      %v2904 = vshll.u32 %v2843, 16
      %v2906 = vrot.slane %v2904, 5
      %v2907 = vsel %vm965, %v2902, %v2906
      %v2909 = vshrl.u32 %v2844, 16
      %v2911 = vrot.slane %v2909, 4
      %v2912 = vshll.u32 %v2844, 16
      %v2914 = vrot.slane %v2912, 5
      %v2915 = vor.u32 %v2911, %v2914
      %v2916 = vrot.slane %v2915, 4
      %v2918 = vshll.u32 %v2845, 16
      %v2920 = vrot.slane %v2918, 5
      %v2921 = vsel %vm965, %v2916, %v2920
      %v2923 = vshrl.u32 %v2846, 16
      %v2925 = vrot.slane %v2923, 4
      %v2926 = vshll.u32 %v2846, 16
      %v2928 = vrot.slane %v2926, 5
      %v2929 = vor.u32 %v2925, %v2928
      %v2930 = vrot.slane %v2929, 4
      %v2932 = vshll.u32 %v2847, 16
      %v2934 = vrot.slane %v2932, 5
      %v2935 = vsel %vm965, %v2930, %v2934
      %v2937 = vshrl.u32 %v2848, 16
      %v2939 = vrot.slane %v2937, 4
      %v2940 = vshll.u32 %v2848, 16
      %v2942 = vrot.slane %v2940, 5
      %v2943 = vor.u32 %v2939, %v2942
      %v2944 = vrot.slane %v2943, 4
      %v2946 = vshll.u32 %v2849, 16
      %v2948 = vrot.slane %v2946, 5
      %v2949 = vsel %vm965, %v2944, %v2948
      %v2951 = vshrl.u32 %v2850, 16
      %v2953 = vrot.slane %v2951, 4
      %v2954 = vshll.u32 %v2850, 16
      %v2956 = vrot.slane %v2954, 5
      %v2957 = vor.u32 %v2953, %v2956
      %v2958 = vrot.slane %v2957, 4
      %v2960 = vshll.u32 %v2851, 16
      %v2962 = vrot.slane %v2960, 5
      %v2963 = vsel %vm965, %v2958, %v2962
      %2964 = vrot.lane.b32.xlu0 %v2865, 28
      %v2965 = vpop.permute.xlu0 %2964
      %2966 = vrot.lane.b32.xlu0 %v2879, 28
      %v2967 = vpop.permute.xlu0 %2966
      %2968 = vrot.lane.b32.xlu0 %v2893, 28
      %v2969 = vpop.permute.xlu0 %2968
      %2970 = vrot.lane.b32.xlu0 %v2907, 28
      %v2971 = vpop.permute.xlu0 %2970
      %2972 = vrot.lane.b32.xlu0 %v2921, 28
      %v2973 = vpop.permute.xlu0 %2972
      %2974 = vrot.lane.b32.xlu0 %v2935, 28
      %v2975 = vpop.permute.xlu0 %2974
      %2976 = vrot.lane.b32.xlu0 %v2949, 28
      %v2977 = vpop.permute.xlu0 %2976
      %2978 = vrot.lane.b32.xlu0 %v2963, 28
      %v2979 = vpop.permute.xlu0 %2978
      %2988 = vst.msk [vmem:[#allocation5] sm:$0xf] %vm1619, %v2965
      %2989 = vst.msk [vmem:[#allocation5 + $0x4] sm:$0xf] %vm1619, %v2967
      %2990 = vst.msk [vmem:[#allocation5 + $0x8] sm:$0xf] %vm1619, %v2969
      %2991 = vst.msk [vmem:[#allocation5 + $0xc] sm:$0xf] %vm1619, %v2971
      %2992 = vst.msk [vmem:[#allocation5 + $0x10] sm:$0xf] %vm1619, %v2973
      %2993 = vst.msk [vmem:[#allocation5 + $0x14] sm:$0xf] %vm1619, %v2975
      %2994 = vst.msk [vmem:[#allocation5 + $0x18] sm:$0xf] %vm1619, %v2977
      %2995 = vst.msk [vmem:[#allocation5 + $0x1c] sm:$0xf] %vm1619, %v2979
      %v2996 = vld [vmem:[#allocation5] sm:$0xf]
      %v2997 = vld [vmem:[#allocation5 + $0x4] sm:$0xf]
      %v2998 = vld [vmem:[#allocation5 + $0x8] sm:$0xf]
      %v2999 = vld [vmem:[#allocation5 + $0xc] sm:$0xf]
      %v3000 = vld [vmem:[#allocation5 + $0x10] sm:$0xf]
      %v3001 = vld [vmem:[#allocation5 + $0x14] sm:$0xf]
      %v3002 = vld [vmem:[#allocation5 + $0x18] sm:$0xf]
      %v3003 = vld [vmem:[#allocation5 + $0x1c] sm:$0xf]
      %v3004 = vld [vmem:[%s1] sm:$0xf]
      %v3005 = vld [vmem:[%s1 + $0x4] sm:$0xf]
      %v3006 = vld [vmem:[%s1 + $0x8] sm:$0xf]
      %v3007 = vld [vmem:[%s1 + $0xc] sm:$0xf]
      %v3008 = vld [vmem:[%s1 + $0x10] sm:$0x3]
      %v3009 = vld [vmem:[%s2] sm:$0x1]
      %v3011 = vlaneseq
      %v3012 = vshrl.u32 %v3011, 7
      %v3013 = vsub.s32 0, %v3012
      %v3014 = vrot.slane %v3009, %v3013
      %v3024 = vunpack.c.l.b16 %v2996
      %v3025 = vunpack.c.l.b16 %v2997
      %v3026 = vunpack.c.l.b16 %v2998
      %v3027 = vunpack.c.l.b16 %v2999
      %v3028 = vunpack.c.l.b16 %v3000
      %v3029 = vunpack.c.l.b16 %v3001
      %v3030 = vunpack.c.l.b16 %v3002
      %v3031 = vunpack.c.l.b16 %v3003
      %v3032 = vpack.c.b16 %v3025, %v3024
      %v3033 = vpack.c.b16 %v3027, %v3026
      %v3034 = vpack.c.b16 %v3029, %v3028
      %v3035 = vpack.c.b16 %v3031, %v3030
      %v3041 = vunpack.c.l.b16 %v3004
      %v3042 = vunpack.c.l.b16 %v3005
      %v3043 = vunpack.c.l.b16 %v3006
      %v3044 = vunpack.c.l.b16 %v3007
      %v3045 = vunpack.c.l.b16 %v3008
      %v3046 = vpack.c.b16 %v3042, %v3041
      %v3047 = vpack.c.b16 %v3044, %v3043
      %v3048 = vpack.c.b16 %v3045, %v3045
      %v3052 = vsel %vm1683, %v3032, 0
      %v3055 = vsel %vm1683, %v3033, 0
      %v3058 = vsel %vm1683, %v3034, 0
      %v3061 = vsel %vm1683, %v3035, 0
      %v3064 = vsel %vm1696, %v3048, 0
      %3066 = vmatprep.subr.bf16.mxu0 0
      %3067 = vmatpush1.bf16.msra.mxu0 0
      %3068 = vmatprep.subr.bf16.mxu0 0
      %3069 = vmatpush1.bf16.msra.mxu0 0
      %3070 = vmatprep.subr.bf16.mxu0 0
      %3071 = vmatpush1.bf16.msra.mxu0 0
      %3072 = vmatprep.subr.bf16.mxu0 0
      %3073 = vmatpush1.bf16.msra.mxu0 0
      %3074 = vmatprep.subr.bf16.mxu0 0
      %3075 = vmatpush1.bf16.msra.mxu0 0
      %3076 = vmatprep.subr.bf16.mxu0 0
      %3077 = vmatpush1.bf16.msra.mxu0 %v3064
      %3078 = vmatprep.subr.bf16.mxu0 0
      %3079 = vmatpush1.bf16.msra.mxu0 %v3047
      %3080 = vmatprep.subr.bf16.mxu0 0
      %3081 = vmatpush1.bf16.msra.mxu0 %v3046
      %3082 = vmatprep.subr.bf16.mxu0 0
      %3083 = vmatpush2.bf16.msra.mxu0 0
      %3084 = vmatprep.subr.bf16.mxu0 0
      %3085 = vmatpush2.bf16.msra.mxu0 0
      %3086 = vmatprep.subr.bf16.mxu0 0
      %3087 = vmatpush2.bf16.msra.mxu0 0
      %3088 = vmatprep.subr.bf16.mxu0 0
      %3089 = vmatpush2.bf16.msra.mxu0 0
      %3090 = vmatprep.subr.bf16.mxu0 0
      %3091 = vmatpush2.bf16.msra.mxu0 0
      %3092 = vmatprep.subr.bf16.mxu0 0
      %3093 = vmatpush2.bf16.msra.mxu0 0
      %3094 = vmatprep.subr.bf16.mxu0 0
      %3095 = vmatpush2.bf16.msra.mxu0 0
      %3096 = vmatprep.subr.bf16.mxu0 0
      %3097 = vmatpush2.bf16.msra.mxu0 0
      %3098 = vmatprep.mubr.bf16.mxu0 0
      %3099 = vmatmul.mubr.bf16.gmra.mxu0 %v3052
      %v3100 = vpop.f32.mrf.mxu0
      %v3101 = vadd.f32 %v3014, %v3100
      %v3102 = vpop.f32.mrf.mxu0
      %v3103 = vpop.f32.mrf.mxu0
      %v3104 = vadd.f32 %v3014, %v3103
      %v3105 = vpop.f32.mrf.mxu0
      %3106 = vmatprep.mubr.bf16.mxu0 0
      %3107 = vmatmul.mubr.bf16.gmra.mxu0 %v3055
      %v3108 = vpop.f32.mrf.mxu0
      %v3109 = vadd.f32 %v3014, %v3108
      %v3110 = vpop.f32.mrf.mxu0
      %v3111 = vpop.f32.mrf.mxu0
      %v3112 = vadd.f32 %v3014, %v3111
      %v3113 = vpop.f32.mrf.mxu0
      %3114 = vmatprep.mubr.bf16.mxu0 0
      %3115 = vmatmul.mubr.bf16.gmra.mxu0 %v3058
      %v3116 = vpop.f32.mrf.mxu0
      %v3117 = vadd.f32 %v3014, %v3116
      %v3118 = vpop.f32.mrf.mxu0
      %v3119 = vpop.f32.mrf.mxu0
      %v3120 = vadd.f32 %v3014, %v3119
      %v3121 = vpop.f32.mrf.mxu0
      %3122 = vmatprep.mubr.bf16.mxu0 0
      %3123 = vmatmul.mubr.bf16.gmra.mxu0 %v3061
      %v3124 = vpop.f32.mrf.mxu0
      %v3125 = vadd.f32 %v3014, %v3124
      %v3126 = vpop.f32.mrf.mxu0
      %v3127 = vpop.f32.mrf.mxu0
      %v3128 = vadd.f32 %v3014, %v3127
      %v3129 = vpop.f32.mrf.mxu0
      %3130 = vdwg.mxu0
      %v3131 = vmax.f32 %v3101, 0.0
      %v3132 = vmax.f32 %v3104, 0.0
      %v3133 = vmax.f32 %v3109, 0.0
      %v3134 = vmax.f32 %v3112, 0.0
      %v3135 = vmax.f32 %v3117, 0.0
      %v3136 = vmax.f32 %v3120, 0.0
      %v3137 = vmax.f32 %v3125, 0.0
      %v3138 = vmax.f32 %v3128, 0.0
      %v3139 = vpack.c.bf16 %v3132, %v3131
      %v3140 = vpack.c.bf16 %v3134, %v3133
      %v3141 = vpack.c.bf16 %v3136, %v3135
      %v3142 = vpack.c.bf16 %v3138, %v3137
      %v3147 = vunpack.c.l.b16 %v3139
      %v3148 = vunpack.c.h.b16 %v3139
      %v3149 = vunpack.c.l.b16 %v3140
      %v3150 = vunpack.c.h.b16 %v3140
      %v3151 = vunpack.c.l.b16 %v3141
      %v3152 = vunpack.c.h.b16 %v3141
      %v3153 = vunpack.c.l.b16 %v3142
      %v3154 = vunpack.c.h.b16 %v3142
      %v3155 = vpack.c.b16 %v3147, %v3147
      %v3156 = vpack.c.b16 %v3148, %v3148
      %v3157 = vpack.c.b16 %v3149, %v3149
      %v3158 = vpack.c.b16 %v3150, %v3150
      %v3159 = vpack.c.b16 %v3151, %v3151
      %v3160 = vpack.c.b16 %v3152, %v3152
      %v3161 = vpack.c.b16 %v3153, %v3153
      %v3162 = vpack.c.b16 %v3154, %v3154
      %v3164 = vshrl.u32 %v3155, 16
      %v3166 = vrot.slane %v3164, 7
      %v3167 = vshll.u32 %v3155, 16
      %v3169 = vor.u32 %v3166, %v3167
      %v3170 = vrot.slane %v3166, 4
      %v3172 = vshrl.u32 %v3156, 16
      %v3174 = vrot.slane %v3172, 7
      %v3175 = vshll.u32 %v3156, 16
      %v3177 = vor.u32 %v3174, %v3175
      %v3178 = vrot.slane %v3174, 4
      %v3180 = vshrl.u32 %v3157, 16
      %v3182 = vrot.slane %v3180, 7
      %v3183 = vshll.u32 %v3157, 16
      %v3185 = vor.u32 %v3182, %v3183
      %v3186 = vrot.slane %v3182, 4
      %v3188 = vshrl.u32 %v3158, 16
      %v3190 = vrot.slane %v3188, 7
      %v3191 = vshll.u32 %v3158, 16
      %v3193 = vor.u32 %v3190, %v3191
      %v3194 = vrot.slane %v3190, 4
      %v3196 = vshrl.u32 %v3159, 16
      %v3198 = vrot.slane %v3196, 7
      %v3199 = vshll.u32 %v3159, 16
      %v3201 = vor.u32 %v3198, %v3199
      %v3202 = vrot.slane %v3198, 4
      %v3204 = vshrl.u32 %v3160, 16
      %v3206 = vrot.slane %v3204, 7
      %v3207 = vshll.u32 %v3160, 16
      %v3209 = vor.u32 %v3206, %v3207
      %v3210 = vrot.slane %v3206, 4
      %v3212 = vshrl.u32 %v3161, 16
      %v3214 = vrot.slane %v3212, 7
      %v3215 = vshll.u32 %v3161, 16
      %v3217 = vor.u32 %v3214, %v3215
      %v3218 = vrot.slane %v3214, 4
      %v3220 = vshrl.u32 %v3162, 16
      %v3222 = vrot.slane %v3220, 7
      %v3223 = vshll.u32 %v3162, 16
      %v3225 = vor.u32 %v3222, %v3223
      %v3226 = vrot.slane %v3222, 4
      %3227 = vrot.lane.b32.xlu0 %v3169, 8
      %v3228 = vpop.permute.xlu0 %3227
      %3229 = vrot.lane.b32.xlu0 %v3170, 8
      %v3230 = vpop.permute.xlu0 %3229
      %3231 = vrot.lane.b32.xlu0 %v3177, 8
      %v3232 = vpop.permute.xlu0 %3231
      %3233 = vrot.lane.b32.xlu0 %v3178, 8
      %v3234 = vpop.permute.xlu0 %3233
      %3235 = vrot.lane.b32.xlu0 %v3185, 8
      %v3236 = vpop.permute.xlu0 %3235
      %3237 = vrot.lane.b32.xlu0 %v3186, 8
      %v3238 = vpop.permute.xlu0 %3237
      %3239 = vrot.lane.b32.xlu0 %v3193, 8
      %v3240 = vpop.permute.xlu0 %3239
      %3241 = vrot.lane.b32.xlu0 %v3194, 8
      %v3242 = vpop.permute.xlu0 %3241
      %3243 = vrot.lane.b32.xlu0 %v3201, 8
      %v3244 = vpop.permute.xlu0 %3243
      %3245 = vrot.lane.b32.xlu0 %v3202, 8
      %v3246 = vpop.permute.xlu0 %3245
      %3247 = vrot.lane.b32.xlu0 %v3209, 8
      %v3248 = vpop.permute.xlu0 %3247
      %3249 = vrot.lane.b32.xlu0 %v3210, 8
      %v3250 = vpop.permute.xlu0 %3249
      %3251 = vrot.lane.b32.xlu0 %v3217, 8
      %v3252 = vpop.permute.xlu0 %3251
      %3253 = vrot.lane.b32.xlu0 %v3218, 8
      %v3254 = vpop.permute.xlu0 %3253
      %3255 = vrot.lane.b32.xlu0 %v3225, 8
      %v3256 = vpop.permute.xlu0 %3255
      %3257 = vrot.lane.b32.xlu0 %v3226, 8
      %v3258 = vpop.permute.xlu0 %3257
      %v3275 = vld [vmem:[#allocation3] sm:$0xf]
      %v3276 = vsel %vm814, %v3228, %v3275
      %3277 = vst [vmem:[#allocation3] sm:$0xf] %v3276
      %v3278 = vld [vmem:[#allocation3 + $0x4] sm:$0x1]
      %v3279 = vsel %vm819, %v3230, %v3278
      %3280 = vst [vmem:[#allocation3 + $0x4] sm:$0x1] %v3279
      %v3281 = vld [vmem:[#allocation3 + $0x8] sm:$0xf]
      %v3282 = vsel %vm814, %v3232, %v3281
      %3283 = vst [vmem:[#allocation3 + $0x8] sm:$0xf] %v3282
      %v3284 = vld [vmem:[#allocation3 + $0xc] sm:$0x1]
      %v3285 = vsel %vm819, %v3234, %v3284
      %3286 = vst [vmem:[#allocation3 + $0xc] sm:$0x1] %v3285
      %v3287 = vld [vmem:[#allocation3 + $0x10] sm:$0xf]
      %v3288 = vsel %vm814, %v3236, %v3287
      %3289 = vst [vmem:[#allocation3 + $0x10] sm:$0xf] %v3288
      %v3290 = vld [vmem:[#allocation3 + $0x14] sm:$0x1]
      %v3291 = vsel %vm819, %v3238, %v3290
      %3292 = vst [vmem:[#allocation3 + $0x14] sm:$0x1] %v3291
      %v3293 = vld [vmem:[#allocation3 + $0x18] sm:$0xf]
      %v3294 = vsel %vm814, %v3240, %v3293
      %3295 = vst [vmem:[#allocation3 + $0x18] sm:$0xf] %v3294
      %v3296 = vld [vmem:[#allocation3 + $0x1c] sm:$0x1]
      %v3297 = vsel %vm819, %v3242, %v3296
      %3298 = vst [vmem:[#allocation3 + $0x1c] sm:$0x1] %v3297
      %v3299 = vld [vmem:[#allocation3 + $0x20] sm:$0xf]
      %v3300 = vsel %vm814, %v3244, %v3299
      %3301 = vst [vmem:[#allocation3 + $0x20] sm:$0xf] %v3300
      %v3302 = vld [vmem:[#allocation3 + $0x24] sm:$0x1]
      %v3303 = vsel %vm819, %v3246, %v3302
      %3304 = vst [vmem:[#allocation3 + $0x24] sm:$0x1] %v3303
      %v3305 = vld [vmem:[#allocation3 + $0x28] sm:$0xf]
      %v3306 = vsel %vm814, %v3248, %v3305
      %3307 = vst [vmem:[#allocation3 + $0x28] sm:$0xf] %v3306
      %v3308 = vld [vmem:[#allocation3 + $0x2c] sm:$0x1]
      %v3309 = vsel %vm819, %v3250, %v3308
      %3310 = vst [vmem:[#allocation3 + $0x2c] sm:$0x1] %v3309
      %v3311 = vld [vmem:[#allocation3 + $0x30] sm:$0xf]
      %v3312 = vsel %vm814, %v3252, %v3311
      %3313 = vst [vmem:[#allocation3 + $0x30] sm:$0xf] %v3312
      %v3314 = vld [vmem:[#allocation3 + $0x34] sm:$0x1]
      %v3315 = vsel %vm819, %v3254, %v3314
      %3316 = vst [vmem:[#allocation3 + $0x34] sm:$0x1] %v3315
      %v3317 = vld [vmem:[#allocation3 + $0x38] sm:$0xf]
      %v3318 = vsel %vm814, %v3256, %v3317
      %3319 = vst [vmem:[#allocation3 + $0x38] sm:$0xf] %v3318
      %v3320 = vld [vmem:[#allocation3 + $0x3c] sm:$0x1]
      %v3321 = vsel %vm819, %v3258, %v3320
      %3322 = vst [vmem:[#allocation3 + $0x3c] sm:$0x1] %v3321
      %v3323 = vld [vmem:[#allocation2] sm:$0xf]
      %v3324 = vld [vmem:[#allocation2 + $0x8] sm:$0xf]
      %v3325 = vld [vmem:[#allocation2 + $0x10] sm:$0xf]
      %v3326 = vld [vmem:[#allocation2 + $0x18] sm:$0xf]
      %v3327 = vld [vmem:[#allocation2 + $0x20] sm:$0xf]
      %v3328 = vld [vmem:[#allocation2 + $0x28] sm:$0xf]
      %v3329 = vld [vmem:[#allocation2 + $0x30] sm:$0xf]
      %v3330 = vld [vmem:[#allocation2 + $0x38] sm:$0xf]
      %3339 = vrot.lane.b32.xlu0 %v3323, 120
      %v3340 = vpop.permute.xlu0 %3339
      %3341 = vrot.lane.b32.xlu0 %v3324, 120
      %v3342 = vpop.permute.xlu0 %3341
      %3343 = vrot.lane.b32.xlu0 %v3325, 120
      %v3344 = vpop.permute.xlu0 %3343
      %3345 = vrot.lane.b32.xlu0 %v3326, 120
      %v3346 = vpop.permute.xlu0 %3345
      %3347 = vrot.lane.b32.xlu0 %v3327, 120
      %v3348 = vpop.permute.xlu0 %3347
      %3349 = vrot.lane.b32.xlu0 %v3328, 120
      %v3350 = vpop.permute.xlu0 %3349
      %3351 = vrot.lane.b32.xlu0 %v3329, 120
      %v3352 = vpop.permute.xlu0 %3351
      %3353 = vrot.lane.b32.xlu0 %v3330, 120
      %v3354 = vpop.permute.xlu0 %3353
      %3363 = vst.msk [vmem:[#allocation5] sm:$0xf] %vm922, %v3340
      %3364 = vst.msk [vmem:[#allocation5 + $0x4] sm:$0xf] %vm922, %v3342
      %3365 = vst.msk [vmem:[#allocation5 + $0x8] sm:$0xf] %vm922, %v3344
      %3366 = vst.msk [vmem:[#allocation5 + $0xc] sm:$0xf] %vm922, %v3346
      %3367 = vst.msk [vmem:[#allocation5 + $0x10] sm:$0xf] %vm922, %v3348
      %3368 = vst.msk [vmem:[#allocation5 + $0x14] sm:$0xf] %vm922, %v3350
      %3369 = vst.msk [vmem:[#allocation5 + $0x18] sm:$0xf] %vm922, %v3352
      %3370 = vst.msk [vmem:[#allocation5 + $0x1c] sm:$0xf] %vm922, %v3354
      %v3371 = vld [vmem:[#allocation2] sm:$0xf]
      %v3372 = vld [vmem:[#allocation2 + $0x8] sm:$0xf]
      %v3373 = vld [vmem:[#allocation2 + $0x10] sm:$0xf]
      %v3374 = vld [vmem:[#allocation2 + $0x18] sm:$0xf]
      %v3375 = vld [vmem:[#allocation2 + $0x20] sm:$0xf]
      %v3376 = vld [vmem:[#allocation2 + $0x28] sm:$0xf]
      %v3377 = vld [vmem:[#allocation2 + $0x30] sm:$0xf]
      %v3378 = vld [vmem:[#allocation2 + $0x38] sm:$0xf]
      %3387 = vrot.lane.b32.xlu0 %v3371, 120
      %v3388 = vpop.permute.xlu0 %3387
      %3389 = vrot.lane.b32.xlu0 %v3372, 120
      %v3390 = vpop.permute.xlu0 %3389
      %3391 = vrot.lane.b32.xlu0 %v3373, 120
      %v3392 = vpop.permute.xlu0 %3391
      %3393 = vrot.lane.b32.xlu0 %v3374, 120
      %v3394 = vpop.permute.xlu0 %3393
      %3395 = vrot.lane.b32.xlu0 %v3375, 120
      %v3396 = vpop.permute.xlu0 %3395
      %3397 = vrot.lane.b32.xlu0 %v3376, 120
      %v3398 = vpop.permute.xlu0 %3397
      %3399 = vrot.lane.b32.xlu0 %v3377, 120
      %v3400 = vpop.permute.xlu0 %3399
      %3401 = vrot.lane.b32.xlu0 %v3378, 120
      %v3402 = vpop.permute.xlu0 %3401
      %3411 = vst.msk [vmem:[#allocation5] sm:$0xf] %vm684, %v3388
      %3412 = vst.msk [vmem:[#allocation5 + $0x4] sm:$0xf] %vm684, %v3390
      %3413 = vst.msk [vmem:[#allocation5 + $0x8] sm:$0xf] %vm684, %v3392
      %3414 = vst.msk [vmem:[#allocation5 + $0xc] sm:$0xf] %vm684, %v3394
      %3415 = vst.msk [vmem:[#allocation5 + $0x10] sm:$0xf] %vm684, %v3396
      %3416 = vst.msk [vmem:[#allocation5 + $0x14] sm:$0xf] %vm684, %v3398
      %3417 = vst.msk [vmem:[#allocation5 + $0x18] sm:$0xf] %vm684, %v3400
      %3418 = vst.msk [vmem:[#allocation5 + $0x1c] sm:$0xf] %vm684, %v3402
      %v3419 = vld [vmem:[#allocation2] sm:$0xf]
      %v3420 = vld [vmem:[#allocation2 + $0x4] sm:$0x1]
      %v3421 = vld [vmem:[#allocation2 + $0x8] sm:$0xf]
      %v3422 = vld [vmem:[#allocation2 + $0xc] sm:$0x1]
      %v3423 = vld [vmem:[#allocation2 + $0x10] sm:$0xf]
      %v3424 = vld [vmem:[#allocation2 + $0x14] sm:$0x1]
      %v3425 = vld [vmem:[#allocation2 + $0x18] sm:$0xf]
      %v3426 = vld [vmem:[#allocation2 + $0x1c] sm:$0x1]
      %v3427 = vld [vmem:[#allocation2 + $0x20] sm:$0xf]
      %v3428 = vld [vmem:[#allocation2 + $0x24] sm:$0x1]
      %v3429 = vld [vmem:[#allocation2 + $0x28] sm:$0xf]
      %v3430 = vld [vmem:[#allocation2 + $0x2c] sm:$0x1]
      %v3431 = vld [vmem:[#allocation2 + $0x30] sm:$0xf]
      %v3432 = vld [vmem:[#allocation2 + $0x34] sm:$0x1]
      %v3433 = vld [vmem:[#allocation2 + $0x38] sm:$0xf]
      %v3434 = vld [vmem:[#allocation2 + $0x3c] sm:$0x1]
      %v3436 = vshrl.u32 %v3419, 16
      %v3438 = vrot.slane %v3436, 4
      %v3439 = vshll.u32 %v3419, 16
      %v3441 = vrot.slane %v3439, 5
      %v3442 = vor.u32 %v3438, %v3441
      %v3443 = vrot.slane %v3442, 4
      %v3445 = vshll.u32 %v3420, 16
      %v3447 = vrot.slane %v3445, 5
      %v3448 = vsel %vm965, %v3443, %v3447
      %v3450 = vshrl.u32 %v3421, 16
      %v3452 = vrot.slane %v3450, 4
      %v3453 = vshll.u32 %v3421, 16
      %v3455 = vrot.slane %v3453, 5
      %v3456 = vor.u32 %v3452, %v3455
      %v3457 = vrot.slane %v3456, 4
      %v3459 = vshll.u32 %v3422, 16
      %v3461 = vrot.slane %v3459, 5
      %v3462 = vsel %vm965, %v3457, %v3461
      %v3464 = vshrl.u32 %v3423, 16
      %v3466 = vrot.slane %v3464, 4
      %v3467 = vshll.u32 %v3423, 16
      %v3469 = vrot.slane %v3467, 5
      %v3470 = vor.u32 %v3466, %v3469
      %v3471 = vrot.slane %v3470, 4
      %v3473 = vshll.u32 %v3424, 16
      %v3475 = vrot.slane %v3473, 5
      %v3476 = vsel %vm965, %v3471, %v3475
      %v3478 = vshrl.u32 %v3425, 16
      %v3480 = vrot.slane %v3478, 4
      %v3481 = vshll.u32 %v3425, 16
      %v3483 = vrot.slane %v3481, 5
      %v3484 = vor.u32 %v3480, %v3483
      %v3485 = vrot.slane %v3484, 4
      %v3487 = vshll.u32 %v3426, 16
      %v3489 = vrot.slane %v3487, 5
      %v3490 = vsel %vm965, %v3485, %v3489
      %v3492 = vshrl.u32 %v3427, 16
      %v3494 = vrot.slane %v3492, 4
      %v3495 = vshll.u32 %v3427, 16
      %v3497 = vrot.slane %v3495, 5
      %v3498 = vor.u32 %v3494, %v3497
      %v3499 = vrot.slane %v3498, 4
      %v3501 = vshll.u32 %v3428, 16
      %v3503 = vrot.slane %v3501, 5
      %v3504 = vsel %vm965, %v3499, %v3503
      %v3506 = vshrl.u32 %v3429, 16
      %v3508 = vrot.slane %v3506, 4
      %v3509 = vshll.u32 %v3429, 16
      %v3511 = vrot.slane %v3509, 5
      %v3512 = vor.u32 %v3508, %v3511
      %v3513 = vrot.slane %v3512, 4
      %v3515 = vshll.u32 %v3430, 16
      %v3517 = vrot.slane %v3515, 5
      %v3518 = vsel %vm965, %v3513, %v3517
      %v3520 = vshrl.u32 %v3431, 16
      %v3522 = vrot.slane %v3520, 4
      %v3523 = vshll.u32 %v3431, 16
      %v3525 = vrot.slane %v3523, 5
      %v3526 = vor.u32 %v3522, %v3525
      %v3527 = vrot.slane %v3526, 4
      %v3529 = vshll.u32 %v3432, 16
      %v3531 = vrot.slane %v3529, 5
      %v3532 = vsel %vm965, %v3527, %v3531
      %v3534 = vshrl.u32 %v3433, 16
      %v3536 = vrot.slane %v3534, 4
      %v3537 = vshll.u32 %v3433, 16
      %v3539 = vrot.slane %v3537, 5
      %v3540 = vor.u32 %v3536, %v3539
      %v3541 = vrot.slane %v3540, 4
      %v3543 = vshll.u32 %v3434, 16
      %v3545 = vrot.slane %v3543, 5
      %v3546 = vsel %vm965, %v3541, %v3545
      %3555 = vst.msk [vmem:[#allocation5] sm:$0xf] %vm1102, %v3448
      %3556 = vst.msk [vmem:[#allocation5 + $0x4] sm:$0xf] %vm1102, %v3462
      %3557 = vst.msk [vmem:[#allocation5 + $0x8] sm:$0xf] %vm1102, %v3476
      %3558 = vst.msk [vmem:[#allocation5 + $0xc] sm:$0xf] %vm1102, %v3490
      %3559 = vst.msk [vmem:[#allocation5 + $0x10] sm:$0xf] %vm1102, %v3504
      %3560 = vst.msk [vmem:[#allocation5 + $0x14] sm:$0xf] %vm1102, %v3518
      %3561 = vst.msk [vmem:[#allocation5 + $0x18] sm:$0xf] %vm1102, %v3532
      %3562 = vst.msk [vmem:[#allocation5 + $0x1c] sm:$0xf] %vm1102, %v3546
      %v3563 = vld [vmem:[%s590] sm:$0xf]
      %v3564 = vld [vmem:[%s590 + $0x8] sm:$0xf]
      %v3565 = vld [vmem:[%s590 + $0x10] sm:$0xf]
      %v3566 = vld [vmem:[%s590 + $0x18] sm:$0xf]
      %v3567 = vld [vmem:[%s590 + $0x20] sm:$0xf]
      %v3568 = vld [vmem:[%s590 + $0x28] sm:$0xf]
      %v3569 = vld [vmem:[%s590 + $0x30] sm:$0xf]
      %v3570 = vld [vmem:[%s590 + $0x38] sm:$0xf]
      %3579 = vrot.lane.b32.xlu0 %v3563, 12
      %v3580 = vpop.permute.xlu0 %3579
      %3581 = vrot.lane.b32.xlu0 %v3564, 12
      %v3582 = vpop.permute.xlu0 %3581
      %3583 = vrot.lane.b32.xlu0 %v3565, 12
      %v3584 = vpop.permute.xlu0 %3583
      %3585 = vrot.lane.b32.xlu0 %v3566, 12
      %v3586 = vpop.permute.xlu0 %3585
      %3587 = vrot.lane.b32.xlu0 %v3567, 12
      %v3588 = vpop.permute.xlu0 %3587
      %3589 = vrot.lane.b32.xlu0 %v3568, 12
      %v3590 = vpop.permute.xlu0 %3589
      %3591 = vrot.lane.b32.xlu0 %v3569, 12
      %v3592 = vpop.permute.xlu0 %3591
      %3593 = vrot.lane.b32.xlu0 %v3570, 12
      %v3594 = vpop.permute.xlu0 %3593
      %3603 = vst.msk [vmem:[#allocation5] sm:$0xf] %vm905, %v3580
      %3604 = vst.msk [vmem:[#allocation5 + $0x4] sm:$0xf] %vm905, %v3582
      %3605 = vst.msk [vmem:[#allocation5 + $0x8] sm:$0xf] %vm905, %v3584
      %3606 = vst.msk [vmem:[#allocation5 + $0xc] sm:$0xf] %vm905, %v3586
      %3607 = vst.msk [vmem:[#allocation5 + $0x10] sm:$0xf] %vm905, %v3588
      %3608 = vst.msk [vmem:[#allocation5 + $0x14] sm:$0xf] %vm905, %v3590
      %3609 = vst.msk [vmem:[#allocation5 + $0x18] sm:$0xf] %vm905, %v3592
      %3610 = vst.msk [vmem:[#allocation5 + $0x1c] sm:$0xf] %vm905, %v3594
      %v3611 = vld [vmem:[%s590] sm:$0xf]
      %v3612 = vld [vmem:[%s590 + $0x8] sm:$0xf]
      %v3613 = vld [vmem:[%s590 + $0x10] sm:$0xf]
      %v3614 = vld [vmem:[%s590 + $0x18] sm:$0xf]
      %v3615 = vld [vmem:[%s590 + $0x20] sm:$0xf]
      %v3616 = vld [vmem:[%s590 + $0x28] sm:$0xf]
      %v3617 = vld [vmem:[%s590 + $0x30] sm:$0xf]
      %v3618 = vld [vmem:[%s590 + $0x38] sm:$0xf]
      %3627 = vrot.lane.b32.xlu0 %v3611, 12
      %v3628 = vpop.permute.xlu0 %3627
      %3629 = vrot.lane.b32.xlu0 %v3612, 12
      %v3630 = vpop.permute.xlu0 %3629
      %3631 = vrot.lane.b32.xlu0 %v3613, 12
      %v3632 = vpop.permute.xlu0 %3631
      %3633 = vrot.lane.b32.xlu0 %v3614, 12
      %v3634 = vpop.permute.xlu0 %3633
      %3635 = vrot.lane.b32.xlu0 %v3615, 12
      %v3636 = vpop.permute.xlu0 %3635
      %3637 = vrot.lane.b32.xlu0 %v3616, 12
      %v3638 = vpop.permute.xlu0 %3637
      %3639 = vrot.lane.b32.xlu0 %v3617, 12
      %v3640 = vpop.permute.xlu0 %3639
      %3641 = vrot.lane.b32.xlu0 %v3618, 12
      %v3642 = vpop.permute.xlu0 %3641
      %3651 = vst.msk [vmem:[#allocation5] sm:$0xf] %vm1199, %v3628
      %3652 = vst.msk [vmem:[#allocation5 + $0x4] sm:$0xf] %vm1199, %v3630
      %3653 = vst.msk [vmem:[#allocation5 + $0x8] sm:$0xf] %vm1199, %v3632
      %3654 = vst.msk [vmem:[#allocation5 + $0xc] sm:$0xf] %vm1199, %v3634
      %3655 = vst.msk [vmem:[#allocation5 + $0x10] sm:$0xf] %vm1199, %v3636
      %3656 = vst.msk [vmem:[#allocation5 + $0x14] sm:$0xf] %vm1199, %v3638
      %3657 = vst.msk [vmem:[#allocation5 + $0x18] sm:$0xf] %vm1199, %v3640
      %3658 = vst.msk [vmem:[#allocation5 + $0x1c] sm:$0xf] %vm1199, %v3642
      %v3659 = vld [vmem:[%s590] sm:$0xf]
      %v3660 = vld [vmem:[%s590 + $0x4] sm:$0x1]
      %v3661 = vld [vmem:[%s590 + $0x8] sm:$0xf]
      %v3662 = vld [vmem:[%s590 + $0xc] sm:$0x1]
      %v3663 = vld [vmem:[%s590 + $0x10] sm:$0xf]
      %v3664 = vld [vmem:[%s590 + $0x14] sm:$0x1]
      %v3665 = vld [vmem:[%s590 + $0x18] sm:$0xf]
      %v3666 = vld [vmem:[%s590 + $0x1c] sm:$0x1]
      %v3667 = vld [vmem:[%s590 + $0x20] sm:$0xf]
      %v3668 = vld [vmem:[%s590 + $0x24] sm:$0x1]
      %v3669 = vld [vmem:[%s590 + $0x28] sm:$0xf]
      %v3670 = vld [vmem:[%s590 + $0x2c] sm:$0x1]
      %v3671 = vld [vmem:[%s590 + $0x30] sm:$0xf]
      %v3672 = vld [vmem:[%s590 + $0x34] sm:$0x1]
      %v3673 = vld [vmem:[%s590 + $0x38] sm:$0xf]
      %v3674 = vld [vmem:[%s590 + $0x3c] sm:$0x1]
      %v3676 = vshrl.u32 %v3659, 16
      %v3678 = vrot.slane %v3676, 4
      %v3679 = vshll.u32 %v3659, 16
      %v3681 = vrot.slane %v3679, 5
      %v3682 = vor.u32 %v3678, %v3681
      %v3683 = vrot.slane %v3682, 4
      %v3685 = vshll.u32 %v3660, 16
      %v3687 = vrot.slane %v3685, 5
      %v3688 = vsel %vm965, %v3683, %v3687
      %v3690 = vshrl.u32 %v3661, 16
      %v3692 = vrot.slane %v3690, 4
      %v3693 = vshll.u32 %v3661, 16
      %v3695 = vrot.slane %v3693, 5
      %v3696 = vor.u32 %v3692, %v3695
      %v3697 = vrot.slane %v3696, 4
      %v3699 = vshll.u32 %v3662, 16
      %v3701 = vrot.slane %v3699, 5
      %v3702 = vsel %vm965, %v3697, %v3701
      %v3704 = vshrl.u32 %v3663, 16
      %v3706 = vrot.slane %v3704, 4
      %v3707 = vshll.u32 %v3663, 16
      %v3709 = vrot.slane %v3707, 5
      %v3710 = vor.u32 %v3706, %v3709
      %v3711 = vrot.slane %v3710, 4
      %v3713 = vshll.u32 %v3664, 16
      %v3715 = vrot.slane %v3713, 5
      %v3716 = vsel %vm965, %v3711, %v3715
      %v3718 = vshrl.u32 %v3665, 16
      %v3720 = vrot.slane %v3718, 4
      %v3721 = vshll.u32 %v3665, 16
      %v3723 = vrot.slane %v3721, 5
      %v3724 = vor.u32 %v3720, %v3723
      %v3725 = vrot.slane %v3724, 4
      %v3727 = vshll.u32 %v3666, 16
      %v3729 = vrot.slane %v3727, 5
      %v3730 = vsel %vm965, %v3725, %v3729
      %v3732 = vshrl.u32 %v3667, 16
      %v3734 = vrot.slane %v3732, 4
      %v3735 = vshll.u32 %v3667, 16
      %v3737 = vrot.slane %v3735, 5
      %v3738 = vor.u32 %v3734, %v3737
      %v3739 = vrot.slane %v3738, 4
      %v3741 = vshll.u32 %v3668, 16
      %v3743 = vrot.slane %v3741, 5
      %v3744 = vsel %vm965, %v3739, %v3743
      %v3746 = vshrl.u32 %v3669, 16
      %v3748 = vrot.slane %v3746, 4
      %v3749 = vshll.u32 %v3669, 16
      %v3751 = vrot.slane %v3749, 5
      %v3752 = vor.u32 %v3748, %v3751
      %v3753 = vrot.slane %v3752, 4
      %v3755 = vshll.u32 %v3670, 16
      %v3757 = vrot.slane %v3755, 5
      %v3758 = vsel %vm965, %v3753, %v3757
      %v3760 = vshrl.u32 %v3671, 16
      %v3762 = vrot.slane %v3760, 4
      %v3763 = vshll.u32 %v3671, 16
      %v3765 = vrot.slane %v3763, 5
      %v3766 = vor.u32 %v3762, %v3765
      %v3767 = vrot.slane %v3766, 4
      %v3769 = vshll.u32 %v3672, 16
      %v3771 = vrot.slane %v3769, 5
      %v3772 = vsel %vm965, %v3767, %v3771
      %v3774 = vshrl.u32 %v3673, 16
      %v3776 = vrot.slane %v3774, 4
      %v3777 = vshll.u32 %v3673, 16
      %v3779 = vrot.slane %v3777, 5
      %v3780 = vor.u32 %v3776, %v3779
      %v3781 = vrot.slane %v3780, 4
      %v3783 = vshll.u32 %v3674, 16
      %v3785 = vrot.slane %v3783, 5
      %v3786 = vsel %vm965, %v3781, %v3785
      %3787 = vrot.lane.b32.xlu0 %v3688, 20
      %v3788 = vpop.permute.xlu0 %3787
      %3789 = vrot.lane.b32.xlu0 %v3702, 20
      %v3790 = vpop.permute.xlu0 %3789
      %3791 = vrot.lane.b32.xlu0 %v3716, 20
      %v3792 = vpop.permute.xlu0 %3791
      %3793 = vrot.lane.b32.xlu0 %v3730, 20
      %v3794 = vpop.permute.xlu0 %3793
      %3795 = vrot.lane.b32.xlu0 %v3744, 20
      %v3796 = vpop.permute.xlu0 %3795
      %3797 = vrot.lane.b32.xlu0 %v3758, 20
      %v3798 = vpop.permute.xlu0 %3797
      %3799 = vrot.lane.b32.xlu0 %v3772, 20
      %v3800 = vpop.permute.xlu0 %3799
      %3801 = vrot.lane.b32.xlu0 %v3786, 20
      %v3802 = vpop.permute.xlu0 %3801
      %3811 = vst.msk [vmem:[#allocation5] sm:$0xf] %vm1360, %v3788
      %3812 = vst.msk [vmem:[#allocation5 + $0x4] sm:$0xf] %vm1360, %v3790
      %3813 = vst.msk [vmem:[#allocation5 + $0x8] sm:$0xf] %vm1360, %v3792
      %3814 = vst.msk [vmem:[#allocation5 + $0xc] sm:$0xf] %vm1360, %v3794
      %3815 = vst.msk [vmem:[#allocation5 + $0x10] sm:$0xf] %vm1360, %v3796
      %3816 = vst.msk [vmem:[#allocation5 + $0x14] sm:$0xf] %vm1360, %v3798
      %3817 = vst.msk [vmem:[#allocation5 + $0x18] sm:$0xf] %vm1360, %v3800
      %3818 = vst.msk [vmem:[#allocation5 + $0x1c] sm:$0xf] %vm1360, %v3802
      %v3819 = vld [vmem:[%s590] sm:$0xf]
      %v3820 = vld [vmem:[%s590 + $0x8] sm:$0xf]
      %v3821 = vld [vmem:[%s590 + $0x10] sm:$0xf]
      %v3822 = vld [vmem:[%s590 + $0x18] sm:$0xf]
      %v3823 = vld [vmem:[%s590 + $0x20] sm:$0xf]
      %v3824 = vld [vmem:[%s590 + $0x28] sm:$0xf]
      %v3825 = vld [vmem:[%s590 + $0x30] sm:$0xf]
      %v3826 = vld [vmem:[%s590 + $0x38] sm:$0xf]
      %3835 = vrot.lane.b32.xlu0 %v3819, 16
      %v3836 = vpop.permute.xlu0 %3835
      %3837 = vrot.lane.b32.xlu0 %v3820, 16
      %v3838 = vpop.permute.xlu0 %3837
      %3839 = vrot.lane.b32.xlu0 %v3821, 16
      %v3840 = vpop.permute.xlu0 %3839
      %3841 = vrot.lane.b32.xlu0 %v3822, 16
      %v3842 = vpop.permute.xlu0 %3841
      %3843 = vrot.lane.b32.xlu0 %v3823, 16
      %v3844 = vpop.permute.xlu0 %3843
      %3845 = vrot.lane.b32.xlu0 %v3824, 16
      %v3846 = vpop.permute.xlu0 %3845
      %3847 = vrot.lane.b32.xlu0 %v3825, 16
      %v3848 = vpop.permute.xlu0 %3847
      %3849 = vrot.lane.b32.xlu0 %v3826, 16
      %v3850 = vpop.permute.xlu0 %3849
      %3859 = vst.msk [vmem:[#allocation5] sm:$0xf] %vm1409, %v3836
      %3860 = vst.msk [vmem:[#allocation5 + $0x4] sm:$0xf] %vm1409, %v3838
      %3861 = vst.msk [vmem:[#allocation5 + $0x8] sm:$0xf] %vm1409, %v3840
      %3862 = vst.msk [vmem:[#allocation5 + $0xc] sm:$0xf] %vm1409, %v3842
      %3863 = vst.msk [vmem:[#allocation5 + $0x10] sm:$0xf] %vm1409, %v3844
      %3864 = vst.msk [vmem:[#allocation5 + $0x14] sm:$0xf] %vm1409, %v3846
      %3865 = vst.msk [vmem:[#allocation5 + $0x18] sm:$0xf] %vm1409, %v3848
      %3866 = vst.msk [vmem:[#allocation5 + $0x1c] sm:$0xf] %vm1409, %v3850
      %v3867 = vld [vmem:[%s590] sm:$0xf]
      %v3868 = vld [vmem:[%s590 + $0x8] sm:$0xf]
      %v3869 = vld [vmem:[%s590 + $0x10] sm:$0xf]
      %v3870 = vld [vmem:[%s590 + $0x18] sm:$0xf]
      %v3871 = vld [vmem:[%s590 + $0x20] sm:$0xf]
      %v3872 = vld [vmem:[%s590 + $0x28] sm:$0xf]
      %v3873 = vld [vmem:[%s590 + $0x30] sm:$0xf]
      %v3874 = vld [vmem:[%s590 + $0x38] sm:$0xf]
      %3883 = vrot.lane.b32.xlu0 %v3867, 16
      %v3884 = vpop.permute.xlu0 %3883
      %3885 = vrot.lane.b32.xlu0 %v3868, 16
      %v3886 = vpop.permute.xlu0 %3885
      %3887 = vrot.lane.b32.xlu0 %v3869, 16
      %v3888 = vpop.permute.xlu0 %3887
      %3889 = vrot.lane.b32.xlu0 %v3870, 16
      %v3890 = vpop.permute.xlu0 %3889
      %3891 = vrot.lane.b32.xlu0 %v3871, 16
      %v3892 = vpop.permute.xlu0 %3891
      %3893 = vrot.lane.b32.xlu0 %v3872, 16
      %v3894 = vpop.permute.xlu0 %3893
      %3895 = vrot.lane.b32.xlu0 %v3873, 16
      %v3896 = vpop.permute.xlu0 %3895
      %3897 = vrot.lane.b32.xlu0 %v3874, 16
      %v3898 = vpop.permute.xlu0 %3897
      %3907 = vst.msk [vmem:[#allocation5] sm:$0xf] %vm1458, %v3884
      %3908 = vst.msk [vmem:[#allocation5 + $0x4] sm:$0xf] %vm1458, %v3886
      %3909 = vst.msk [vmem:[#allocation5 + $0x8] sm:$0xf] %vm1458, %v3888
      %3910 = vst.msk [vmem:[#allocation5 + $0xc] sm:$0xf] %vm1458, %v3890
      %3911 = vst.msk [vmem:[#allocation5 + $0x10] sm:$0xf] %vm1458, %v3892
      %3912 = vst.msk [vmem:[#allocation5 + $0x14] sm:$0xf] %vm1458, %v3894
      %3913 = vst.msk [vmem:[#allocation5 + $0x18] sm:$0xf] %vm1458, %v3896
      %3914 = vst.msk [vmem:[#allocation5 + $0x1c] sm:$0xf] %vm1458, %v3898
      %v3915 = vld [vmem:[%s590] sm:$0xf]
      %v3916 = vld [vmem:[%s590 + $0x4] sm:$0x1]
      %v3917 = vld [vmem:[%s590 + $0x8] sm:$0xf]
      %v3918 = vld [vmem:[%s590 + $0xc] sm:$0x1]
      %v3919 = vld [vmem:[%s590 + $0x10] sm:$0xf]
      %v3920 = vld [vmem:[%s590 + $0x14] sm:$0x1]
      %v3921 = vld [vmem:[%s590 + $0x18] sm:$0xf]
      %v3922 = vld [vmem:[%s590 + $0x1c] sm:$0x1]
      %v3923 = vld [vmem:[%s590 + $0x20] sm:$0xf]
      %v3924 = vld [vmem:[%s590 + $0x24] sm:$0x1]
      %v3925 = vld [vmem:[%s590 + $0x28] sm:$0xf]
      %v3926 = vld [vmem:[%s590 + $0x2c] sm:$0x1]
      %v3927 = vld [vmem:[%s590 + $0x30] sm:$0xf]
      %v3928 = vld [vmem:[%s590 + $0x34] sm:$0x1]
      %v3929 = vld [vmem:[%s590 + $0x38] sm:$0xf]
      %v3930 = vld [vmem:[%s590 + $0x3c] sm:$0x1]
      %v3932 = vshrl.u32 %v3915, 16
      %v3934 = vrot.slane %v3932, 4
      %v3935 = vshll.u32 %v3915, 16
      %v3937 = vrot.slane %v3935, 5
      %v3938 = vor.u32 %v3934, %v3937
      %v3939 = vrot.slane %v3938, 4
      %v3941 = vshll.u32 %v3916, 16
      %v3943 = vrot.slane %v3941, 5
      %v3944 = vsel %vm965, %v3939, %v3943
      %v3946 = vshrl.u32 %v3917, 16
      %v3948 = vrot.slane %v3946, 4
      %v3949 = vshll.u32 %v3917, 16
      %v3951 = vrot.slane %v3949, 5
      %v3952 = vor.u32 %v3948, %v3951
      %v3953 = vrot.slane %v3952, 4
      %v3955 = vshll.u32 %v3918, 16
      %v3957 = vrot.slane %v3955, 5
      %v3958 = vsel %vm965, %v3953, %v3957
      %v3960 = vshrl.u32 %v3919, 16
      %v3962 = vrot.slane %v3960, 4
      %v3963 = vshll.u32 %v3919, 16
      %v3965 = vrot.slane %v3963, 5
      %v3966 = vor.u32 %v3962, %v3965
      %v3967 = vrot.slane %v3966, 4
      %v3969 = vshll.u32 %v3920, 16
      %v3971 = vrot.slane %v3969, 5
      %v3972 = vsel %vm965, %v3967, %v3971
      %v3974 = vshrl.u32 %v3921, 16
      %v3976 = vrot.slane %v3974, 4
      %v3977 = vshll.u32 %v3921, 16
      %v3979 = vrot.slane %v3977, 5
      %v3980 = vor.u32 %v3976, %v3979
      %v3981 = vrot.slane %v3980, 4
      %v3983 = vshll.u32 %v3922, 16
      %v3985 = vrot.slane %v3983, 5
      %v3986 = vsel %vm965, %v3981, %v3985
      %v3988 = vshrl.u32 %v3923, 16
      %v3990 = vrot.slane %v3988, 4
      %v3991 = vshll.u32 %v3923, 16
      %v3993 = vrot.slane %v3991, 5
      %v3994 = vor.u32 %v3990, %v3993
      %v3995 = vrot.slane %v3994, 4
      %v3997 = vshll.u32 %v3924, 16
      %v3999 = vrot.slane %v3997, 5
      %v4000 = vsel %vm965, %v3995, %v3999
      %v4002 = vshrl.u32 %v3925, 16
      %v4004 = vrot.slane %v4002, 4
      %v4005 = vshll.u32 %v3925, 16
      %v4007 = vrot.slane %v4005, 5
      %v4008 = vor.u32 %v4004, %v4007
      %v4009 = vrot.slane %v4008, 4
      %v4011 = vshll.u32 %v3926, 16
      %v4013 = vrot.slane %v4011, 5
      %v4014 = vsel %vm965, %v4009, %v4013
      %v4016 = vshrl.u32 %v3927, 16
      %v4018 = vrot.slane %v4016, 4
      %v4019 = vshll.u32 %v3927, 16
      %v4021 = vrot.slane %v4019, 5
      %v4022 = vor.u32 %v4018, %v4021
      %v4023 = vrot.slane %v4022, 4
      %v4025 = vshll.u32 %v3928, 16
      %v4027 = vrot.slane %v4025, 5
      %v4028 = vsel %vm965, %v4023, %v4027
      %v4030 = vshrl.u32 %v3929, 16
      %v4032 = vrot.slane %v4030, 4
      %v4033 = vshll.u32 %v3929, 16
      %v4035 = vrot.slane %v4033, 5
      %v4036 = vor.u32 %v4032, %v4035
      %v4037 = vrot.slane %v4036, 4
      %v4039 = vshll.u32 %v3930, 16
      %v4041 = vrot.slane %v4039, 5
      %v4042 = vsel %vm965, %v4037, %v4041
      %4043 = vrot.lane.b32.xlu0 %v3944, 24
      %v4044 = vpop.permute.xlu0 %4043
      %4045 = vrot.lane.b32.xlu0 %v3958, 24
      %v4046 = vpop.permute.xlu0 %4045
      %4047 = vrot.lane.b32.xlu0 %v3972, 24
      %v4048 = vpop.permute.xlu0 %4047
      %4049 = vrot.lane.b32.xlu0 %v3986, 24
      %v4050 = vpop.permute.xlu0 %4049
      %4051 = vrot.lane.b32.xlu0 %v4000, 24
      %v4052 = vpop.permute.xlu0 %4051
      %4053 = vrot.lane.b32.xlu0 %v4014, 24
      %v4054 = vpop.permute.xlu0 %4053
      %4055 = vrot.lane.b32.xlu0 %v4028, 24
      %v4056 = vpop.permute.xlu0 %4055
      %4057 = vrot.lane.b32.xlu0 %v4042, 24
      %v4058 = vpop.permute.xlu0 %4057
      %4067 = vst.msk [vmem:[#allocation5] sm:$0xf] %vm1619, %v4044
      %4068 = vst.msk [vmem:[#allocation5 + $0x4] sm:$0xf] %vm1619, %v4046
      %4069 = vst.msk [vmem:[#allocation5 + $0x8] sm:$0xf] %vm1619, %v4048
      %4070 = vst.msk [vmem:[#allocation5 + $0xc] sm:$0xf] %vm1619, %v4050
      %4071 = vst.msk [vmem:[#allocation5 + $0x10] sm:$0xf] %vm1619, %v4052
      %4072 = vst.msk [vmem:[#allocation5 + $0x14] sm:$0xf] %vm1619, %v4054
      %4073 = vst.msk [vmem:[#allocation5 + $0x18] sm:$0xf] %vm1619, %v4056
      %4074 = vst.msk [vmem:[#allocation5 + $0x1c] sm:$0xf] %vm1619, %v4058
      %v4075 = vld [vmem:[#allocation5] sm:$0xf]
      %v4076 = vld [vmem:[#allocation5 + $0x4] sm:$0xf]
      %v4077 = vld [vmem:[#allocation5 + $0x8] sm:$0xf]
      %v4078 = vld [vmem:[#allocation5 + $0xc] sm:$0xf]
      %v4079 = vld [vmem:[#allocation5 + $0x10] sm:$0xf]
      %v4080 = vld [vmem:[#allocation5 + $0x14] sm:$0xf]
      %v4081 = vld [vmem:[#allocation5 + $0x18] sm:$0xf]
      %v4082 = vld [vmem:[#allocation5 + $0x1c] sm:$0xf]
      %v4083 = vld [vmem:[%s1] sm:$0xf]
      %v4084 = vld [vmem:[%s1 + $0x4] sm:$0xf]
      %v4085 = vld [vmem:[%s1 + $0x8] sm:$0xf]
      %v4086 = vld [vmem:[%s1 + $0xc] sm:$0xf]
      %v4087 = vld [vmem:[%s1 + $0x10] sm:$0x3]
      %v4088 = vld [vmem:[%s2] sm:$0x1]
      %v4090 = vlaneseq
      %v4091 = vshrl.u32 %v4090, 7
      %v4092 = vsub.s32 0, %v4091
      %v4093 = vrot.slane %v4088, %v4092
      %v4103 = vunpack.c.l.b16 %v4075
      %v4104 = vunpack.c.l.b16 %v4076
      %v4105 = vunpack.c.l.b16 %v4077
      %v4106 = vunpack.c.l.b16 %v4078
      %v4107 = vunpack.c.l.b16 %v4079
      %v4108 = vunpack.c.l.b16 %v4080
      %v4109 = vunpack.c.l.b16 %v4081
      %v4110 = vunpack.c.l.b16 %v4082
      %v4111 = vpack.c.b16 %v4104, %v4103
      %v4112 = vpack.c.b16 %v4106, %v4105
      %v4113 = vpack.c.b16 %v4108, %v4107
      %v4114 = vpack.c.b16 %v4110, %v4109
      %v4120 = vunpack.c.l.b16 %v4083
      %v4121 = vunpack.c.l.b16 %v4084
      %v4122 = vunpack.c.l.b16 %v4085
      %v4123 = vunpack.c.l.b16 %v4086
      %v4124 = vunpack.c.l.b16 %v4087
      %v4125 = vpack.c.b16 %v4121, %v4120
      %v4126 = vpack.c.b16 %v4123, %v4122
      %v4127 = vpack.c.b16 %v4124, %v4124
      %v4131 = vsel %vm1683, %v4111, 0
      %v4134 = vsel %vm1683, %v4112, 0
      %v4137 = vsel %vm1683, %v4113, 0
      %v4140 = vsel %vm1683, %v4114, 0
      %v4143 = vsel %vm1696, %v4127, 0
      %4145 = vmatprep.subr.bf16.mxu0 0
      %4146 = vmatpush1.bf16.msra.mxu0 0
      %4147 = vmatprep.subr.bf16.mxu0 0
      %4148 = vmatpush1.bf16.msra.mxu0 0
      %4149 = vmatprep.subr.bf16.mxu0 0
      %4150 = vmatpush1.bf16.msra.mxu0 0
      %4151 = vmatprep.subr.bf16.mxu0 0
      %4152 = vmatpush1.bf16.msra.mxu0 0
      %4153 = vmatprep.subr.bf16.mxu0 0
      %4154 = vmatpush1.bf16.msra.mxu0 0
      %4155 = vmatprep.subr.bf16.mxu0 0
      %4156 = vmatpush1.bf16.msra.mxu0 %v4143
      %4157 = vmatprep.subr.bf16.mxu0 0
      %4158 = vmatpush1.bf16.msra.mxu0 %v4126
      %4159 = vmatprep.subr.bf16.mxu0 0
      %4160 = vmatpush1.bf16.msra.mxu0 %v4125
      %4161 = vmatprep.subr.bf16.mxu0 0
      %4162 = vmatpush2.bf16.msra.mxu0 0
      %4163 = vmatprep.subr.bf16.mxu0 0
      %4164 = vmatpush2.bf16.msra.mxu0 0
      %4165 = vmatprep.subr.bf16.mxu0 0
      %4166 = vmatpush2.bf16.msra.mxu0 0
      %4167 = vmatprep.subr.bf16.mxu0 0
      %4168 = vmatpush2.bf16.msra.mxu0 0
      %4169 = vmatprep.subr.bf16.mxu0 0
      %4170 = vmatpush2.bf16.msra.mxu0 0
      %4171 = vmatprep.subr.bf16.mxu0 0
      %4172 = vmatpush2.bf16.msra.mxu0 0
      %4173 = vmatprep.subr.bf16.mxu0 0
      %4174 = vmatpush2.bf16.msra.mxu0 0
      %4175 = vmatprep.subr.bf16.mxu0 0
      %4176 = vmatpush2.bf16.msra.mxu0 0
      %4177 = vmatprep.mubr.bf16.mxu0 0
      %4178 = vmatmul.mubr.bf16.gmra.mxu0 %v4131
      %v4179 = vpop.f32.mrf.mxu0
      %v4180 = vadd.f32 %v4093, %v4179
      %v4181 = vpop.f32.mrf.mxu0
      %v4182 = vpop.f32.mrf.mxu0
      %v4183 = vadd.f32 %v4093, %v4182
      %v4184 = vpop.f32.mrf.mxu0
      %4185 = vmatprep.mubr.bf16.mxu0 0
      %4186 = vmatmul.mubr.bf16.gmra.mxu0 %v4134
      %v4187 = vpop.f32.mrf.mxu0
      %v4188 = vadd.f32 %v4093, %v4187
      %v4189 = vpop.f32.mrf.mxu0
      %v4190 = vpop.f32.mrf.mxu0
      %v4191 = vadd.f32 %v4093, %v4190
      %v4192 = vpop.f32.mrf.mxu0
      %4193 = vmatprep.mubr.bf16.mxu0 0
      %4194 = vmatmul.mubr.bf16.gmra.mxu0 %v4137
      %v4195 = vpop.f32.mrf.mxu0
      %v4196 = vadd.f32 %v4093, %v4195
      %v4197 = vpop.f32.mrf.mxu0
      %v4198 = vpop.f32.mrf.mxu0
      %v4199 = vadd.f32 %v4093, %v4198
      %v4200 = vpop.f32.mrf.mxu0
      %4201 = vmatprep.mubr.bf16.mxu0 0
      %4202 = vmatmul.mubr.bf16.gmra.mxu0 %v4140
      %v4203 = vpop.f32.mrf.mxu0
      %v4204 = vadd.f32 %v4093, %v4203
      %v4205 = vpop.f32.mrf.mxu0
      %v4206 = vpop.f32.mrf.mxu0
      %v4207 = vadd.f32 %v4093, %v4206
      %v4208 = vpop.f32.mrf.mxu0
      %4209 = vdwg.mxu0
      %v4210 = vmax.f32 %v4180, 0.0
      %v4211 = vmax.f32 %v4183, 0.0
      %v4212 = vmax.f32 %v4188, 0.0
      %v4213 = vmax.f32 %v4191, 0.0
      %v4214 = vmax.f32 %v4196, 0.0
      %v4215 = vmax.f32 %v4199, 0.0
      %v4216 = vmax.f32 %v4204, 0.0
      %v4217 = vmax.f32 %v4207, 0.0
      %v4218 = vpack.c.bf16 %v4211, %v4210
      %v4219 = vpack.c.bf16 %v4213, %v4212
      %v4220 = vpack.c.bf16 %v4215, %v4214
      %v4221 = vpack.c.bf16 %v4217, %v4216
      %v4226 = vunpack.c.l.b16 %v4218
      %v4227 = vunpack.c.h.b16 %v4218
      %v4228 = vunpack.c.l.b16 %v4219
      %v4229 = vunpack.c.h.b16 %v4219
      %v4230 = vunpack.c.l.b16 %v4220
      %v4231 = vunpack.c.h.b16 %v4220
      %v4232 = vunpack.c.l.b16 %v4221
      %v4233 = vunpack.c.h.b16 %v4221
      %v4234 = vpack.c.b16 %v4226, %v4226
      %v4235 = vpack.c.b16 %v4227, %v4227
      %v4236 = vpack.c.b16 %v4228, %v4228
      %v4237 = vpack.c.b16 %v4229, %v4229
      %v4238 = vpack.c.b16 %v4230, %v4230
      %v4239 = vpack.c.b16 %v4231, %v4231
      %v4240 = vpack.c.b16 %v4232, %v4232
      %v4241 = vpack.c.b16 %v4233, %v4233
      %4242 = vrot.lane.b32.xlu0 %v4234, 4
      %v4243 = vpop.permute.xlu0 %4242
      %4244 = vrot.lane.b32.xlu0 %v4235, 4
      %v4245 = vpop.permute.xlu0 %4244
      %4246 = vrot.lane.b32.xlu0 %v4236, 4
      %v4247 = vpop.permute.xlu0 %4246
      %4248 = vrot.lane.b32.xlu0 %v4237, 4
      %v4249 = vpop.permute.xlu0 %4248
      %4250 = vrot.lane.b32.xlu0 %v4238, 4
      %v4251 = vpop.permute.xlu0 %4250
      %4252 = vrot.lane.b32.xlu0 %v4239, 4
      %v4253 = vpop.permute.xlu0 %4252
      %4254 = vrot.lane.b32.xlu0 %v4240, 4
      %v4255 = vpop.permute.xlu0 %4254
      %4256 = vrot.lane.b32.xlu0 %v4241, 4
      %v4257 = vpop.permute.xlu0 %4256
      %s4266 = scalar_lea.vmem [#allocation3], 8
      %4267 = vst.msk [vmem:[%s4266] sm:$0xf] %vm684, %v4243
      %4268 = vst.msk [vmem:[%s4266 + $0x8] sm:$0xf] %vm684, %v4245
      %4269 = vst.msk [vmem:[%s4266 + $0x10] sm:$0xf] %vm684, %v4247
      %4270 = vst.msk [vmem:[%s4266 + $0x18] sm:$0xf] %vm684, %v4249
      %4271 = vst.msk [vmem:[%s4266 + $0x20] sm:$0xf] %vm684, %v4251
      %4272 = vst.msk [vmem:[%s4266 + $0x28] sm:$0xf] %vm684, %v4253
      %4273 = vst.msk [vmem:[%s4266 + $0x30] sm:$0xf] %vm684, %v4255
      %4274 = vst.msk [vmem:[%s4266 + $0x38] sm:$0xf] %vm684, %v4257
      %v4275 = vld [vmem:[#allocation2] sm:$0xf]
      %v4276 = vld [vmem:[#allocation2 + $0x8] sm:$0xf]
      %v4277 = vld [vmem:[#allocation2 + $0x10] sm:$0xf]
      %v4278 = vld [vmem:[#allocation2 + $0x18] sm:$0xf]
      %v4279 = vld [vmem:[#allocation2 + $0x20] sm:$0xf]
      %v4280 = vld [vmem:[#allocation2 + $0x28] sm:$0xf]
      %v4281 = vld [vmem:[#allocation2 + $0x30] sm:$0xf]
      %v4282 = vld [vmem:[#allocation2 + $0x38] sm:$0xf]
      %4291 = vrot.lane.b32.xlu0 %v4275, 116
      %v4292 = vpop.permute.xlu0 %4291
      %4293 = vrot.lane.b32.xlu0 %v4276, 116
      %v4294 = vpop.permute.xlu0 %4293
      %4295 = vrot.lane.b32.xlu0 %v4277, 116
      %v4296 = vpop.permute.xlu0 %4295
      %4297 = vrot.lane.b32.xlu0 %v4278, 116
      %v4298 = vpop.permute.xlu0 %4297
      %4299 = vrot.lane.b32.xlu0 %v4279, 116
      %v4300 = vpop.permute.xlu0 %4299
      %4301 = vrot.lane.b32.xlu0 %v4280, 116
      %v4302 = vpop.permute.xlu0 %4301
      %4303 = vrot.lane.b32.xlu0 %v4281, 116
      %v4304 = vpop.permute.xlu0 %4303
      %4305 = vrot.lane.b32.xlu0 %v4282, 116
      %v4306 = vpop.permute.xlu0 %4305
      %4315 = vst.msk [vmem:[#allocation5] sm:$0xf] %vm922, %v4292
      %4316 = vst.msk [vmem:[#allocation5 + $0x4] sm:$0xf] %vm922, %v4294
      %4317 = vst.msk [vmem:[#allocation5 + $0x8] sm:$0xf] %vm922, %v4296
      %4318 = vst.msk [vmem:[#allocation5 + $0xc] sm:$0xf] %vm922, %v4298
      %4319 = vst.msk [vmem:[#allocation5 + $0x10] sm:$0xf] %vm922, %v4300
      %4320 = vst.msk [vmem:[#allocation5 + $0x14] sm:$0xf] %vm922, %v4302
      %4321 = vst.msk [vmem:[#allocation5 + $0x18] sm:$0xf] %vm922, %v4304
      %4322 = vst.msk [vmem:[#allocation5 + $0x1c] sm:$0xf] %vm922, %v4306
      %v4323 = vld [vmem:[#allocation2] sm:$0xf]
      %v4324 = vld [vmem:[#allocation2 + $0x4] sm:$0x1]
      %v4325 = vld [vmem:[#allocation2 + $0x8] sm:$0xf]
      %v4326 = vld [vmem:[#allocation2 + $0xc] sm:$0x1]
      %v4327 = vld [vmem:[#allocation2 + $0x10] sm:$0xf]
      %v4328 = vld [vmem:[#allocation2 + $0x14] sm:$0x1]
      %v4329 = vld [vmem:[#allocation2 + $0x18] sm:$0xf]
      %v4330 = vld [vmem:[#allocation2 + $0x1c] sm:$0x1]
      %v4331 = vld [vmem:[#allocation2 + $0x20] sm:$0xf]
      %v4332 = vld [vmem:[#allocation2 + $0x24] sm:$0x1]
      %v4333 = vld [vmem:[#allocation2 + $0x28] sm:$0xf]
      %v4334 = vld [vmem:[#allocation2 + $0x2c] sm:$0x1]
      %v4335 = vld [vmem:[#allocation2 + $0x30] sm:$0xf]
      %v4336 = vld [vmem:[#allocation2 + $0x34] sm:$0x1]
      %v4337 = vld [vmem:[#allocation2 + $0x38] sm:$0xf]
      %v4338 = vld [vmem:[#allocation2 + $0x3c] sm:$0x1]
      %v4340 = vshrl.u32 %v4323, 16
      %v4342 = vrot.slane %v4340, 4
      %v4343 = vshll.u32 %v4323, 16
      %v4345 = vrot.slane %v4343, 5
      %v4346 = vor.u32 %v4342, %v4345
      %v4347 = vrot.slane %v4346, 4
      %v4349 = vshll.u32 %v4324, 16
      %v4351 = vrot.slane %v4349, 5
      %v4352 = vsel %vm965, %v4347, %v4351
      %v4354 = vshrl.u32 %v4325, 16
      %v4356 = vrot.slane %v4354, 4
      %v4357 = vshll.u32 %v4325, 16
      %v4359 = vrot.slane %v4357, 5
      %v4360 = vor.u32 %v4356, %v4359
      %v4361 = vrot.slane %v4360, 4
      %v4363 = vshll.u32 %v4326, 16
      %v4365 = vrot.slane %v4363, 5
      %v4366 = vsel %vm965, %v4361, %v4365
      %v4368 = vshrl.u32 %v4327, 16
      %v4370 = vrot.slane %v4368, 4
      %v4371 = vshll.u32 %v4327, 16
      %v4373 = vrot.slane %v4371, 5
      %v4374 = vor.u32 %v4370, %v4373
      %v4375 = vrot.slane %v4374, 4
      %v4377 = vshll.u32 %v4328, 16
      %v4379 = vrot.slane %v4377, 5
      %v4380 = vsel %vm965, %v4375, %v4379
      %v4382 = vshrl.u32 %v4329, 16
      %v4384 = vrot.slane %v4382, 4
      %v4385 = vshll.u32 %v4329, 16
      %v4387 = vrot.slane %v4385, 5
      %v4388 = vor.u32 %v4384, %v4387
      %v4389 = vrot.slane %v4388, 4
      %v4391 = vshll.u32 %v4330, 16
      %v4393 = vrot.slane %v4391, 5
      %v4394 = vsel %vm965, %v4389, %v4393
      %v4396 = vshrl.u32 %v4331, 16
      %v4398 = vrot.slane %v4396, 4
      %v4399 = vshll.u32 %v4331, 16
      %v4401 = vrot.slane %v4399, 5
      %v4402 = vor.u32 %v4398, %v4401
      %v4403 = vrot.slane %v4402, 4
      %v4405 = vshll.u32 %v4332, 16
      %v4407 = vrot.slane %v4405, 5
      %v4408 = vsel %vm965, %v4403, %v4407
      %v4410 = vshrl.u32 %v4333, 16
      %v4412 = vrot.slane %v4410, 4
      %v4413 = vshll.u32 %v4333, 16
      %v4415 = vrot.slane %v4413, 5
      %v4416 = vor.u32 %v4412, %v4415
      %v4417 = vrot.slane %v4416, 4
      %v4419 = vshll.u32 %v4334, 16
      %v4421 = vrot.slane %v4419, 5
      %v4422 = vsel %vm965, %v4417, %v4421
      %v4424 = vshrl.u32 %v4335, 16
      %v4426 = vrot.slane %v4424, 4
      %v4427 = vshll.u32 %v4335, 16
      %v4429 = vrot.slane %v4427, 5
      %v4430 = vor.u32 %v4426, %v4429
      %v4431 = vrot.slane %v4430, 4
      %v4433 = vshll.u32 %v4336, 16
      %v4435 = vrot.slane %v4433, 5
      %v4436 = vsel %vm965, %v4431, %v4435
      %v4438 = vshrl.u32 %v4337, 16
      %v4440 = vrot.slane %v4438, 4
      %v4441 = vshll.u32 %v4337, 16
      %v4443 = vrot.slane %v4441, 5
      %v4444 = vor.u32 %v4440, %v4443
      %v4445 = vrot.slane %v4444, 4
      %v4447 = vshll.u32 %v4338, 16
      %v4449 = vrot.slane %v4447, 5
      %v4450 = vsel %vm965, %v4445, %v4449
      %4451 = vrot.lane.b32.xlu0 %v4352, 124
      %v4452 = vpop.permute.xlu0 %4451
      %4453 = vrot.lane.b32.xlu0 %v4366, 124
      %v4454 = vpop.permute.xlu0 %4453
      %4455 = vrot.lane.b32.xlu0 %v4380, 124
      %v4456 = vpop.permute.xlu0 %4455
      %4457 = vrot.lane.b32.xlu0 %v4394, 124
      %v4458 = vpop.permute.xlu0 %4457
      %4459 = vrot.lane.b32.xlu0 %v4408, 124
      %v4460 = vpop.permute.xlu0 %4459
      %4461 = vrot.lane.b32.xlu0 %v4422, 124
      %v4462 = vpop.permute.xlu0 %4461
      %4463 = vrot.lane.b32.xlu0 %v4436, 124
      %v4464 = vpop.permute.xlu0 %4463
      %4465 = vrot.lane.b32.xlu0 %v4450, 124
      %v4466 = vpop.permute.xlu0 %4465
      %4475 = vst.msk [vmem:[#allocation5] sm:$0xf] %vm684, %v4452
      %4476 = vst.msk [vmem:[#allocation5 + $0x4] sm:$0xf] %vm684, %v4454
      %4477 = vst.msk [vmem:[#allocation5 + $0x8] sm:$0xf] %vm684, %v4456
      %4478 = vst.msk [vmem:[#allocation5 + $0xc] sm:$0xf] %vm684, %v4458
      %4479 = vst.msk [vmem:[#allocation5 + $0x10] sm:$0xf] %vm684, %v4460
      %4480 = vst.msk [vmem:[#allocation5 + $0x14] sm:$0xf] %vm684, %v4462
      %4481 = vst.msk [vmem:[#allocation5 + $0x18] sm:$0xf] %vm684, %v4464
      %4482 = vst.msk [vmem:[#allocation5 + $0x1c] sm:$0xf] %vm684, %v4466
      %v4483 = vld [vmem:[#allocation2] sm:$0xf]
      %v4484 = vld [vmem:[#allocation2 + $0x4] sm:$0x1]
      %v4485 = vld [vmem:[#allocation2 + $0x8] sm:$0xf]
      %v4486 = vld [vmem:[#allocation2 + $0xc] sm:$0x1]
      %v4487 = vld [vmem:[#allocation2 + $0x10] sm:$0xf]
      %v4488 = vld [vmem:[#allocation2 + $0x14] sm:$0x1]
      %v4489 = vld [vmem:[#allocation2 + $0x18] sm:$0xf]
      %v4490 = vld [vmem:[#allocation2 + $0x1c] sm:$0x1]
      %v4491 = vld [vmem:[#allocation2 + $0x20] sm:$0xf]
      %v4492 = vld [vmem:[#allocation2 + $0x24] sm:$0x1]
      %v4493 = vld [vmem:[#allocation2 + $0x28] sm:$0xf]
      %v4494 = vld [vmem:[#allocation2 + $0x2c] sm:$0x1]
      %v4495 = vld [vmem:[#allocation2 + $0x30] sm:$0xf]
      %v4496 = vld [vmem:[#allocation2 + $0x34] sm:$0x1]
      %v4497 = vld [vmem:[#allocation2 + $0x38] sm:$0xf]
      %v4498 = vld [vmem:[#allocation2 + $0x3c] sm:$0x1]
      %v4500 = vshrl.u32 %v4483, 16
      %v4502 = vrot.slane %v4500, 4
      %v4503 = vshll.u32 %v4483, 16
      %v4505 = vrot.slane %v4503, 5
      %v4506 = vor.u32 %v4502, %v4505
      %v4507 = vrot.slane %v4506, 4
      %v4509 = vshll.u32 %v4484, 16
      %v4511 = vrot.slane %v4509, 5
      %v4512 = vsel %vm965, %v4507, %v4511
      %v4514 = vshrl.u32 %v4485, 16
      %v4516 = vrot.slane %v4514, 4
      %v4517 = vshll.u32 %v4485, 16
      %v4519 = vrot.slane %v4517, 5
      %v4520 = vor.u32 %v4516, %v4519
      %v4521 = vrot.slane %v4520, 4
      %v4523 = vshll.u32 %v4486, 16
      %v4525 = vrot.slane %v4523, 5
      %v4526 = vsel %vm965, %v4521, %v4525
      %v4528 = vshrl.u32 %v4487, 16
      %v4530 = vrot.slane %v4528, 4
      %v4531 = vshll.u32 %v4487, 16
      %v4533 = vrot.slane %v4531, 5
      %v4534 = vor.u32 %v4530, %v4533
      %v4535 = vrot.slane %v4534, 4
      %v4537 = vshll.u32 %v4488, 16
      %v4539 = vrot.slane %v4537, 5
      %v4540 = vsel %vm965, %v4535, %v4539
      %v4542 = vshrl.u32 %v4489, 16
      %v4544 = vrot.slane %v4542, 4
      %v4545 = vshll.u32 %v4489, 16
      %v4547 = vrot.slane %v4545, 5
      %v4548 = vor.u32 %v4544, %v4547
      %v4549 = vrot.slane %v4548, 4
      %v4551 = vshll.u32 %v4490, 16
      %v4553 = vrot.slane %v4551, 5
      %v4554 = vsel %vm965, %v4549, %v4553
      %v4556 = vshrl.u32 %v4491, 16
      %v4558 = vrot.slane %v4556, 4
      %v4559 = vshll.u32 %v4491, 16
      %v4561 = vrot.slane %v4559, 5
      %v4562 = vor.u32 %v4558, %v4561
      %v4563 = vrot.slane %v4562, 4
      %v4565 = vshll.u32 %v4492, 16
      %v4567 = vrot.slane %v4565, 5
      %v4568 = vsel %vm965, %v4563, %v4567
      %v4570 = vshrl.u32 %v4493, 16
      %v4572 = vrot.slane %v4570, 4
      %v4573 = vshll.u32 %v4493, 16
      %v4575 = vrot.slane %v4573, 5
      %v4576 = vor.u32 %v4572, %v4575
      %v4577 = vrot.slane %v4576, 4
      %v4579 = vshll.u32 %v4494, 16
      %v4581 = vrot.slane %v4579, 5
      %v4582 = vsel %vm965, %v4577, %v4581
      %v4584 = vshrl.u32 %v4495, 16
      %v4586 = vrot.slane %v4584, 4
      %v4587 = vshll.u32 %v4495, 16
      %v4589 = vrot.slane %v4587, 5
      %v4590 = vor.u32 %v4586, %v4589
      %v4591 = vrot.slane %v4590, 4
      %v4593 = vshll.u32 %v4496, 16
      %v4595 = vrot.slane %v4593, 5
      %v4596 = vsel %vm965, %v4591, %v4595
      %v4598 = vshrl.u32 %v4497, 16
      %v4600 = vrot.slane %v4598, 4
      %v4601 = vshll.u32 %v4497, 16
      %v4603 = vrot.slane %v4601, 5
      %v4604 = vor.u32 %v4600, %v4603
      %v4605 = vrot.slane %v4604, 4
      %v4607 = vshll.u32 %v4498, 16
      %v4609 = vrot.slane %v4607, 5
      %v4610 = vsel %vm965, %v4605, %v4609
      %4611 = vrot.lane.b32.xlu0 %v4512, 124
      %v4612 = vpop.permute.xlu0 %4611
      %4613 = vrot.lane.b32.xlu0 %v4526, 124
      %v4614 = vpop.permute.xlu0 %4613
      %4615 = vrot.lane.b32.xlu0 %v4540, 124
      %v4616 = vpop.permute.xlu0 %4615
      %4617 = vrot.lane.b32.xlu0 %v4554, 124
      %v4618 = vpop.permute.xlu0 %4617
      %4619 = vrot.lane.b32.xlu0 %v4568, 124
      %v4620 = vpop.permute.xlu0 %4619
      %4621 = vrot.lane.b32.xlu0 %v4582, 124
      %v4622 = vpop.permute.xlu0 %4621
      %4623 = vrot.lane.b32.xlu0 %v4596, 124
      %v4624 = vpop.permute.xlu0 %4623
      %4625 = vrot.lane.b32.xlu0 %v4610, 124
      %v4626 = vpop.permute.xlu0 %4625
      %4635 = vst.msk [vmem:[#allocation5] sm:$0xf] %vm1102, %v4612
      %4636 = vst.msk [vmem:[#allocation5 + $0x4] sm:$0xf] %vm1102, %v4614
      %4637 = vst.msk [vmem:[#allocation5 + $0x8] sm:$0xf] %vm1102, %v4616
      %4638 = vst.msk [vmem:[#allocation5 + $0xc] sm:$0xf] %vm1102, %v4618
      %4639 = vst.msk [vmem:[#allocation5 + $0x10] sm:$0xf] %vm1102, %v4620
      %4640 = vst.msk [vmem:[#allocation5 + $0x14] sm:$0xf] %vm1102, %v4622
      %4641 = vst.msk [vmem:[#allocation5 + $0x18] sm:$0xf] %vm1102, %v4624
      %4642 = vst.msk [vmem:[#allocation5 + $0x1c] sm:$0xf] %vm1102, %v4626
      %v4643 = vld [vmem:[%s590] sm:$0xf]
      %v4644 = vld [vmem:[%s590 + $0x8] sm:$0xf]
      %v4645 = vld [vmem:[%s590 + $0x10] sm:$0xf]
      %v4646 = vld [vmem:[%s590 + $0x18] sm:$0xf]
      %v4647 = vld [vmem:[%s590 + $0x20] sm:$0xf]
      %v4648 = vld [vmem:[%s590 + $0x28] sm:$0xf]
      %v4649 = vld [vmem:[%s590 + $0x30] sm:$0xf]
      %v4650 = vld [vmem:[%s590 + $0x38] sm:$0xf]
      %4659 = vrot.lane.b32.xlu0 %v4643, 8
      %v4660 = vpop.permute.xlu0 %4659
      %4661 = vrot.lane.b32.xlu0 %v4644, 8
      %v4662 = vpop.permute.xlu0 %4661
      %4663 = vrot.lane.b32.xlu0 %v4645, 8
      %v4664 = vpop.permute.xlu0 %4663
      %4665 = vrot.lane.b32.xlu0 %v4646, 8
      %v4666 = vpop.permute.xlu0 %4665
      %4667 = vrot.lane.b32.xlu0 %v4647, 8
      %v4668 = vpop.permute.xlu0 %4667
      %4669 = vrot.lane.b32.xlu0 %v4648, 8
      %v4670 = vpop.permute.xlu0 %4669
      %4671 = vrot.lane.b32.xlu0 %v4649, 8
      %v4672 = vpop.permute.xlu0 %4671
      %4673 = vrot.lane.b32.xlu0 %v4650, 8
      %v4674 = vpop.permute.xlu0 %4673
      %4683 = vst.msk [vmem:[#allocation5] sm:$0xf] %vm905, %v4660
      %4684 = vst.msk [vmem:[#allocation5 + $0x4] sm:$0xf] %vm905, %v4662
      %4685 = vst.msk [vmem:[#allocation5 + $0x8] sm:$0xf] %vm905, %v4664
      %4686 = vst.msk [vmem:[#allocation5 + $0xc] sm:$0xf] %vm905, %v4666
      %4687 = vst.msk [vmem:[#allocation5 + $0x10] sm:$0xf] %vm905, %v4668
      %4688 = vst.msk [vmem:[#allocation5 + $0x14] sm:$0xf] %vm905, %v4670
      %4689 = vst.msk [vmem:[#allocation5 + $0x18] sm:$0xf] %vm905, %v4672
      %4690 = vst.msk [vmem:[#allocation5 + $0x1c] sm:$0xf] %vm905, %v4674
      %v4691 = vld [vmem:[%s590] sm:$0xf]
      %v4692 = vld [vmem:[%s590 + $0x4] sm:$0x1]
      %v4693 = vld [vmem:[%s590 + $0x8] sm:$0xf]
      %v4694 = vld [vmem:[%s590 + $0xc] sm:$0x1]
      %v4695 = vld [vmem:[%s590 + $0x10] sm:$0xf]
      %v4696 = vld [vmem:[%s590 + $0x14] sm:$0x1]
      %v4697 = vld [vmem:[%s590 + $0x18] sm:$0xf]
      %v4698 = vld [vmem:[%s590 + $0x1c] sm:$0x1]
      %v4699 = vld [vmem:[%s590 + $0x20] sm:$0xf]
      %v4700 = vld [vmem:[%s590 + $0x24] sm:$0x1]
      %v4701 = vld [vmem:[%s590 + $0x28] sm:$0xf]
      %v4702 = vld [vmem:[%s590 + $0x2c] sm:$0x1]
      %v4703 = vld [vmem:[%s590 + $0x30] sm:$0xf]
      %v4704 = vld [vmem:[%s590 + $0x34] sm:$0x1]
      %v4705 = vld [vmem:[%s590 + $0x38] sm:$0xf]
      %v4706 = vld [vmem:[%s590 + $0x3c] sm:$0x1]
      %v4708 = vshrl.u32 %v4691, 16
      %v4710 = vrot.slane %v4708, 4
      %v4711 = vshll.u32 %v4691, 16
      %v4713 = vrot.slane %v4711, 5
      %v4714 = vor.u32 %v4710, %v4713
      %v4715 = vrot.slane %v4714, 4
      %v4717 = vshll.u32 %v4692, 16
      %v4719 = vrot.slane %v4717, 5
      %v4720 = vsel %vm965, %v4715, %v4719
      %v4722 = vshrl.u32 %v4693, 16
      %v4724 = vrot.slane %v4722, 4
      %v4725 = vshll.u32 %v4693, 16
      %v4727 = vrot.slane %v4725, 5
      %v4728 = vor.u32 %v4724, %v4727
      %v4729 = vrot.slane %v4728, 4
      %v4731 = vshll.u32 %v4694, 16
      %v4733 = vrot.slane %v4731, 5
      %v4734 = vsel %vm965, %v4729, %v4733
      %v4736 = vshrl.u32 %v4695, 16
      %v4738 = vrot.slane %v4736, 4
      %v4739 = vshll.u32 %v4695, 16
      %v4741 = vrot.slane %v4739, 5
      %v4742 = vor.u32 %v4738, %v4741
      %v4743 = vrot.slane %v4742, 4
      %v4745 = vshll.u32 %v4696, 16
      %v4747 = vrot.slane %v4745, 5
      %v4748 = vsel %vm965, %v4743, %v4747
      %v4750 = vshrl.u32 %v4697, 16
      %v4752 = vrot.slane %v4750, 4
      %v4753 = vshll.u32 %v4697, 16
      %v4755 = vrot.slane %v4753, 5
      %v4756 = vor.u32 %v4752, %v4755
      %v4757 = vrot.slane %v4756, 4
      %v4759 = vshll.u32 %v4698, 16
      %v4761 = vrot.slane %v4759, 5
      %v4762 = vsel %vm965, %v4757, %v4761
      %v4764 = vshrl.u32 %v4699, 16
      %v4766 = vrot.slane %v4764, 4
      %v4767 = vshll.u32 %v4699, 16
      %v4769 = vrot.slane %v4767, 5
      %v4770 = vor.u32 %v4766, %v4769
      %v4771 = vrot.slane %v4770, 4
      %v4773 = vshll.u32 %v4700, 16
      %v4775 = vrot.slane %v4773, 5
      %v4776 = vsel %vm965, %v4771, %v4775
      %v4778 = vshrl.u32 %v4701, 16
      %v4780 = vrot.slane %v4778, 4
      %v4781 = vshll.u32 %v4701, 16
      %v4783 = vrot.slane %v4781, 5
      %v4784 = vor.u32 %v4780, %v4783
      %v4785 = vrot.slane %v4784, 4
      %v4787 = vshll.u32 %v4702, 16
      %v4789 = vrot.slane %v4787, 5
      %v4790 = vsel %vm965, %v4785, %v4789
      %v4792 = vshrl.u32 %v4703, 16
      %v4794 = vrot.slane %v4792, 4
      %v4795 = vshll.u32 %v4703, 16
      %v4797 = vrot.slane %v4795, 5
      %v4798 = vor.u32 %v4794, %v4797
      %v4799 = vrot.slane %v4798, 4
      %v4801 = vshll.u32 %v4704, 16
      %v4803 = vrot.slane %v4801, 5
      %v4804 = vsel %vm965, %v4799, %v4803
      %v4806 = vshrl.u32 %v4705, 16
      %v4808 = vrot.slane %v4806, 4
      %v4809 = vshll.u32 %v4705, 16
      %v4811 = vrot.slane %v4809, 5
      %v4812 = vor.u32 %v4808, %v4811
      %v4813 = vrot.slane %v4812, 4
      %v4815 = vshll.u32 %v4706, 16
      %v4817 = vrot.slane %v4815, 5
      %v4818 = vsel %vm965, %v4813, %v4817
      %4819 = vrot.lane.b32.xlu0 %v4720, 16
      %v4820 = vpop.permute.xlu0 %4819
      %4821 = vrot.lane.b32.xlu0 %v4734, 16
      %v4822 = vpop.permute.xlu0 %4821
      %4823 = vrot.lane.b32.xlu0 %v4748, 16
      %v4824 = vpop.permute.xlu0 %4823
      %4825 = vrot.lane.b32.xlu0 %v4762, 16
      %v4826 = vpop.permute.xlu0 %4825
      %4827 = vrot.lane.b32.xlu0 %v4776, 16
      %v4828 = vpop.permute.xlu0 %4827
      %4829 = vrot.lane.b32.xlu0 %v4790, 16
      %v4830 = vpop.permute.xlu0 %4829
      %4831 = vrot.lane.b32.xlu0 %v4804, 16
      %v4832 = vpop.permute.xlu0 %4831
      %4833 = vrot.lane.b32.xlu0 %v4818, 16
      %v4834 = vpop.permute.xlu0 %4833
      %4843 = vst.msk [vmem:[#allocation5] sm:$0xf] %vm1199, %v4820
      %4844 = vst.msk [vmem:[#allocation5 + $0x4] sm:$0xf] %vm1199, %v4822
      %4845 = vst.msk [vmem:[#allocation5 + $0x8] sm:$0xf] %vm1199, %v4824
      %4846 = vst.msk [vmem:[#allocation5 + $0xc] sm:$0xf] %vm1199, %v4826
      %4847 = vst.msk [vmem:[#allocation5 + $0x10] sm:$0xf] %vm1199, %v4828
      %4848 = vst.msk [vmem:[#allocation5 + $0x14] sm:$0xf] %vm1199, %v4830
      %4849 = vst.msk [vmem:[#allocation5 + $0x18] sm:$0xf] %vm1199, %v4832
      %4850 = vst.msk [vmem:[#allocation5 + $0x1c] sm:$0xf] %vm1199, %v4834
      %v4851 = vld [vmem:[%s590] sm:$0xf]
      %v4852 = vld [vmem:[%s590 + $0x4] sm:$0x1]
      %v4853 = vld [vmem:[%s590 + $0x8] sm:$0xf]
      %v4854 = vld [vmem:[%s590 + $0xc] sm:$0x1]
      %v4855 = vld [vmem:[%s590 + $0x10] sm:$0xf]
      %v4856 = vld [vmem:[%s590 + $0x14] sm:$0x1]
      %v4857 = vld [vmem:[%s590 + $0x18] sm:$0xf]
      %v4858 = vld [vmem:[%s590 + $0x1c] sm:$0x1]
      %v4859 = vld [vmem:[%s590 + $0x20] sm:$0xf]
      %v4860 = vld [vmem:[%s590 + $0x24] sm:$0x1]
      %v4861 = vld [vmem:[%s590 + $0x28] sm:$0xf]
      %v4862 = vld [vmem:[%s590 + $0x2c] sm:$0x1]
      %v4863 = vld [vmem:[%s590 + $0x30] sm:$0xf]
      %v4864 = vld [vmem:[%s590 + $0x34] sm:$0x1]
      %v4865 = vld [vmem:[%s590 + $0x38] sm:$0xf]
      %v4866 = vld [vmem:[%s590 + $0x3c] sm:$0x1]
      %v4868 = vshrl.u32 %v4851, 16
      %v4870 = vrot.slane %v4868, 4
      %v4871 = vshll.u32 %v4851, 16
      %v4873 = vrot.slane %v4871, 5
      %v4874 = vor.u32 %v4870, %v4873
      %v4875 = vrot.slane %v4874, 4
      %v4877 = vshll.u32 %v4852, 16
      %v4879 = vrot.slane %v4877, 5
      %v4880 = vsel %vm965, %v4875, %v4879
      %v4882 = vshrl.u32 %v4853, 16
      %v4884 = vrot.slane %v4882, 4
      %v4885 = vshll.u32 %v4853, 16
      %v4887 = vrot.slane %v4885, 5
      %v4888 = vor.u32 %v4884, %v4887
      %v4889 = vrot.slane %v4888, 4
      %v4891 = vshll.u32 %v4854, 16
      %v4893 = vrot.slane %v4891, 5
      %v4894 = vsel %vm965, %v4889, %v4893
      %v4896 = vshrl.u32 %v4855, 16
      %v4898 = vrot.slane %v4896, 4
      %v4899 = vshll.u32 %v4855, 16
      %v4901 = vrot.slane %v4899, 5
      %v4902 = vor.u32 %v4898, %v4901
      %v4903 = vrot.slane %v4902, 4
      %v4905 = vshll.u32 %v4856, 16
      %v4907 = vrot.slane %v4905, 5
      %v4908 = vsel %vm965, %v4903, %v4907
      %v4910 = vshrl.u32 %v4857, 16
      %v4912 = vrot.slane %v4910, 4
      %v4913 = vshll.u32 %v4857, 16
      %v4915 = vrot.slane %v4913, 5
      %v4916 = vor.u32 %v4912, %v4915
      %v4917 = vrot.slane %v4916, 4
      %v4919 = vshll.u32 %v4858, 16
      %v4921 = vrot.slane %v4919, 5
      %v4922 = vsel %vm965, %v4917, %v4921
      %v4924 = vshrl.u32 %v4859, 16
      %v4926 = vrot.slane %v4924, 4
      %v4927 = vshll.u32 %v4859, 16
      %v4929 = vrot.slane %v4927, 5
      %v4930 = vor.u32 %v4926, %v4929
      %v4931 = vrot.slane %v4930, 4
      %v4933 = vshll.u32 %v4860, 16
      %v4935 = vrot.slane %v4933, 5
      %v4936 = vsel %vm965, %v4931, %v4935
      %v4938 = vshrl.u32 %v4861, 16
      %v4940 = vrot.slane %v4938, 4
      %v4941 = vshll.u32 %v4861, 16
      %v4943 = vrot.slane %v4941, 5
      %v4944 = vor.u32 %v4940, %v4943
      %v4945 = vrot.slane %v4944, 4
      %v4947 = vshll.u32 %v4862, 16
      %v4949 = vrot.slane %v4947, 5
      %v4950 = vsel %vm965, %v4945, %v4949
      %v4952 = vshrl.u32 %v4863, 16
      %v4954 = vrot.slane %v4952, 4
      %v4955 = vshll.u32 %v4863, 16
      %v4957 = vrot.slane %v4955, 5
      %v4958 = vor.u32 %v4954, %v4957
      %v4959 = vrot.slane %v4958, 4
      %v4961 = vshll.u32 %v4864, 16
      %v4963 = vrot.slane %v4961, 5
      %v4964 = vsel %vm965, %v4959, %v4963
      %v4966 = vshrl.u32 %v4865, 16
      %v4968 = vrot.slane %v4966, 4
      %v4969 = vshll.u32 %v4865, 16
      %v4971 = vrot.slane %v4969, 5
      %v4972 = vor.u32 %v4968, %v4971
      %v4973 = vrot.slane %v4972, 4
      %v4975 = vshll.u32 %v4866, 16
      %v4977 = vrot.slane %v4975, 5
      %v4978 = vsel %vm965, %v4973, %v4977
      %4979 = vrot.lane.b32.xlu0 %v4880, 16
      %v4980 = vpop.permute.xlu0 %4979
      %4981 = vrot.lane.b32.xlu0 %v4894, 16
      %v4982 = vpop.permute.xlu0 %4981
      %4983 = vrot.lane.b32.xlu0 %v4908, 16
      %v4984 = vpop.permute.xlu0 %4983
      %4985 = vrot.lane.b32.xlu0 %v4922, 16
      %v4986 = vpop.permute.xlu0 %4985
      %4987 = vrot.lane.b32.xlu0 %v4936, 16
      %v4988 = vpop.permute.xlu0 %4987
      %4989 = vrot.lane.b32.xlu0 %v4950, 16
      %v4990 = vpop.permute.xlu0 %4989
      %4991 = vrot.lane.b32.xlu0 %v4964, 16
      %v4992 = vpop.permute.xlu0 %4991
      %4993 = vrot.lane.b32.xlu0 %v4978, 16
      %v4994 = vpop.permute.xlu0 %4993
      %5003 = vst.msk [vmem:[#allocation5] sm:$0xf] %vm1360, %v4980
      %5004 = vst.msk [vmem:[#allocation5 + $0x4] sm:$0xf] %vm1360, %v4982
      %5005 = vst.msk [vmem:[#allocation5 + $0x8] sm:$0xf] %vm1360, %v4984
      %5006 = vst.msk [vmem:[#allocation5 + $0xc] sm:$0xf] %vm1360, %v4986
      %5007 = vst.msk [vmem:[#allocation5 + $0x10] sm:$0xf] %vm1360, %v4988
      %5008 = vst.msk [vmem:[#allocation5 + $0x14] sm:$0xf] %vm1360, %v4990
      %5009 = vst.msk [vmem:[#allocation5 + $0x18] sm:$0xf] %vm1360, %v4992
      %5010 = vst.msk [vmem:[#allocation5 + $0x1c] sm:$0xf] %vm1360, %v4994
      %v5011 = vld [vmem:[%s590] sm:$0xf]
      %v5012 = vld [vmem:[%s590 + $0x8] sm:$0xf]
      %v5013 = vld [vmem:[%s590 + $0x10] sm:$0xf]
      %v5014 = vld [vmem:[%s590 + $0x18] sm:$0xf]
      %v5015 = vld [vmem:[%s590 + $0x20] sm:$0xf]
      %v5016 = vld [vmem:[%s590 + $0x28] sm:$0xf]
      %v5017 = vld [vmem:[%s590 + $0x30] sm:$0xf]
      %v5018 = vld [vmem:[%s590 + $0x38] sm:$0xf]
      %5027 = vrot.lane.b32.xlu0 %v5011, 12
      %v5028 = vpop.permute.xlu0 %5027
      %5029 = vrot.lane.b32.xlu0 %v5012, 12
      %v5030 = vpop.permute.xlu0 %5029
      %5031 = vrot.lane.b32.xlu0 %v5013, 12
      %v5032 = vpop.permute.xlu0 %5031
      %5033 = vrot.lane.b32.xlu0 %v5014, 12
      %v5034 = vpop.permute.xlu0 %5033
      %5035 = vrot.lane.b32.xlu0 %v5015, 12
      %v5036 = vpop.permute.xlu0 %5035
      %5037 = vrot.lane.b32.xlu0 %v5016, 12
      %v5038 = vpop.permute.xlu0 %5037
      %5039 = vrot.lane.b32.xlu0 %v5017, 12
      %v5040 = vpop.permute.xlu0 %5039
      %5041 = vrot.lane.b32.xlu0 %v5018, 12
      %v5042 = vpop.permute.xlu0 %5041
      %5051 = vst.msk [vmem:[#allocation5] sm:$0xf] %vm1409, %v5028
      %5052 = vst.msk [vmem:[#allocation5 + $0x4] sm:$0xf] %vm1409, %v5030
      %5053 = vst.msk [vmem:[#allocation5 + $0x8] sm:$0xf] %vm1409, %v5032
      %5054 = vst.msk [vmem:[#allocation5 + $0xc] sm:$0xf] %vm1409, %v5034
      %5055 = vst.msk [vmem:[#allocation5 + $0x10] sm:$0xf] %vm1409, %v5036
      %5056 = vst.msk [vmem:[#allocation5 + $0x14] sm:$0xf] %vm1409, %v5038
      %5057 = vst.msk [vmem:[#allocation5 + $0x18] sm:$0xf] %vm1409, %v5040
      %5058 = vst.msk [vmem:[#allocation5 + $0x1c] sm:$0xf] %vm1409, %v5042
      %v5059 = vld [vmem:[%s590] sm:$0xf]
      %v5060 = vld [vmem:[%s590 + $0x4] sm:$0x1]
      %v5061 = vld [vmem:[%s590 + $0x8] sm:$0xf]
      %v5062 = vld [vmem:[%s590 + $0xc] sm:$0x1]
      %v5063 = vld [vmem:[%s590 + $0x10] sm:$0xf]
      %v5064 = vld [vmem:[%s590 + $0x14] sm:$0x1]
      %v5065 = vld [vmem:[%s590 + $0x18] sm:$0xf]
      %v5066 = vld [vmem:[%s590 + $0x1c] sm:$0x1]
      %v5067 = vld [vmem:[%s590 + $0x20] sm:$0xf]
      %v5068 = vld [vmem:[%s590 + $0x24] sm:$0x1]
      %v5069 = vld [vmem:[%s590 + $0x28] sm:$0xf]
      %v5070 = vld [vmem:[%s590 + $0x2c] sm:$0x1]
      %v5071 = vld [vmem:[%s590 + $0x30] sm:$0xf]
      %v5072 = vld [vmem:[%s590 + $0x34] sm:$0x1]
      %v5073 = vld [vmem:[%s590 + $0x38] sm:$0xf]
      %v5074 = vld [vmem:[%s590 + $0x3c] sm:$0x1]
      %v5076 = vshrl.u32 %v5059, 16
      %v5078 = vrot.slane %v5076, 4
      %v5079 = vshll.u32 %v5059, 16
      %v5081 = vrot.slane %v5079, 5
      %v5082 = vor.u32 %v5078, %v5081
      %v5083 = vrot.slane %v5082, 4
      %v5085 = vshll.u32 %v5060, 16
      %v5087 = vrot.slane %v5085, 5
      %v5088 = vsel %vm965, %v5083, %v5087
      %v5090 = vshrl.u32 %v5061, 16
      %v5092 = vrot.slane %v5090, 4
      %v5093 = vshll.u32 %v5061, 16
      %v5095 = vrot.slane %v5093, 5
      %v5096 = vor.u32 %v5092, %v5095
      %v5097 = vrot.slane %v5096, 4
      %v5099 = vshll.u32 %v5062, 16
      %v5101 = vrot.slane %v5099, 5
      %v5102 = vsel %vm965, %v5097, %v5101
      %v5104 = vshrl.u32 %v5063, 16
      %v5106 = vrot.slane %v5104, 4
      %v5107 = vshll.u32 %v5063, 16
      %v5109 = vrot.slane %v5107, 5
      %v5110 = vor.u32 %v5106, %v5109
      %v5111 = vrot.slane %v5110, 4
      %v5113 = vshll.u32 %v5064, 16
      %v5115 = vrot.slane %v5113, 5
      %v5116 = vsel %vm965, %v5111, %v5115
      %v5118 = vshrl.u32 %v5065, 16
      %v5120 = vrot.slane %v5118, 4
      %v5121 = vshll.u32 %v5065, 16
      %v5123 = vrot.slane %v5121, 5
      %v5124 = vor.u32 %v5120, %v5123
      %v5125 = vrot.slane %v5124, 4
      %v5127 = vshll.u32 %v5066, 16
      %v5129 = vrot.slane %v5127, 5
      %v5130 = vsel %vm965, %v5125, %v5129
      %v5132 = vshrl.u32 %v5067, 16
      %v5134 = vrot.slane %v5132, 4
      %v5135 = vshll.u32 %v5067, 16
      %v5137 = vrot.slane %v5135, 5
      %v5138 = vor.u32 %v5134, %v5137
      %v5139 = vrot.slane %v5138, 4
      %v5141 = vshll.u32 %v5068, 16
      %v5143 = vrot.slane %v5141, 5
      %v5144 = vsel %vm965, %v5139, %v5143
      %v5146 = vshrl.u32 %v5069, 16
      %v5148 = vrot.slane %v5146, 4
      %v5149 = vshll.u32 %v5069, 16
      %v5151 = vrot.slane %v5149, 5
      %v5152 = vor.u32 %v5148, %v5151
      %v5153 = vrot.slane %v5152, 4
      %v5155 = vshll.u32 %v5070, 16
      %v5157 = vrot.slane %v5155, 5
      %v5158 = vsel %vm965, %v5153, %v5157
      %v5160 = vshrl.u32 %v5071, 16
      %v5162 = vrot.slane %v5160, 4
      %v5163 = vshll.u32 %v5071, 16
      %v5165 = vrot.slane %v5163, 5
      %v5166 = vor.u32 %v5162, %v5165
      %v5167 = vrot.slane %v5166, 4
      %v5169 = vshll.u32 %v5072, 16
      %v5171 = vrot.slane %v5169, 5
      %v5172 = vsel %vm965, %v5167, %v5171
      %v5174 = vshrl.u32 %v5073, 16
      %v5176 = vrot.slane %v5174, 4
      %v5177 = vshll.u32 %v5073, 16
      %v5179 = vrot.slane %v5177, 5
      %v5180 = vor.u32 %v5176, %v5179
      %v5181 = vrot.slane %v5180, 4
      %v5183 = vshll.u32 %v5074, 16
      %v5185 = vrot.slane %v5183, 5
      %v5186 = vsel %vm965, %v5181, %v5185
      %5187 = vrot.lane.b32.xlu0 %v5088, 20
      %v5188 = vpop.permute.xlu0 %5187
      %5189 = vrot.lane.b32.xlu0 %v5102, 20
      %v5190 = vpop.permute.xlu0 %5189
      %5191 = vrot.lane.b32.xlu0 %v5116, 20
      %v5192 = vpop.permute.xlu0 %5191
      %5193 = vrot.lane.b32.xlu0 %v5130, 20
      %v5194 = vpop.permute.xlu0 %5193
      %5195 = vrot.lane.b32.xlu0 %v5144, 20
      %v5196 = vpop.permute.xlu0 %5195
      %5197 = vrot.lane.b32.xlu0 %v5158, 20
      %v5198 = vpop.permute.xlu0 %5197
      %5199 = vrot.lane.b32.xlu0 %v5172, 20
      %v5200 = vpop.permute.xlu0 %5199
      %5201 = vrot.lane.b32.xlu0 %v5186, 20
      %v5202 = vpop.permute.xlu0 %5201
      %5211 = vst.msk [vmem:[#allocation5] sm:$0xf] %vm1458, %v5188
      %5212 = vst.msk [vmem:[#allocation5 + $0x4] sm:$0xf] %vm1458, %v5190
      %5213 = vst.msk [vmem:[#allocation5 + $0x8] sm:$0xf] %vm1458, %v5192
      %5214 = vst.msk [vmem:[#allocation5 + $0xc] sm:$0xf] %vm1458, %v5194
      %5215 = vst.msk [vmem:[#allocation5 + $0x10] sm:$0xf] %vm1458, %v5196
      %5216 = vst.msk [vmem:[#allocation5 + $0x14] sm:$0xf] %vm1458, %v5198
      %5217 = vst.msk [vmem:[#allocation5 + $0x18] sm:$0xf] %vm1458, %v5200
      %5218 = vst.msk [vmem:[#allocation5 + $0x1c] sm:$0xf] %vm1458, %v5202
      %v5219 = vld [vmem:[%s590] sm:$0xf]
      %v5220 = vld [vmem:[%s590 + $0x4] sm:$0x1]
      %v5221 = vld [vmem:[%s590 + $0x8] sm:$0xf]
      %v5222 = vld [vmem:[%s590 + $0xc] sm:$0x1]
      %v5223 = vld [vmem:[%s590 + $0x10] sm:$0xf]
      %v5224 = vld [vmem:[%s590 + $0x14] sm:$0x1]
      %v5225 = vld [vmem:[%s590 + $0x18] sm:$0xf]
      %v5226 = vld [vmem:[%s590 + $0x1c] sm:$0x1]
      %v5227 = vld [vmem:[%s590 + $0x20] sm:$0xf]
      %v5228 = vld [vmem:[%s590 + $0x24] sm:$0x1]
      %v5229 = vld [vmem:[%s590 + $0x28] sm:$0xf]
      %v5230 = vld [vmem:[%s590 + $0x2c] sm:$0x1]
      %v5231 = vld [vmem:[%s590 + $0x30] sm:$0xf]
      %v5232 = vld [vmem:[%s590 + $0x34] sm:$0x1]
      %v5233 = vld [vmem:[%s590 + $0x38] sm:$0xf]
      %v5234 = vld [vmem:[%s590 + $0x3c] sm:$0x1]
      %v5236 = vshrl.u32 %v5219, 16
      %v5238 = vrot.slane %v5236, 4
      %v5239 = vshll.u32 %v5219, 16
      %v5241 = vrot.slane %v5239, 5
      %v5242 = vor.u32 %v5238, %v5241
      %v5243 = vrot.slane %v5242, 4
      %v5245 = vshll.u32 %v5220, 16
      %v5247 = vrot.slane %v5245, 5
      %v5248 = vsel %vm965, %v5243, %v5247
      %v5250 = vshrl.u32 %v5221, 16
      %v5252 = vrot.slane %v5250, 4
      %v5253 = vshll.u32 %v5221, 16
      %v5255 = vrot.slane %v5253, 5
      %v5256 = vor.u32 %v5252, %v5255
      %v5257 = vrot.slane %v5256, 4
      %v5259 = vshll.u32 %v5222, 16
      %v5261 = vrot.slane %v5259, 5
      %v5262 = vsel %vm965, %v5257, %v5261
      %v5264 = vshrl.u32 %v5223, 16
      %v5266 = vrot.slane %v5264, 4
      %v5267 = vshll.u32 %v5223, 16
      %v5269 = vrot.slane %v5267, 5
      %v5270 = vor.u32 %v5266, %v5269
      %v5271 = vrot.slane %v5270, 4
      %v5273 = vshll.u32 %v5224, 16
      %v5275 = vrot.slane %v5273, 5
      %v5276 = vsel %vm965, %v5271, %v5275
      %v5278 = vshrl.u32 %v5225, 16
      %v5280 = vrot.slane %v5278, 4
      %v5281 = vshll.u32 %v5225, 16
      %v5283 = vrot.slane %v5281, 5
      %v5284 = vor.u32 %v5280, %v5283
      %v5285 = vrot.slane %v5284, 4
      %v5287 = vshll.u32 %v5226, 16
      %v5289 = vrot.slane %v5287, 5
      %v5290 = vsel %vm965, %v5285, %v5289
      %v5292 = vshrl.u32 %v5227, 16
      %v5294 = vrot.slane %v5292, 4
      %v5295 = vshll.u32 %v5227, 16
      %v5297 = vrot.slane %v5295, 5
      %v5298 = vor.u32 %v5294, %v5297
      %v5299 = vrot.slane %v5298, 4
      %v5301 = vshll.u32 %v5228, 16
      %v5303 = vrot.slane %v5301, 5
      %v5304 = vsel %vm965, %v5299, %v5303
      %v5306 = vshrl.u32 %v5229, 16
      %v5308 = vrot.slane %v5306, 4
      %v5309 = vshll.u32 %v5229, 16
      %v5311 = vrot.slane %v5309, 5
      %v5312 = vor.u32 %v5308, %v5311
      %v5313 = vrot.slane %v5312, 4
      %v5315 = vshll.u32 %v5230, 16
      %v5317 = vrot.slane %v5315, 5
      %v5318 = vsel %vm965, %v5313, %v5317
      %v5320 = vshrl.u32 %v5231, 16
      %v5322 = vrot.slane %v5320, 4
      %v5323 = vshll.u32 %v5231, 16
      %v5325 = vrot.slane %v5323, 5
      %v5326 = vor.u32 %v5322, %v5325
      %v5327 = vrot.slane %v5326, 4
      %v5329 = vshll.u32 %v5232, 16
      %v5331 = vrot.slane %v5329, 5
      %v5332 = vsel %vm965, %v5327, %v5331
      %v5334 = vshrl.u32 %v5233, 16
      %v5336 = vrot.slane %v5334, 4
      %v5337 = vshll.u32 %v5233, 16
      %v5339 = vrot.slane %v5337, 5
      %v5340 = vor.u32 %v5336, %v5339
      %v5341 = vrot.slane %v5340, 4
      %v5343 = vshll.u32 %v5234, 16
      %v5345 = vrot.slane %v5343, 5
      %v5346 = vsel %vm965, %v5341, %v5345
      %5347 = vrot.lane.b32.xlu0 %v5248, 20
      %v5348 = vpop.permute.xlu0 %5347
      %5349 = vrot.lane.b32.xlu0 %v5262, 20
      %v5350 = vpop.permute.xlu0 %5349
      %5351 = vrot.lane.b32.xlu0 %v5276, 20
      %v5352 = vpop.permute.xlu0 %5351
      %5353 = vrot.lane.b32.xlu0 %v5290, 20
      %v5354 = vpop.permute.xlu0 %5353
      %5355 = vrot.lane.b32.xlu0 %v5304, 20
      %v5356 = vpop.permute.xlu0 %5355
      %5357 = vrot.lane.b32.xlu0 %v5318, 20
      %v5358 = vpop.permute.xlu0 %5357
      %5359 = vrot.lane.b32.xlu0 %v5332, 20
      %v5360 = vpop.permute.xlu0 %5359
      %5361 = vrot.lane.b32.xlu0 %v5346, 20
      %v5362 = vpop.permute.xlu0 %5361
      %5371 = vst.msk [vmem:[#allocation5] sm:$0xf] %vm1619, %v5348
      %5372 = vst.msk [vmem:[#allocation5 + $0x4] sm:$0xf] %vm1619, %v5350
      %5373 = vst.msk [vmem:[#allocation5 + $0x8] sm:$0xf] %vm1619, %v5352
      %5374 = vst.msk [vmem:[#allocation5 + $0xc] sm:$0xf] %vm1619, %v5354
      %5375 = vst.msk [vmem:[#allocation5 + $0x10] sm:$0xf] %vm1619, %v5356
      %5376 = vst.msk [vmem:[#allocation5 + $0x14] sm:$0xf] %vm1619, %v5358
      %5377 = vst.msk [vmem:[#allocation5 + $0x18] sm:$0xf] %vm1619, %v5360
      %5378 = vst.msk [vmem:[#allocation5 + $0x1c] sm:$0xf] %vm1619, %v5362
      %v5379 = vld [vmem:[#allocation5] sm:$0xf]
      %v5380 = vld [vmem:[#allocation5 + $0x4] sm:$0xf]
      %v5381 = vld [vmem:[#allocation5 + $0x8] sm:$0xf]
      %v5382 = vld [vmem:[#allocation5 + $0xc] sm:$0xf]
      %v5383 = vld [vmem:[#allocation5 + $0x10] sm:$0xf]
      %v5384 = vld [vmem:[#allocation5 + $0x14] sm:$0xf]
      %v5385 = vld [vmem:[#allocation5 + $0x18] sm:$0xf]
      %v5386 = vld [vmem:[#allocation5 + $0x1c] sm:$0xf]
      %v5387 = vld [vmem:[%s1] sm:$0xf]
      %v5388 = vld [vmem:[%s1 + $0x4] sm:$0xf]
      %v5389 = vld [vmem:[%s1 + $0x8] sm:$0xf]
      %v5390 = vld [vmem:[%s1 + $0xc] sm:$0xf]
      %v5391 = vld [vmem:[%s1 + $0x10] sm:$0x3]
      %v5392 = vld [vmem:[%s2] sm:$0x1]
      %v5394 = vlaneseq
      %v5395 = vshrl.u32 %v5394, 7
      %v5396 = vsub.s32 0, %v5395
      %v5397 = vrot.slane %v5392, %v5396
      %v5407 = vunpack.c.l.b16 %v5379
      %v5408 = vunpack.c.l.b16 %v5380
      %v5409 = vunpack.c.l.b16 %v5381
      %v5410 = vunpack.c.l.b16 %v5382
      %v5411 = vunpack.c.l.b16 %v5383
      %v5412 = vunpack.c.l.b16 %v5384
      %v5413 = vunpack.c.l.b16 %v5385
      %v5414 = vunpack.c.l.b16 %v5386
      %v5415 = vpack.c.b16 %v5408, %v5407
      %v5416 = vpack.c.b16 %v5410, %v5409
      %v5417 = vpack.c.b16 %v5412, %v5411
      %v5418 = vpack.c.b16 %v5414, %v5413
      %v5424 = vunpack.c.l.b16 %v5387
      %v5425 = vunpack.c.l.b16 %v5388
      %v5426 = vunpack.c.l.b16 %v5389
      %v5427 = vunpack.c.l.b16 %v5390
      %v5428 = vunpack.c.l.b16 %v5391
      %v5429 = vpack.c.b16 %v5425, %v5424
      %v5430 = vpack.c.b16 %v5427, %v5426
      %v5431 = vpack.c.b16 %v5428, %v5428
      %v5435 = vsel %vm1683, %v5415, 0
      %v5438 = vsel %vm1683, %v5416, 0
      %v5441 = vsel %vm1683, %v5417, 0
      %v5444 = vsel %vm1683, %v5418, 0
      %v5447 = vsel %vm1696, %v5431, 0
      %5449 = vmatprep.subr.bf16.mxu0 0
      %5450 = vmatpush1.bf16.msra.mxu0 0
      %5451 = vmatprep.subr.bf16.mxu0 0
      %5452 = vmatpush1.bf16.msra.mxu0 0
      %5453 = vmatprep.subr.bf16.mxu0 0
      %5454 = vmatpush1.bf16.msra.mxu0 0
      %5455 = vmatprep.subr.bf16.mxu0 0
      %5456 = vmatpush1.bf16.msra.mxu0 0
      %5457 = vmatprep.subr.bf16.mxu0 0
      %5458 = vmatpush1.bf16.msra.mxu0 0
      %5459 = vmatprep.subr.bf16.mxu0 0
      %5460 = vmatpush1.bf16.msra.mxu0 %v5447
      %5461 = vmatprep.subr.bf16.mxu0 0
      %5462 = vmatpush1.bf16.msra.mxu0 %v5430
      %5463 = vmatprep.subr.bf16.mxu0 0
      %5464 = vmatpush1.bf16.msra.mxu0 %v5429
      %5465 = vmatprep.subr.bf16.mxu0 0
      %5466 = vmatpush2.bf16.msra.mxu0 0
      %5467 = vmatprep.subr.bf16.mxu0 0
      %5468 = vmatpush2.bf16.msra.mxu0 0
      %5469 = vmatprep.subr.bf16.mxu0 0
      %5470 = vmatpush2.bf16.msra.mxu0 0
      %5471 = vmatprep.subr.bf16.mxu0 0
      %5472 = vmatpush2.bf16.msra.mxu0 0
      %5473 = vmatprep.subr.bf16.mxu0 0
      %5474 = vmatpush2.bf16.msra.mxu0 0
      %5475 = vmatprep.subr.bf16.mxu0 0
      %5476 = vmatpush2.bf16.msra.mxu0 0
      %5477 = vmatprep.subr.bf16.mxu0 0
      %5478 = vmatpush2.bf16.msra.mxu0 0
      %5479 = vmatprep.subr.bf16.mxu0 0
      %5480 = vmatpush2.bf16.msra.mxu0 0
      %5481 = vmatprep.mubr.bf16.mxu0 0
      %5482 = vmatmul.mubr.bf16.gmra.mxu0 %v5435
      %v5483 = vpop.f32.mrf.mxu0
      %v5484 = vadd.f32 %v5397, %v5483
      %v5485 = vpop.f32.mrf.mxu0
      %v5486 = vpop.f32.mrf.mxu0
      %v5487 = vadd.f32 %v5397, %v5486
      %v5488 = vpop.f32.mrf.mxu0
      %5489 = vmatprep.mubr.bf16.mxu0 0
      %5490 = vmatmul.mubr.bf16.gmra.mxu0 %v5438
      %v5491 = vpop.f32.mrf.mxu0
      %v5492 = vadd.f32 %v5397, %v5491
      %v5493 = vpop.f32.mrf.mxu0
      %v5494 = vpop.f32.mrf.mxu0
      %v5495 = vadd.f32 %v5397, %v5494
      %v5496 = vpop.f32.mrf.mxu0
      %5497 = vmatprep.mubr.bf16.mxu0 0
      %5498 = vmatmul.mubr.bf16.gmra.mxu0 %v5441
      %v5499 = vpop.f32.mrf.mxu0
      %v5500 = vadd.f32 %v5397, %v5499
      %v5501 = vpop.f32.mrf.mxu0
      %v5502 = vpop.f32.mrf.mxu0
      %v5503 = vadd.f32 %v5397, %v5502
      %v5504 = vpop.f32.mrf.mxu0
      %5505 = vmatprep.mubr.bf16.mxu0 0
      %5506 = vmatmul.mubr.bf16.gmra.mxu0 %v5444
      %v5507 = vpop.f32.mrf.mxu0
      %v5508 = vadd.f32 %v5397, %v5507
      %v5509 = vpop.f32.mrf.mxu0
      %v5510 = vpop.f32.mrf.mxu0
      %v5511 = vadd.f32 %v5397, %v5510
      %v5512 = vpop.f32.mrf.mxu0
      %5513 = vdwg.mxu0
      %v5514 = vmax.f32 %v5484, 0.0
      %v5515 = vmax.f32 %v5487, 0.0
      %v5516 = vmax.f32 %v5492, 0.0
      %v5517 = vmax.f32 %v5495, 0.0
      %v5518 = vmax.f32 %v5500, 0.0
      %v5519 = vmax.f32 %v5503, 0.0
      %v5520 = vmax.f32 %v5508, 0.0
      %v5521 = vmax.f32 %v5511, 0.0
      %v5522 = vpack.c.bf16 %v5515, %v5514
      %v5523 = vpack.c.bf16 %v5517, %v5516
      %v5524 = vpack.c.bf16 %v5519, %v5518
      %v5525 = vpack.c.bf16 %v5521, %v5520
      %v5530 = vunpack.c.l.b16 %v5522
      %v5531 = vunpack.c.h.b16 %v5522
      %v5532 = vunpack.c.l.b16 %v5523
      %v5533 = vunpack.c.h.b16 %v5523
      %v5534 = vunpack.c.l.b16 %v5524
      %v5535 = vunpack.c.h.b16 %v5524
      %v5536 = vunpack.c.l.b16 %v5525
      %v5537 = vunpack.c.h.b16 %v5525
      %v5538 = vpack.c.b16 %v5530, %v5530
      %v5539 = vpack.c.b16 %v5531, %v5531
      %v5540 = vpack.c.b16 %v5532, %v5532
      %v5541 = vpack.c.b16 %v5533, %v5533
      %v5542 = vpack.c.b16 %v5534, %v5534
      %v5543 = vpack.c.b16 %v5535, %v5535
      %v5544 = vpack.c.b16 %v5536, %v5536
      %v5545 = vpack.c.b16 %v5537, %v5537
      %v5547 = vshrl.u32 %v5538, 16
      %v5549 = vrot.slane %v5547, 7
      %v5550 = vshll.u32 %v5538, 16
      %v5552 = vor.u32 %v5549, %v5550
      %v5553 = vrot.slane %v5549, 4
      %v5555 = vshrl.u32 %v5539, 16
      %v5557 = vrot.slane %v5555, 7
      %v5558 = vshll.u32 %v5539, 16
      %v5560 = vor.u32 %v5557, %v5558
      %v5561 = vrot.slane %v5557, 4
      %v5563 = vshrl.u32 %v5540, 16
      %v5565 = vrot.slane %v5563, 7
      %v5566 = vshll.u32 %v5540, 16
      %v5568 = vor.u32 %v5565, %v5566
      %v5569 = vrot.slane %v5565, 4
      %v5571 = vshrl.u32 %v5541, 16
      %v5573 = vrot.slane %v5571, 7
      %v5574 = vshll.u32 %v5541, 16
      %v5576 = vor.u32 %v5573, %v5574
      %v5577 = vrot.slane %v5573, 4
      %v5579 = vshrl.u32 %v5542, 16
      %v5581 = vrot.slane %v5579, 7
      %v5582 = vshll.u32 %v5542, 16
      %v5584 = vor.u32 %v5581, %v5582
      %v5585 = vrot.slane %v5581, 4
      %v5587 = vshrl.u32 %v5543, 16
      %v5589 = vrot.slane %v5587, 7
      %v5590 = vshll.u32 %v5543, 16
      %v5592 = vor.u32 %v5589, %v5590
      %v5593 = vrot.slane %v5589, 4
      %v5595 = vshrl.u32 %v5544, 16
      %v5597 = vrot.slane %v5595, 7
      %v5598 = vshll.u32 %v5544, 16
      %v5600 = vor.u32 %v5597, %v5598
      %v5601 = vrot.slane %v5597, 4
      %v5603 = vshrl.u32 %v5545, 16
      %v5605 = vrot.slane %v5603, 7
      %v5606 = vshll.u32 %v5545, 16
      %v5608 = vor.u32 %v5605, %v5606
      %v5609 = vrot.slane %v5605, 4
      %v5626 = vld [vmem:[%s4266] sm:$0xf]
      %v5627 = vsel %vm593, %v5552, %v5626
      %5628 = vst [vmem:[%s4266] sm:$0xf] %v5627
      %v5629 = vld [vmem:[%s4266 + $0x4] sm:$0x1]
      %v5630 = vsel %vm598, %v5553, %v5629
      %5631 = vst [vmem:[%s4266 + $0x4] sm:$0x1] %v5630
      %v5632 = vld [vmem:[%s4266 + $0x8] sm:$0xf]
      %v5633 = vsel %vm593, %v5560, %v5632
      %5634 = vst [vmem:[%s4266 + $0x8] sm:$0xf] %v5633
      %v5635 = vld [vmem:[%s4266 + $0xc] sm:$0x1]
      %v5636 = vsel %vm598, %v5561, %v5635
      %5637 = vst [vmem:[%s4266 + $0xc] sm:$0x1] %v5636
      %v5638 = vld [vmem:[%s4266 + $0x10] sm:$0xf]
      %v5639 = vsel %vm593, %v5568, %v5638
      %5640 = vst [vmem:[%s4266 + $0x10] sm:$0xf] %v5639
      %v5641 = vld [vmem:[%s4266 + $0x14] sm:$0x1]
      %v5642 = vsel %vm598, %v5569, %v5641
      %5643 = vst [vmem:[%s4266 + $0x14] sm:$0x1] %v5642
      %v5644 = vld [vmem:[%s4266 + $0x18] sm:$0xf]
      %v5645 = vsel %vm593, %v5576, %v5644
      %5646 = vst [vmem:[%s4266 + $0x18] sm:$0xf] %v5645
      %v5647 = vld [vmem:[%s4266 + $0x1c] sm:$0x1]
      %v5648 = vsel %vm598, %v5577, %v5647
      %5649 = vst [vmem:[%s4266 + $0x1c] sm:$0x1] %v5648
      %v5650 = vld [vmem:[%s4266 + $0x20] sm:$0xf]
      %v5651 = vsel %vm593, %v5584, %v5650
      %5652 = vst [vmem:[%s4266 + $0x20] sm:$0xf] %v5651
      %v5653 = vld [vmem:[%s4266 + $0x24] sm:$0x1]
      %v5654 = vsel %vm598, %v5585, %v5653
      %5655 = vst [vmem:[%s4266 + $0x24] sm:$0x1] %v5654
      %v5656 = vld [vmem:[%s4266 + $0x28] sm:$0xf]
      %v5657 = vsel %vm593, %v5592, %v5656
      %5658 = vst [vmem:[%s4266 + $0x28] sm:$0xf] %v5657
      %v5659 = vld [vmem:[%s4266 + $0x2c] sm:$0x1]
      %v5660 = vsel %vm598, %v5593, %v5659
      %5661 = vst [vmem:[%s4266 + $0x2c] sm:$0x1] %v5660
      %v5662 = vld [vmem:[%s4266 + $0x30] sm:$0xf]
      %v5663 = vsel %vm593, %v5600, %v5662
      %5664 = vst [vmem:[%s4266 + $0x30] sm:$0xf] %v5663
      %v5665 = vld [vmem:[%s4266 + $0x34] sm:$0x1]
      %v5666 = vsel %vm598, %v5601, %v5665
      %5667 = vst [vmem:[%s4266 + $0x34] sm:$0x1] %v5666
      %v5668 = vld [vmem:[%s4266 + $0x38] sm:$0xf]
      %v5669 = vsel %vm593, %v5608, %v5668
      %5670 = vst [vmem:[%s4266 + $0x38] sm:$0xf] %v5669
      %v5671 = vld [vmem:[%s4266 + $0x3c] sm:$0x1]
      %v5672 = vsel %vm598, %v5609, %v5671
      %5673 = vst [vmem:[%s4266 + $0x3c] sm:$0x1] %v5672
      %v5674 = vld [vmem:[#allocation3] sm:$0xf]
      %v5675 = vld [vmem:[#allocation3 + $0x8] sm:$0xf]
      %v5676 = vld [vmem:[#allocation3 + $0x10] sm:$0xf]
      %v5677 = vld [vmem:[#allocation3 + $0x18] sm:$0xf]
      %v5678 = vld [vmem:[#allocation3 + $0x20] sm:$0xf]
      %v5679 = vld [vmem:[#allocation3 + $0x28] sm:$0xf]
      %v5680 = vld [vmem:[#allocation3 + $0x30] sm:$0xf]
      %v5681 = vld [vmem:[#allocation3 + $0x38] sm:$0xf]
      %5682 = vst.msk [vmem:[#allocation5] sm:$0xf] %vm922, %v5674
      %5683 = vst.msk [vmem:[#allocation5 + $0x4] sm:$0xf] %vm922, %v5675
      %5684 = vst.msk [vmem:[#allocation5 + $0x8] sm:$0xf] %vm922, %v5676
      %5685 = vst.msk [vmem:[#allocation5 + $0xc] sm:$0xf] %vm922, %v5677
      %5686 = vst.msk [vmem:[#allocation5 + $0x10] sm:$0xf] %vm922, %v5678
      %5687 = vst.msk [vmem:[#allocation5 + $0x14] sm:$0xf] %vm922, %v5679
      %5688 = vst.msk [vmem:[#allocation5 + $0x18] sm:$0xf] %vm922, %v5680
      %5689 = vst.msk [vmem:[#allocation5 + $0x1c] sm:$0xf] %vm922, %v5681
      %v5690 = vld [vmem:[#allocation3] sm:$0xf]
      %v5691 = vld [vmem:[#allocation3 + $0x8] sm:$0xf]
      %v5692 = vld [vmem:[#allocation3 + $0x10] sm:$0xf]
      %v5693 = vld [vmem:[#allocation3 + $0x18] sm:$0xf]
      %v5694 = vld [vmem:[#allocation3 + $0x20] sm:$0xf]
      %v5695 = vld [vmem:[#allocation3 + $0x28] sm:$0xf]
      %v5696 = vld [vmem:[#allocation3 + $0x30] sm:$0xf]
      %v5697 = vld [vmem:[#allocation3 + $0x38] sm:$0xf]
      %5698 = vst.msk [vmem:[#allocation5] sm:$0xf] %vm684, %v5690
      %5699 = vst.msk [vmem:[#allocation5 + $0x4] sm:$0xf] %vm684, %v5691
      %5700 = vst.msk [vmem:[#allocation5 + $0x8] sm:$0xf] %vm684, %v5692
      %5701 = vst.msk [vmem:[#allocation5 + $0xc] sm:$0xf] %vm684, %v5693
      %5702 = vst.msk [vmem:[#allocation5 + $0x10] sm:$0xf] %vm684, %v5694
      %5703 = vst.msk [vmem:[#allocation5 + $0x14] sm:$0xf] %vm684, %v5695
      %5704 = vst.msk [vmem:[#allocation5 + $0x18] sm:$0xf] %vm684, %v5696
      %5705 = vst.msk [vmem:[#allocation5 + $0x1c] sm:$0xf] %vm684, %v5697
      %v5706 = vld [vmem:[#allocation3] sm:$0xf]
      %v5707 = vld [vmem:[#allocation3 + $0x4] sm:$0x1]
      %v5708 = vld [vmem:[#allocation3 + $0x8] sm:$0xf]
      %v5709 = vld [vmem:[#allocation3 + $0xc] sm:$0x1]
      %v5710 = vld [vmem:[#allocation3 + $0x10] sm:$0xf]
      %v5711 = vld [vmem:[#allocation3 + $0x14] sm:$0x1]
      %v5712 = vld [vmem:[#allocation3 + $0x18] sm:$0xf]
      %v5713 = vld [vmem:[#allocation3 + $0x1c] sm:$0x1]
      %v5714 = vld [vmem:[#allocation3 + $0x20] sm:$0xf]
      %v5715 = vld [vmem:[#allocation3 + $0x24] sm:$0x1]
      %v5716 = vld [vmem:[#allocation3 + $0x28] sm:$0xf]
      %v5717 = vld [vmem:[#allocation3 + $0x2c] sm:$0x1]
      %v5718 = vld [vmem:[#allocation3 + $0x30] sm:$0xf]
      %v5719 = vld [vmem:[#allocation3 + $0x34] sm:$0x1]
      %v5720 = vld [vmem:[#allocation3 + $0x38] sm:$0xf]
      %v5721 = vld [vmem:[#allocation3 + $0x3c] sm:$0x1]
      %v5723 = vshrl.u32 %v5706, 16
      %v5725 = vrot.slane %v5723, 4
      %v5726 = vshll.u32 %v5706, 16
      %v5728 = vrot.slane %v5726, 5
      %v5729 = vor.u32 %v5725, %v5728
      %v5730 = vrot.slane %v5729, 4
      %v5732 = vshll.u32 %v5707, 16
      %v5734 = vrot.slane %v5732, 5
      %v5735 = vsel %vm965, %v5730, %v5734
      %v5737 = vshrl.u32 %v5708, 16
      %v5739 = vrot.slane %v5737, 4
      %v5740 = vshll.u32 %v5708, 16
      %v5742 = vrot.slane %v5740, 5
      %v5743 = vor.u32 %v5739, %v5742
      %v5744 = vrot.slane %v5743, 4
      %v5746 = vshll.u32 %v5709, 16
      %v5748 = vrot.slane %v5746, 5
      %v5749 = vsel %vm965, %v5744, %v5748
      %v5751 = vshrl.u32 %v5710, 16
      %v5753 = vrot.slane %v5751, 4
      %v5754 = vshll.u32 %v5710, 16
      %v5756 = vrot.slane %v5754, 5
      %v5757 = vor.u32 %v5753, %v5756
      %v5758 = vrot.slane %v5757, 4
      %v5760 = vshll.u32 %v5711, 16
      %v5762 = vrot.slane %v5760, 5
      %v5763 = vsel %vm965, %v5758, %v5762
      %v5765 = vshrl.u32 %v5712, 16
      %v5767 = vrot.slane %v5765, 4
      %v5768 = vshll.u32 %v5712, 16
      %v5770 = vrot.slane %v5768, 5
      %v5771 = vor.u32 %v5767, %v5770
      %v5772 = vrot.slane %v5771, 4
      %v5774 = vshll.u32 %v5713, 16
      %v5776 = vrot.slane %v5774, 5
      %v5777 = vsel %vm965, %v5772, %v5776
      %v5779 = vshrl.u32 %v5714, 16
      %v5781 = vrot.slane %v5779, 4
      %v5782 = vshll.u32 %v5714, 16
      %v5784 = vrot.slane %v5782, 5
      %v5785 = vor.u32 %v5781, %v5784
      %v5786 = vrot.slane %v5785, 4
      %v5788 = vshll.u32 %v5715, 16
      %v5790 = vrot.slane %v5788, 5
      %v5791 = vsel %vm965, %v5786, %v5790
      %v5793 = vshrl.u32 %v5716, 16
      %v5795 = vrot.slane %v5793, 4
      %v5796 = vshll.u32 %v5716, 16
      %v5798 = vrot.slane %v5796, 5
      %v5799 = vor.u32 %v5795, %v5798
      %v5800 = vrot.slane %v5799, 4
      %v5802 = vshll.u32 %v5717, 16
      %v5804 = vrot.slane %v5802, 5
      %v5805 = vsel %vm965, %v5800, %v5804
      %v5807 = vshrl.u32 %v5718, 16
      %v5809 = vrot.slane %v5807, 4
      %v5810 = vshll.u32 %v5718, 16
      %v5812 = vrot.slane %v5810, 5
      %v5813 = vor.u32 %v5809, %v5812
      %v5814 = vrot.slane %v5813, 4
      %v5816 = vshll.u32 %v5719, 16
      %v5818 = vrot.slane %v5816, 5
      %v5819 = vsel %vm965, %v5814, %v5818
      %v5821 = vshrl.u32 %v5720, 16
      %v5823 = vrot.slane %v5821, 4
      %v5824 = vshll.u32 %v5720, 16
      %v5826 = vrot.slane %v5824, 5
      %v5827 = vor.u32 %v5823, %v5826
      %v5828 = vrot.slane %v5827, 4
      %v5830 = vshll.u32 %v5721, 16
      %v5832 = vrot.slane %v5830, 5
      %v5833 = vsel %vm965, %v5828, %v5832
      %5834 = vrot.lane.b32.xlu0 %v5735, 8
      %v5835 = vpop.permute.xlu0 %5834
      %5836 = vrot.lane.b32.xlu0 %v5749, 8
      %v5837 = vpop.permute.xlu0 %5836
      %5838 = vrot.lane.b32.xlu0 %v5763, 8
      %v5839 = vpop.permute.xlu0 %5838
      %5840 = vrot.lane.b32.xlu0 %v5777, 8
      %v5841 = vpop.permute.xlu0 %5840
      %5842 = vrot.lane.b32.xlu0 %v5791, 8
      %v5843 = vpop.permute.xlu0 %5842
      %5844 = vrot.lane.b32.xlu0 %v5805, 8
      %v5845 = vpop.permute.xlu0 %5844
      %5846 = vrot.lane.b32.xlu0 %v5819, 8
      %v5847 = vpop.permute.xlu0 %5846
      %5848 = vrot.lane.b32.xlu0 %v5833, 8
      %v5849 = vpop.permute.xlu0 %5848
      %5858 = vst.msk [vmem:[#allocation5] sm:$0xf] %vm1102, %v5835
      %5859 = vst.msk [vmem:[#allocation5 + $0x4] sm:$0xf] %vm1102, %v5837
      %5860 = vst.msk [vmem:[#allocation5 + $0x8] sm:$0xf] %vm1102, %v5839
      %5861 = vst.msk [vmem:[#allocation5 + $0xc] sm:$0xf] %vm1102, %v5841
      %5862 = vst.msk [vmem:[#allocation5 + $0x10] sm:$0xf] %vm1102, %v5843
      %5863 = vst.msk [vmem:[#allocation5 + $0x14] sm:$0xf] %vm1102, %v5845
      %5864 = vst.msk [vmem:[#allocation5 + $0x18] sm:$0xf] %vm1102, %v5847
      %5865 = vst.msk [vmem:[#allocation5 + $0x1c] sm:$0xf] %vm1102, %v5849
      %v5866 = vld [vmem:[#allocation3] sm:$0xf]
      %v5867 = vld [vmem:[#allocation3 + $0x8] sm:$0xf]
      %v5868 = vld [vmem:[#allocation3 + $0x10] sm:$0xf]
      %v5869 = vld [vmem:[#allocation3 + $0x18] sm:$0xf]
      %v5870 = vld [vmem:[#allocation3 + $0x20] sm:$0xf]
      %v5871 = vld [vmem:[#allocation3 + $0x28] sm:$0xf]
      %v5872 = vld [vmem:[#allocation3 + $0x30] sm:$0xf]
      %v5873 = vld [vmem:[#allocation3 + $0x38] sm:$0xf]
      %5882 = vrot.lane.b32.xlu0 %v5866, 4
      %v5883 = vpop.permute.xlu0 %5882
      %5884 = vrot.lane.b32.xlu0 %v5867, 4
      %v5885 = vpop.permute.xlu0 %5884
      %5886 = vrot.lane.b32.xlu0 %v5868, 4
      %v5887 = vpop.permute.xlu0 %5886
      %5888 = vrot.lane.b32.xlu0 %v5869, 4
      %v5889 = vpop.permute.xlu0 %5888
      %5890 = vrot.lane.b32.xlu0 %v5870, 4
      %v5891 = vpop.permute.xlu0 %5890
      %5892 = vrot.lane.b32.xlu0 %v5871, 4
      %v5893 = vpop.permute.xlu0 %5892
      %5894 = vrot.lane.b32.xlu0 %v5872, 4
      %v5895 = vpop.permute.xlu0 %5894
      %5896 = vrot.lane.b32.xlu0 %v5873, 4
      %v5897 = vpop.permute.xlu0 %5896
      %5906 = vst.msk [vmem:[#allocation5] sm:$0xf] %vm905, %v5883
      %5907 = vst.msk [vmem:[#allocation5 + $0x4] sm:$0xf] %vm905, %v5885
      %5908 = vst.msk [vmem:[#allocation5 + $0x8] sm:$0xf] %vm905, %v5887
      %5909 = vst.msk [vmem:[#allocation5 + $0xc] sm:$0xf] %vm905, %v5889
      %5910 = vst.msk [vmem:[#allocation5 + $0x10] sm:$0xf] %vm905, %v5891
      %5911 = vst.msk [vmem:[#allocation5 + $0x14] sm:$0xf] %vm905, %v5893
      %5912 = vst.msk [vmem:[#allocation5 + $0x18] sm:$0xf] %vm905, %v5895
      %5913 = vst.msk [vmem:[#allocation5 + $0x1c] sm:$0xf] %vm905, %v5897
      %v5914 = vld [vmem:[#allocation3] sm:$0xf]
      %v5915 = vld [vmem:[#allocation3 + $0x8] sm:$0xf]
      %v5916 = vld [vmem:[#allocation3 + $0x10] sm:$0xf]
      %v5917 = vld [vmem:[#allocation3 + $0x18] sm:$0xf]
      %v5918 = vld [vmem:[#allocation3 + $0x20] sm:$0xf]
      %v5919 = vld [vmem:[#allocation3 + $0x28] sm:$0xf]
      %v5920 = vld [vmem:[#allocation3 + $0x30] sm:$0xf]
      %v5921 = vld [vmem:[#allocation3 + $0x38] sm:$0xf]
      %5930 = vrot.lane.b32.xlu0 %v5914, 4
      %v5931 = vpop.permute.xlu0 %5930
      %5932 = vrot.lane.b32.xlu0 %v5915, 4
      %v5933 = vpop.permute.xlu0 %5932
      %5934 = vrot.lane.b32.xlu0 %v5916, 4
      %v5935 = vpop.permute.xlu0 %5934
      %5936 = vrot.lane.b32.xlu0 %v5917, 4
      %v5937 = vpop.permute.xlu0 %5936
      %5938 = vrot.lane.b32.xlu0 %v5918, 4
      %v5939 = vpop.permute.xlu0 %5938
      %5940 = vrot.lane.b32.xlu0 %v5919, 4
      %v5941 = vpop.permute.xlu0 %5940
      %5942 = vrot.lane.b32.xlu0 %v5920, 4
      %v5943 = vpop.permute.xlu0 %5942
      %5944 = vrot.lane.b32.xlu0 %v5921, 4
      %v5945 = vpop.permute.xlu0 %5944
      %5954 = vst.msk [vmem:[#allocation5] sm:$0xf] %vm1199, %v5931
      %5955 = vst.msk [vmem:[#allocation5 + $0x4] sm:$0xf] %vm1199, %v5933
      %5956 = vst.msk [vmem:[#allocation5 + $0x8] sm:$0xf] %vm1199, %v5935
      %5957 = vst.msk [vmem:[#allocation5 + $0xc] sm:$0xf] %vm1199, %v5937
      %5958 = vst.msk [vmem:[#allocation5 + $0x10] sm:$0xf] %vm1199, %v5939
      %5959 = vst.msk [vmem:[#allocation5 + $0x14] sm:$0xf] %vm1199, %v5941
      %5960 = vst.msk [vmem:[#allocation5 + $0x18] sm:$0xf] %vm1199, %v5943
      %5961 = vst.msk [vmem:[#allocation5 + $0x1c] sm:$0xf] %vm1199, %v5945
      %v5962 = vld [vmem:[#allocation3] sm:$0xf]
      %v5963 = vld [vmem:[#allocation3 + $0x4] sm:$0x1]
      %v5964 = vld [vmem:[#allocation3 + $0x8] sm:$0xf]
      %v5965 = vld [vmem:[#allocation3 + $0xc] sm:$0x1]
      %v5966 = vld [vmem:[#allocation3 + $0x10] sm:$0xf]
      %v5967 = vld [vmem:[#allocation3 + $0x14] sm:$0x1]
      %v5968 = vld [vmem:[#allocation3 + $0x18] sm:$0xf]
      %v5969 = vld [vmem:[#allocation3 + $0x1c] sm:$0x1]
      %v5970 = vld [vmem:[#allocation3 + $0x20] sm:$0xf]
      %v5971 = vld [vmem:[#allocation3 + $0x24] sm:$0x1]
      %v5972 = vld [vmem:[#allocation3 + $0x28] sm:$0xf]
      %v5973 = vld [vmem:[#allocation3 + $0x2c] sm:$0x1]
      %v5974 = vld [vmem:[#allocation3 + $0x30] sm:$0xf]
      %v5975 = vld [vmem:[#allocation3 + $0x34] sm:$0x1]
      %v5976 = vld [vmem:[#allocation3 + $0x38] sm:$0xf]
      %v5977 = vld [vmem:[#allocation3 + $0x3c] sm:$0x1]
      %v5979 = vshrl.u32 %v5962, 16
      %v5981 = vrot.slane %v5979, 4
      %v5982 = vshll.u32 %v5962, 16
      %v5984 = vrot.slane %v5982, 5
      %v5985 = vor.u32 %v5981, %v5984
      %v5986 = vrot.slane %v5985, 4
      %v5988 = vshll.u32 %v5963, 16
      %v5990 = vrot.slane %v5988, 5
      %v5991 = vsel %vm965, %v5986, %v5990
      %v5993 = vshrl.u32 %v5964, 16
      %v5995 = vrot.slane %v5993, 4
      %v5996 = vshll.u32 %v5964, 16
      %v5998 = vrot.slane %v5996, 5
      %v5999 = vor.u32 %v5995, %v5998
      %v6000 = vrot.slane %v5999, 4
      %v6002 = vshll.u32 %v5965, 16
      %v6004 = vrot.slane %v6002, 5
      %v6005 = vsel %vm965, %v6000, %v6004
      %v6007 = vshrl.u32 %v5966, 16
      %v6009 = vrot.slane %v6007, 4
      %v6010 = vshll.u32 %v5966, 16
      %v6012 = vrot.slane %v6010, 5
      %v6013 = vor.u32 %v6009, %v6012
      %v6014 = vrot.slane %v6013, 4
      %v6016 = vshll.u32 %v5967, 16
      %v6018 = vrot.slane %v6016, 5
      %v6019 = vsel %vm965, %v6014, %v6018
      %v6021 = vshrl.u32 %v5968, 16
      %v6023 = vrot.slane %v6021, 4
      %v6024 = vshll.u32 %v5968, 16
      %v6026 = vrot.slane %v6024, 5
      %v6027 = vor.u32 %v6023, %v6026
      %v6028 = vrot.slane %v6027, 4
      %v6030 = vshll.u32 %v5969, 16
      %v6032 = vrot.slane %v6030, 5
      %v6033 = vsel %vm965, %v6028, %v6032
      %v6035 = vshrl.u32 %v5970, 16
      %v6037 = vrot.slane %v6035, 4
      %v6038 = vshll.u32 %v5970, 16
      %v6040 = vrot.slane %v6038, 5
      %v6041 = vor.u32 %v6037, %v6040
      %v6042 = vrot.slane %v6041, 4
      %v6044 = vshll.u32 %v5971, 16
      %v6046 = vrot.slane %v6044, 5
      %v6047 = vsel %vm965, %v6042, %v6046
      %v6049 = vshrl.u32 %v5972, 16
      %v6051 = vrot.slane %v6049, 4
      %v6052 = vshll.u32 %v5972, 16
      %v6054 = vrot.slane %v6052, 5
      %v6055 = vor.u32 %v6051, %v6054
      %v6056 = vrot.slane %v6055, 4
      %v6058 = vshll.u32 %v5973, 16
      %v6060 = vrot.slane %v6058, 5
      %v6061 = vsel %vm965, %v6056, %v6060
      %v6063 = vshrl.u32 %v5974, 16
      %v6065 = vrot.slane %v6063, 4
      %v6066 = vshll.u32 %v5974, 16
      %v6068 = vrot.slane %v6066, 5
      %v6069 = vor.u32 %v6065, %v6068
      %v6070 = vrot.slane %v6069, 4
      %v6072 = vshll.u32 %v5975, 16
      %v6074 = vrot.slane %v6072, 5
      %v6075 = vsel %vm965, %v6070, %v6074
      %v6077 = vshrl.u32 %v5976, 16
      %v6079 = vrot.slane %v6077, 4
      %v6080 = vshll.u32 %v5976, 16
      %v6082 = vrot.slane %v6080, 5
      %v6083 = vor.u32 %v6079, %v6082
      %v6084 = vrot.slane %v6083, 4
      %v6086 = vshll.u32 %v5977, 16
      %v6088 = vrot.slane %v6086, 5
      %v6089 = vsel %vm965, %v6084, %v6088
      %6090 = vrot.lane.b32.xlu0 %v5991, 12
      %v6091 = vpop.permute.xlu0 %6090
      %6092 = vrot.lane.b32.xlu0 %v6005, 12
      %v6093 = vpop.permute.xlu0 %6092
      %6094 = vrot.lane.b32.xlu0 %v6019, 12
      %v6095 = vpop.permute.xlu0 %6094
      %6096 = vrot.lane.b32.xlu0 %v6033, 12
      %v6097 = vpop.permute.xlu0 %6096
      %6098 = vrot.lane.b32.xlu0 %v6047, 12
      %v6099 = vpop.permute.xlu0 %6098
      %6100 = vrot.lane.b32.xlu0 %v6061, 12
      %v6101 = vpop.permute.xlu0 %6100
      %6102 = vrot.lane.b32.xlu0 %v6075, 12
      %v6103 = vpop.permute.xlu0 %6102
      %6104 = vrot.lane.b32.xlu0 %v6089, 12
      %v6105 = vpop.permute.xlu0 %6104
      %6114 = vst.msk [vmem:[#allocation5] sm:$0xf] %vm1360, %v6091
      %6115 = vst.msk [vmem:[#allocation5 + $0x4] sm:$0xf] %vm1360, %v6093
      %6116 = vst.msk [vmem:[#allocation5 + $0x8] sm:$0xf] %vm1360, %v6095
      %6117 = vst.msk [vmem:[#allocation5 + $0xc] sm:$0xf] %vm1360, %v6097
      %6118 = vst.msk [vmem:[#allocation5 + $0x10] sm:$0xf] %vm1360, %v6099
      %6119 = vst.msk [vmem:[#allocation5 + $0x14] sm:$0xf] %vm1360, %v6101
      %6120 = vst.msk [vmem:[#allocation5 + $0x18] sm:$0xf] %vm1360, %v6103
      %6121 = vst.msk [vmem:[#allocation5 + $0x1c] sm:$0xf] %vm1360, %v6105
      %v6122 = vld [vmem:[%s4266] sm:$0xf]
      %v6123 = vld [vmem:[%s4266 + $0x8] sm:$0xf]
      %v6124 = vld [vmem:[%s4266 + $0x10] sm:$0xf]
      %v6125 = vld [vmem:[%s4266 + $0x18] sm:$0xf]
      %v6126 = vld [vmem:[%s4266 + $0x20] sm:$0xf]
      %v6127 = vld [vmem:[%s4266 + $0x28] sm:$0xf]
      %v6128 = vld [vmem:[%s4266 + $0x30] sm:$0xf]
      %v6129 = vld [vmem:[%s4266 + $0x38] sm:$0xf]
      %6138 = vrot.lane.b32.xlu0 %v6122, 24
      %v6139 = vpop.permute.xlu0 %6138
      %6140 = vrot.lane.b32.xlu0 %v6123, 24
      %v6141 = vpop.permute.xlu0 %6140
      %6142 = vrot.lane.b32.xlu0 %v6124, 24
      %v6143 = vpop.permute.xlu0 %6142
      %6144 = vrot.lane.b32.xlu0 %v6125, 24
      %v6145 = vpop.permute.xlu0 %6144
      %6146 = vrot.lane.b32.xlu0 %v6126, 24
      %v6147 = vpop.permute.xlu0 %6146
      %6148 = vrot.lane.b32.xlu0 %v6127, 24
      %v6149 = vpop.permute.xlu0 %6148
      %6150 = vrot.lane.b32.xlu0 %v6128, 24
      %v6151 = vpop.permute.xlu0 %6150
      %6152 = vrot.lane.b32.xlu0 %v6129, 24
      %v6153 = vpop.permute.xlu0 %6152
      %6162 = vst.msk [vmem:[#allocation5] sm:$0xf] %vm1409, %v6139
      %6163 = vst.msk [vmem:[#allocation5 + $0x4] sm:$0xf] %vm1409, %v6141
      %6164 = vst.msk [vmem:[#allocation5 + $0x8] sm:$0xf] %vm1409, %v6143
      %6165 = vst.msk [vmem:[#allocation5 + $0xc] sm:$0xf] %vm1409, %v6145
      %6166 = vst.msk [vmem:[#allocation5 + $0x10] sm:$0xf] %vm1409, %v6147
      %6167 = vst.msk [vmem:[#allocation5 + $0x14] sm:$0xf] %vm1409, %v6149
      %6168 = vst.msk [vmem:[#allocation5 + $0x18] sm:$0xf] %vm1409, %v6151
      %6169 = vst.msk [vmem:[#allocation5 + $0x1c] sm:$0xf] %vm1409, %v6153
      %v6170 = vld [vmem:[%s4266] sm:$0xf]
      %v6171 = vld [vmem:[%s4266 + $0x8] sm:$0xf]
      %v6172 = vld [vmem:[%s4266 + $0x10] sm:$0xf]
      %v6173 = vld [vmem:[%s4266 + $0x18] sm:$0xf]
      %v6174 = vld [vmem:[%s4266 + $0x20] sm:$0xf]
      %v6175 = vld [vmem:[%s4266 + $0x28] sm:$0xf]
      %v6176 = vld [vmem:[%s4266 + $0x30] sm:$0xf]
      %v6177 = vld [vmem:[%s4266 + $0x38] sm:$0xf]
      %6186 = vrot.lane.b32.xlu0 %v6170, 24
      %v6187 = vpop.permute.xlu0 %6186
      %6188 = vrot.lane.b32.xlu0 %v6171, 24
      %v6189 = vpop.permute.xlu0 %6188
      %6190 = vrot.lane.b32.xlu0 %v6172, 24
      %v6191 = vpop.permute.xlu0 %6190
      %6192 = vrot.lane.b32.xlu0 %v6173, 24
      %v6193 = vpop.permute.xlu0 %6192
      %6194 = vrot.lane.b32.xlu0 %v6174, 24
      %v6195 = vpop.permute.xlu0 %6194
      %6196 = vrot.lane.b32.xlu0 %v6175, 24
      %v6197 = vpop.permute.xlu0 %6196
      %6198 = vrot.lane.b32.xlu0 %v6176, 24
      %v6199 = vpop.permute.xlu0 %6198
      %6200 = vrot.lane.b32.xlu0 %v6177, 24
      %v6201 = vpop.permute.xlu0 %6200
      %6210 = vst.msk [vmem:[#allocation5] sm:$0xf] %vm1458, %v6187
      %6211 = vst.msk [vmem:[#allocation5 + $0x4] sm:$0xf] %vm1458, %v6189
      %6212 = vst.msk [vmem:[#allocation5 + $0x8] sm:$0xf] %vm1458, %v6191
      %6213 = vst.msk [vmem:[#allocation5 + $0xc] sm:$0xf] %vm1458, %v6193
      %6214 = vst.msk [vmem:[#allocation5 + $0x10] sm:$0xf] %vm1458, %v6195
      %6215 = vst.msk [vmem:[#allocation5 + $0x14] sm:$0xf] %vm1458, %v6197
      %6216 = vst.msk [vmem:[#allocation5 + $0x18] sm:$0xf] %vm1458, %v6199
      %6217 = vst.msk [vmem:[#allocation5 + $0x1c] sm:$0xf] %vm1458, %v6201
      %v6218 = vld [vmem:[%s4266] sm:$0xf]
      %v6219 = vld [vmem:[%s4266 + $0x4] sm:$0x1]
      %v6220 = vld [vmem:[%s4266 + $0x8] sm:$0xf]
      %v6221 = vld [vmem:[%s4266 + $0xc] sm:$0x1]
      %v6222 = vld [vmem:[%s4266 + $0x10] sm:$0xf]
      %v6223 = vld [vmem:[%s4266 + $0x14] sm:$0x1]
      %v6224 = vld [vmem:[%s4266 + $0x18] sm:$0xf]
      %v6225 = vld [vmem:[%s4266 + $0x1c] sm:$0x1]
      %v6226 = vld [vmem:[%s4266 + $0x20] sm:$0xf]
      %v6227 = vld [vmem:[%s4266 + $0x24] sm:$0x1]
      %v6228 = vld [vmem:[%s4266 + $0x28] sm:$0xf]
      %v6229 = vld [vmem:[%s4266 + $0x2c] sm:$0x1]
      %v6230 = vld [vmem:[%s4266 + $0x30] sm:$0xf]
      %v6231 = vld [vmem:[%s4266 + $0x34] sm:$0x1]
      %v6232 = vld [vmem:[%s4266 + $0x38] sm:$0xf]
      %v6233 = vld [vmem:[%s4266 + $0x3c] sm:$0x1]
      %v6235 = vshrl.u32 %v6218, 16
      %v6237 = vrot.slane %v6235, 4
      %v6238 = vshll.u32 %v6218, 16
      %v6240 = vrot.slane %v6238, 5
      %v6241 = vor.u32 %v6237, %v6240
      %v6242 = vrot.slane %v6241, 4
      %v6244 = vshll.u32 %v6219, 16
      %v6246 = vrot.slane %v6244, 5
      %v6247 = vsel %vm965, %v6242, %v6246
      %v6249 = vshrl.u32 %v6220, 16
      %v6251 = vrot.slane %v6249, 4
      %v6252 = vshll.u32 %v6220, 16
      %v6254 = vrot.slane %v6252, 5
      %v6255 = vor.u32 %v6251, %v6254
      %v6256 = vrot.slane %v6255, 4
      %v6258 = vshll.u32 %v6221, 16
      %v6260 = vrot.slane %v6258, 5
      %v6261 = vsel %vm965, %v6256, %v6260
      %v6263 = vshrl.u32 %v6222, 16
      %v6265 = vrot.slane %v6263, 4
      %v6266 = vshll.u32 %v6222, 16
      %v6268 = vrot.slane %v6266, 5
      %v6269 = vor.u32 %v6265, %v6268
      %v6270 = vrot.slane %v6269, 4
      %v6272 = vshll.u32 %v6223, 16
      %v6274 = vrot.slane %v6272, 5
      %v6275 = vsel %vm965, %v6270, %v6274
      %v6277 = vshrl.u32 %v6224, 16
      %v6279 = vrot.slane %v6277, 4
      %v6280 = vshll.u32 %v6224, 16
      %v6282 = vrot.slane %v6280, 5
      %v6283 = vor.u32 %v6279, %v6282
      %v6284 = vrot.slane %v6283, 4
      %v6286 = vshll.u32 %v6225, 16
      %v6288 = vrot.slane %v6286, 5
      %v6289 = vsel %vm965, %v6284, %v6288
      %v6291 = vshrl.u32 %v6226, 16
      %v6293 = vrot.slane %v6291, 4
      %v6294 = vshll.u32 %v6226, 16
      %v6296 = vrot.slane %v6294, 5
      %v6297 = vor.u32 %v6293, %v6296
      %v6298 = vrot.slane %v6297, 4
      %v6300 = vshll.u32 %v6227, 16
      %v6302 = vrot.slane %v6300, 5
      %v6303 = vsel %vm965, %v6298, %v6302
      %v6305 = vshrl.u32 %v6228, 16
      %v6307 = vrot.slane %v6305, 4
      %v6308 = vshll.u32 %v6228, 16
      %v6310 = vrot.slane %v6308, 5
      %v6311 = vor.u32 %v6307, %v6310
      %v6312 = vrot.slane %v6311, 4
      %v6314 = vshll.u32 %v6229, 16
      %v6316 = vrot.slane %v6314, 5
      %v6317 = vsel %vm965, %v6312, %v6316
      %v6319 = vshrl.u32 %v6230, 16
      %v6321 = vrot.slane %v6319, 4
      %v6322 = vshll.u32 %v6230, 16
      %v6324 = vrot.slane %v6322, 5
      %v6325 = vor.u32 %v6321, %v6324
      %v6326 = vrot.slane %v6325, 4
      %v6328 = vshll.u32 %v6231, 16
      %v6330 = vrot.slane %v6328, 5
      %v6331 = vsel %vm965, %v6326, %v6330
      %v6333 = vshrl.u32 %v6232, 16
      %v6335 = vrot.slane %v6333, 4
      %v6336 = vshll.u32 %v6232, 16
      %v6338 = vrot.slane %v6336, 5
      %v6339 = vor.u32 %v6335, %v6338
      %v6340 = vrot.slane %v6339, 4
      %v6342 = vshll.u32 %v6233, 16
      %v6344 = vrot.slane %v6342, 5
      %v6345 = vsel %vm965, %v6340, %v6344
      %6346 = vrot.lane.b32.xlu0 %v6247, 32
      %v6347 = vpop.permute.xlu0 %6346
      %6348 = vrot.lane.b32.xlu0 %v6261, 32
      %v6349 = vpop.permute.xlu0 %6348
      %6350 = vrot.lane.b32.xlu0 %v6275, 32
      %v6351 = vpop.permute.xlu0 %6350
      %6352 = vrot.lane.b32.xlu0 %v6289, 32
      %v6353 = vpop.permute.xlu0 %6352
      %6354 = vrot.lane.b32.xlu0 %v6303, 32
      %v6355 = vpop.permute.xlu0 %6354
      %6356 = vrot.lane.b32.xlu0 %v6317, 32
      %v6357 = vpop.permute.xlu0 %6356
      %6358 = vrot.lane.b32.xlu0 %v6331, 32
      %v6359 = vpop.permute.xlu0 %6358
      %6360 = vrot.lane.b32.xlu0 %v6345, 32
      %v6361 = vpop.permute.xlu0 %6360
      %6370 = vst.msk [vmem:[#allocation5] sm:$0xf] %vm1619, %v6347
      %6371 = vst.msk [vmem:[#allocation5 + $0x4] sm:$0xf] %vm1619, %v6349
      %6372 = vst.msk [vmem:[#allocation5 + $0x8] sm:$0xf] %vm1619, %v6351
      %6373 = vst.msk [vmem:[#allocation5 + $0xc] sm:$0xf] %vm1619, %v6353
      %6374 = vst.msk [vmem:[#allocation5 + $0x10] sm:$0xf] %vm1619, %v6355
      %6375 = vst.msk [vmem:[#allocation5 + $0x14] sm:$0xf] %vm1619, %v6357
      %6376 = vst.msk [vmem:[#allocation5 + $0x18] sm:$0xf] %vm1619, %v6359
      %6377 = vst.msk [vmem:[#allocation5 + $0x1c] sm:$0xf] %vm1619, %v6361
      %v6378 = vld [vmem:[#allocation5] sm:$0xf]
      %v6379 = vld [vmem:[#allocation5 + $0x4] sm:$0xf]
      %v6380 = vld [vmem:[#allocation5 + $0x8] sm:$0xf]
      %v6381 = vld [vmem:[#allocation5 + $0xc] sm:$0xf]
      %v6382 = vld [vmem:[#allocation5 + $0x10] sm:$0xf]
      %v6383 = vld [vmem:[#allocation5 + $0x14] sm:$0xf]
      %v6384 = vld [vmem:[#allocation5 + $0x18] sm:$0xf]
      %v6385 = vld [vmem:[#allocation5 + $0x1c] sm:$0xf]
      %v6386 = vld [vmem:[%s5] sm:$0xf]
      %v6387 = vld [vmem:[%s5 + $0x4] sm:$0xf]
      %v6388 = vld [vmem:[%s5 + $0x8] sm:$0xf]
      %v6389 = vld [vmem:[%s5 + $0xc] sm:$0xf]
      %v6390 = vld [vmem:[%s5 + $0x10] sm:$0x3]
      %v6391 = vld [vmem:[%s6] sm:$0x1]
      %v6393 = vlaneseq
      %v6394 = vshrl.u32 %v6393, 7
      %v6395 = vsub.s32 0, %v6394
      %v6396 = vrot.slane %v6391, %v6395
      %v6406 = vunpack.c.l.b16 %v6378
      %v6407 = vunpack.c.l.b16 %v6379
      %v6408 = vunpack.c.l.b16 %v6380
      %v6409 = vunpack.c.l.b16 %v6381
      %v6410 = vunpack.c.l.b16 %v6382
      %v6411 = vunpack.c.l.b16 %v6383
      %v6412 = vunpack.c.l.b16 %v6384
      %v6413 = vunpack.c.l.b16 %v6385
      %v6414 = vpack.c.b16 %v6407, %v6406
      %v6415 = vpack.c.b16 %v6409, %v6408
      %v6416 = vpack.c.b16 %v6411, %v6410
      %v6417 = vpack.c.b16 %v6413, %v6412
      %v6423 = vunpack.c.l.b16 %v6386
      %v6424 = vunpack.c.l.b16 %v6387
      %v6425 = vunpack.c.l.b16 %v6388
      %v6426 = vunpack.c.l.b16 %v6389
      %v6427 = vunpack.c.l.b16 %v6390
      %v6428 = vpack.c.b16 %v6424, %v6423
      %v6429 = vpack.c.b16 %v6426, %v6425
      %v6430 = vpack.c.b16 %v6427, %v6427
      %v6434 = vsel %vm1683, %v6414, 0
      %v6437 = vsel %vm1683, %v6415, 0
      %v6440 = vsel %vm1683, %v6416, 0
      %v6443 = vsel %vm1683, %v6417, 0
      %v6446 = vsel %vm1696, %v6430, 0
      %6448 = vmatprep.subr.bf16.mxu0 0
      %6449 = vmatpush1.bf16.msra.mxu0 0
      %6450 = vmatprep.subr.bf16.mxu0 0
      %6451 = vmatpush1.bf16.msra.mxu0 0
      %6452 = vmatprep.subr.bf16.mxu0 0
      %6453 = vmatpush1.bf16.msra.mxu0 0
      %6454 = vmatprep.subr.bf16.mxu0 0
      %6455 = vmatpush1.bf16.msra.mxu0 0
      %6456 = vmatprep.subr.bf16.mxu0 0
      %6457 = vmatpush1.bf16.msra.mxu0 0
      %6458 = vmatprep.subr.bf16.mxu0 0
      %6459 = vmatpush1.bf16.msra.mxu0 %v6446
      %6460 = vmatprep.subr.bf16.mxu0 0
      %6461 = vmatpush1.bf16.msra.mxu0 %v6429
      %6462 = vmatprep.subr.bf16.mxu0 0
      %6463 = vmatpush1.bf16.msra.mxu0 %v6428
      %6464 = vmatprep.subr.bf16.mxu0 0
      %6465 = vmatpush2.bf16.msra.mxu0 0
      %6466 = vmatprep.subr.bf16.mxu0 0
      %6467 = vmatpush2.bf16.msra.mxu0 0
      %6468 = vmatprep.subr.bf16.mxu0 0
      %6469 = vmatpush2.bf16.msra.mxu0 0
      %6470 = vmatprep.subr.bf16.mxu0 0
      %6471 = vmatpush2.bf16.msra.mxu0 0
      %6472 = vmatprep.subr.bf16.mxu0 0
      %6473 = vmatpush2.bf16.msra.mxu0 0
      %6474 = vmatprep.subr.bf16.mxu0 0
      %6475 = vmatpush2.bf16.msra.mxu0 0
      %6476 = vmatprep.subr.bf16.mxu0 0
      %6477 = vmatpush2.bf16.msra.mxu0 0
      %6478 = vmatprep.subr.bf16.mxu0 0
      %6479 = vmatpush2.bf16.msra.mxu0 0
      %6480 = vmatprep.mubr.bf16.mxu0 0
      %6481 = vmatmul.mubr.bf16.gmra.mxu0 %v6434
      %v6482 = vpop.f32.mrf.mxu0
      %v6483 = vadd.f32 %v6396, %v6482
      %v6484 = vpop.f32.mrf.mxu0
      %v6485 = vpop.f32.mrf.mxu0
      %v6486 = vadd.f32 %v6396, %v6485
      %v6487 = vpop.f32.mrf.mxu0
      %6488 = vmatprep.mubr.bf16.mxu0 0
      %6489 = vmatmul.mubr.bf16.gmra.mxu0 %v6437
      %v6490 = vpop.f32.mrf.mxu0
      %v6491 = vadd.f32 %v6396, %v6490
      %v6492 = vpop.f32.mrf.mxu0
      %v6493 = vpop.f32.mrf.mxu0
      %v6494 = vadd.f32 %v6396, %v6493
      %v6495 = vpop.f32.mrf.mxu0
      %6496 = vmatprep.mubr.bf16.mxu0 0
      %6497 = vmatmul.mubr.bf16.gmra.mxu0 %v6440
      %v6498 = vpop.f32.mrf.mxu0
      %v6499 = vadd.f32 %v6396, %v6498
      %v6500 = vpop.f32.mrf.mxu0
      %v6501 = vpop.f32.mrf.mxu0
      %v6502 = vadd.f32 %v6396, %v6501
      %v6503 = vpop.f32.mrf.mxu0
      %6504 = vmatprep.mubr.bf16.mxu0 0
      %6505 = vmatmul.mubr.bf16.gmra.mxu0 %v6443
      %v6506 = vpop.f32.mrf.mxu0
      %v6507 = vadd.f32 %v6396, %v6506
      %v6508 = vpop.f32.mrf.mxu0
      %v6509 = vpop.f32.mrf.mxu0
      %v6510 = vadd.f32 %v6396, %v6509
      %v6511 = vpop.f32.mrf.mxu0
      %6512 = vdwg.mxu0
      %vm6513 = vcmask 191488
      %6514 = vst.msk [vmem:[#allocation4] sm:$0xf] %vm6513, 0
      %vm6515 = vcmask 188416
      %6516 = vst.msk [vmem:[#allocation4 + $0x4] sm:$0x1] %vm6515, 0
      %6517 = vst.msk [vmem:[#allocation4 + $0x8] sm:$0xf] %vm6513, 0
      %6518 = vst.msk [vmem:[#allocation4 + $0xc] sm:$0x1] %vm6515, 0
      %6519 = vst.msk [vmem:[#allocation4 + $0x10] sm:$0xf] %vm6513, 0
      %6520 = vst.msk [vmem:[#allocation4 + $0x14] sm:$0x1] %vm6515, 0
      %6521 = vst.msk [vmem:[#allocation4 + $0x18] sm:$0xf] %vm6513, 0
      %6522 = vst.msk [vmem:[#allocation4 + $0x1c] sm:$0x1] %vm6515, 0
      %6523 = vst.msk [vmem:[#allocation4 + $0x20] sm:$0xf] %vm6513, 0
      %6524 = vst.msk [vmem:[#allocation4 + $0x24] sm:$0x1] %vm6515, 0
      %6525 = vst.msk [vmem:[#allocation4 + $0x28] sm:$0xf] %vm6513, 0
      %6526 = vst.msk [vmem:[#allocation4 + $0x2c] sm:$0x1] %vm6515, 0
      %6527 = vst.msk [vmem:[#allocation4 + $0x30] sm:$0xf] %vm6513, 0
      %6528 = vst.msk [vmem:[#allocation4 + $0x34] sm:$0x1] %vm6515, 0
      %6529 = vst.msk [vmem:[#allocation4 + $0x38] sm:$0xf] %vm6513, 0
      %6530 = vst.msk [vmem:[#allocation4 + $0x3c] sm:$0x1] %vm6515, 0
      %6531 = vst.msk [vmem:[#allocation4 + $0x40] sm:$0xf] %vm6513, 0
      %6532 = vst.msk [vmem:[#allocation4 + $0x44] sm:$0x1] %vm6515, 0
      %6533 = vst.msk [vmem:[#allocation4 + $0x48] sm:$0xf] %vm6513, 0
      %6534 = vst.msk [vmem:[#allocation4 + $0x4c] sm:$0x1] %vm6515, 0
      %v6535 = vpack.c.bf16 %v6486, %v6483
      %v6536 = vpack.c.bf16 %v6494, %v6491
      %v6537 = vpack.c.bf16 %v6502, %v6499
      %v6538 = vpack.c.bf16 %v6510, %v6507
      %v6543 = vunpack.c.l.b16 %v6535
      %v6544 = vunpack.c.h.b16 %v6535
      %v6545 = vunpack.c.l.b16 %v6536
      %v6546 = vunpack.c.h.b16 %v6536
      %v6547 = vunpack.c.l.b16 %v6537
      %v6548 = vunpack.c.h.b16 %v6537
      %v6549 = vunpack.c.l.b16 %v6538
      %v6550 = vunpack.c.h.b16 %v6538
      %v6551 = vpack.c.b16 %v6543, %v6543
      %v6552 = vpack.c.b16 %v6544, %v6544
      %v6553 = vpack.c.b16 %v6545, %v6545
      %v6554 = vpack.c.b16 %v6546, %v6546
      %v6555 = vpack.c.b16 %v6547, %v6547
      %v6556 = vpack.c.b16 %v6548, %v6548
      %v6557 = vpack.c.b16 %v6549, %v6549
      %v6558 = vpack.c.b16 %v6550, %v6550
      %v6560 = vshrl.u32 %v6551, 16
      %v6562 = vrot.slane %v6560, 7
      %v6563 = vshll.u32 %v6551, 16
      %v6565 = vor.u32 %v6562, %v6563
      %v6566 = vrot.slane %v6562, 4
      %v6568 = vshrl.u32 %v6552, 16
      %v6570 = vrot.slane %v6568, 7
      %v6571 = vshll.u32 %v6552, 16
      %v6573 = vor.u32 %v6570, %v6571
      %v6574 = vrot.slane %v6570, 4
      %v6576 = vshrl.u32 %v6553, 16
      %v6578 = vrot.slane %v6576, 7
      %v6579 = vshll.u32 %v6553, 16
      %v6581 = vor.u32 %v6578, %v6579
      %v6582 = vrot.slane %v6578, 4
      %v6584 = vshrl.u32 %v6554, 16
      %v6586 = vrot.slane %v6584, 7
      %v6587 = vshll.u32 %v6554, 16
      %v6589 = vor.u32 %v6586, %v6587
      %v6590 = vrot.slane %v6586, 4
      %v6592 = vshrl.u32 %v6555, 16
      %v6594 = vrot.slane %v6592, 7
      %v6595 = vshll.u32 %v6555, 16
      %v6597 = vor.u32 %v6594, %v6595
      %v6598 = vrot.slane %v6594, 4
      %v6600 = vshrl.u32 %v6556, 16
      %v6602 = vrot.slane %v6600, 7
      %v6603 = vshll.u32 %v6556, 16
      %v6605 = vor.u32 %v6602, %v6603
      %v6606 = vrot.slane %v6602, 4
      %v6608 = vshrl.u32 %v6557, 16
      %v6610 = vrot.slane %v6608, 7
      %v6611 = vshll.u32 %v6557, 16
      %v6613 = vor.u32 %v6610, %v6611
      %v6614 = vrot.slane %v6610, 4
      %v6616 = vshrl.u32 %v6558, 16
      %v6618 = vrot.slane %v6616, 7
      %v6619 = vshll.u32 %v6558, 16
      %v6621 = vor.u32 %v6618, %v6619
      %v6622 = vrot.slane %v6618, 4
      %s6639 = scalar_lea.vmem [#allocation4], 8
      %vm6640 = vcmask 191488
      %vm6641 = vmand %vm6640, %vm592
      %v6642 = vld [vmem:[%s6639] sm:$0xf]
      %v6643 = vsel %vm6641, %v6565, %v6642
      %6644 = vst [vmem:[%s6639] sm:$0xf] %v6643
      %vm6645 = vcmask 188416
      %vm6646 = vmand %vm6645, %vm396
      %v6647 = vld [vmem:[%s6639 + $0x4] sm:$0x1]
      %v6648 = vsel %vm6646, %v6566, %v6647
      %6649 = vst [vmem:[%s6639 + $0x4] sm:$0x1] %v6648
      %v6650 = vld [vmem:[%s6639 + $0x8] sm:$0xf]
      %v6651 = vsel %vm6641, %v6573, %v6650
      %6652 = vst [vmem:[%s6639 + $0x8] sm:$0xf] %v6651
      %v6653 = vld [vmem:[%s6639 + $0xc] sm:$0x1]
      %v6654 = vsel %vm6646, %v6574, %v6653
      %6655 = vst [vmem:[%s6639 + $0xc] sm:$0x1] %v6654
      %v6656 = vld [vmem:[%s6639 + $0x10] sm:$0xf]
      %v6657 = vsel %vm6641, %v6581, %v6656
      %6658 = vst [vmem:[%s6639 + $0x10] sm:$0xf] %v6657
      %v6659 = vld [vmem:[%s6639 + $0x14] sm:$0x1]
      %v6660 = vsel %vm6646, %v6582, %v6659
      %6661 = vst [vmem:[%s6639 + $0x14] sm:$0x1] %v6660
      %v6662 = vld [vmem:[%s6639 + $0x18] sm:$0xf]
      %v6663 = vsel %vm6641, %v6589, %v6662
      %6664 = vst [vmem:[%s6639 + $0x18] sm:$0xf] %v6663
      %v6665 = vld [vmem:[%s6639 + $0x1c] sm:$0x1]
      %v6666 = vsel %vm6646, %v6590, %v6665
      %6667 = vst [vmem:[%s6639 + $0x1c] sm:$0x1] %v6666
      %v6668 = vld [vmem:[%s6639 + $0x20] sm:$0xf]
      %v6669 = vsel %vm6641, %v6597, %v6668
      %6670 = vst [vmem:[%s6639 + $0x20] sm:$0xf] %v6669
      %v6671 = vld [vmem:[%s6639 + $0x24] sm:$0x1]
      %v6672 = vsel %vm6646, %v6598, %v6671
      %6673 = vst [vmem:[%s6639 + $0x24] sm:$0x1] %v6672
      %v6674 = vld [vmem:[%s6639 + $0x28] sm:$0xf]
      %v6675 = vsel %vm6641, %v6605, %v6674
      %6676 = vst [vmem:[%s6639 + $0x28] sm:$0xf] %v6675
      %v6677 = vld [vmem:[%s6639 + $0x2c] sm:$0x1]
      %v6678 = vsel %vm6646, %v6606, %v6677
      %6679 = vst [vmem:[%s6639 + $0x2c] sm:$0x1] %v6678
      %v6680 = vld [vmem:[%s6639 + $0x30] sm:$0xf]
      %v6681 = vsel %vm6641, %v6613, %v6680
      %6682 = vst [vmem:[%s6639 + $0x30] sm:$0xf] %v6681
      %v6683 = vld [vmem:[%s6639 + $0x34] sm:$0x1]
      %v6684 = vsel %vm6646, %v6614, %v6683
      %6685 = vst [vmem:[%s6639 + $0x34] sm:$0x1] %v6684
      %v6686 = vld [vmem:[%s6639 + $0x38] sm:$0xf]
      %v6687 = vsel %vm6641, %v6621, %v6686
      %6688 = vst [vmem:[%s6639 + $0x38] sm:$0xf] %v6687
      %v6689 = vld [vmem:[%s6639 + $0x3c] sm:$0x1]
      %v6690 = vsel %vm6646, %v6622, %v6689
      %6691 = vst [vmem:[%s6639 + $0x3c] sm:$0x1] %v6690
      %v6692 = vld [vmem:[#allocation4] sm:$0xf]
      %v6693 = vld [vmem:[#allocation4 + $0x8] sm:$0xf]
      %v6694 = vld [vmem:[#allocation4 + $0x10] sm:$0xf]
      %v6695 = vld [vmem:[#allocation4 + $0x18] sm:$0xf]
      %v6696 = vld [vmem:[#allocation4 + $0x20] sm:$0xf]
      %v6697 = vld [vmem:[#allocation4 + $0x28] sm:$0xf]
      %v6698 = vld [vmem:[#allocation4 + $0x30] sm:$0xf]
      %v6699 = vld [vmem:[#allocation4 + $0x38] sm:$0xf]
      %v6700 = vunpack.c.l.bf16 %v6692
      %v6701 = vunpack.c.l.bf16 %v6693
      %v6702 = vunpack.c.l.bf16 %v6694
      %v6703 = vunpack.c.l.bf16 %v6695
      %v6704 = vunpack.c.l.bf16 %v6696
      %v6705 = vunpack.c.l.bf16 %v6697
      %v6706 = vunpack.c.l.bf16 %v6698
      %v6707 = vunpack.c.l.bf16 %v6699
      %v6708 = vld [vmem:[%s7] sm:$0x1]
      %v6709 = vlaneseq
      %v6710 = vshrl.u32 %v6709, 7
      %v6711 = vsub.s32 0, %v6710
      %v6712 = vrot.slane %v6708, %v6711
      %v6713 = vmul.f32 %v6700, %v6712
      %v6714 = vmul.f32 %v6701, %v6712
      %v6715 = vmul.f32 %v6702, %v6712
      %v6716 = vmul.f32 %v6703, %v6712
      %v6717 = vmul.f32 %v6704, %v6712
      %v6718 = vmul.f32 %v6705, %v6712
      %v6719 = vmul.f32 %v6706, %v6712
      %v6720 = vmul.f32 %v6707, %v6712
      %v6721 = vadd.f32 %v6713, 0.0
      %v6722 = vadd.f32 %v6714, 0.0
      %v6723 = vadd.f32 %v6715, 0.0
      %v6724 = vadd.f32 %v6716, 0.0
      %v6725 = vadd.f32 %v6717, 0.0
      %v6726 = vadd.f32 %v6718, 0.0
      %v6727 = vadd.f32 %v6719, 0.0
      %v6728 = vadd.f32 %v6720, 0.0
      %v6729 = vld [vmem:[#allocation4 + $0x4] sm:$0x1]
      %v6730 = vld [vmem:[#allocation4 + $0xc] sm:$0x1]
      %v6731 = vld [vmem:[#allocation4 + $0x14] sm:$0x1]
      %v6732 = vld [vmem:[#allocation4 + $0x1c] sm:$0x1]
      %v6733 = vld [vmem:[#allocation4 + $0x24] sm:$0x1]
      %v6734 = vld [vmem:[#allocation4 + $0x2c] sm:$0x1]
      %v6735 = vld [vmem:[#allocation4 + $0x34] sm:$0x1]
      %v6736 = vld [vmem:[#allocation4 + $0x3c] sm:$0x1]
      %v6738 = vshrl.u32 %v6692, 16
      %v6740 = vrot.slane %v6738, 4
      %v6741 = vshll.u32 %v6692, 16
      %v6743 = vrot.slane %v6741, 5
      %v6744 = vor.u32 %v6740, %v6743
      %v6745 = vrot.slane %v6744, 4
      %v6747 = vshll.u32 %v6729, 16
      %v6749 = vrot.slane %v6747, 5
      %v6750 = vsel %vm965, %v6745, %v6749
      %v6752 = vshrl.u32 %v6693, 16
      %v6754 = vrot.slane %v6752, 4
      %v6755 = vshll.u32 %v6693, 16
      %v6757 = vrot.slane %v6755, 5
      %v6758 = vor.u32 %v6754, %v6757
      %v6759 = vrot.slane %v6758, 4
      %v6761 = vshll.u32 %v6730, 16
      %v6763 = vrot.slane %v6761, 5
      %v6764 = vsel %vm965, %v6759, %v6763
      %v6766 = vshrl.u32 %v6694, 16
      %v6768 = vrot.slane %v6766, 4
      %v6769 = vshll.u32 %v6694, 16
      %v6771 = vrot.slane %v6769, 5
      %v6772 = vor.u32 %v6768, %v6771
      %v6773 = vrot.slane %v6772, 4
      %v6775 = vshll.u32 %v6731, 16
      %v6777 = vrot.slane %v6775, 5
      %v6778 = vsel %vm965, %v6773, %v6777
      %v6780 = vshrl.u32 %v6695, 16
      %v6782 = vrot.slane %v6780, 4
      %v6783 = vshll.u32 %v6695, 16
      %v6785 = vrot.slane %v6783, 5
      %v6786 = vor.u32 %v6782, %v6785
      %v6787 = vrot.slane %v6786, 4
      %v6789 = vshll.u32 %v6732, 16
      %v6791 = vrot.slane %v6789, 5
      %v6792 = vsel %vm965, %v6787, %v6791
      %v6794 = vshrl.u32 %v6696, 16
      %v6796 = vrot.slane %v6794, 4
      %v6797 = vshll.u32 %v6696, 16
      %v6799 = vrot.slane %v6797, 5
      %v6800 = vor.u32 %v6796, %v6799
      %v6801 = vrot.slane %v6800, 4
      %v6803 = vshll.u32 %v6733, 16
      %v6805 = vrot.slane %v6803, 5
      %v6806 = vsel %vm965, %v6801, %v6805
      %v6808 = vshrl.u32 %v6697, 16
      %v6810 = vrot.slane %v6808, 4
      %v6811 = vshll.u32 %v6697, 16
      %v6813 = vrot.slane %v6811, 5
      %v6814 = vor.u32 %v6810, %v6813
      %v6815 = vrot.slane %v6814, 4
      %v6817 = vshll.u32 %v6734, 16
      %v6819 = vrot.slane %v6817, 5
      %v6820 = vsel %vm965, %v6815, %v6819
      %v6822 = vshrl.u32 %v6698, 16
      %v6824 = vrot.slane %v6822, 4
      %v6825 = vshll.u32 %v6698, 16
      %v6827 = vrot.slane %v6825, 5
      %v6828 = vor.u32 %v6824, %v6827
      %v6829 = vrot.slane %v6828, 4
      %v6831 = vshll.u32 %v6735, 16
      %v6833 = vrot.slane %v6831, 5
      %v6834 = vsel %vm965, %v6829, %v6833
      %v6836 = vshrl.u32 %v6699, 16
      %v6838 = vrot.slane %v6836, 4
      %v6839 = vshll.u32 %v6699, 16
      %v6841 = vrot.slane %v6839, 5
      %v6842 = vor.u32 %v6838, %v6841
      %v6843 = vrot.slane %v6842, 4
      %v6845 = vshll.u32 %v6736, 16
      %v6847 = vrot.slane %v6845, 5
      %v6848 = vsel %vm965, %v6843, %v6847
      %v6857 = vunpack.c.l.bf16 %v6750
      %v6858 = vunpack.c.l.bf16 %v6764
      %v6859 = vunpack.c.l.bf16 %v6778
      %v6860 = vunpack.c.l.bf16 %v6792
      %v6861 = vunpack.c.l.bf16 %v6806
      %v6862 = vunpack.c.l.bf16 %v6820
      %v6863 = vunpack.c.l.bf16 %v6834
      %v6864 = vunpack.c.l.bf16 %v6848
      %v6865 = vld [vmem:[%s7 + $0x1] sm:$0x1]
      %v6866 = vlaneseq
      %v6867 = vshrl.u32 %v6866, 7
      %v6868 = vsub.s32 0, %v6867
      %v6869 = vrot.slane %v6865, %v6868
      %v6870 = vmul.f32 %v6857, %v6869
      %v6871 = vmul.f32 %v6858, %v6869
      %v6872 = vmul.f32 %v6859, %v6869
      %v6873 = vmul.f32 %v6860, %v6869
      %v6874 = vmul.f32 %v6861, %v6869
      %v6875 = vmul.f32 %v6862, %v6869
      %v6876 = vmul.f32 %v6863, %v6869
      %v6877 = vmul.f32 %v6864, %v6869
      %v6878 = vadd.f32 %v6721, %v6870
      %v6879 = vadd.f32 %v6722, %v6871
      %v6880 = vadd.f32 %v6723, %v6872
      %v6881 = vadd.f32 %v6724, %v6873
      %v6882 = vadd.f32 %v6725, %v6874
      %v6883 = vadd.f32 %v6726, %v6875
      %v6884 = vadd.f32 %v6727, %v6876
      %v6885 = vadd.f32 %v6728, %v6877
      %v6886 = vld [vmem:[#allocation4] sm:$0xe]
      %v6887 = vld [vmem:[#allocation4 + $0x8] sm:$0xe]
      %v6888 = vld [vmem:[#allocation4 + $0x10] sm:$0xe]
      %v6889 = vld [vmem:[#allocation4 + $0x18] sm:$0xe]
      %v6890 = vld [vmem:[#allocation4 + $0x20] sm:$0xe]
      %v6891 = vld [vmem:[#allocation4 + $0x28] sm:$0xe]
      %v6892 = vld [vmem:[#allocation4 + $0x30] sm:$0xe]
      %v6893 = vld [vmem:[#allocation4 + $0x38] sm:$0xe]
      %vm6910 = vcmask 1042432
      %vm6911 = vcmask 1046532
      %vm6912 = vmor %vm6910, %vm6911
      %v6913 = vrot.slane %v6886, 5
      %v6914 = vrot.slane %v6913, 4
      %v6915 = vrot.slane %v6729, 5
      %v6916 = vsel %vm6912, %v6914, %v6915
      %v6917 = vrot.slane %v6887, 5
      %v6918 = vrot.slane %v6917, 4
      %v6919 = vrot.slane %v6730, 5
      %v6920 = vsel %vm6912, %v6918, %v6919
      %v6921 = vrot.slane %v6888, 5
      %v6922 = vrot.slane %v6921, 4
      %v6923 = vrot.slane %v6731, 5
      %v6924 = vsel %vm6912, %v6922, %v6923
      %v6925 = vrot.slane %v6889, 5
      %v6926 = vrot.slane %v6925, 4
      %v6927 = vrot.slane %v6732, 5
      %v6928 = vsel %vm6912, %v6926, %v6927
      %v6929 = vrot.slane %v6890, 5
      %v6930 = vrot.slane %v6929, 4
      %v6931 = vrot.slane %v6733, 5
      %v6932 = vsel %vm6912, %v6930, %v6931
      %v6933 = vrot.slane %v6891, 5
      %v6934 = vrot.slane %v6933, 4
      %v6935 = vrot.slane %v6734, 5
      %v6936 = vsel %vm6912, %v6934, %v6935
      %v6937 = vrot.slane %v6892, 5
      %v6938 = vrot.slane %v6937, 4
      %v6939 = vrot.slane %v6735, 5
      %v6940 = vsel %vm6912, %v6938, %v6939
      %v6941 = vrot.slane %v6893, 5
      %v6942 = vrot.slane %v6941, 4
      %v6943 = vrot.slane %v6736, 5
      %v6944 = vsel %vm6912, %v6942, %v6943
      %v6953 = vunpack.c.l.bf16 %v6916
      %v6954 = vunpack.c.l.bf16 %v6920
      %v6955 = vunpack.c.l.bf16 %v6924
      %v6956 = vunpack.c.l.bf16 %v6928
      %v6957 = vunpack.c.l.bf16 %v6932
      %v6958 = vunpack.c.l.bf16 %v6936
      %v6959 = vunpack.c.l.bf16 %v6940
      %v6960 = vunpack.c.l.bf16 %v6944
      %v6961 = vld [vmem:[%s7 + $0x2] sm:$0x1]
      %v6962 = vlaneseq
      %v6963 = vshrl.u32 %v6962, 7
      %v6964 = vsub.s32 0, %v6963
      %v6965 = vrot.slane %v6961, %v6964
      %v6966 = vmul.f32 %v6953, %v6965
      %v6967 = vmul.f32 %v6954, %v6965
      %v6968 = vmul.f32 %v6955, %v6965
      %v6969 = vmul.f32 %v6956, %v6965
      %v6970 = vmul.f32 %v6957, %v6965
      %v6971 = vmul.f32 %v6958, %v6965
      %v6972 = vmul.f32 %v6959, %v6965
      %v6973 = vmul.f32 %v6960, %v6965
      %v6974 = vadd.f32 %v6878, %v6966
      %v6975 = vadd.f32 %v6879, %v6967
      %v6976 = vadd.f32 %v6880, %v6968
      %v6977 = vadd.f32 %v6881, %v6969
      %v6978 = vadd.f32 %v6882, %v6970
      %v6979 = vadd.f32 %v6883, %v6971
      %v6980 = vadd.f32 %v6884, %v6972
      %v6981 = vadd.f32 %v6885, %v6973
      %v6982 = vld [vmem:[%s6639] sm:$0xf]
      %v6983 = vld [vmem:[%s6639 + $0x8] sm:$0xf]
      %v6984 = vld [vmem:[%s6639 + $0x10] sm:$0xf]
      %v6985 = vld [vmem:[%s6639 + $0x18] sm:$0xf]
      %v6986 = vld [vmem:[%s6639 + $0x20] sm:$0xf]
      %v6987 = vld [vmem:[%s6639 + $0x28] sm:$0xf]
      %v6988 = vld [vmem:[%s6639 + $0x30] sm:$0xf]
      %v6989 = vld [vmem:[%s6639 + $0x38] sm:$0xf]
      %v6990 = vunpack.c.l.bf16 %v6982
      %v6991 = vunpack.c.l.bf16 %v6983
      %v6992 = vunpack.c.l.bf16 %v6984
      %v6993 = vunpack.c.l.bf16 %v6985
      %v6994 = vunpack.c.l.bf16 %v6986
      %v6995 = vunpack.c.l.bf16 %v6987
      %v6996 = vunpack.c.l.bf16 %v6988
      %v6997 = vunpack.c.l.bf16 %v6989
      %v6998 = vld [vmem:[%s7 + $0x3] sm:$0x1]
      %v6999 = vlaneseq
      %v7000 = vshrl.u32 %v6999, 7
      %v7001 = vsub.s32 0, %v7000
      %v7002 = vrot.slane %v6998, %v7001
      %v7003 = vmul.f32 %v6990, %v7002
      %v7004 = vmul.f32 %v6991, %v7002
      %v7005 = vmul.f32 %v6992, %v7002
      %v7006 = vmul.f32 %v6993, %v7002
      %v7007 = vmul.f32 %v6994, %v7002
      %v7008 = vmul.f32 %v6995, %v7002
      %v7009 = vmul.f32 %v6996, %v7002
      %v7010 = vmul.f32 %v6997, %v7002
      %v7011 = vadd.f32 %v6974, %v7003
      %v7012 = vadd.f32 %v6975, %v7004
      %v7013 = vadd.f32 %v6976, %v7005
      %v7014 = vadd.f32 %v6977, %v7006
      %v7015 = vadd.f32 %v6978, %v7007
      %v7016 = vadd.f32 %v6979, %v7008
      %v7017 = vadd.f32 %v6980, %v7009
      %v7018 = vadd.f32 %v6981, %v7010
      %v7019 = vld [vmem:[%s6639 + $0x4] sm:$0x1]
      %v7020 = vld [vmem:[%s6639 + $0xc] sm:$0x1]
      %v7021 = vld [vmem:[%s6639 + $0x14] sm:$0x1]
      %v7022 = vld [vmem:[%s6639 + $0x1c] sm:$0x1]
      %v7023 = vld [vmem:[%s6639 + $0x24] sm:$0x1]
      %v7024 = vld [vmem:[%s6639 + $0x2c] sm:$0x1]
      %v7025 = vld [vmem:[%s6639 + $0x34] sm:$0x1]
      %v7026 = vld [vmem:[%s6639 + $0x3c] sm:$0x1]
      %v7028 = vshrl.u32 %v6982, 16
      %v7030 = vrot.slane %v7028, 4
      %v7031 = vshll.u32 %v6982, 16
      %v7033 = vrot.slane %v7031, 5
      %v7034 = vor.u32 %v7030, %v7033
      %v7035 = vrot.slane %v7034, 4
      %v7037 = vshll.u32 %v7019, 16
      %v7039 = vrot.slane %v7037, 5
      %v7040 = vsel %vm965, %v7035, %v7039
      %v7042 = vshrl.u32 %v6983, 16
      %v7044 = vrot.slane %v7042, 4
      %v7045 = vshll.u32 %v6983, 16
      %v7047 = vrot.slane %v7045, 5
      %v7048 = vor.u32 %v7044, %v7047
      %v7049 = vrot.slane %v7048, 4
      %v7051 = vshll.u32 %v7020, 16
      %v7053 = vrot.slane %v7051, 5
      %v7054 = vsel %vm965, %v7049, %v7053
      %v7056 = vshrl.u32 %v6984, 16
      %v7058 = vrot.slane %v7056, 4
      %v7059 = vshll.u32 %v6984, 16
      %v7061 = vrot.slane %v7059, 5
      %v7062 = vor.u32 %v7058, %v7061
      %v7063 = vrot.slane %v7062, 4
      %v7065 = vshll.u32 %v7021, 16
      %v7067 = vrot.slane %v7065, 5
      %v7068 = vsel %vm965, %v7063, %v7067
      %v7070 = vshrl.u32 %v6985, 16
      %v7072 = vrot.slane %v7070, 4
      %v7073 = vshll.u32 %v6985, 16
      %v7075 = vrot.slane %v7073, 5
      %v7076 = vor.u32 %v7072, %v7075
      %v7077 = vrot.slane %v7076, 4
      %v7079 = vshll.u32 %v7022, 16
      %v7081 = vrot.slane %v7079, 5
      %v7082 = vsel %vm965, %v7077, %v7081
      %v7084 = vshrl.u32 %v6986, 16
      %v7086 = vrot.slane %v7084, 4
      %v7087 = vshll.u32 %v6986, 16
      %v7089 = vrot.slane %v7087, 5
      %v7090 = vor.u32 %v7086, %v7089
      %v7091 = vrot.slane %v7090, 4
      %v7093 = vshll.u32 %v7023, 16
      %v7095 = vrot.slane %v7093, 5
      %v7096 = vsel %vm965, %v7091, %v7095
      %v7098 = vshrl.u32 %v6987, 16
      %v7100 = vrot.slane %v7098, 4
      %v7101 = vshll.u32 %v6987, 16
      %v7103 = vrot.slane %v7101, 5
      %v7104 = vor.u32 %v7100, %v7103
      %v7105 = vrot.slane %v7104, 4
      %v7107 = vshll.u32 %v7024, 16
      %v7109 = vrot.slane %v7107, 5
      %v7110 = vsel %vm965, %v7105, %v7109
      %v7112 = vshrl.u32 %v6988, 16
      %v7114 = vrot.slane %v7112, 4
      %v7115 = vshll.u32 %v6988, 16
      %v7117 = vrot.slane %v7115, 5
      %v7118 = vor.u32 %v7114, %v7117
      %v7119 = vrot.slane %v7118, 4
      %v7121 = vshll.u32 %v7025, 16
      %v7123 = vrot.slane %v7121, 5
      %v7124 = vsel %vm965, %v7119, %v7123
      %v7126 = vshrl.u32 %v6989, 16
      %v7128 = vrot.slane %v7126, 4
      %v7129 = vshll.u32 %v6989, 16
      %v7131 = vrot.slane %v7129, 5
      %v7132 = vor.u32 %v7128, %v7131
      %v7133 = vrot.slane %v7132, 4
      %v7135 = vshll.u32 %v7026, 16
      %v7137 = vrot.slane %v7135, 5
      %v7138 = vsel %vm965, %v7133, %v7137
      %v7147 = vunpack.c.l.bf16 %v7040
      %v7148 = vunpack.c.l.bf16 %v7054
      %v7149 = vunpack.c.l.bf16 %v7068
      %v7150 = vunpack.c.l.bf16 %v7082
      %v7151 = vunpack.c.l.bf16 %v7096
      %v7152 = vunpack.c.l.bf16 %v7110
      %v7153 = vunpack.c.l.bf16 %v7124
      %v7154 = vunpack.c.l.bf16 %v7138
      %v7155 = vld [vmem:[%s7 + $0x4] sm:$0x1]
      %v7156 = vlaneseq
      %v7157 = vshrl.u32 %v7156, 7
      %v7158 = vsub.s32 0, %v7157
      %v7159 = vrot.slane %v7155, %v7158
      %v7160 = vmul.f32 %v7147, %v7159
      %v7161 = vmul.f32 %v7148, %v7159
      %v7162 = vmul.f32 %v7149, %v7159
      %v7163 = vmul.f32 %v7150, %v7159
      %v7164 = vmul.f32 %v7151, %v7159
      %v7165 = vmul.f32 %v7152, %v7159
      %v7166 = vmul.f32 %v7153, %v7159
      %v7167 = vmul.f32 %v7154, %v7159
      %v7168 = vadd.f32 %v7011, %v7160
      %v7169 = vadd.f32 %v7012, %v7161
      %v7170 = vadd.f32 %v7013, %v7162
      %v7171 = vadd.f32 %v7014, %v7163
      %v7172 = vadd.f32 %v7015, %v7164
      %v7173 = vadd.f32 %v7016, %v7165
      %v7174 = vadd.f32 %v7017, %v7166
      %v7175 = vadd.f32 %v7018, %v7167
      %v7176 = vld [vmem:[%s6639] sm:$0xe]
      %v7177 = vld [vmem:[%s6639 + $0x8] sm:$0xe]
      %v7178 = vld [vmem:[%s6639 + $0x10] sm:$0xe]
      %v7179 = vld [vmem:[%s6639 + $0x18] sm:$0xe]
      %v7180 = vld [vmem:[%s6639 + $0x20] sm:$0xe]
      %v7181 = vld [vmem:[%s6639 + $0x28] sm:$0xe]
      %v7182 = vld [vmem:[%s6639 + $0x30] sm:$0xe]
      %v7183 = vld [vmem:[%s6639 + $0x38] sm:$0xe]
      %v7200 = vrot.slane %v7176, 5
      %v7201 = vrot.slane %v7200, 4
      %v7202 = vrot.slane %v7019, 5
      %v7203 = vsel %vm6912, %v7201, %v7202
      %v7204 = vrot.slane %v7177, 5
      %v7205 = vrot.slane %v7204, 4
      %v7206 = vrot.slane %v7020, 5
      %v7207 = vsel %vm6912, %v7205, %v7206
      %v7208 = vrot.slane %v7178, 5
      %v7209 = vrot.slane %v7208, 4
      %v7210 = vrot.slane %v7021, 5
      %v7211 = vsel %vm6912, %v7209, %v7210
      %v7212 = vrot.slane %v7179, 5
      %v7213 = vrot.slane %v7212, 4
      %v7214 = vrot.slane %v7022, 5
      %v7215 = vsel %vm6912, %v7213, %v7214
      %v7216 = vrot.slane %v7180, 5
      %v7217 = vrot.slane %v7216, 4
      %v7218 = vrot.slane %v7023, 5
      %v7219 = vsel %vm6912, %v7217, %v7218
      %v7220 = vrot.slane %v7181, 5
      %v7221 = vrot.slane %v7220, 4
      %v7222 = vrot.slane %v7024, 5
      %v7223 = vsel %vm6912, %v7221, %v7222
      %v7224 = vrot.slane %v7182, 5
      %v7225 = vrot.slane %v7224, 4
      %v7226 = vrot.slane %v7025, 5
      %v7227 = vsel %vm6912, %v7225, %v7226
      %v7228 = vrot.slane %v7183, 5
      %v7229 = vrot.slane %v7228, 4
      %v7230 = vrot.slane %v7026, 5
      %v7231 = vsel %vm6912, %v7229, %v7230
      %v7240 = vunpack.c.l.bf16 %v7203
      %v7241 = vunpack.c.l.bf16 %v7207
      %v7242 = vunpack.c.l.bf16 %v7211
      %v7243 = vunpack.c.l.bf16 %v7215
      %v7244 = vunpack.c.l.bf16 %v7219
      %v7245 = vunpack.c.l.bf16 %v7223
      %v7246 = vunpack.c.l.bf16 %v7227
      %v7247 = vunpack.c.l.bf16 %v7231
      %v7248 = vld [vmem:[%s7 + $0x5] sm:$0x1]
      %v7249 = vlaneseq
      %v7250 = vshrl.u32 %v7249, 7
      %v7251 = vsub.s32 0, %v7250
      %v7252 = vrot.slane %v7248, %v7251
      %v7253 = vmul.f32 %v7240, %v7252
      %v7254 = vmul.f32 %v7241, %v7252
      %v7255 = vmul.f32 %v7242, %v7252
      %v7256 = vmul.f32 %v7243, %v7252
      %v7257 = vmul.f32 %v7244, %v7252
      %v7258 = vmul.f32 %v7245, %v7252
      %v7259 = vmul.f32 %v7246, %v7252
      %v7260 = vmul.f32 %v7247, %v7252
      %v7261 = vadd.f32 %v7168, %v7253
      %v7262 = vadd.f32 %v7169, %v7254
      %v7263 = vadd.f32 %v7170, %v7255
      %v7264 = vadd.f32 %v7171, %v7256
      %v7265 = vadd.f32 %v7172, %v7257
      %v7266 = vadd.f32 %v7173, %v7258
      %v7267 = vadd.f32 %v7174, %v7259
      %v7268 = vadd.f32 %v7175, %v7260
      %s7269 = scalar_lea.vmem [#allocation4], 16
      %v7270 = vld [vmem:[%s7269] sm:$0xf]
      %v7271 = vld [vmem:[%s7269 + $0x8] sm:$0xf]
      %v7272 = vld [vmem:[%s7269 + $0x10] sm:$0xf]
      %v7273 = vld [vmem:[%s7269 + $0x18] sm:$0xf]
      %v7274 = vld [vmem:[%s7269 + $0x20] sm:$0xf]
      %v7275 = vld [vmem:[%s7269 + $0x28] sm:$0xf]
      %v7276 = vld [vmem:[%s7269 + $0x30] sm:$0xf]
      %v7277 = vld [vmem:[%s7269 + $0x38] sm:$0xf]
      %v7278 = vunpack.c.l.bf16 %v7270
      %v7279 = vunpack.c.l.bf16 %v7271
      %v7280 = vunpack.c.l.bf16 %v7272
      %v7281 = vunpack.c.l.bf16 %v7273
      %v7282 = vunpack.c.l.bf16 %v7274
      %v7283 = vunpack.c.l.bf16 %v7275
      %v7284 = vunpack.c.l.bf16 %v7276
      %v7285 = vunpack.c.l.bf16 %v7277
      %v7286 = vld [vmem:[%s7 + $0x6] sm:$0x1]
      %v7287 = vlaneseq
      %v7288 = vshrl.u32 %v7287, 7
      %v7289 = vsub.s32 0, %v7288
      %v7290 = vrot.slane %v7286, %v7289
      %v7291 = vmul.f32 %v7278, %v7290
      %v7292 = vmul.f32 %v7279, %v7290
      %v7293 = vmul.f32 %v7280, %v7290
      %v7294 = vmul.f32 %v7281, %v7290
      %v7295 = vmul.f32 %v7282, %v7290
      %v7296 = vmul.f32 %v7283, %v7290
      %v7297 = vmul.f32 %v7284, %v7290
      %v7298 = vmul.f32 %v7285, %v7290
      %v7299 = vadd.f32 %v7261, %v7291
      %v7300 = vadd.f32 %v7262, %v7292
      %v7301 = vadd.f32 %v7263, %v7293
      %v7302 = vadd.f32 %v7264, %v7294
      %v7303 = vadd.f32 %v7265, %v7295
      %v7304 = vadd.f32 %v7266, %v7296
      %v7305 = vadd.f32 %v7267, %v7297
      %v7306 = vadd.f32 %v7268, %v7298
      %v7307 = vld [vmem:[%s7269 + $0x4] sm:$0x1]
      %v7308 = vld [vmem:[%s7269 + $0xc] sm:$0x1]
      %v7309 = vld [vmem:[%s7269 + $0x14] sm:$0x1]
      %v7310 = vld [vmem:[%s7269 + $0x1c] sm:$0x1]
      %v7311 = vld [vmem:[%s7269 + $0x24] sm:$0x1]
      %v7312 = vld [vmem:[%s7269 + $0x2c] sm:$0x1]
      %v7313 = vld [vmem:[%s7269 + $0x34] sm:$0x1]
      %v7314 = vld [vmem:[%s7269 + $0x3c] sm:$0x1]
      %v7316 = vshrl.u32 %v7270, 16
      %v7318 = vrot.slane %v7316, 4
      %v7319 = vshll.u32 %v7270, 16
      %v7321 = vrot.slane %v7319, 5
      %v7322 = vor.u32 %v7318, %v7321
      %v7323 = vrot.slane %v7322, 4
      %v7325 = vshll.u32 %v7307, 16
      %v7327 = vrot.slane %v7325, 5
      %v7328 = vsel %vm965, %v7323, %v7327
      %v7330 = vshrl.u32 %v7271, 16
      %v7332 = vrot.slane %v7330, 4
      %v7333 = vshll.u32 %v7271, 16
      %v7335 = vrot.slane %v7333, 5
      %v7336 = vor.u32 %v7332, %v7335
      %v7337 = vrot.slane %v7336, 4
      %v7339 = vshll.u32 %v7308, 16
      %v7341 = vrot.slane %v7339, 5
      %v7342 = vsel %vm965, %v7337, %v7341
      %v7344 = vshrl.u32 %v7272, 16
      %v7346 = vrot.slane %v7344, 4
      %v7347 = vshll.u32 %v7272, 16
      %v7349 = vrot.slane %v7347, 5
      %v7350 = vor.u32 %v7346, %v7349
      %v7351 = vrot.slane %v7350, 4
      %v7353 = vshll.u32 %v7309, 16
      %v7355 = vrot.slane %v7353, 5
      %v7356 = vsel %vm965, %v7351, %v7355
      %v7358 = vshrl.u32 %v7273, 16
      %v7360 = vrot.slane %v7358, 4
      %v7361 = vshll.u32 %v7273, 16
      %v7363 = vrot.slane %v7361, 5
      %v7364 = vor.u32 %v7360, %v7363
      %v7365 = vrot.slane %v7364, 4
      %v7367 = vshll.u32 %v7310, 16
      %v7369 = vrot.slane %v7367, 5
      %v7370 = vsel %vm965, %v7365, %v7369
      %v7372 = vshrl.u32 %v7274, 16
      %v7374 = vrot.slane %v7372, 4
      %v7375 = vshll.u32 %v7274, 16
      %v7377 = vrot.slane %v7375, 5
      %v7378 = vor.u32 %v7374, %v7377
      %v7379 = vrot.slane %v7378, 4
      %v7381 = vshll.u32 %v7311, 16
      %v7383 = vrot.slane %v7381, 5
      %v7384 = vsel %vm965, %v7379, %v7383
      %v7386 = vshrl.u32 %v7275, 16
      %v7388 = vrot.slane %v7386, 4
      %v7389 = vshll.u32 %v7275, 16
      %v7391 = vrot.slane %v7389, 5
      %v7392 = vor.u32 %v7388, %v7391
      %v7393 = vrot.slane %v7392, 4
      %v7395 = vshll.u32 %v7312, 16
      %v7397 = vrot.slane %v7395, 5
      %v7398 = vsel %vm965, %v7393, %v7397
      %v7400 = vshrl.u32 %v7276, 16
      %v7402 = vrot.slane %v7400, 4
      %v7403 = vshll.u32 %v7276, 16
      %v7405 = vrot.slane %v7403, 5
      %v7406 = vor.u32 %v7402, %v7405
      %v7407 = vrot.slane %v7406, 4
      %v7409 = vshll.u32 %v7313, 16
      %v7411 = vrot.slane %v7409, 5
      %v7412 = vsel %vm965, %v7407, %v7411
      %v7414 = vshrl.u32 %v7277, 16
      %v7416 = vrot.slane %v7414, 4
      %v7417 = vshll.u32 %v7277, 16
      %v7419 = vrot.slane %v7417, 5
      %v7420 = vor.u32 %v7416, %v7419
      %v7421 = vrot.slane %v7420, 4
      %v7423 = vshll.u32 %v7314, 16
      %v7425 = vrot.slane %v7423, 5
      %v7426 = vsel %vm965, %v7421, %v7425
      %v7435 = vunpack.c.l.bf16 %v7328
      %v7436 = vunpack.c.l.bf16 %v7342
      %v7437 = vunpack.c.l.bf16 %v7356
      %v7438 = vunpack.c.l.bf16 %v7370
      %v7439 = vunpack.c.l.bf16 %v7384
      %v7440 = vunpack.c.l.bf16 %v7398
      %v7441 = vunpack.c.l.bf16 %v7412
      %v7442 = vunpack.c.l.bf16 %v7426
      %v7443 = vld [vmem:[%s7 + $0x7] sm:$0x1]
      %v7444 = vlaneseq
      %v7445 = vshrl.u32 %v7444, 7
      %v7446 = vsub.s32 0, %v7445
      %v7447 = vrot.slane %v7443, %v7446
      %v7448 = vmul.f32 %v7435, %v7447
      %v7449 = vmul.f32 %v7436, %v7447
      %v7450 = vmul.f32 %v7437, %v7447
      %v7451 = vmul.f32 %v7438, %v7447
      %v7452 = vmul.f32 %v7439, %v7447
      %v7453 = vmul.f32 %v7440, %v7447
      %v7454 = vmul.f32 %v7441, %v7447
      %v7455 = vmul.f32 %v7442, %v7447
      %v7456 = vadd.f32 %v7299, %v7448
      %v7457 = vadd.f32 %v7300, %v7449
      %v7458 = vadd.f32 %v7301, %v7450
      %v7459 = vadd.f32 %v7302, %v7451
      %v7460 = vadd.f32 %v7303, %v7452
      %v7461 = vadd.f32 %v7304, %v7453
      %v7462 = vadd.f32 %v7305, %v7454
      %v7463 = vadd.f32 %v7306, %v7455
      %v7464 = vld [vmem:[%s7269] sm:$0xe]
      %v7465 = vld [vmem:[%s7269 + $0x8] sm:$0xe]
      %v7466 = vld [vmem:[%s7269 + $0x10] sm:$0xe]
      %v7467 = vld [vmem:[%s7269 + $0x18] sm:$0xe]
      %v7468 = vld [vmem:[%s7269 + $0x20] sm:$0xe]
      %v7469 = vld [vmem:[%s7269 + $0x28] sm:$0xe]
      %v7470 = vld [vmem:[%s7269 + $0x30] sm:$0xe]
      %v7471 = vld [vmem:[%s7269 + $0x38] sm:$0xe]
      %v7488 = vrot.slane %v7464, 5
      %v7489 = vrot.slane %v7488, 4
      %v7490 = vrot.slane %v7307, 5
      %v7491 = vsel %vm6912, %v7489, %v7490
      %v7492 = vrot.slane %v7465, 5
      %v7493 = vrot.slane %v7492, 4
      %v7494 = vrot.slane %v7308, 5
      %v7495 = vsel %vm6912, %v7493, %v7494
      %v7496 = vrot.slane %v7466, 5
      %v7497 = vrot.slane %v7496, 4
      %v7498 = vrot.slane %v7309, 5
      %v7499 = vsel %vm6912, %v7497, %v7498
      %v7500 = vrot.slane %v7467, 5
      %v7501 = vrot.slane %v7500, 4
      %v7502 = vrot.slane %v7310, 5
      %v7503 = vsel %vm6912, %v7501, %v7502
      %v7504 = vrot.slane %v7468, 5
      %v7505 = vrot.slane %v7504, 4
      %v7506 = vrot.slane %v7311, 5
      %v7507 = vsel %vm6912, %v7505, %v7506
      %v7508 = vrot.slane %v7469, 5
      %v7509 = vrot.slane %v7508, 4
      %v7510 = vrot.slane %v7312, 5
      %v7511 = vsel %vm6912, %v7509, %v7510
      %v7512 = vrot.slane %v7470, 5
      %v7513 = vrot.slane %v7512, 4
      %v7514 = vrot.slane %v7313, 5
      %v7515 = vsel %vm6912, %v7513, %v7514
      %v7516 = vrot.slane %v7471, 5
      %v7517 = vrot.slane %v7516, 4
      %v7518 = vrot.slane %v7314, 5
      %v7519 = vsel %vm6912, %v7517, %v7518
      %v7528 = vunpack.c.l.bf16 %v7491
      %v7529 = vunpack.c.l.bf16 %v7495
      %v7530 = vunpack.c.l.bf16 %v7499
      %v7531 = vunpack.c.l.bf16 %v7503
      %v7532 = vunpack.c.l.bf16 %v7507
      %v7533 = vunpack.c.l.bf16 %v7511
      %v7534 = vunpack.c.l.bf16 %v7515
      %v7535 = vunpack.c.l.bf16 %v7519
      %v7536 = vld [vmem:[%s7 + $0x8] sm:$0x1]
      %v7537 = vlaneseq
      %v7538 = vshrl.u32 %v7537, 7
      %v7539 = vsub.s32 0, %v7538
      %v7540 = vrot.slane %v7536, %v7539
      %v7541 = vmul.f32 %v7528, %v7540
      %v7542 = vmul.f32 %v7529, %v7540
      %v7543 = vmul.f32 %v7530, %v7540
      %v7544 = vmul.f32 %v7531, %v7540
      %v7545 = vmul.f32 %v7532, %v7540
      %v7546 = vmul.f32 %v7533, %v7540
      %v7547 = vmul.f32 %v7534, %v7540
      %v7548 = vmul.f32 %v7535, %v7540
      %v7549 = vadd.f32 %v7456, %v7541
      %v7550 = vadd.f32 %v7457, %v7542
      %v7551 = vadd.f32 %v7458, %v7543
      %v7552 = vadd.f32 %v7459, %v7544
      %v7553 = vadd.f32 %v7460, %v7545
      %v7554 = vadd.f32 %v7461, %v7546
      %v7555 = vadd.f32 %v7462, %v7547
      %v7556 = vadd.f32 %v7463, %v7548
      %v7557 = vld [vmem:[%s8] sm:$0x1]
      %v7559 = vlaneseq
      %v7560 = vshrl.u32 %v7559, 7
      %v7561 = vsub.s32 0, %v7560
      %v7562 = vrot.slane %v7557, %v7561
      %v7564 = vadd.f32 %v7549, %v7562
      %v7565 = vadd.f32 %v7550, %v7562
      %v7566 = vadd.f32 %v7551, %v7562
      %v7567 = vadd.f32 %v7552, %v7562
      %v7568 = vadd.f32 %v7553, %v7562
      %v7569 = vadd.f32 %v7554, %v7562
      %v7570 = vadd.f32 %v7555, %v7562
      %v7571 = vadd.f32 %v7556, %v7562
      %v7572 = vmax.f32 %v7564, 0.0
      %v7573 = vmax.f32 %v7565, 0.0
      %v7574 = vmax.f32 %v7566, 0.0
      %v7575 = vmax.f32 %v7567, 0.0
      %v7576 = vmax.f32 %v7568, 0.0
      %v7577 = vmax.f32 %v7569, 0.0
      %v7578 = vmax.f32 %v7570, 0.0
      %v7579 = vmax.f32 %v7571, 0.0
      %v7580 = vpack.c.bf16 %v7573, %v7572
      %v7581 = vpack.c.bf16 %v7575, %v7574
      %v7582 = vpack.c.bf16 %v7577, %v7576
      %v7583 = vpack.c.bf16 %v7579, %v7578
      %v7584 = vld [vmem:[%s9] sm:$0xf]
      %v7585 = vld [vmem:[%s9 + $0x4] sm:$0xf]
      %v7586 = vld [vmem:[%s9 + $0x8] sm:$0xf]
      %v7587 = vld [vmem:[%s10] sm:$0x1]
      %v7589 = vlaneseq
      %v7590 = vshrl.u32 %v7589, 7
      %v7591 = vsub.s32 0, %v7590
      %v7592 = vrot.slane %v7587, %v7591
      %v7597 = vunpack.c.l.b16 %v7584
      %v7598 = vunpack.c.l.b16 %v7585
      %v7599 = vunpack.c.l.b16 %v7586
      %v7600 = vpack.c.b16 %v7598, %v7597
      %v7601 = vpack.c.b16 %v7599, %v7599
      %vm7603 = vcmask 195584
      %v7605 = vsel %vm7603, %v7580, 0
      %v7608 = vsel %vm7603, %v7581, 0
      %v7611 = vsel %vm7603, %v7582, 0
      %v7614 = vsel %vm7603, %v7583, 0
      %vm7616 = vcmask 1043456
      %v7618 = vsel %vm7616, %v7601, 0
      %7620 = vmatprep.subr.bf16.mxu0 0
      %7621 = vmatpush1.bf16.msra.mxu0 0
      %7622 = vmatprep.subr.bf16.mxu0 0
      %7623 = vmatpush1.bf16.msra.mxu0 0
      %7624 = vmatprep.subr.bf16.mxu0 0
      %7625 = vmatpush1.bf16.msra.mxu0 0
      %7626 = vmatprep.subr.bf16.mxu0 0
      %7627 = vmatpush1.bf16.msra.mxu0 0
      %7628 = vmatprep.subr.bf16.mxu0 0
      %7629 = vmatpush1.bf16.msra.mxu0 0
      %7630 = vmatprep.subr.bf16.mxu0 0
      %7631 = vmatpush1.bf16.msra.mxu0 0
      %7632 = vmatprep.subr.bf16.mxu0 0
      %7633 = vmatpush1.bf16.msra.mxu0 %v7618
      %7634 = vmatprep.subr.bf16.mxu0 0
      %7635 = vmatpush1.bf16.msra.mxu0 %v7600
      %7636 = vmatprep.subr.bf16.mxu0 0
      %7637 = vmatpush2.bf16.msra.mxu0 0
      %7638 = vmatprep.subr.bf16.mxu0 0
      %7639 = vmatpush2.bf16.msra.mxu0 0
      %7640 = vmatprep.subr.bf16.mxu0 0
      %7641 = vmatpush2.bf16.msra.mxu0 0
      %7642 = vmatprep.subr.bf16.mxu0 0
      %7643 = vmatpush2.bf16.msra.mxu0 0
      %7644 = vmatprep.subr.bf16.mxu0 0
      %7645 = vmatpush2.bf16.msra.mxu0 0
      %7646 = vmatprep.subr.bf16.mxu0 0
      %7647 = vmatpush2.bf16.msra.mxu0 0
      %7648 = vmatprep.subr.bf16.mxu0 0
      %7649 = vmatpush2.bf16.msra.mxu0 0
      %7650 = vmatprep.subr.bf16.mxu0 0
      %7651 = vmatpush2.bf16.msra.mxu0 0
      %7652 = vmatprep.mubr.bf16.mxu0 0
      %7653 = vmatmul.mubr.bf16.gmra.mxu0 %v7605
      %v7654 = vpop.f32.mrf.mxu0
      %v7655 = vadd.f32 %v7592, %v7654
      %v7656 = vpop.f32.mrf.mxu0
      %v7657 = vpop.f32.mrf.mxu0
      %v7658 = vadd.f32 %v7592, %v7657
      %v7659 = vpop.f32.mrf.mxu0
      %7660 = vmatprep.mubr.bf16.mxu0 0
      %7661 = vmatmul.mubr.bf16.gmra.mxu0 %v7608
      %v7662 = vpop.f32.mrf.mxu0
      %v7663 = vadd.f32 %v7592, %v7662
      %v7664 = vpop.f32.mrf.mxu0
      %v7665 = vpop.f32.mrf.mxu0
      %v7666 = vadd.f32 %v7592, %v7665
      %v7667 = vpop.f32.mrf.mxu0
      %7668 = vmatprep.mubr.bf16.mxu0 0
      %7669 = vmatmul.mubr.bf16.gmra.mxu0 %v7611
      %v7670 = vpop.f32.mrf.mxu0
      %v7671 = vadd.f32 %v7592, %v7670
      %v7672 = vpop.f32.mrf.mxu0
      %v7673 = vpop.f32.mrf.mxu0
      %v7674 = vadd.f32 %v7592, %v7673
      %v7675 = vpop.f32.mrf.mxu0
      %7676 = vmatprep.mubr.bf16.mxu0 0
      %7677 = vmatmul.mubr.bf16.gmra.mxu0 %v7614
      %v7678 = vpop.f32.mrf.mxu0
      %v7679 = vadd.f32 %v7592, %v7678
      %v7680 = vpop.f32.mrf.mxu0
      %v7681 = vpop.f32.mrf.mxu0
      %v7682 = vadd.f32 %v7592, %v7681
      %v7683 = vpop.f32.mrf.mxu0
      %7684 = vdwg.mxu0
      %v7685 = vadd.f32 %v7655, %v1838
      %v7686 = vadd.f32 %v7658, %v1841
      %v7687 = vadd.f32 %v7663, %v1846
      %v7688 = vadd.f32 %v7666, %v1849
      %v7689 = vadd.f32 %v7671, %v1854
      %v7690 = vadd.f32 %v7674, %v1857
      %v7691 = vadd.f32 %v7679, %v1862
      %v7692 = vadd.f32 %v7682, %v1865
      %v7693 = vmax.f32 %v7685, 0.0
      %v7694 = vmax.f32 %v7686, 0.0
      %v7695 = vmax.f32 %v7687, 0.0
      %v7696 = vmax.f32 %v7688, 0.0
      %v7697 = vmax.f32 %v7689, 0.0
      %v7698 = vmax.f32 %v7690, 0.0
      %v7699 = vmax.f32 %v7691, 0.0
      %v7700 = vmax.f32 %v7692, 0.0
      %vm7701 = vcmask 64512
      %7702 = vst.msk [vmem:[%s391] sm:$0xff] %vm7701, %v7693
      %7703 = vst.msk [vmem:[%s391 + $0x8] sm:$0xff] %vm7701, %v7694
      %7704 = vst.msk [vmem:[%s391 + $0x10] sm:$0xff] %vm7701, %v7695
      %7705 = vst.msk [vmem:[%s391 + $0x18] sm:$0xff] %vm7701, %v7696
      %7706 = vst.msk [vmem:[%s391 + $0x20] sm:$0xff] %vm7701, %v7697
      %7707 = vst.msk [vmem:[%s391 + $0x28] sm:$0xff] %vm7701, %v7698
      %7708 = vst.msk [vmem:[%s391 + $0x30] sm:$0xff] %vm7701, %v7699
      %7709 = vst.msk [vmem:[%s391 + $0x38] sm:$0xff] %vm7701, %v7700
      %p7710 = scmp.lt.s32.totalorder %s22, 1
      %s7711 = scalar_select %p7710, %s22, 1
      %s7712 = smul.addr %s7711, 8
      %s7713 = smul.addr %s7712, 8
      %s7714 = scalar_lea.vmem %s11, %s7713
      // Predicated region
      $region65: #{_lambda_.1} parent=63 // pred_check
        %p7715 = pneg %p276
      $region66: #{_lambda_.1} parent=63 // pred_check_branch
        %7717 = sbr.rel (%p7715) target = $region68
      $region67: #{_lambda_.1} parent=63 // pred_region
        _
      $region68: #{_lambda_.1} parent=63 // pred_fallthru
        _
    $region64: #{_lambda_.1} parent=5 // pred_fallthru
      _
    %p7718 = scmp.le.s32.totalorder 2, %s17
    // Predicated region
    $region69: #{_lambda_.1} parent=5 // pred_check
      %p7719 = pneg %p7718
    $region70: #{_lambda_.1} parent=5 // pred_check_branch
      %7721 = sbr.rel (%p7719) target = $region72
    $region71: #{_lambda_.1} parent=5 // pred_region
      %s7722 = ssub.s32 %s17, 2
      // Predicated region
      $region73: #{_lambda_.1} parent=71 // pred_check
        %p7723 = pneg %p282
      $region74: #{_lambda_.1} parent=71 // pred_check_branch
        %7725 = sbr.rel (%p7723) target = $region76
      $region75: #{_lambda_.1} parent=71 // pred_region
        %p7726 = scmp.lt.s32.totalorder %s23, 1
        %s7727 = scalar_select %p7726, %s23, 1
        %s7728 = smul.addr %s7727, 8
        %s7729 = smul.addr %s7728, 8
        %s7730 = scalar_lea.vmem %s11, %s7729
      $region76: #{_lambda_.1} parent=71 // pred_fallthru
        _
    $region72: #{_lambda_.1} parent=5 // pred_fallthru
      _
  $region6: #{_lambda_.1} parent=0 // loop_footer
    %s21 = sadd.s32 1, %s17
  $region7: #{_lambda_.1} parent=0 // loop_footer_branch
    %16 = sbr.rel target = $region3
  $region8: #{_lambda_.1} parent=0 // loop_exit
    _

</llo_original>
